<compile_context>
chip_gen: v5e
topology: v5e:2x2
jax: 0.10.0
libtpu: 0.0.40
codegen_flags: <defaults>
</compile_context>

<pallas_src>
import jax
import jax.numpy as jnp
from jax.experimental import pallas as pl
from jax.experimental.pallas import tpu as pltpu

F32 = jnp.float32
BF16 = jnp.bfloat16


def _tree_sum(parts):
    """Sum a list of arrays with a balanced tree (breaks serial add chains)."""
    parts = list(parts)
    while len(parts) > 1:
        nxt = [parts[i] + parts[i + 1] for i in range(0, len(parts) - 1, 2)]
        if len(parts) % 2:
            nxt.append(parts[-1])
        parts = nxt
    return parts[0]


# ----------------------------------------------------------------------------
# Fused forward kernel: conv1 -> conv2 -> conv3 -> dense -> out, all in VMEM.
# ----------------------------------------------------------------------------
def _fused_forward_kernel(
    xs_ref,                      # (225, 64)    bf16  space-to-depth input rows
    s1_ref, w1_ref,              # (4,196,225)  (4,64,32)    bf16
    s2_ref, w2_ref,              # (16,36,196)  (16,32,64)   bf16
    s3_ref, w3_ref,              # (9,16,36)    (9,64,64)    bf16
    b_ref,                       # (1, 1024)    f32  packed biases
    wo_ref,                      # (512, 18)    bf16
    wd_hbm_ref,                  # (16,64,512)  bf16  raw HBM ref (pl.ANY)
    o_ref,                       # (1, 18)      f32   final output
    wd_vmem,                     # VMEM scratch (16,64,512) bf16
    wd_sem,                      # DMA semaphore
    a3_ref,                      # VMEM scratch (16, 64) bf16
):
    # Kick off the ~1 MB dense-weight DMA now; it overlaps conv1-3 compute and
    # is only waited on right before the dense layer.
    wd_copy = pltpu.make_async_copy(wd_hbm_ref, wd_vmem, wd_sem)
    wd_copy.start()

    xs = xs_ref[...]                                                  # (225,64) bf16

    # conv1 (8x8/s4 folded to a 2x2/s1 conv over the space-to-depth input),
    # reordered: weight matmul first, then the 0/1 row-gather matmul.
    parts = []
    for t in range(4):
        y_t = jnp.dot(xs, w1_ref[t], preferred_element_type=F32)      # (225,32)
        parts.append(jnp.dot(s1_ref[t], y_t.astype(BF16),
                             preferred_element_type=F32))             # (196,32)
    a1 = jnp.maximum(_tree_sum(parts) + b_ref[:, 0:32], 0.0).astype(BF16)

    # conv2: 4x4 stride 2 -> 6x6x64
    parts = []
    for t in range(16):
        cols = jnp.dot(s2_ref[t], a1, preferred_element_type=F32)     # (36,32)
        parts.append(jnp.dot(cols.astype(BF16), w2_ref[t],
                             preferred_element_type=F32))             # (36,64)
    a2 = jnp.maximum(_tree_sum(parts) + b_ref[:, 128:192], 0.0).astype(BF16)

    # conv3: 3x3 stride 1 -> 4x4x64, kept in VMEM scratch (row p = h*4 + w)
    parts = []
    for t in range(9):
        cols = jnp.dot(s3_ref[t], a2, preferred_element_type=F32)     # (16,64)
        parts.append(jnp.dot(cols.astype(BF16), w3_ref[t],
                             preferred_element_type=F32))             # (16,64)
    a3_ref[...] = jnp.maximum(_tree_sum(parts) + b_ref[:, 256:320],
                              0.0).astype(BF16)

    # Dense weights must be resident before the dense stage.
    wd_copy.wait()

    # dense 1024 -> 512 (+ReLU).  torch's channel-major .view(1,-1) reorder is
    # folded into wd (shape (16, 64, 512), one 64x512 block per spatial row p).
    parts = []
    for p in range(16):
        parts.append(jnp.dot(a3_ref[pl.ds(p, 1), :], wd_vmem[p],
                             preferred_element_type=F32))             # (1,512)
    h = jnp.maximum(_tree_sum(parts) + b_ref[:, 384:896], 0.0).astype(BF16)

    # out 512 -> 18 (no activation)
    o_ref[...] = (jnp.dot(h, wo_ref[...], preferred_element_type=F32)
                  + b_ref[:, 896:914])


# ----------------------------------------------------------------------------
# One-time layout prep: per-tap weights, selection matrices, packed biases.
# ----------------------------------------------------------------------------
def _one_hot_rows(src_idx, n_src):
    """(M,) int source-row indices -> (M, n_src) 0/1 float32 selection matrix."""
    return (src_idx[:, None] == jnp.arange(n_src)[None, :]).astype(F32)


def _conv_selectors(out_hw, in_hw, k, stride):
    """Per-tap row-selection matrices gathering flattened (h*in_hw + w) rows."""
    oh, ow = jnp.meshgrid(jnp.arange(out_hw), jnp.arange(out_hw), indexing="ij")
    n_src = in_hw * in_hw
    mats = []
    for ki in range(k):
        for kj in range(k):
            idx = ((stride * oh + ki) * in_hw + (stride * ow + kj)).reshape(-1)
            mats.append(_one_hot_rows(idx, n_src))
    return jnp.stack(mats)                 # (k*k, out_hw^2, in_hw^2)


def prepare_params(params):
    """Pre-lay-out all weights once (outside the per-call path), in bf16."""
    # conv1: fold the 4x4 space-to-depth into the weight -> 2x2 taps over 64 ch.
    # (32,4,8,8)[o,c,ki,kj] with ki=4a+p, kj=4b+q -> (4,64,32)[a*2+b, p*16+q*4+c, o]
    w1 = params["conv1_w"].astype(F32).reshape(32, 4, 2, 4, 2, 4)
    w1 = w1.transpose(2, 4, 3, 5, 1, 0).reshape(4, 64, 32)

    # conv2/conv3: per-tap (C_in, C_out) matrices, tap index t = ki*K + kj.
    w2 = params["conv2_w"].astype(F32).transpose(2, 3, 1, 0).reshape(16, 32, 64)
    w3 = params["conv3_w"].astype(F32).transpose(2, 3, 1, 0).reshape(9, 64, 64)

    # dense: transpose to (K, N) and fold the torch NCHW flatten (f = c*16 + p)
    # into per-spatial-row blocks: (16, 64, 512) indexed [p, c, n].
    wd = params["dense_w"].astype(F32).T.reshape(64, 16, 512).transpose(1, 0, 2)
    wo = params["out_w"].astype(F32).T                                   # (512,18)

    # Pack all biases into one (1, 1024) f32 buffer at 128-aligned offsets.
    biases = jnp.zeros((1, 1024), F32)
    biases = biases.at[0, 0:32].set(params["conv1_b"].astype(F32))
    biases = biases.at[0, 128:192].set(params["conv2_b"].astype(F32))
    biases = biases.at[0, 256:320].set(params["conv3_b"].astype(F32))
    biases = biases.at[0, 384:896].set(params["dense_b"].astype(F32))
    biases = biases.at[0, 896:914].set(params["out_b"].astype(F32))

    return {
        # selectors are exact 0/1 -> lossless in bf16, half the DMA bytes
        "s1": _conv_selectors(14, 15, 2, 1).astype(BF16),    # (4, 196, 225)
        "s2": _conv_selectors(6, 14, 4, 2).astype(BF16),     # (16, 36, 196)
        "s3": _conv_selectors(4, 6, 3, 1).astype(BF16),      # (9, 16, 36)
        "w1": w1.astype(BF16), "w2": w2.astype(BF16), "w3": w3.astype(BF16),
        "wd": wd.astype(BF16), "wo": wo.astype(BF16),
        "biases": biases,
    }


# ----------------------------------------------------------------------------
# Forward wrapper: tiny input relayout + a single fused pallas_call.
# ----------------------------------------------------------------------------
def _space_to_depth_rows(x):
    """(1, 4, 60, 60) NCHW -> (225, 64): row = h4*15 + w4, col = p*16 + q*4 + c."""
    x0 = x[0].reshape(4, 15, 4, 15, 4)          # [c, h4, p, w4, q]
    return x0.transpose(1, 3, 2, 4, 0).reshape(225, 64)


def _full_block(shape):
    nd = len(shape)
    return pl.BlockSpec(shape, lambda *_: (0,) * nd)


_DOT_SHAPES = ([(225, 64, 32), (196, 225, 32)] * 4
               + [(36, 196, 32), (36, 32, 64)] * 16
               + [(16, 36, 64), (16, 64, 64)] * 9
               + [(1, 64, 512)] * 16
               + [(1, 512, 18)])
_FLOPS = int(sum(2 * m * k * n for m, k, n in _DOT_SHAPES))


@jax.jit
def forward(prepped, x):
    # TODO(synk): this 57 KB space-to-depth relayout stays as one small fused
    # XLA op; folding the 5-D transpose into the kernel risks Mosaic relayouts.
    xs = _space_to_depth_rows(x.astype(F32)).astype(BF16)

    vmem_args = (xs,
                 prepped["s1"], prepped["w1"],
                 prepped["s2"], prepped["w2"],
                 prepped["s3"], prepped["w3"],
                 prepped["biases"], prepped["wo"])
    wd = prepped["wd"]
    bytes_accessed = int(sum(a.size * a.dtype.itemsize for a in vmem_args)
                         + wd.size * wd.dtype.itemsize + 18 * 4)

    return pl.pallas_call(
        _fused_forward_kernel,
        out_shape=jax.ShapeDtypeStruct((1, 18), F32),
        in_specs=[_full_block(a.shape) for a in vmem_args]
        + [pl.BlockSpec(memory_space=pl.ANY)],      # wd stays in HBM; manual DMA
        out_specs=pl.BlockSpec((1, 18), lambda: (0, 0)),
        scratch_shapes=[
            pltpu.VMEM((16, 64, 512), BF16),          # dense-weight landing buffer
            pltpu.SemaphoreType.DMA(()),              # its completion semaphore
            pltpu.VMEM((16, 64), BF16),               # conv3 activation
        ],
        compiler_params=pltpu.CompilerParams(vmem_limit_bytes=32 * 1024 * 1024),
        cost_estimate=pl.CostEstimate(flops=_FLOPS, transcendentals=0,
                                      bytes_accessed=bytes_accessed),
    )(*vmem_args, wd)


# ----------------------------------------------------------------------------
# Parameters (kaiming-normal weights, zero biases — deterministic).
# TODO(synk): evolve()/compress() (torch.manual_seed-driven mutation) is RNG
# bookkeeping outside forward(); not implemented here.
# ----------------------------------------------------------------------------
def kaiming_normal(key, shape, fan_in):
    std = (2.0 / fan_in) ** 0.5
    return std * jax.random.normal(key, shape, dtype=F32)


def init_params(key):
    ks = jax.random.split(key, 5)
    return {
        "conv1_w": kaiming_normal(ks[0], (32, 4, 8, 8), 4 * 8 * 8),
        "conv1_b": jnp.zeros((32,), F32),
        "conv2_w": kaiming_normal(ks[1], (64, 32, 4, 4), 32 * 4 * 4),
        "conv2_b": jnp.zeros((64,), F32),
        "conv3_w": kaiming_normal(ks[2], (64, 64, 3, 3), 64 * 3 * 3),
        "conv3_b": jnp.zeros((64,), F32),
        "dense_w": kaiming_normal(ks[3], (512, 4 * 4 * 64), 4 * 4 * 64),
        "dense_b": jnp.zeros((512,), F32),
        "out_w": kaiming_normal(ks[4], (18, 512), 512),
        "out_b": jnp.zeros((18,), F32),
    }


# ----------------------------------------------------------------------------
# Plain-JAX reference of Model.forward (for a numerical sanity check).
# ----------------------------------------------------------------------------
def reference_forward(params, x):
    hp = jax.lax.Precision.HIGHEST
    dn = ("NCHW", "OIHW", "NCHW")
    y = jax.lax.conv_general_dilated(x, params["conv1_w"], (4, 4), "VALID",
                                     dimension_numbers=dn, precision=hp)
    y = jnp.maximum(y + params["conv1_b"].reshape(1, -1, 1, 1), 0.0)
    y = jax.lax.conv_general_dilated(y, params["conv2_w"], (2, 2), "VALID",
                                     dimension_numbers=dn, precision=hp)
    y = jnp.maximum(y + params["conv2_b"].reshape(1, -1, 1, 1), 0.0)
    y = jax.lax.conv_general_dilated(y, params["conv3_w"], (1, 1), "VALID",
                                     dimension_numbers=dn, precision=hp)
    y = jnp.maximum(y + params["conv3_b"].reshape(1, -1, 1, 1), 0.0)
    y = y.reshape(1, -1)
    y = jnp.maximum(jnp.dot(y, params["dense_w"].T, precision=hp)
                    + params["dense_b"], 0.0)
    return jnp.dot(y, params["out_w"].T, precision=hp) + params["out_b"]


if __name__ == "__main__":
    key = jax.random.PRNGKey(0)
    pkey, xkey = jax.random.split(key)
    params = init_params(pkey)
    prepped = prepare_params(params)     # one-time weight/selector layout

    # 60x60 input -> conv stack yields 4x4x64 = 1024 features (matches dense);
    # the torch `x.view(1, -1)` implies batch size 1.
    x = jax.random.normal(xkey, (1, 4, 60, 60), dtype=F32)

    y = jax.block_until_ready(forward(prepped, x))
    assert y.shape == (1, 18), y.shape

    # bf16 operands with f32 accumulation -> 5e-2 tolerance vs the f32 reference.
    y_ref = jax.block_until_ready(reference_forward(params, x))
    if not bool(jnp.allclose(y, y_ref, rtol=5e-2, atol=5e-2)):
        raise AssertionError(
            f"Pallas forward deviates from JAX reference: "
            f"max abs diff {float(jnp.max(jnp.abs(y - y_ref)))}")
    print("KERNEL_OK")
</pallas_src>

<mosaic_0001>
module attributes {stable_mosaic.version = 11 : i64} {
  func.func @_fused_forward_kernel(%arg0: memref<225x64xbf16, #tpu.memory_space<vmem>>, %arg1: memref<4x196x225xbf16, #tpu.memory_space<vmem>>, %arg2: memref<4x64x32xbf16, #tpu.memory_space<vmem>>, %arg3: memref<16x36x196xbf16, #tpu.memory_space<vmem>>, %arg4: memref<16x32x64xbf16, #tpu.memory_space<vmem>>, %arg5: memref<9x16x36xbf16, #tpu.memory_space<vmem>>, %arg6: memref<9x64x64xbf16, #tpu.memory_space<vmem>>, %arg7: memref<1x1024xf32, #tpu.memory_space<vmem>>, %arg8: memref<512x18xbf16, #tpu.memory_space<vmem>>, %arg9: memref<16x64x512xbf16, #tpu.memory_space<any>>, %arg10: memref<1x18xf32, #tpu.memory_space<vmem>>, %arg11: memref<16x64x512xbf16, #tpu.memory_space<vmem>>, %arg12: memref<!tpu.dma_semaphore, #tpu.memory_space<semaphore_mem>>, %arg13: memref<16x64xbf16, #tpu.memory_space<vmem>>) attributes {dimension_semantics = [], scalar_prefetch = 0 : i64, scratch_operands = 3 : i64, tpu.core_type = #tpu.core_type<tc>} {
    tpu.enqueue_dma source(%arg9 : memref<16x64x512xbf16, #tpu.memory_space<any>>) target(%arg11 : memref<16x64x512xbf16, #tpu.memory_space<vmem>>) target_semaphore(%arg12 : memref<!tpu.dma_semaphore, #tpu.memory_space<semaphore_mem>>)
    %c0 = arith.constant 0 : index
    %c0_0 = arith.constant 0 : index
    %0 = vector.load %arg0[%c0, %c0_0] : memref<225x64xbf16, #tpu.memory_space<vmem>>, vector<225x64xbf16>
    %c0_1 = arith.constant 0 : index
    %c0_2 = arith.constant 0 : index
    %c0_3 = arith.constant 0 : index
    %1 = vector.load %arg2[%c0_1, %c0_2, %c0_3] : memref<4x64x32xbf16, #tpu.memory_space<vmem>>, vector<1x64x32xbf16>
    %2 = vector.shape_cast %1 : vector<1x64x32xbf16> to vector<64x32xbf16>
    %cst = arith.constant dense<0.000000e+00> : vector<225x32xf32>
    %3 = tpu.matmul %0, %2, %cst {dimension_numbers = #tpu.dot_dimension_numbers<[1], [0], [0], [1], [0, 0, 1, 1], [], []>} : vector<225x64xbf16>, vector<64x32xbf16>, vector<225x32xf32> -> vector<225x32xf32>
    %c0_4 = arith.constant 0 : index
    %c0_5 = arith.constant 0 : index
    %c0_6 = arith.constant 0 : index
    %4 = vector.load %arg1[%c0_4, %c0_5, %c0_6] : memref<4x196x225xbf16, #tpu.memory_space<vmem>>, vector<1x196x225xbf16>
    %5 = vector.shape_cast %4 : vector<1x196x225xbf16> to vector<196x225xbf16>
    %6 = arith.truncf %3 : vector<225x32xf32> to vector<225x32xbf16>
    %cst_7 = arith.constant dense<0.000000e+00> : vector<196x32xf32>
    %7 = tpu.matmul %5, %6, %cst_7 {dimension_numbers = #tpu.dot_dimension_numbers<[1], [0], [0], [1], [0, 0, 1, 1], [], []>} : vector<196x225xbf16>, vector<225x32xbf16>, vector<196x32xf32> -> vector<196x32xf32>
    %c1 = arith.constant 1 : index
    %c0_8 = arith.constant 0 : index
    %c0_9 = arith.constant 0 : index
    %8 = vector.load %arg2[%c1, %c0_8, %c0_9] : memref<4x64x32xbf16, #tpu.memory_space<vmem>>, vector<1x64x32xbf16>
    %9 = vector.shape_cast %8 : vector<1x64x32xbf16> to vector<64x32xbf16>
    %cst_10 = arith.constant dense<0.000000e+00> : vector<225x32xf32>
    %10 = tpu.matmul %0, %9, %cst_10 {dimension_numbers = #tpu.dot_dimension_numbers<[1], [0], [0], [1], [0, 0, 1, 1], [], []>} : vector<225x64xbf16>, vector<64x32xbf16>, vector<225x32xf32> -> vector<225x32xf32>
    %c1_11 = arith.constant 1 : index
    %c0_12 = arith.constant 0 : index
    %c0_13 = arith.constant 0 : index
    %11 = vector.load %arg1[%c1_11, %c0_12, %c0_13] : memref<4x196x225xbf16, #tpu.memory_space<vmem>>, vector<1x196x225xbf16>
    %12 = vector.shape_cast %11 : vector<1x196x225xbf16> to vector<196x225xbf16>
    %13 = arith.truncf %10 : vector<225x32xf32> to vector<225x32xbf16>
    %cst_14 = arith.constant dense<0.000000e+00> : vector<196x32xf32>
    %14 = tpu.matmul %12, %13, %cst_14 {dimension_numbers = #tpu.dot_dimension_numbers<[1], [0], [0], [1], [0, 0, 1, 1], [], []>} : vector<196x225xbf16>, vector<225x32xbf16>, vector<196x32xf32> -> vector<196x32xf32>
    %c2 = arith.constant 2 : index
    %c0_15 = arith.constant 0 : index
    %c0_16 = arith.constant 0 : index
    %15 = vector.load %arg2[%c2, %c0_15, %c0_16] : memref<4x64x32xbf16, #tpu.memory_space<vmem>>, vector<1x64x32xbf16>
    %16 = vector.shape_cast %15 : vector<1x64x32xbf16> to vector<64x32xbf16>
    %cst_17 = arith.constant dense<0.000000e+00> : vector<225x32xf32>
    %17 = tpu.matmul %0, %16, %cst_17 {dimension_numbers = #tpu.dot_dimension_numbers<[1], [0], [0], [1], [0, 0, 1, 1], [], []>} : vector<225x64xbf16>, vector<64x32xbf16>, vector<225x32xf32> -> vector<225x32xf32>
    %c2_18 = arith.constant 2 : index
    %c0_19 = arith.constant 0 : index
    %c0_20 = arith.constant 0 : index
    %18 = vector.load %arg1[%c2_18, %c0_19, %c0_20] : memref<4x196x225xbf16, #tpu.memory_space<vmem>>, vector<1x196x225xbf16>
    %19 = vector.shape_cast %18 : vector<1x196x225xbf16> to vector<196x225xbf16>
    %20 = arith.truncf %17 : vector<225x32xf32> to vector<225x32xbf16>
    %cst_21 = arith.constant dense<0.000000e+00> : vector<196x32xf32>
    %21 = tpu.matmul %19, %20, %cst_21 {dimension_numbers = #tpu.dot_dimension_numbers<[1], [0], [0], [1], [0, 0, 1, 1], [], []>} : vector<196x225xbf16>, vector<225x32xbf16>, vector<196x32xf32> -> vector<196x32xf32>
    %c3 = arith.constant 3 : index
    %c0_22 = arith.constant 0 : index
    %c0_23 = arith.constant 0 : index
    %22 = vector.load %arg2[%c3, %c0_22, %c0_23] : memref<4x64x32xbf16, #tpu.memory_space<vmem>>, vector<1x64x32xbf16>
    %23 = vector.shape_cast %22 : vector<1x64x32xbf16> to vector<64x32xbf16>
    %cst_24 = arith.constant dense<0.000000e+00> : vector<225x32xf32>
    %24 = tpu.matmul %0, %23, %cst_24 {dimension_numbers = #tpu.dot_dimension_numbers<[1], [0], [0], [1], [0, 0, 1, 1], [], []>} : vector<225x64xbf16>, vector<64x32xbf16>, vector<225x32xf32> -> vector<225x32xf32>
    %c3_25 = arith.constant 3 : index
    %c0_26 = arith.constant 0 : index
    %c0_27 = arith.constant 0 : index
    %25 = vector.load %arg1[%c3_25, %c0_26, %c0_27] : memref<4x196x225xbf16, #tpu.memory_space<vmem>>, vector<1x196x225xbf16>
    %26 = vector.shape_cast %25 : vector<1x196x225xbf16> to vector<196x225xbf16>
    %27 = arith.truncf %24 : vector<225x32xf32> to vector<225x32xbf16>
    %cst_28 = arith.constant dense<0.000000e+00> : vector<196x32xf32>
    %28 = tpu.matmul %26, %27, %cst_28 {dimension_numbers = #tpu.dot_dimension_numbers<[1], [0], [0], [1], [0, 0, 1, 1], [], []>} : vector<196x225xbf16>, vector<225x32xbf16>, vector<196x32xf32> -> vector<196x32xf32>
    %29 = arith.addf %7, %14 : vector<196x32xf32>
    %30 = arith.addf %21, %28 : vector<196x32xf32>
    %31 = arith.addf %29, %30 : vector<196x32xf32>
    %c0_29 = arith.constant 0 : index
    %c0_30 = arith.constant 0 : index
    %32 = vector.load %arg7[%c0_29, %c0_30] : memref<1x1024xf32, #tpu.memory_space<vmem>>, vector<1x32xf32>
    %33 = vector.broadcast %32 : vector<1x32xf32> to vector<196x32xf32>
    %34 = arith.addf %31, %33 : vector<196x32xf32>
    %cst_31 = arith.constant 0.000000e+00 : f32
    %35 = vector.broadcast %cst_31 : f32 to vector<196x32xf32>
    %36 = arith.maximumf %34, %35 : vector<196x32xf32>
    %37 = arith.truncf %36 : vector<196x32xf32> to vector<196x32xbf16>
    %c0_32 = arith.constant 0 : index
    %c0_33 = arith.constant 0 : index
    %c0_34 = arith.constant 0 : index
    %38 = vector.load %arg3[%c0_32, %c0_33, %c0_34] : memref<16x36x196xbf16, #tpu.memory_space<vmem>>, vector<1x36x196xbf16>
    %39 = vector.shape_cast %38 : vector<1x36x196xbf16> to vector<36x196xbf16>
    %cst_35 = arith.constant dense<0.000000e+00> : vector<36x32xf32>
    %40 = tpu.matmul %39, %37, %cst_35 {dimension_numbers = #tpu.dot_dimension_numbers<[1], [0], [0], [1], [0, 0, 1, 1], [], []>} : vector<36x196xbf16>, vector<196x32xbf16>, vector<36x32xf32> -> vector<36x32xf32>
    %41 = arith.truncf %40 : vector<36x32xf32> to vector<36x32xbf16>
    %c0_36 = arith.constant 0 : index
    %c0_37 = arith.constant 0 : index
    %c0_38 = arith.constant 0 : index
    %42 = vector.load %arg4[%c0_36, %c0_37, %c0_38] : memref<16x32x64xbf16, #tpu.memory_space<vmem>>, vector<1x32x64xbf16>
    %43 = vector.shape_cast %42 : vector<1x32x64xbf16> to vector<32x64xbf16>
    %cst_39 = arith.constant dense<0.000000e+00> : vector<36x64xf32>
    %44 = tpu.matmul %41, %43, %cst_39 {dimension_numbers = #tpu.dot_dimension_numbers<[1], [0], [0], [1], [0, 0, 1, 1], [], []>} : vector<36x32xbf16>, vector<32x64xbf16>, vector<36x64xf32> -> vector<36x64xf32>
    %c1_40 = arith.constant 1 : index
    %c0_41 = arith.constant 0 : index
    %c0_42 = arith.constant 0 : index
    %45 = vector.load %arg3[%c1_40, %c0_41, %c0_42] : memref<16x36x196xbf16, #tpu.memory_space<vmem>>, vector<1x36x196xbf16>
    %46 = vector.shape_cast %45 : vector<1x36x196xbf16> to vector<36x196xbf16>
    %cst_43 = arith.constant dense<0.000000e+00> : vector<36x32xf32>
    %47 = tpu.matmul %46, %37, %cst_43 {dimension_numbers = #tpu.dot_dimension_numbers<[1], [0], [0], [1], [0, 0, 1, 1], [], []>} : vector<36x196xbf16>, vector<196x32xbf16>, vector<36x32xf32> -> vector<36x32xf32>
    %48 = arith.truncf %47 : vector<36x32xf32> to vector<36x32xbf16>
    %c1_44 = arith.constant 1 : index
    %c0_45 = arith.constant 0 : index
    %c0_46 = arith.constant 0 : index
    %49 = vector.load %arg4[%c1_44, %c0_45, %c0_46] : memref<16x32x64xbf16, #tpu.memory_space<vmem>>, vector<1x32x64xbf16>
    %50 = vector.shape_cast %49 : vector<1x32x64xbf16> to vector<32x64xbf16>
    %cst_47 = arith.constant dense<0.000000e+00> : vector<36x64xf32>
    %51 = tpu.matmul %48, %50, %cst_47 {dimension_numbers = #tpu.dot_dimension_numbers<[1], [0], [0], [1], [0, 0, 1, 1], [], []>} : vector<36x32xbf16>, vector<32x64xbf16>, vector<36x64xf32> -> vector<36x64xf32>
    %c2_48 = arith.constant 2 : index
    %c0_49 = arith.constant 0 : index
    %c0_50 = arith.constant 0 : index
    %52 = vector.load %arg3[%c2_48, %c0_49, %c0_50] : memref<16x36x196xbf16, #tpu.memory_space<vmem>>, vector<1x36x196xbf16>
    %53 = vector.shape_cast %52 : vector<1x36x196xbf16> to vector<36x196xbf16>
    %cst_51 = arith.constant dense<0.000000e+00> : vector<36x32xf32>
    %54 = tpu.matmul %53, %37, %cst_51 {dimension_numbers = #tpu.dot_dimension_numbers<[1], [0], [0], [1], [0, 0, 1, 1], [], []>} : vector<36x196xbf16>, vector<196x32xbf16>, vector<36x32xf32> -> vector<36x32xf32>
    %55 = arith.truncf %54 : vector<36x32xf32> to vector<36x32xbf16>
    %c2_52 = arith.constant 2 : index
    %c0_53 = arith.constant 0 : index
    %c0_54 = arith.constant 0 : index
    %56 = vector.load %arg4[%c2_52, %c0_53, %c0_54] : memref<16x32x64xbf16, #tpu.memory_space<vmem>>, vector<1x32x64xbf16>
    %57 = vector.shape_cast %56 : vector<1x32x64xbf16> to vector<32x64xbf16>
    %cst_55 = arith.constant dense<0.000000e+00> : vector<36x64xf32>
    %58 = tpu.matmul %55, %57, %cst_55 {dimension_numbers = #tpu.dot_dimension_numbers<[1], [0], [0], [1], [0, 0, 1, 1], [], []>} : vector<36x32xbf16>, vector<32x64xbf16>, vector<36x64xf32> -> vector<36x64xf32>
    %c3_56 = arith.constant 3 : index
    %c0_57 = arith.constant 0 : index
    %c0_58 = arith.constant 0 : index
    %59 = vector.load %arg3[%c3_56, %c0_57, %c0_58] : memref<16x36x196xbf16, #tpu.memory_space<vmem>>, vector<1x36x196xbf16>
    %60 = vector.shape_cast %59 : vector<1x36x196xbf16> to vector<36x196xbf16>
    %cst_59 = arith.constant dense<0.000000e+00> : vector<36x32xf32>
    %61 = tpu.matmul %60, %37, %cst_59 {dimension_numbers = #tpu.dot_dimension_numbers<[1], [0], [0], [1], [0, 0, 1, 1], [], []>} : vector<36x196xbf16>, vector<196x32xbf16>, vector<36x32xf32> -> vector<36x32xf32>
    %62 = arith.truncf %61 : vector<36x32xf32> to vector<36x32xbf16>
    %c3_60 = arith.constant 3 : index
    %c0_61 = arith.constant 0 : index
    %c0_62 = arith.constant 0 : index
    %63 = vector.load %arg4[%c3_60, %c0_61, %c0_62] : memref<16x32x64xbf16, #tpu.memory_space<vmem>>, vector<1x32x64xbf16>
    %64 = vector.shape_cast %63 : vector<1x32x64xbf16> to vector<32x64xbf16>
    %cst_63 = arith.constant dense<0.000000e+00> : vector<36x64xf32>
    %65 = tpu.matmul %62, %64, %cst_63 {dimension_numbers = #tpu.dot_dimension_numbers<[1], [0], [0], [1], [0, 0, 1, 1], [], []>} : vector<36x32xbf16>, vector<32x64xbf16>, vector<36x64xf32> -> vector<36x64xf32>
    %c4 = arith.constant 4 : index
    %c0_64 = arith.constant 0 : index
    %c0_65 = arith.constant 0 : index
    %66 = vector.load %arg3[%c4, %c0_64, %c0_65] : memref<16x36x196xbf16, #tpu.memory_space<vmem>>, vector<1x36x196xbf16>
    %67 = vector.shape_cast %66 : vector<1x36x196xbf16> to vector<36x196xbf16>
    %cst_66 = arith.constant dense<0.000000e+00> : vector<36x32xf32>
    %68 = tpu.matmul %67, %37, %cst_66 {dimension_numbers = #tpu.dot_dimension_numbers<[1], [0], [0], [1], [0, 0, 1, 1], [], []>} : vector<36x196xbf16>, vector<196x32xbf16>, vector<36x32xf32> -> vector<36x32xf32>
    %69 = arith.truncf %68 : vector<36x32xf32> to vector<36x32xbf16>
    %c4_67 = arith.constant 4 : index
    %c0_68 = arith.constant 0 : index
    %c0_69 = arith.constant 0 : index
    %70 = vector.load %arg4[%c4_67, %c0_68, %c0_69] : memref<16x32x64xbf16, #tpu.memory_space<vmem>>, vector<1x32x64xbf16>
    %71 = vector.shape_cast %70 : vector<1x32x64xbf16> to vector<32x64xbf16>
    %cst_70 = arith.constant dense<0.000000e+00> : vector<36x64xf32>
    %72 = tpu.matmul %69, %71, %cst_70 {dimension_numbers = #tpu.dot_dimension_numbers<[1], [0], [0], [1], [0, 0, 1, 1], [], []>} : vector<36x32xbf16>, vector<32x64xbf16>, vector<36x64xf32> -> vector<36x64xf32>
    %c5 = arith.constant 5 : index
    %c0_71 = arith.constant 0 : index
    %c0_72 = arith.constant 0 : index
    %73 = vector.load %arg3[%c5, %c0_71, %c0_72] : memref<16x36x196xbf16, #tpu.memory_space<vmem>>, vector<1x36x196xbf16>
    %74 = vector.shape_cast %73 : vector<1x36x196xbf16> to vector<36x196xbf16>
    %cst_73 = arith.constant dense<0.000000e+00> : vector<36x32xf32>
    %75 = tpu.matmul %74, %37, %cst_73 {dimension_numbers = #tpu.dot_dimension_numbers<[1], [0], [0], [1], [0, 0, 1, 1], [], []>} : vector<36x196xbf16>, vector<196x32xbf16>, vector<36x32xf32> -> vector<36x32xf32>
    %76 = arith.truncf %75 : vector<36x32xf32> to vector<36x32xbf16>
    %c5_74 = arith.constant 5 : index
    %c0_75 = arith.constant 0 : index
    %c0_76 = arith.constant 0 : index
    %77 = vector.load %arg4[%c5_74, %c0_75, %c0_76] : memref<16x32x64xbf16, #tpu.memory_space<vmem>>, vector<1x32x64xbf16>
    %78 = vector.shape_cast %77 : vector<1x32x64xbf16> to vector<32x64xbf16>
    %cst_77 = arith.constant dense<0.000000e+00> : vector<36x64xf32>
    %79 = tpu.matmul %76, %78, %cst_77 {dimension_numbers = #tpu.dot_dimension_numbers<[1], [0], [0], [1], [0, 0, 1, 1], [], []>} : vector<36x32xbf16>, vector<32x64xbf16>, vector<36x64xf32> -> vector<36x64xf32>
    %c6 = arith.constant 6 : index
    %c0_78 = arith.constant 0 : index
    %c0_79 = arith.constant 0 : index
    %80 = vector.load %arg3[%c6, %c0_78, %c0_79] : memref<16x36x196xbf16, #tpu.memory_space<vmem>>, vector<1x36x196xbf16>
    %81 = vector.shape_cast %80 : vector<1x36x196xbf16> to vector<36x196xbf16>
    %cst_80 = arith.constant dense<0.000000e+00> : vector<36x32xf32>
    %82 = tpu.matmul %81, %37, %cst_80 {dimension_numbers = #tpu.dot_dimension_numbers<[1], [0], [0], [1], [0, 0, 1, 1], [], []>} : vector<36x196xbf16>, vector<196x32xbf16>, vector<36x32xf32> -> vector<36x32xf32>
    %83 = arith.truncf %82 : vector<36x32xf32> to vector<36x32xbf16>
    %c6_81 = arith.constant 6 : index
    %c0_82 = arith.constant 0 : index
    %c0_83 = arith.constant 0 : index
    %84 = vector.load %arg4[%c6_81, %c0_82, %c0_83] : memref<16x32x64xbf16, #tpu.memory_space<vmem>>, vector<1x32x64xbf16>
    %85 = vector.shape_cast %84 : vector<1x32x64xbf16> to vector<32x64xbf16>
    %cst_84 = arith.constant dense<0.000000e+00> : vector<36x64xf32>
    %86 = tpu.matmul %83, %85, %cst_84 {dimension_numbers = #tpu.dot_dimension_numbers<[1], [0], [0], [1], [0, 0, 1, 1], [], []>} : vector<36x32xbf16>, vector<32x64xbf16>, vector<36x64xf32> -> vector<36x64xf32>
    %c7 = arith.constant 7 : index
    %c0_85 = arith.constant 0 : index
    %c0_86 = arith.constant 0 : index
    %87 = vector.load %arg3[%c7, %c0_85, %c0_86] : memref<16x36x196xbf16, #tpu.memory_space<vmem>>, vector<1x36x196xbf16>
    %88 = vector.shape_cast %87 : vector<1x36x196xbf16> to vector<36x196xbf16>
    %cst_87 = arith.constant dense<0.000000e+00> : vector<36x32xf32>
    %89 = tpu.matmul %88, %37, %cst_87 {dimension_numbers = #tpu.dot_dimension_numbers<[1], [0], [0], [1], [0, 0, 1, 1], [], []>} : vector<36x196xbf16>, vector<196x32xbf16>, vector<36x32xf32> -> vector<36x32xf32>
    %90 = arith.truncf %89 : vector<36x32xf32> to vector<36x32xbf16>
    %c7_88 = arith.constant 7 : index
    %c0_89 = arith.constant 0 : index
    %c0_90 = arith.constant 0 : index
    %91 = vector.load %arg4[%c7_88, %c0_89, %c0_90] : memref<16x32x64xbf16, #tpu.memory_space<vmem>>, vector<1x32x64xbf16>
    %92 = vector.shape_cast %91 : vector<1x32x64xbf16> to vector<32x64xbf16>
    %cst_91 = arith.constant dense<0.000000e+00> : vector<36x64xf32>
    %93 = tpu.matmul %90, %92, %cst_91 {dimension_numbers = #tpu.dot_dimension_numbers<[1], [0], [0], [1], [0, 0, 1, 1], [], []>} : vector<36x32xbf16>, vector<32x64xbf16>, vector<36x64xf32> -> vector<36x64xf32>
    %c8 = arith.constant 8 : index
    %c0_92 = arith.constant 0 : index
    %c0_93 = arith.constant 0 : index
    %94 = vector.load %arg3[%c8, %c0_92, %c0_93] : memref<16x36x196xbf16, #tpu.memory_space<vmem>>, vector<1x36x196xbf16>
    %95 = vector.shape_cast %94 : vector<1x36x196xbf16> to vector<36x196xbf16>
    %cst_94 = arith.constant dense<0.000000e+00> : vector<36x32xf32>
    %96 = tpu.matmul %95, %37, %cst_94 {dimension_numbers = #tpu.dot_dimension_numbers<[1], [0], [0], [1], [0, 0, 1, 1], [], []>} : vector<36x196xbf16>, vector<196x32xbf16>, vector<36x32xf32> -> vector<36x32xf32>
    %97 = arith.truncf %96 : vector<36x32xf32> to vector<36x32xbf16>
    %c8_95 = arith.constant 8 : index
    %c0_96 = arith.constant 0 : index
    %c0_97 = arith.constant 0 : index
    %98 = vector.load %arg4[%c8_95, %c0_96, %c0_97] : memref<16x32x64xbf16, #tpu.memory_space<vmem>>, vector<1x32x64xbf16>
    %99 = vector.shape_cast %98 : vector<1x32x64xbf16> to vector<32x64xbf16>
    %cst_98 = arith.constant dense<0.000000e+00> : vector<36x64xf32>
    %100 = tpu.matmul %97, %99, %cst_98 {dimension_numbers = #tpu.dot_dimension_numbers<[1], [0], [0], [1], [0, 0, 1, 1], [], []>} : vector<36x32xbf16>, vector<32x64xbf16>, vector<36x64xf32> -> vector<36x64xf32>
    %c9 = arith.constant 9 : index
    %c0_99 = arith.constant 0 : index
    %c0_100 = arith.constant 0 : index
    %101 = vector.load %arg3[%c9, %c0_99, %c0_100] : memref<16x36x196xbf16, #tpu.memory_space<vmem>>, vector<1x36x196xbf16>
    %102 = vector.shape_cast %101 : vector<1x36x196xbf16> to vector<36x196xbf16>
    %cst_101 = arith.constant dense<0.000000e+00> : vector<36x32xf32>
    %103 = tpu.matmul %102, %37, %cst_101 {dimension_numbers = #tpu.dot_dimension_numbers<[1], [0], [0], [1], [0, 0, 1, 1], [], []>} : vector<36x196xbf16>, vector<196x32xbf16>, vector<36x32xf32> -> vector<36x32xf32>
    %104 = arith.truncf %103 : vector<36x32xf32> to vector<36x32xbf16>
    %c9_102 = arith.constant 9 : index
    %c0_103 = arith.constant 0 : index
    %c0_104 = arith.constant 0 : index
    %105 = vector.load %arg4[%c9_102, %c0_103, %c0_104] : memref<16x32x64xbf16, #tpu.memory_space<vmem>>, vector<1x32x64xbf16>
    %106 = vector.shape_cast %105 : vector<1x32x64xbf16> to vector<32x64xbf16>
    %cst_105 = arith.constant dense<0.000000e+00> : vector<36x64xf32>
    %107 = tpu.matmul %104, %106, %cst_105 {dimension_numbers = #tpu.dot_dimension_numbers<[1], [0], [0], [1], [0, 0, 1, 1], [], []>} : vector<36x32xbf16>, vector<32x64xbf16>, vector<36x64xf32> -> vector<36x64xf32>
    %c10 = arith.constant 10 : index
    %c0_106 = arith.constant 0 : index
    %c0_107 = arith.constant 0 : index
    %108 = vector.load %arg3[%c10, %c0_106, %c0_107] : memref<16x36x196xbf16, #tpu.memory_space<vmem>>, vector<1x36x196xbf16>
    %109 = vector.shape_cast %108 : vector<1x36x196xbf16> to vector<36x196xbf16>
    %cst_108 = arith.constant dense<0.000000e+00> : vector<36x32xf32>
    %110 = tpu.matmul %109, %37, %cst_108 {dimension_numbers = #tpu.dot_dimension_numbers<[1], [0], [0], [1], [0, 0, 1, 1], [], []>} : vector<36x196xbf16>, vector<196x32xbf16>, vector<36x32xf32> -> vector<36x32xf32>
    %111 = arith.truncf %110 : vector<36x32xf32> to vector<36x32xbf16>
    %c10_109 = arith.constant 10 : index
    %c0_110 = arith.constant 0 : index
    %c0_111 = arith.constant 0 : index
    %112 = vector.load %arg4[%c10_109, %c0_110, %c0_111] : memref<16x32x64xbf16, #tpu.memory_space<vmem>>, vector<1x32x64xbf16>
    %113 = vector.shape_cast %112 : vector<1x32x64xbf16> to vector<32x64xbf16>
    %cst_112 = arith.constant dense<0.000000e+00> : vector<36x64xf32>
    %114 = tpu.matmul %111, %113, %cst_112 {dimension_numbers = #tpu.dot_dimension_numbers<[1], [0], [0], [1], [0, 0, 1, 1], [], []>} : vector<36x32xbf16>, vector<32x64xbf16>, vector<36x64xf32> -> vector<36x64xf32>
    %c11 = arith.constant 11 : index
    %c0_113 = arith.constant 0 : index
    %c0_114 = arith.constant 0 : index
    %115 = vector.load %arg3[%c11, %c0_113, %c0_114] : memref<16x36x196xbf16, #tpu.memory_space<vmem>>, vector<1x36x196xbf16>
    %116 = vector.shape_cast %115 : vector<1x36x196xbf16> to vector<36x196xbf16>
    %cst_115 = arith.constant dense<0.000000e+00> : vector<36x32xf32>
    %117 = tpu.matmul %116, %37, %cst_115 {dimension_numbers = #tpu.dot_dimension_numbers<[1], [0], [0], [1], [0, 0, 1, 1], [], []>} : vector<36x196xbf16>, vector<196x32xbf16>, vector<36x32xf32> -> vector<36x32xf32>
    %118 = arith.truncf %117 : vector<36x32xf32> to vector<36x32xbf16>
    %c11_116 = arith.constant 11 : index
    %c0_117 = arith.constant 0 : index
    %c0_118 = arith.constant 0 : index
    %119 = vector.load %arg4[%c11_116, %c0_117, %c0_118] : memref<16x32x64xbf16, #tpu.memory_space<vmem>>, vector<1x32x64xbf16>
    %120 = vector.shape_cast %119 : vector<1x32x64xbf16> to vector<32x64xbf16>
    %cst_119 = arith.constant dense<0.000000e+00> : vector<36x64xf32>
    %121 = tpu.matmul %118, %120, %cst_119 {dimension_numbers = #tpu.dot_dimension_numbers<[1], [0], [0], [1], [0, 0, 1, 1], [], []>} : vector<36x32xbf16>, vector<32x64xbf16>, vector<36x64xf32> -> vector<36x64xf32>
    %c12 = arith.constant 12 : index
    %c0_120 = arith.constant 0 : index
    %c0_121 = arith.constant 0 : index
    %122 = vector.load %arg3[%c12, %c0_120, %c0_121] : memref<16x36x196xbf16, #tpu.memory_space<vmem>>, vector<1x36x196xbf16>
    %123 = vector.shape_cast %122 : vector<1x36x196xbf16> to vector<36x196xbf16>
    %cst_122 = arith.constant dense<0.000000e+00> : vector<36x32xf32>
    %124 = tpu.matmul %123, %37, %cst_122 {dimension_numbers = #tpu.dot_dimension_numbers<[1], [0], [0], [1], [0, 0, 1, 1], [], []>} : vector<36x196xbf16>, vector<196x32xbf16>, vector<36x32xf32> -> vector<36x32xf32>
    %125 = arith.truncf %124 : vector<36x32xf32> to vector<36x32xbf16>
    %c12_123 = arith.constant 12 : index
    %c0_124 = arith.constant 0 : index
    %c0_125 = arith.constant 0 : index
    %126 = vector.load %arg4[%c12_123, %c0_124, %c0_125] : memref<16x32x64xbf16, #tpu.memory_space<vmem>>, vector<1x32x64xbf16>
    %127 = vector.shape_cast %126 : vector<1x32x64xbf16> to vector<32x64xbf16>
    %cst_126 = arith.constant dense<0.000000e+00> : vector<36x64xf32>
    %128 = tpu.matmul %125, %127, %cst_126 {dimension_numbers = #tpu.dot_dimension_numbers<[1], [0], [0], [1], [0, 0, 1, 1], [], []>} : vector<36x32xbf16>, vector<32x64xbf16>, vector<36x64xf32> -> vector<36x64xf32>
    %c13 = arith.constant 13 : index
    %c0_127 = arith.constant 0 : index
    %c0_128 = arith.constant 0 : index
    %129 = vector.load %arg3[%c13, %c0_127, %c0_128] : memref<16x36x196xbf16, #tpu.memory_space<vmem>>, vector<1x36x196xbf16>
    %130 = vector.shape_cast %129 : vector<1x36x196xbf16> to vector<36x196xbf16>
    %cst_129 = arith.constant dense<0.000000e+00> : vector<36x32xf32>
    %131 = tpu.matmul %130, %37, %cst_129 {dimension_numbers = #tpu.dot_dimension_numbers<[1], [0], [0], [1], [0, 0, 1, 1], [], []>} : vector<36x196xbf16>, vector<196x32xbf16>, vector<36x32xf32> -> vector<36x32xf32>
    %132 = arith.truncf %131 : vector<36x32xf32> to vector<36x32xbf16>
    %c13_130 = arith.constant 13 : index
    %c0_131 = arith.constant 0 : index
    %c0_132 = arith.constant 0 : index
    %133 = vector.load %arg4[%c13_130, %c0_131, %c0_132] : memref<16x32x64xbf16, #tpu.memory_space<vmem>>, vector<1x32x64xbf16>
    %134 = vector.shape_cast %133 : vector<1x32x64xbf16> to vector<32x64xbf16>
    %cst_133 = arith.constant dense<0.000000e+00> : vector<36x64xf32>
    %135 = tpu.matmul %132, %134, %cst_133 {dimension_numbers = #tpu.dot_dimension_numbers<[1], [0], [0], [1], [0, 0, 1, 1], [], []>} : vector<36x32xbf16>, vector<32x64xbf16>, vector<36x64xf32> -> vector<36x64xf32>
    %c14 = arith.constant 14 : index
    %c0_134 = arith.constant 0 : index
    %c0_135 = arith.constant 0 : index
    %136 = vector.load %arg3[%c14, %c0_134, %c0_135] : memref<16x36x196xbf16, #tpu.memory_space<vmem>>, vector<1x36x196xbf16>
    %137 = vector.shape_cast %136 : vector<1x36x196xbf16> to vector<36x196xbf16>
    %cst_136 = arith.constant dense<0.000000e+00> : vector<36x32xf32>
    %138 = tpu.matmul %137, %37, %cst_136 {dimension_numbers = #tpu.dot_dimension_numbers<[1], [0], [0], [1], [0, 0, 1, 1], [], []>} : vector<36x196xbf16>, vector<196x32xbf16>, vector<36x32xf32> -> vector<36x32xf32>
    %139 = arith.truncf %138 : vector<36x32xf32> to vector<36x32xbf16>
    %c14_137 = arith.constant 14 : index
    %c0_138 = arith.constant 0 : index
    %c0_139 = arith.constant 0 : index
    %140 = vector.load %arg4[%c14_137, %c0_138, %c0_139] : memref<16x32x64xbf16, #tpu.memory_space<vmem>>, vector<1x32x64xbf16>
    %141 = vector.shape_cast %140 : vector<1x32x64xbf16> to vector<32x64xbf16>
    %cst_140 = arith.constant dense<0.000000e+00> : vector<36x64xf32>
    %142 = tpu.matmul %139, %141, %cst_140 {dimension_numbers = #tpu.dot_dimension_numbers<[1], [0], [0], [1], [0, 0, 1, 1], [], []>} : vector<36x32xbf16>, vector<32x64xbf16>, vector<36x64xf32> -> vector<36x64xf32>
    %c15 = arith.constant 15 : index
    %c0_141 = arith.constant 0 : index
    %c0_142 = arith.constant 0 : index
    %143 = vector.load %arg3[%c15, %c0_141, %c0_142] : memref<16x36x196xbf16, #tpu.memory_space<vmem>>, vector<1x36x196xbf16>
    %144 = vector.shape_cast %143 : vector<1x36x196xbf16> to vector<36x196xbf16>
    %cst_143 = arith.constant dense<0.000000e+00> : vector<36x32xf32>
    %145 = tpu.matmul %144, %37, %cst_143 {dimension_numbers = #tpu.dot_dimension_numbers<[1], [0], [0], [1], [0, 0, 1, 1], [], []>} : vector<36x196xbf16>, vector<196x32xbf16>, vector<36x32xf32> -> vector<36x32xf32>
    %146 = arith.truncf %145 : vector<36x32xf32> to vector<36x32xbf16>
    %c15_144 = arith.constant 15 : index
    %c0_145 = arith.constant 0 : index
    %c0_146 = arith.constant 0 : index
    %147 = vector.load %arg4[%c15_144, %c0_145, %c0_146] : memref<16x32x64xbf16, #tpu.memory_space<vmem>>, vector<1x32x64xbf16>
    %148 = vector.shape_cast %147 : vector<1x32x64xbf16> to vector<32x64xbf16>
    %cst_147 = arith.constant dense<0.000000e+00> : vector<36x64xf32>
    %149 = tpu.matmul %146, %148, %cst_147 {dimension_numbers = #tpu.dot_dimension_numbers<[1], [0], [0], [1], [0, 0, 1, 1], [], []>} : vector<36x32xbf16>, vector<32x64xbf16>, vector<36x64xf32> -> vector<36x64xf32>
    %150 = arith.addf %44, %51 : vector<36x64xf32>
    %151 = arith.addf %58, %65 : vector<36x64xf32>
    %152 = arith.addf %72, %79 : vector<36x64xf32>
    %153 = arith.addf %86, %93 : vector<36x64xf32>
    %154 = arith.addf %100, %107 : vector<36x64xf32>
    %155 = arith.addf %114, %121 : vector<36x64xf32>
    %156 = arith.addf %128, %135 : vector<36x64xf32>
    %157 = arith.addf %142, %149 : vector<36x64xf32>
    %158 = arith.addf %150, %151 : vector<36x64xf32>
    %159 = arith.addf %152, %153 : vector<36x64xf32>
    %160 = arith.addf %154, %155 : vector<36x64xf32>
    %161 = arith.addf %156, %157 : vector<36x64xf32>
    %162 = arith.addf %158, %159 : vector<36x64xf32>
    %163 = arith.addf %160, %161 : vector<36x64xf32>
    %164 = arith.addf %162, %163 : vector<36x64xf32>
    %c0_148 = arith.constant 0 : index
    %c128 = arith.constant 128 : index
    %165 = vector.load %arg7[%c0_148, %c128] : memref<1x1024xf32, #tpu.memory_space<vmem>>, vector<1x64xf32>
    %166 = vector.broadcast %165 : vector<1x64xf32> to vector<36x64xf32>
    %167 = arith.addf %164, %166 : vector<36x64xf32>
    %cst_149 = arith.constant 0.000000e+00 : f32
    %168 = vector.broadcast %cst_149 : f32 to vector<36x64xf32>
    %169 = arith.maximumf %167, %168 : vector<36x64xf32>
    %170 = arith.truncf %169 : vector<36x64xf32> to vector<36x64xbf16>
    %c0_150 = arith.constant 0 : index
    %c0_151 = arith.constant 0 : index
    %c0_152 = arith.constant 0 : index
    %171 = vector.load %arg5[%c0_150, %c0_151, %c0_152] : memref<9x16x36xbf16, #tpu.memory_space<vmem>>, vector<1x16x36xbf16>
    %172 = vector.shape_cast %171 : vector<1x16x36xbf16> to vector<16x36xbf16>
    %cst_153 = arith.constant dense<0.000000e+00> : vector<16x64xf32>
    %173 = tpu.matmul %172, %170, %cst_153 {dimension_numbers = #tpu.dot_dimension_numbers<[1], [0], [0], [1], [0, 0, 1, 1], [], []>} : vector<16x36xbf16>, vector<36x64xbf16>, vector<16x64xf32> -> vector<16x64xf32>
    %174 = arith.truncf %173 : vector<16x64xf32> to vector<16x64xbf16>
    %c0_154 = arith.constant 0 : index
    %c0_155 = arith.constant 0 : index
    %c0_156 = arith.constant 0 : index
    %175 = vector.load %arg6[%c0_154, %c0_155, %c0_156] : memref<9x64x64xbf16, #tpu.memory_space<vmem>>, vector<1x64x64xbf16>
    %176 = vector.shape_cast %175 : vector<1x64x64xbf16> to vector<64x64xbf16>
    %cst_157 = arith.constant dense<0.000000e+00> : vector<16x64xf32>
    %177 = tpu.matmul %174, %176, %cst_157 {dimension_numbers = #tpu.dot_dimension_numbers<[1], [0], [0], [1], [0, 0, 1, 1], [], []>} : vector<16x64xbf16>, vector<64x64xbf16>, vector<16x64xf32> -> vector<16x64xf32>
    %c1_158 = arith.constant 1 : index
    %c0_159 = arith.constant 0 : index
    %c0_160 = arith.constant 0 : index
    %178 = vector.load %arg5[%c1_158, %c0_159, %c0_160] : memref<9x16x36xbf16, #tpu.memory_space<vmem>>, vector<1x16x36xbf16>
    %179 = vector.shape_cast %178 : vector<1x16x36xbf16> to vector<16x36xbf16>
    %cst_161 = arith.constant dense<0.000000e+00> : vector<16x64xf32>
    %180 = tpu.matmul %179, %170, %cst_161 {dimension_numbers = #tpu.dot_dimension_numbers<[1], [0], [0], [1], [0, 0, 1, 1], [], []>} : vector<16x36xbf16>, vector<36x64xbf16>, vector<16x64xf32> -> vector<16x64xf32>
    %181 = arith.truncf %180 : vector<16x64xf32> to vector<16x64xbf16>
    %c1_162 = arith.constant 1 : index
    %c0_163 = arith.constant 0 : index
    %c0_164 = arith.constant 0 : index
    %182 = vector.load %arg6[%c1_162, %c0_163, %c0_164] : memref<9x64x64xbf16, #tpu.memory_space<vmem>>, vector<1x64x64xbf16>
    %183 = vector.shape_cast %182 : vector<1x64x64xbf16> to vector<64x64xbf16>
    %cst_165 = arith.constant dense<0.000000e+00> : vector<16x64xf32>
    %184 = tpu.matmul %181, %183, %cst_165 {dimension_numbers = #tpu.dot_dimension_numbers<[1], [0], [0], [1], [0, 0, 1, 1], [], []>} : vector<16x64xbf16>, vector<64x64xbf16>, vector<16x64xf32> -> vector<16x64xf32>
    %c2_166 = arith.constant 2 : index
    %c0_167 = arith.constant 0 : index
    %c0_168 = arith.constant 0 : index
    %185 = vector.load %arg5[%c2_166, %c0_167, %c0_168] : memref<9x16x36xbf16, #tpu.memory_space<vmem>>, vector<1x16x36xbf16>
    %186 = vector.shape_cast %185 : vector<1x16x36xbf16> to vector<16x36xbf16>
    %cst_169 = arith.constant dense<0.000000e+00> : vector<16x64xf32>
    %187 = tpu.matmul %186, %170, %cst_169 {dimension_numbers = #tpu.dot_dimension_numbers<[1], [0], [0], [1], [0, 0, 1, 1], [], []>} : vector<16x36xbf16>, vector<36x64xbf16>, vector<16x64xf32> -> vector<16x64xf32>
    %188 = arith.truncf %187 : vector<16x64xf32> to vector<16x64xbf16>
    %c2_170 = arith.constant 2 : index
    %c0_171 = arith.constant 0 : index
    %c0_172 = arith.constant 0 : index
    %189 = vector.load %arg6[%c2_170, %c0_171, %c0_172] : memref<9x64x64xbf16, #tpu.memory_space<vmem>>, vector<1x64x64xbf16>
    %190 = vector.shape_cast %189 : vector<1x64x64xbf16> to vector<64x64xbf16>
    %cst_173 = arith.constant dense<0.000000e+00> : vector<16x64xf32>
    %191 = tpu.matmul %188, %190, %cst_173 {dimension_numbers = #tpu.dot_dimension_numbers<[1], [0], [0], [1], [0, 0, 1, 1], [], []>} : vector<16x64xbf16>, vector<64x64xbf16>, vector<16x64xf32> -> vector<16x64xf32>
    %c3_174 = arith.constant 3 : index
    %c0_175 = arith.constant 0 : index
    %c0_176 = arith.constant 0 : index
    %192 = vector.load %arg5[%c3_174, %c0_175, %c0_176] : memref<9x16x36xbf16, #tpu.memory_space<vmem>>, vector<1x16x36xbf16>
    %193 = vector.shape_cast %192 : vector<1x16x36xbf16> to vector<16x36xbf16>
    %cst_177 = arith.constant dense<0.000000e+00> : vector<16x64xf32>
    %194 = tpu.matmul %193, %170, %cst_177 {dimension_numbers = #tpu.dot_dimension_numbers<[1], [0], [0], [1], [0, 0, 1, 1], [], []>} : vector<16x36xbf16>, vector<36x64xbf16>, vector<16x64xf32> -> vector<16x64xf32>
    %195 = arith.truncf %194 : vector<16x64xf32> to vector<16x64xbf16>
    %c3_178 = arith.constant 3 : index
    %c0_179 = arith.constant 0 : index
    %c0_180 = arith.constant 0 : index
    %196 = vector.load %arg6[%c3_178, %c0_179, %c0_180] : memref<9x64x64xbf16, #tpu.memory_space<vmem>>, vector<1x64x64xbf16>
    %197 = vector.shape_cast %196 : vector<1x64x64xbf16> to vector<64x64xbf16>
    %cst_181 = arith.constant dense<0.000000e+00> : vector<16x64xf32>
    %198 = tpu.matmul %195, %197, %cst_181 {dimension_numbers = #tpu.dot_dimension_numbers<[1], [0], [0], [1], [0, 0, 1, 1], [], []>} : vector<16x64xbf16>, vector<64x64xbf16>, vector<16x64xf32> -> vector<16x64xf32>
    %c4_182 = arith.constant 4 : index
    %c0_183 = arith.constant 0 : index
    %c0_184 = arith.constant 0 : index
    %199 = vector.load %arg5[%c4_182, %c0_183, %c0_184] : memref<9x16x36xbf16, #tpu.memory_space<vmem>>, vector<1x16x36xbf16>
    %200 = vector.shape_cast %199 : vector<1x16x36xbf16> to vector<16x36xbf16>
    %cst_185 = arith.constant dense<0.000000e+00> : vector<16x64xf32>
    %201 = tpu.matmul %200, %170, %cst_185 {dimension_numbers = #tpu.dot_dimension_numbers<[1], [0], [0], [1], [0, 0, 1, 1], [], []>} : vector<16x36xbf16>, vector<36x64xbf16>, vector<16x64xf32> -> vector<16x64xf32>
    %202 = arith.truncf %201 : vector<16x64xf32> to vector<16x64xbf16>
    %c4_186 = arith.constant 4 : index
    %c0_187 = arith.constant 0 : index
    %c0_188 = arith.constant 0 : index
    %203 = vector.load %arg6[%c4_186, %c0_187, %c0_188] : memref<9x64x64xbf16, #tpu.memory_space<vmem>>, vector<1x64x64xbf16>
    %204 = vector.shape_cast %203 : vector<1x64x64xbf16> to vector<64x64xbf16>
    %cst_189 = arith.constant dense<0.000000e+00> : vector<16x64xf32>
    %205 = tpu.matmul %202, %204, %cst_189 {dimension_numbers = #tpu.dot_dimension_numbers<[1], [0], [0], [1], [0, 0, 1, 1], [], []>} : vector<16x64xbf16>, vector<64x64xbf16>, vector<16x64xf32> -> vector<16x64xf32>
    %c5_190 = arith.constant 5 : index
    %c0_191 = arith.constant 0 : index
    %c0_192 = arith.constant 0 : index
    %206 = vector.load %arg5[%c5_190, %c0_191, %c0_192] : memref<9x16x36xbf16, #tpu.memory_space<vmem>>, vector<1x16x36xbf16>
    %207 = vector.shape_cast %206 : vector<1x16x36xbf16> to vector<16x36xbf16>
    %cst_193 = arith.constant dense<0.000000e+00> : vector<16x64xf32>
    %208 = tpu.matmul %207, %170, %cst_193 {dimension_numbers = #tpu.dot_dimension_numbers<[1], [0], [0], [1], [0, 0, 1, 1], [], []>} : vector<16x36xbf16>, vector<36x64xbf16>, vector<16x64xf32> -> vector<16x64xf32>
    %209 = arith.truncf %208 : vector<16x64xf32> to vector<16x64xbf16>
    %c5_194 = arith.constant 5 : index
    %c0_195 = arith.constant 0 : index
    %c0_196 = arith.constant 0 : index
    %210 = vector.load %arg6[%c5_194, %c0_195, %c0_196] : memref<9x64x64xbf16, #tpu.memory_space<vmem>>, vector<1x64x64xbf16>
    %211 = vector.shape_cast %210 : vector<1x64x64xbf16> to vector<64x64xbf16>
    %cst_197 = arith.constant dense<0.000000e+00> : vector<16x64xf32>
    %212 = tpu.matmul %209, %211, %cst_197 {dimension_numbers = #tpu.dot_dimension_numbers<[1], [0], [0], [1], [0, 0, 1, 1], [], []>} : vector<16x64xbf16>, vector<64x64xbf16>, vector<16x64xf32> -> vector<16x64xf32>
    %c6_198 = arith.constant 6 : index
    %c0_199 = arith.constant 0 : index
    %c0_200 = arith.constant 0 : index
    %213 = vector.load %arg5[%c6_198, %c0_199, %c0_200] : memref<9x16x36xbf16, #tpu.memory_space<vmem>>, vector<1x16x36xbf16>
    %214 = vector.shape_cast %213 : vector<1x16x36xbf16> to vector<16x36xbf16>
    %cst_201 = arith.constant dense<0.000000e+00> : vector<16x64xf32>
    %215 = tpu.matmul %214, %170, %cst_201 {dimension_numbers = #tpu.dot_dimension_numbers<[1], [0], [0], [1], [0, 0, 1, 1], [], []>} : vector<16x36xbf16>, vector<36x64xbf16>, vector<16x64xf32> -> vector<16x64xf32>
    %216 = arith.truncf %215 : vector<16x64xf32> to vector<16x64xbf16>
    %c6_202 = arith.constant 6 : index
    %c0_203 = arith.constant 0 : index
    %c0_204 = arith.constant 0 : index
    %217 = vector.load %arg6[%c6_202, %c0_203, %c0_204] : memref<9x64x64xbf16, #tpu.memory_space<vmem>>, vector<1x64x64xbf16>
    %218 = vector.shape_cast %217 : vector<1x64x64xbf16> to vector<64x64xbf16>
    %cst_205 = arith.constant dense<0.000000e+00> : vector<16x64xf32>
    %219 = tpu.matmul %216, %218, %cst_205 {dimension_numbers = #tpu.dot_dimension_numbers<[1], [0], [0], [1], [0, 0, 1, 1], [], []>} : vector<16x64xbf16>, vector<64x64xbf16>, vector<16x64xf32> -> vector<16x64xf32>
    %c7_206 = arith.constant 7 : index
    %c0_207 = arith.constant 0 : index
    %c0_208 = arith.constant 0 : index
    %220 = vector.load %arg5[%c7_206, %c0_207, %c0_208] : memref<9x16x36xbf16, #tpu.memory_space<vmem>>, vector<1x16x36xbf16>
    %221 = vector.shape_cast %220 : vector<1x16x36xbf16> to vector<16x36xbf16>
    %cst_209 = arith.constant dense<0.000000e+00> : vector<16x64xf32>
    %222 = tpu.matmul %221, %170, %cst_209 {dimension_numbers = #tpu.dot_dimension_numbers<[1], [0], [0], [1], [0, 0, 1, 1], [], []>} : vector<16x36xbf16>, vector<36x64xbf16>, vector<16x64xf32> -> vector<16x64xf32>
    %223 = arith.truncf %222 : vector<16x64xf32> to vector<16x64xbf16>
    %c7_210 = arith.constant 7 : index
    %c0_211 = arith.constant 0 : index
    %c0_212 = arith.constant 0 : index
    %224 = vector.load %arg6[%c7_210, %c0_211, %c0_212] : memref<9x64x64xbf16, #tpu.memory_space<vmem>>, vector<1x64x64xbf16>
    %225 = vector.shape_cast %224 : vector<1x64x64xbf16> to vector<64x64xbf16>
    %cst_213 = arith.constant dense<0.000000e+00> : vector<16x64xf32>
    %226 = tpu.matmul %223, %225, %cst_213 {dimension_numbers = #tpu.dot_dimension_numbers<[1], [0], [0], [1], [0, 0, 1, 1], [], []>} : vector<16x64xbf16>, vector<64x64xbf16>, vector<16x64xf32> -> vector<16x64xf32>
    %c8_214 = arith.constant 8 : index
    %c0_215 = arith.constant 0 : index
    %c0_216 = arith.constant 0 : index
    %227 = vector.load %arg5[%c8_214, %c0_215, %c0_216] : memref<9x16x36xbf16, #tpu.memory_space<vmem>>, vector<1x16x36xbf16>
    %228 = vector.shape_cast %227 : vector<1x16x36xbf16> to vector<16x36xbf16>
    %cst_217 = arith.constant dense<0.000000e+00> : vector<16x64xf32>
    %229 = tpu.matmul %228, %170, %cst_217 {dimension_numbers = #tpu.dot_dimension_numbers<[1], [0], [0], [1], [0, 0, 1, 1], [], []>} : vector<16x36xbf16>, vector<36x64xbf16>, vector<16x64xf32> -> vector<16x64xf32>
    %230 = arith.truncf %229 : vector<16x64xf32> to vector<16x64xbf16>
    %c8_218 = arith.constant 8 : index
    %c0_219 = arith.constant 0 : index
    %c0_220 = arith.constant 0 : index
    %231 = vector.load %arg6[%c8_218, %c0_219, %c0_220] : memref<9x64x64xbf16, #tpu.memory_space<vmem>>, vector<1x64x64xbf16>
    %232 = vector.shape_cast %231 : vector<1x64x64xbf16> to vector<64x64xbf16>
    %cst_221 = arith.constant dense<0.000000e+00> : vector<16x64xf32>
    %233 = tpu.matmul %230, %232, %cst_221 {dimension_numbers = #tpu.dot_dimension_numbers<[1], [0], [0], [1], [0, 0, 1, 1], [], []>} : vector<16x64xbf16>, vector<64x64xbf16>, vector<16x64xf32> -> vector<16x64xf32>
    %234 = arith.addf %177, %184 : vector<16x64xf32>
    %235 = arith.addf %191, %198 : vector<16x64xf32>
    %236 = arith.addf %205, %212 : vector<16x64xf32>
    %237 = arith.addf %219, %226 : vector<16x64xf32>
    %238 = arith.addf %234, %235 : vector<16x64xf32>
    %239 = arith.addf %236, %237 : vector<16x64xf32>
    %240 = arith.addf %238, %239 : vector<16x64xf32>
    %241 = arith.addf %240, %233 : vector<16x64xf32>
    %c0_222 = arith.constant 0 : index
    %c256 = arith.constant 256 : index
    %242 = vector.load %arg7[%c0_222, %c256] : memref<1x1024xf32, #tpu.memory_space<vmem>>, vector<1x64xf32>
    %243 = vector.broadcast %242 : vector<1x64xf32> to vector<16x64xf32>
    %244 = arith.addf %241, %243 : vector<16x64xf32>
    %cst_223 = arith.constant 0.000000e+00 : f32
    %245 = vector.broadcast %cst_223 : f32 to vector<16x64xf32>
    %246 = arith.maximumf %244, %245 : vector<16x64xf32>
    %247 = arith.truncf %246 : vector<16x64xf32> to vector<16x64xbf16>
    %c0_224 = arith.constant 0 : index
    %c0_225 = arith.constant 0 : index
    %248 = vector.load %arg13[%c0_224, %c0_225] : memref<16x64xbf16, #tpu.memory_space<vmem>>, vector<16x64xbf16>
    tpu.vector_store %arg13[%c0_224, %c0_225], %247 {strides = array<i32>} : memref<16x64xbf16, #tpu.memory_space<vmem>>, vector<16x64xbf16>,
    tpu.wait_dma2 semaphore(%arg12 : memref<!tpu.dma_semaphore, #tpu.memory_space<semaphore_mem>>) src(%arg9 : memref<16x64x512xbf16, #tpu.memory_space<any>>) dst(%arg11 : memref<16x64x512xbf16, #tpu.memory_space<vmem>>)
    %c0_226 = arith.constant 0 : index
    %c0_227 = arith.constant 0 : index
    %249 = vector.load %arg13[%c0_226, %c0_227] : memref<16x64xbf16, #tpu.memory_space<vmem>>, vector<1x64xbf16>
    %c0_228 = arith.constant 0 : index
    %c0_229 = arith.constant 0 : index
    %c0_230 = arith.constant 0 : index
    %250 = vector.load %arg11[%c0_228, %c0_229, %c0_230] : memref<16x64x512xbf16, #tpu.memory_space<vmem>>, vector<1x64x512xbf16>
    %251 = vector.shape_cast %250 : vector<1x64x512xbf16> to vector<64x512xbf16>
    %cst_231 = arith.constant dense<0.000000e+00> : vector<1x512xf32>
    %252 = tpu.matmul %249, %251, %cst_231 {dimension_numbers = #tpu.dot_dimension_numbers<[1], [0], [0], [1], [0, 0, 1, 1], [], []>} : vector<1x64xbf16>, vector<64x512xbf16>, vector<1x512xf32> -> vector<1x512xf32>
    %c1_232 = arith.constant 1 : index
    %c0_233 = arith.constant 0 : index
    %253 = vector.load %arg13[%c1_232, %c0_233] : memref<16x64xbf16, #tpu.memory_space<vmem>>, vector<1x64xbf16>
    %c1_234 = arith.constant 1 : index
    %c0_235 = arith.constant 0 : index
    %c0_236 = arith.constant 0 : index
    %254 = vector.load %arg11[%c1_234, %c0_235, %c0_236] : memref<16x64x512xbf16, #tpu.memory_space<vmem>>, vector<1x64x512xbf16>
    %255 = vector.shape_cast %254 : vector<1x64x512xbf16> to vector<64x512xbf16>
    %cst_237 = arith.constant dense<0.000000e+00> : vector<1x512xf32>
    %256 = tpu.matmul %253, %255, %cst_237 {dimension_numbers = #tpu.dot_dimension_numbers<[1], [0], [0], [1], [0, 0, 1, 1], [], []>} : vector<1x64xbf16>, vector<64x512xbf16>, vector<1x512xf32> -> vector<1x512xf32>
    %c2_238 = arith.constant 2 : index
    %c0_239 = arith.constant 0 : index
    %257 = vector.load %arg13[%c2_238, %c0_239] : memref<16x64xbf16, #tpu.memory_space<vmem>>, vector<1x64xbf16>
    %c2_240 = arith.constant 2 : index
    %c0_241 = arith.constant 0 : index
    %c0_242 = arith.constant 0 : index
    %258 = vector.load %arg11[%c2_240, %c0_241, %c0_242] : memref<16x64x512xbf16, #tpu.memory_space<vmem>>, vector<1x64x512xbf16>
    %259 = vector.shape_cast %258 : vector<1x64x512xbf16> to vector<64x512xbf16>
    %cst_243 = arith.constant dense<0.000000e+00> : vector<1x512xf32>
    %260 = tpu.matmul %257, %259, %cst_243 {dimension_numbers = #tpu.dot_dimension_numbers<[1], [0], [0], [1], [0, 0, 1, 1], [], []>} : vector<1x64xbf16>, vector<64x512xbf16>, vector<1x512xf32> -> vector<1x512xf32>
    %c3_244 = arith.constant 3 : index
    %c0_245 = arith.constant 0 : index
    %261 = vector.load %arg13[%c3_244, %c0_245] : memref<16x64xbf16, #tpu.memory_space<vmem>>, vector<1x64xbf16>
    %c3_246 = arith.constant 3 : index
    %c0_247 = arith.constant 0 : index
    %c0_248 = arith.constant 0 : index
    %262 = vector.load %arg11[%c3_246, %c0_247, %c0_248] : memref<16x64x512xbf16, #tpu.memory_space<vmem>>, vector<1x64x512xbf16>
    %263 = vector.shape_cast %262 : vector<1x64x512xbf16> to vector<64x512xbf16>
    %cst_249 = arith.constant dense<0.000000e+00> : vector<1x512xf32>
    %264 = tpu.matmul %261, %263, %cst_249 {dimension_numbers = #tpu.dot_dimension_numbers<[1], [0], [0], [1], [0, 0, 1, 1], [], []>} : vector<1x64xbf16>, vector<64x512xbf16>, vector<1x512xf32> -> vector<1x512xf32>
    %c4_250 = arith.constant 4 : index
    %c0_251 = arith.constant 0 : index
    %265 = vector.load %arg13[%c4_250, %c0_251] : memref<16x64xbf16, #tpu.memory_space<vmem>>, vector<1x64xbf16>
    %c4_252 = arith.constant 4 : index
    %c0_253 = arith.constant 0 : index
    %c0_254 = arith.constant 0 : index
    %266 = vector.load %arg11[%c4_252, %c0_253, %c0_254] : memref<16x64x512xbf16, #tpu.memory_space<vmem>>, vector<1x64x512xbf16>
    %267 = vector.shape_cast %266 : vector<1x64x512xbf16> to vector<64x512xbf16>
    %cst_255 = arith.constant dense<0.000000e+00> : vector<1x512xf32>
    %268 = tpu.matmul %265, %267, %cst_255 {dimension_numbers = #tpu.dot_dimension_numbers<[1], [0], [0], [1], [0, 0, 1, 1], [], []>} : vector<1x64xbf16>, vector<64x512xbf16>, vector<1x512xf32> -> vector<1x512xf32>
    %c5_256 = arith.constant 5 : index
    %c0_257 = arith.constant 0 : index
    %269 = vector.load %arg13[%c5_256, %c0_257] : memref<16x64xbf16, #tpu.memory_space<vmem>>, vector<1x64xbf16>
    %c5_258 = arith.constant 5 : index
    %c0_259 = arith.constant 0 : index
    %c0_260 = arith.constant 0 : index
    %270 = vector.load %arg11[%c5_258, %c0_259, %c0_260] : memref<16x64x512xbf16, #tpu.memory_space<vmem>>, vector<1x64x512xbf16>
    %271 = vector.shape_cast %270 : vector<1x64x512xbf16> to vector<64x512xbf16>
    %cst_261 = arith.constant dense<0.000000e+00> : vector<1x512xf32>
    %272 = tpu.matmul %269, %271, %cst_261 {dimension_numbers = #tpu.dot_dimension_numbers<[1], [0], [0], [1], [0, 0, 1, 1], [], []>} : vector<1x64xbf16>, vector<64x512xbf16>, vector<1x512xf32> -> vector<1x512xf32>
    %c6_262 = arith.constant 6 : index
    %c0_263 = arith.constant 0 : index
    %273 = vector.load %arg13[%c6_262, %c0_263] : memref<16x64xbf16, #tpu.memory_space<vmem>>, vector<1x64xbf16>
    %c6_264 = arith.constant 6 : index
    %c0_265 = arith.constant 0 : index
    %c0_266 = arith.constant 0 : index
    %274 = vector.load %arg11[%c6_264, %c0_265, %c0_266] : memref<16x64x512xbf16, #tpu.memory_space<vmem>>, vector<1x64x512xbf16>
    %275 = vector.shape_cast %274 : vector<1x64x512xbf16> to vector<64x512xbf16>
    %cst_267 = arith.constant dense<0.000000e+00> : vector<1x512xf32>
    %276 = tpu.matmul %273, %275, %cst_267 {dimension_numbers = #tpu.dot_dimension_numbers<[1], [0], [0], [1], [0, 0, 1, 1], [], []>} : vector<1x64xbf16>, vector<64x512xbf16>, vector<1x512xf32> -> vector<1x512xf32>
    %c7_268 = arith.constant 7 : index
    %c0_269 = arith.constant 0 : index
    %277 = vector.load %arg13[%c7_268, %c0_269] : memref<16x64xbf16, #tpu.memory_space<vmem>>, vector<1x64xbf16>
    %c7_270 = arith.constant 7 : index
    %c0_271 = arith.constant 0 : index
    %c0_272 = arith.constant 0 : index
    %278 = vector.load %arg11[%c7_270, %c0_271, %c0_272] : memref<16x64x512xbf16, #tpu.memory_space<vmem>>, vector<1x64x512xbf16>
    %279 = vector.shape_cast %278 : vector<1x64x512xbf16> to vector<64x512xbf16>
    %cst_273 = arith.constant dense<0.000000e+00> : vector<1x512xf32>
    %280 = tpu.matmul %277, %279, %cst_273 {dimension_numbers = #tpu.dot_dimension_numbers<[1], [0], [0], [1], [0, 0, 1, 1], [], []>} : vector<1x64xbf16>, vector<64x512xbf16>, vector<1x512xf32> -> vector<1x512xf32>
    %c8_274 = arith.constant 8 : index
    %c0_275 = arith.constant 0 : index
    %281 = vector.load %arg13[%c8_274, %c0_275] : memref<16x64xbf16, #tpu.memory_space<vmem>>, vector<1x64xbf16>
    %c8_276 = arith.constant 8 : index
    %c0_277 = arith.constant 0 : index
    %c0_278 = arith.constant 0 : index
    %282 = vector.load %arg11[%c8_276, %c0_277, %c0_278] : memref<16x64x512xbf16, #tpu.memory_space<vmem>>, vector<1x64x512xbf16>
    %283 = vector.shape_cast %282 : vector<1x64x512xbf16> to vector<64x512xbf16>
    %cst_279 = arith.constant dense<0.000000e+00> : vector<1x512xf32>
    %284 = tpu.matmul %281, %283, %cst_279 {dimension_numbers = #tpu.dot_dimension_numbers<[1], [0], [0], [1], [0, 0, 1, 1], [], []>} : vector<1x64xbf16>, vector<64x512xbf16>, vector<1x512xf32> -> vector<1x512xf32>
    %c9_280 = arith.constant 9 : index
    %c0_281 = arith.constant 0 : index
    %285 = vector.load %arg13[%c9_280, %c0_281] : memref<16x64xbf16, #tpu.memory_space<vmem>>, vector<1x64xbf16>
    %c9_282 = arith.constant 9 : index
    %c0_283 = arith.constant 0 : index
    %c0_284 = arith.constant 0 : index
    %286 = vector.load %arg11[%c9_282, %c0_283, %c0_284] : memref<16x64x512xbf16, #tpu.memory_space<vmem>>, vector<1x64x512xbf16>
    %287 = vector.shape_cast %286 : vector<1x64x512xbf16> to vector<64x512xbf16>
    %cst_285 = arith.constant dense<0.000000e+00> : vector<1x512xf32>
    %288 = tpu.matmul %285, %287, %cst_285 {dimension_numbers = #tpu.dot_dimension_numbers<[1], [0], [0], [1], [0, 0, 1, 1], [], []>} : vector<1x64xbf16>, vector<64x512xbf16>, vector<1x512xf32> -> vector<1x512xf32>
    %c10_286 = arith.constant 10 : index
    %c0_287 = arith.constant 0 : index
    %289 = vector.load %arg13[%c10_286, %c0_287] : memref<16x64xbf16, #tpu.memory_space<vmem>>, vector<1x64xbf16>
    %c10_288 = arith.constant 10 : index
    %c0_289 = arith.constant 0 : index
    %c0_290 = arith.constant 0 : index
    %290 = vector.load %arg11[%c10_288, %c0_289, %c0_290] : memref<16x64x512xbf16, #tpu.memory_space<vmem>>, vector<1x64x512xbf16>
    %291 = vector.shape_cast %290 : vector<1x64x512xbf16> to vector<64x512xbf16>
    %cst_291 = arith.constant dense<0.000000e+00> : vector<1x512xf32>
    %292 = tpu.matmul %289, %291, %cst_291 {dimension_numbers = #tpu.dot_dimension_numbers<[1], [0], [0], [1], [0, 0, 1, 1], [], []>} : vector<1x64xbf16>, vector<64x512xbf16>, vector<1x512xf32> -> vector<1x512xf32>
    %c11_292 = arith.constant 11 : index
    %c0_293 = arith.constant 0 : index
    %293 = vector.load %arg13[%c11_292, %c0_293] : memref<16x64xbf16, #tpu.memory_space<vmem>>, vector<1x64xbf16>
    %c11_294 = arith.constant 11 : index
    %c0_295 = arith.constant 0 : index
    %c0_296 = arith.constant 0 : index
    %294 = vector.load %arg11[%c11_294, %c0_295, %c0_296] : memref<16x64x512xbf16, #tpu.memory_space<vmem>>, vector<1x64x512xbf16>
    %295 = vector.shape_cast %294 : vector<1x64x512xbf16> to vector<64x512xbf16>
    %cst_297 = arith.constant dense<0.000000e+00> : vector<1x512xf32>
    %296 = tpu.matmul %293, %295, %cst_297 {dimension_numbers = #tpu.dot_dimension_numbers<[1], [0], [0], [1], [0, 0, 1, 1], [], []>} : vector<1x64xbf16>, vector<64x512xbf16>, vector<1x512xf32> -> vector<1x512xf32>
    %c12_298 = arith.constant 12 : index
    %c0_299 = arith.constant 0 : index
    %297 = vector.load %arg13[%c12_298, %c0_299] : memref<16x64xbf16, #tpu.memory_space<vmem>>, vector<1x64xbf16>
    %c12_300 = arith.constant 12 : index
    %c0_301 = arith.constant 0 : index
    %c0_302 = arith.constant 0 : index
    %298 = vector.load %arg11[%c12_300, %c0_301, %c0_302] : memref<16x64x512xbf16, #tpu.memory_space<vmem>>, vector<1x64x512xbf16>
    %299 = vector.shape_cast %298 : vector<1x64x512xbf16> to vector<64x512xbf16>
    %cst_303 = arith.constant dense<0.000000e+00> : vector<1x512xf32>
    %300 = tpu.matmul %297, %299, %cst_303 {dimension_numbers = #tpu.dot_dimension_numbers<[1], [0], [0], [1], [0, 0, 1, 1], [], []>} : vector<1x64xbf16>, vector<64x512xbf16>, vector<1x512xf32> -> vector<1x512xf32>
    %c13_304 = arith.constant 13 : index
    %c0_305 = arith.constant 0 : index
    %301 = vector.load %arg13[%c13_304, %c0_305] : memref<16x64xbf16, #tpu.memory_space<vmem>>, vector<1x64xbf16>
    %c13_306 = arith.constant 13 : index
    %c0_307 = arith.constant 0 : index
    %c0_308 = arith.constant 0 : index
    %302 = vector.load %arg11[%c13_306, %c0_307, %c0_308] : memref<16x64x512xbf16, #tpu.memory_space<vmem>>, vector<1x64x512xbf16>
    %303 = vector.shape_cast %302 : vector<1x64x512xbf16> to vector<64x512xbf16>
    %cst_309 = arith.constant dense<0.000000e+00> : vector<1x512xf32>
    %304 = tpu.matmul %301, %303, %cst_309 {dimension_numbers = #tpu.dot_dimension_numbers<[1], [0], [0], [1], [0, 0, 1, 1], [], []>} : vector<1x64xbf16>, vector<64x512xbf16>, vector<1x512xf32> -> vector<1x512xf32>
    %c14_310 = arith.constant 14 : index
    %c0_311 = arith.constant 0 : index
    %305 = vector.load %arg13[%c14_310, %c0_311] : memref<16x64xbf16, #tpu.memory_space<vmem>>, vector<1x64xbf16>
    %c14_312 = arith.constant 14 : index
    %c0_313 = arith.constant 0 : index
    %c0_314 = arith.constant 0 : index
    %306 = vector.load %arg11[%c14_312, %c0_313, %c0_314] : memref<16x64x512xbf16, #tpu.memory_space<vmem>>, vector<1x64x512xbf16>
    %307 = vector.shape_cast %306 : vector<1x64x512xbf16> to vector<64x512xbf16>
    %cst_315 = arith.constant dense<0.000000e+00> : vector<1x512xf32>
    %308 = tpu.matmul %305, %307, %cst_315 {dimension_numbers = #tpu.dot_dimension_numbers<[1], [0], [0], [1], [0, 0, 1, 1], [], []>} : vector<1x64xbf16>, vector<64x512xbf16>, vector<1x512xf32> -> vector<1x512xf32>
    %c15_316 = arith.constant 15 : index
    %c0_317 = arith.constant 0 : index
    %309 = vector.load %arg13[%c15_316, %c0_317] : memref<16x64xbf16, #tpu.memory_space<vmem>>, vector<1x64xbf16>
    %c15_318 = arith.constant 15 : index
    %c0_319 = arith.constant 0 : index
    %c0_320 = arith.constant 0 : index
    %310 = vector.load %arg11[%c15_318, %c0_319, %c0_320] : memref<16x64x512xbf16, #tpu.memory_space<vmem>>, vector<1x64x512xbf16>
    %311 = vector.shape_cast %310 : vector<1x64x512xbf16> to vector<64x512xbf16>
    %cst_321 = arith.constant dense<0.000000e+00> : vector<1x512xf32>
    %312 = tpu.matmul %309, %311, %cst_321 {dimension_numbers = #tpu.dot_dimension_numbers<[1], [0], [0], [1], [0, 0, 1, 1], [], []>} : vector<1x64xbf16>, vector<64x512xbf16>, vector<1x512xf32> -> vector<1x512xf32>
    %313 = arith.addf %252, %256 : vector<1x512xf32>
    %314 = arith.addf %260, %264 : vector<1x512xf32>
    %315 = arith.addf %268, %272 : vector<1x512xf32>
    %316 = arith.addf %276, %280 : vector<1x512xf32>
    %317 = arith.addf %284, %288 : vector<1x512xf32>
    %318 = arith.addf %292, %296 : vector<1x512xf32>
    %319 = arith.addf %300, %304 : vector<1x512xf32>
    %320 = arith.addf %308, %312 : vector<1x512xf32>
    %321 = arith.addf %313, %314 : vector<1x512xf32>
    %322 = arith.addf %315, %316 : vector<1x512xf32>
    %323 = arith.addf %317, %318 : vector<1x512xf32>
    %324 = arith.addf %319, %320 : vector<1x512xf32>
    %325 = arith.addf %321, %322 : vector<1x512xf32>
    %326 = arith.addf %323, %324 : vector<1x512xf32>
    %327 = arith.addf %325, %326 : vector<1x512xf32>
    %c0_322 = arith.constant 0 : index
    %c384 = arith.constant 384 : index
    %328 = vector.load %arg7[%c0_322, %c384] : memref<1x1024xf32, #tpu.memory_space<vmem>>, vector<1x512xf32>
    %329 = arith.addf %327, %328 : vector<1x512xf32>
    %cst_323 = arith.constant 0.000000e+00 : f32
    %330 = vector.broadcast %cst_323 : f32 to vector<1x512xf32>
    %331 = arith.maximumf %329, %330 : vector<1x512xf32>
    %332 = arith.truncf %331 : vector<1x512xf32> to vector<1x512xbf16>
    %c0_324 = arith.constant 0 : index
    %c0_325 = arith.constant 0 : index
    %333 = vector.load %arg8[%c0_324, %c0_325] : memref<512x18xbf16, #tpu.memory_space<vmem>>, vector<512x18xbf16>
    %cst_326 = arith.constant dense<0.000000e+00> : vector<1x18xf32>
    %334 = tpu.matmul %332, %333, %cst_326 {dimension_numbers = #tpu.dot_dimension_numbers<[1], [0], [0], [1], [0, 0, 1, 1], [], []>} : vector<1x512xbf16>, vector<512x18xbf16>, vector<1x18xf32> -> vector<1x18xf32>
    %c0_327 = arith.constant 0 : index
    %c896 = arith.constant 896 : index
    %335 = vector.load %arg7[%c0_327, %c896] : memref<1x1024xf32, #tpu.memory_space<vmem>>, vector<1x18xf32>
    %336 = arith.addf %334, %335 : vector<1x18xf32>
    %c0_328 = arith.constant 0 : index
    %c0_329 = arith.constant 0 : index
    %337 = vector.load %arg10[%c0_328, %c0_329] : memref<1x18xf32, #tpu.memory_space<vmem>>, vector<1x18xf32>
    tpu.vector_store %arg10[%c0_328, %c0_329], %336 {strides = array<i32>} : memref<1x18xf32, #tpu.memory_space<vmem>>, vector<1x18xf32>,
    return
  }
}

</mosaic_0001>

<llo_original>
// kernel: forward.1
$region0: #{forward.1}
  #allocation0 [shape = 'u32[]', space=smem, size = 0x4, offset = 0x4, fixed_abs, tag = 'smem constant byte address 0x4 - core index']
  #allocation1 [shape = 'u32[72,128]{1,0:T(1,128)}', space=vmem, size = 0x9000, scoped, tag = 'internal scratch']
  #allocation2 [shape = 'bf16[16,64,512]{2,1,0:T(8,128)(2,1)}', space=vmem, size = 0x100000, scoped, tag = 'scratch operand']
  #allocation3 [shape = 's32[1]{0}', space=sflag, size = 0x4, scoped, tag = 'scratch operand']
  #allocation4 [shape = 'bf16[16,64]{1,0:T(8,128)(2,1)}', space=vmem, size = 0x1000, scoped, tag = 'scratch operand']
  #allocation7 [shape = 's32[]', space=sflag, size = 0x4, offset = 0, fixed_abs, tag = 'sflag constant byte address 0x0 - dummy sync flag']
  %s0 = inlined_call_operand.vmem [shape: bf16[225,64], index: 0, kind: input, shape index: {}]
  %s1 = inlined_call_operand.vmem [shape: bf16[4,196,225], index: 1, kind: input, shape index: {}]
  %s2 = inlined_call_operand.vmem [shape: bf16[4,64,32], index: 2, kind: input, shape index: {}]
  %s3 = inlined_call_operand.vmem [shape: bf16[16,36,196], index: 3, kind: input, shape index: {}]
  %s4 = inlined_call_operand.vmem [shape: bf16[16,32,64], index: 4, kind: input, shape index: {}]
  %s5 = inlined_call_operand.vmem [shape: bf16[9,16,36], index: 5, kind: input, shape index: {}]
  %s6 = inlined_call_operand.vmem [shape: bf16[9,64,64], index: 6, kind: input, shape index: {}]
  %s7 = inlined_call_operand.vmem [shape: f32[1,1024], index: 7, kind: input, shape index: {}]
  %s8 = inlined_call_operand.vmem [shape: bf16[512,18], index: 8, kind: input, shape index: {}]
  %s9 = inlined_call_operand.vmem [shape: bf16[16,64,512], index: 9, kind: input, shape index: {}]
  %s10 = inlined_call_operand.hbm [shape: f32[1,18], index: 10, kind: output, shape index: {}]
  %s11 = sld [smem:[#allocation0]]
  $region65: #{forward.1} parent=0
    _
  %s13 = ssub.s32 1, %s11
  %s14 = scalar_select 0, %s13, %s11
  $region1: #{forward.1} parent=0
    #allocation5 [shape = 'u8[512]{0}', space=vmem, size = 0x400, scoped, tag = 'output window, operand 0, single buffered']
    #allocation6 [shape = 's32[1]{0}', space=sflag, size = 0x4, scoped, tag = 'scoped memory for forward.1']
    %15 = vsyncpa [#allocation6], 0
    // Predicated region
    $region2: #{forward.1} parent=1 // pred_check
      _
    $region3: #{forward.1} parent=1 // pred_check_branch
      %17 = sbr.rel (0) target = $region5
    $region4: #{forward.1} parent=1 // pred_region
      _
    $region5: #{forward.1} parent=1 // pred_fallthru
      _
    // Predicated region
    $region6: #{forward.1} parent=1 // pred_check
      _
    $region7: #{forward.1} parent=1 // pred_check_branch
      %19 = sbr.rel (0) target = $region9
    $region8: #{forward.1} parent=1 // pred_region
      _
    $region9: #{forward.1} parent=1 // pred_fallthru
      _
    // Predicated region
    $region10: #{forward.1} parent=1 // pred_check
      _
    $region11: #{forward.1} parent=1 // pred_check_branch
      %21 = sbr.rel (0) target = $region13
    $region12: #{forward.1} parent=1 // pred_region
      _
    $region13: #{forward.1} parent=1 // pred_fallthru
      _
    // Predicated region
    $region14: #{forward.1} parent=1 // pred_check
      _
    $region15: #{forward.1} parent=1 // pred_check_branch
      %23 = sbr.rel (0) target = $region17
    $region16: #{forward.1} parent=1 // pred_region
      _
    $region17: #{forward.1} parent=1 // pred_fallthru
      _
    // Predicated region
    $region18: #{forward.1} parent=1 // pred_check
      _
    $region19: #{forward.1} parent=1 // pred_check_branch
      %25 = sbr.rel (0) target = $region21
    $region20: #{forward.1} parent=1 // pred_region
      _
    $region21: #{forward.1} parent=1 // pred_fallthru
      _
    // Predicated region
    $region22: #{forward.1} parent=1 // pred_check
      _
    $region23: #{forward.1} parent=1 // pred_check_branch
      %27 = sbr.rel (0) target = $region25
    $region24: #{forward.1} parent=1 // pred_region
      _
    $region25: #{forward.1} parent=1 // pred_fallthru
      _
    // Predicated region
    $region26: #{forward.1} parent=1 // pred_check
      _
    $region27: #{forward.1} parent=1 // pred_check_branch
      %29 = sbr.rel (0) target = $region29
    $region28: #{forward.1} parent=1 // pred_region
      _
    $region29: #{forward.1} parent=1 // pred_fallthru
      _
    // Predicated region
    $region30: #{forward.1} parent=1 // pred_check
      _
    $region31: #{forward.1} parent=1 // pred_check_branch
      %31 = sbr.rel (0) target = $region33
    $region32: #{forward.1} parent=1 // pred_region
      _
    $region33: #{forward.1} parent=1 // pred_fallthru
      _
    // Predicated region
    $region34: #{forward.1} parent=1 // pred_check
      _
    $region35: #{forward.1} parent=1 // pred_check_branch
      %33 = sbr.rel (0) target = $region37
    $region36: #{forward.1} parent=1 // pred_region
      _
    $region37: #{forward.1} parent=1 // pred_fallthru
      _
    // Predicated region
    $region38: #{forward.1} parent=1 // pred_check
      _
    $region39: #{forward.1} parent=1 // pred_check_branch
      %36 = sbr.rel (0) target = $region41
    $region40: #{forward.1} parent=1 // pred_region
      loop: start=0, step=1, limit=1
      $region42: #{forward.1} parent=40 // loop_pre_header
        _
      $region43: #{forward.1} parent=40 // loop_header
        %s38 = sphi 0, %s42
        %p39 = scmp.ge.s32.totalorder %s38, 1
        %s43 = sphi %s9, %s9
        %s44 = sphi [#allocation2], [#allocation2]
      $region44: #{forward.1} parent=40 // loop_header_branch
        %41 = sbr.rel (%p39) target = $region48
      $region45: #{forward.1} parent=40 // loop_body
        %v45 = vld [vmem:[%s43] sm:$0xff]
        %46 = vst [vmem:[%s44] sm:$0xff] %v45
        %v47 = vld [vmem:[%s43 + $0x8] sm:$0xff]
        %48 = vst [vmem:[%s44 + $0x8] sm:$0xff] %v47
        %v49 = vld [vmem:[%s43 + $0x10] sm:$0xff]
        %50 = vst [vmem:[%s44 + $0x10] sm:$0xff] %v49
        %v51 = vld [vmem:[%s43 + $0x18] sm:$0xff]
        %52 = vst [vmem:[%s44 + $0x18] sm:$0xff] %v51
        %v53 = vld [vmem:[%s43 + $0x20] sm:$0xff]
        %54 = vst [vmem:[%s44 + $0x20] sm:$0xff] %v53
        %v55 = vld [vmem:[%s43 + $0x28] sm:$0xff]
        %56 = vst [vmem:[%s44 + $0x28] sm:$0xff] %v55
        %v57 = vld [vmem:[%s43 + $0x30] sm:$0xff]
        %58 = vst [vmem:[%s44 + $0x30] sm:$0xff] %v57
        %v59 = vld [vmem:[%s43 + $0x38] sm:$0xff]
        %60 = vst [vmem:[%s44 + $0x38] sm:$0xff] %v59
        %v61 = vld [vmem:[%s43 + $0x40] sm:$0xff]
        %62 = vst [vmem:[%s44 + $0x40] sm:$0xff] %v61
        %v63 = vld [vmem:[%s43 + $0x48] sm:$0xff]
        %64 = vst [vmem:[%s44 + $0x48] sm:$0xff] %v63
        %v65 = vld [vmem:[%s43 + $0x50] sm:$0xff]
        %66 = vst [vmem:[%s44 + $0x50] sm:$0xff] %v65
        %v67 = vld [vmem:[%s43 + $0x58] sm:$0xff]
        %68 = vst [vmem:[%s44 + $0x58] sm:$0xff] %v67
        %v69 = vld [vmem:[%s43 + $0x60] sm:$0xff]
        %70 = vst [vmem:[%s44 + $0x60] sm:$0xff] %v69
        %v71 = vld [vmem:[%s43 + $0x68] sm:$0xff]
        %72 = vst [vmem:[%s44 + $0x68] sm:$0xff] %v71
        %v73 = vld [vmem:[%s43 + $0x70] sm:$0xff]
        %74 = vst [vmem:[%s44 + $0x70] sm:$0xff] %v73
        %v75 = vld [vmem:[%s43 + $0x78] sm:$0xff]
        %76 = vst [vmem:[%s44 + $0x78] sm:$0xff] %v75
        %v77 = vld [vmem:[%s43 + $0x80] sm:$0xff]
        %78 = vst [vmem:[%s44 + $0x80] sm:$0xff] %v77
        %v79 = vld [vmem:[%s43 + $0x88] sm:$0xff]
        %80 = vst [vmem:[%s44 + $0x88] sm:$0xff] %v79
        %v81 = vld [vmem:[%s43 + $0x90] sm:$0xff]
        %82 = vst [vmem:[%s44 + $0x90] sm:$0xff] %v81
        %v83 = vld [vmem:[%s43 + $0x98] sm:$0xff]
        %84 = vst [vmem:[%s44 + $0x98] sm:$0xff] %v83
        %v85 = vld [vmem:[%s43 + $0xa0] sm:$0xff]
        %86 = vst [vmem:[%s44 + $0xa0] sm:$0xff] %v85
        %v87 = vld [vmem:[%s43 + $0xa8] sm:$0xff]
        %88 = vst [vmem:[%s44 + $0xa8] sm:$0xff] %v87
        %v89 = vld [vmem:[%s43 + $0xb0] sm:$0xff]
        %90 = vst [vmem:[%s44 + $0xb0] sm:$0xff] %v89
        %v91 = vld [vmem:[%s43 + $0xb8] sm:$0xff]
        %92 = vst [vmem:[%s44 + $0xb8] sm:$0xff] %v91
        %v93 = vld [vmem:[%s43 + $0xc0] sm:$0xff]
        %94 = vst [vmem:[%s44 + $0xc0] sm:$0xff] %v93
        %v95 = vld [vmem:[%s43 + $0xc8] sm:$0xff]
        %96 = vst [vmem:[%s44 + $0xc8] sm:$0xff] %v95
        %v97 = vld [vmem:[%s43 + $0xd0] sm:$0xff]
        %98 = vst [vmem:[%s44 + $0xd0] sm:$0xff] %v97
        %v99 = vld [vmem:[%s43 + $0xd8] sm:$0xff]
        %100 = vst [vmem:[%s44 + $0xd8] sm:$0xff] %v99
        %v101 = vld [vmem:[%s43 + $0xe0] sm:$0xff]
        %102 = vst [vmem:[%s44 + $0xe0] sm:$0xff] %v101
        %v103 = vld [vmem:[%s43 + $0xe8] sm:$0xff]
        %104 = vst [vmem:[%s44 + $0xe8] sm:$0xff] %v103
        %v105 = vld [vmem:[%s43 + $0xf0] sm:$0xff]
        %106 = vst [vmem:[%s44 + $0xf0] sm:$0xff] %v105
        %v107 = vld [vmem:[%s43 + $0xf8] sm:$0xff]
        %108 = vst [vmem:[%s44 + $0xf8] sm:$0xff] %v107
        %v109 = vld [vmem:[%s43 + $0x100] sm:$0xff]
        %110 = vst [vmem:[%s44 + $0x100] sm:$0xff] %v109
        %v111 = vld [vmem:[%s43 + $0x108] sm:$0xff]
        %112 = vst [vmem:[%s44 + $0x108] sm:$0xff] %v111
        %v113 = vld [vmem:[%s43 + $0x110] sm:$0xff]
        %114 = vst [vmem:[%s44 + $0x110] sm:$0xff] %v113
        %v115 = vld [vmem:[%s43 + $0x118] sm:$0xff]
        %116 = vst [vmem:[%s44 + $0x118] sm:$0xff] %v115
        %v117 = vld [vmem:[%s43 + $0x120] sm:$0xff]
        %118 = vst [vmem:[%s44 + $0x120] sm:$0xff] %v117
        %v119 = vld [vmem:[%s43 + $0x128] sm:$0xff]
        %120 = vst [vmem:[%s44 + $0x128] sm:$0xff] %v119
        %v121 = vld [vmem:[%s43 + $0x130] sm:$0xff]
        %122 = vst [vmem:[%s44 + $0x130] sm:$0xff] %v121
        %v123 = vld [vmem:[%s43 + $0x138] sm:$0xff]
        %124 = vst [vmem:[%s44 + $0x138] sm:$0xff] %v123
        %v125 = vld [vmem:[%s43 + $0x140] sm:$0xff]
        %126 = vst [vmem:[%s44 + $0x140] sm:$0xff] %v125
        %v127 = vld [vmem:[%s43 + $0x148] sm:$0xff]
        %128 = vst [vmem:[%s44 + $0x148] sm:$0xff] %v127
        %v129 = vld [vmem:[%s43 + $0x150] sm:$0xff]
        %130 = vst [vmem:[%s44 + $0x150] sm:$0xff] %v129
        %v131 = vld [vmem:[%s43 + $0x158] sm:$0xff]
        %132 = vst [vmem:[%s44 + $0x158] sm:$0xff] %v131
        %v133 = vld [vmem:[%s43 + $0x160] sm:$0xff]
        %134 = vst [vmem:[%s44 + $0x160] sm:$0xff] %v133
        %v135 = vld [vmem:[%s43 + $0x168] sm:$0xff]
        %136 = vst [vmem:[%s44 + $0x168] sm:$0xff] %v135
        %v137 = vld [vmem:[%s43 + $0x170] sm:$0xff]
        %138 = vst [vmem:[%s44 + $0x170] sm:$0xff] %v137
        %v139 = vld [vmem:[%s43 + $0x178] sm:$0xff]
        %140 = vst [vmem:[%s44 + $0x178] sm:$0xff] %v139
        %v141 = vld [vmem:[%s43 + $0x180] sm:$0xff]
        %142 = vst [vmem:[%s44 + $0x180] sm:$0xff] %v141
        %v143 = vld [vmem:[%s43 + $0x188] sm:$0xff]
        %144 = vst [vmem:[%s44 + $0x188] sm:$0xff] %v143
        %v145 = vld [vmem:[%s43 + $0x190] sm:$0xff]
        %146 = vst [vmem:[%s44 + $0x190] sm:$0xff] %v145
        %v147 = vld [vmem:[%s43 + $0x198] sm:$0xff]
        %148 = vst [vmem:[%s44 + $0x198] sm:$0xff] %v147
        %v149 = vld [vmem:[%s43 + $0x1a0] sm:$0xff]
        %150 = vst [vmem:[%s44 + $0x1a0] sm:$0xff] %v149
        %v151 = vld [vmem:[%s43 + $0x1a8] sm:$0xff]
        %152 = vst [vmem:[%s44 + $0x1a8] sm:$0xff] %v151
        %v153 = vld [vmem:[%s43 + $0x1b0] sm:$0xff]
        %154 = vst [vmem:[%s44 + $0x1b0] sm:$0xff] %v153
        %v155 = vld [vmem:[%s43 + $0x1b8] sm:$0xff]
        %156 = vst [vmem:[%s44 + $0x1b8] sm:$0xff] %v155
        %v157 = vld [vmem:[%s43 + $0x1c0] sm:$0xff]
        %158 = vst [vmem:[%s44 + $0x1c0] sm:$0xff] %v157
        %v159 = vld [vmem:[%s43 + $0x1c8] sm:$0xff]
        %160 = vst [vmem:[%s44 + $0x1c8] sm:$0xff] %v159
        %v161 = vld [vmem:[%s43 + $0x1d0] sm:$0xff]
        %162 = vst [vmem:[%s44 + $0x1d0] sm:$0xff] %v161
        %v163 = vld [vmem:[%s43 + $0x1d8] sm:$0xff]
        %164 = vst [vmem:[%s44 + $0x1d8] sm:$0xff] %v163
        %v165 = vld [vmem:[%s43 + $0x1e0] sm:$0xff]
        %166 = vst [vmem:[%s44 + $0x1e0] sm:$0xff] %v165
        %v167 = vld [vmem:[%s43 + $0x1e8] sm:$0xff]
        %168 = vst [vmem:[%s44 + $0x1e8] sm:$0xff] %v167
        %v169 = vld [vmem:[%s43 + $0x1f0] sm:$0xff]
        %170 = vst [vmem:[%s44 + $0x1f0] sm:$0xff] %v169
        %v171 = vld [vmem:[%s43 + $0x1f8] sm:$0xff]
        %172 = vst [vmem:[%s44 + $0x1f8] sm:$0xff] %v171
        %v173 = vld [vmem:[%s43 + $0x200] sm:$0xff]
        %174 = vst [vmem:[%s44 + $0x200] sm:$0xff] %v173
        %v175 = vld [vmem:[%s43 + $0x208] sm:$0xff]
        %176 = vst [vmem:[%s44 + $0x208] sm:$0xff] %v175
        %v177 = vld [vmem:[%s43 + $0x210] sm:$0xff]
        %178 = vst [vmem:[%s44 + $0x210] sm:$0xff] %v177
        %v179 = vld [vmem:[%s43 + $0x218] sm:$0xff]
        %180 = vst [vmem:[%s44 + $0x218] sm:$0xff] %v179
        %v181 = vld [vmem:[%s43 + $0x220] sm:$0xff]
        %182 = vst [vmem:[%s44 + $0x220] sm:$0xff] %v181
        %v183 = vld [vmem:[%s43 + $0x228] sm:$0xff]
        %184 = vst [vmem:[%s44 + $0x228] sm:$0xff] %v183
        %v185 = vld [vmem:[%s43 + $0x230] sm:$0xff]
        %186 = vst [vmem:[%s44 + $0x230] sm:$0xff] %v185
        %v187 = vld [vmem:[%s43 + $0x238] sm:$0xff]
        %188 = vst [vmem:[%s44 + $0x238] sm:$0xff] %v187
        %v189 = vld [vmem:[%s43 + $0x240] sm:$0xff]
        %190 = vst [vmem:[%s44 + $0x240] sm:$0xff] %v189
        %v191 = vld [vmem:[%s43 + $0x248] sm:$0xff]
        %192 = vst [vmem:[%s44 + $0x248] sm:$0xff] %v191
        %v193 = vld [vmem:[%s43 + $0x250] sm:$0xff]
        %194 = vst [vmem:[%s44 + $0x250] sm:$0xff] %v193
        %v195 = vld [vmem:[%s43 + $0x258] sm:$0xff]
        %196 = vst [vmem:[%s44 + $0x258] sm:$0xff] %v195
        %v197 = vld [vmem:[%s43 + $0x260] sm:$0xff]
        %198 = vst [vmem:[%s44 + $0x260] sm:$0xff] %v197
        %v199 = vld [vmem:[%s43 + $0x268] sm:$0xff]
        %200 = vst [vmem:[%s44 + $0x268] sm:$0xff] %v199
        %v201 = vld [vmem:[%s43 + $0x270] sm:$0xff]
        %202 = vst [vmem:[%s44 + $0x270] sm:$0xff] %v201
        %v203 = vld [vmem:[%s43 + $0x278] sm:$0xff]
        %204 = vst [vmem:[%s44 + $0x278] sm:$0xff] %v203
        %v205 = vld [vmem:[%s43 + $0x280] sm:$0xff]
        %206 = vst [vmem:[%s44 + $0x280] sm:$0xff] %v205
        %v207 = vld [vmem:[%s43 + $0x288] sm:$0xff]
        %208 = vst [vmem:[%s44 + $0x288] sm:$0xff] %v207
        %v209 = vld [vmem:[%s43 + $0x290] sm:$0xff]
        %210 = vst [vmem:[%s44 + $0x290] sm:$0xff] %v209
        %v211 = vld [vmem:[%s43 + $0x298] sm:$0xff]
        %212 = vst [vmem:[%s44 + $0x298] sm:$0xff] %v211
        %v213 = vld [vmem:[%s43 + $0x2a0] sm:$0xff]
        %214 = vst [vmem:[%s44 + $0x2a0] sm:$0xff] %v213
        %v215 = vld [vmem:[%s43 + $0x2a8] sm:$0xff]
        %216 = vst [vmem:[%s44 + $0x2a8] sm:$0xff] %v215
        %v217 = vld [vmem:[%s43 + $0x2b0] sm:$0xff]
        %218 = vst [vmem:[%s44 + $0x2b0] sm:$0xff] %v217
        %v219 = vld [vmem:[%s43 + $0x2b8] sm:$0xff]
        %220 = vst [vmem:[%s44 + $0x2b8] sm:$0xff] %v219
        %v221 = vld [vmem:[%s43 + $0x2c0] sm:$0xff]
        %222 = vst [vmem:[%s44 + $0x2c0] sm:$0xff] %v221
        %v223 = vld [vmem:[%s43 + $0x2c8] sm:$0xff]
        %224 = vst [vmem:[%s44 + $0x2c8] sm:$0xff] %v223
        %v225 = vld [vmem:[%s43 + $0x2d0] sm:$0xff]
        %226 = vst [vmem:[%s44 + $0x2d0] sm:$0xff] %v225
        %v227 = vld [vmem:[%s43 + $0x2d8] sm:$0xff]
        %228 = vst [vmem:[%s44 + $0x2d8] sm:$0xff] %v227
        %v229 = vld [vmem:[%s43 + $0x2e0] sm:$0xff]
        %230 = vst [vmem:[%s44 + $0x2e0] sm:$0xff] %v229
        %v231 = vld [vmem:[%s43 + $0x2e8] sm:$0xff]
        %232 = vst [vmem:[%s44 + $0x2e8] sm:$0xff] %v231
        %v233 = vld [vmem:[%s43 + $0x2f0] sm:$0xff]
        %234 = vst [vmem:[%s44 + $0x2f0] sm:$0xff] %v233
        %v235 = vld [vmem:[%s43 + $0x2f8] sm:$0xff]
        %236 = vst [vmem:[%s44 + $0x2f8] sm:$0xff] %v235
        %v237 = vld [vmem:[%s43 + $0x300] sm:$0xff]
        %238 = vst [vmem:[%s44 + $0x300] sm:$0xff] %v237
        %v239 = vld [vmem:[%s43 + $0x308] sm:$0xff]
        %240 = vst [vmem:[%s44 + $0x308] sm:$0xff] %v239
        %v241 = vld [vmem:[%s43 + $0x310] sm:$0xff]
        %242 = vst [vmem:[%s44 + $0x310] sm:$0xff] %v241
        %v243 = vld [vmem:[%s43 + $0x318] sm:$0xff]
        %244 = vst [vmem:[%s44 + $0x318] sm:$0xff] %v243
        %v245 = vld [vmem:[%s43 + $0x320] sm:$0xff]
        %246 = vst [vmem:[%s44 + $0x320] sm:$0xff] %v245
        %v247 = vld [vmem:[%s43 + $0x328] sm:$0xff]
        %248 = vst [vmem:[%s44 + $0x328] sm:$0xff] %v247
        %v249 = vld [vmem:[%s43 + $0x330] sm:$0xff]
        %250 = vst [vmem:[%s44 + $0x330] sm:$0xff] %v249
        %v251 = vld [vmem:[%s43 + $0x338] sm:$0xff]
        %252 = vst [vmem:[%s44 + $0x338] sm:$0xff] %v251
        %v253 = vld [vmem:[%s43 + $0x340] sm:$0xff]
        %254 = vst [vmem:[%s44 + $0x340] sm:$0xff] %v253
        %v255 = vld [vmem:[%s43 + $0x348] sm:$0xff]
        %256 = vst [vmem:[%s44 + $0x348] sm:$0xff] %v255
        %v257 = vld [vmem:[%s43 + $0x350] sm:$0xff]
        %258 = vst [vmem:[%s44 + $0x350] sm:$0xff] %v257
        %v259 = vld [vmem:[%s43 + $0x358] sm:$0xff]
        %260 = vst [vmem:[%s44 + $0x358] sm:$0xff] %v259
        %v261 = vld [vmem:[%s43 + $0x360] sm:$0xff]
        %262 = vst [vmem:[%s44 + $0x360] sm:$0xff] %v261
        %v263 = vld [vmem:[%s43 + $0x368] sm:$0xff]
        %264 = vst [vmem:[%s44 + $0x368] sm:$0xff] %v263
        %v265 = vld [vmem:[%s43 + $0x370] sm:$0xff]
        %266 = vst [vmem:[%s44 + $0x370] sm:$0xff] %v265
        %v267 = vld [vmem:[%s43 + $0x378] sm:$0xff]
        %268 = vst [vmem:[%s44 + $0x378] sm:$0xff] %v267
        %v269 = vld [vmem:[%s43 + $0x380] sm:$0xff]
        %270 = vst [vmem:[%s44 + $0x380] sm:$0xff] %v269
        %v271 = vld [vmem:[%s43 + $0x388] sm:$0xff]
        %272 = vst [vmem:[%s44 + $0x388] sm:$0xff] %v271
        %v273 = vld [vmem:[%s43 + $0x390] sm:$0xff]
        %274 = vst [vmem:[%s44 + $0x390] sm:$0xff] %v273
        %v275 = vld [vmem:[%s43 + $0x398] sm:$0xff]
        %276 = vst [vmem:[%s44 + $0x398] sm:$0xff] %v275
        %v277 = vld [vmem:[%s43 + $0x3a0] sm:$0xff]
        %278 = vst [vmem:[%s44 + $0x3a0] sm:$0xff] %v277
        %v279 = vld [vmem:[%s43 + $0x3a8] sm:$0xff]
        %280 = vst [vmem:[%s44 + $0x3a8] sm:$0xff] %v279
        %v281 = vld [vmem:[%s43 + $0x3b0] sm:$0xff]
        %282 = vst [vmem:[%s44 + $0x3b0] sm:$0xff] %v281
        %v283 = vld [vmem:[%s43 + $0x3b8] sm:$0xff]
        %284 = vst [vmem:[%s44 + $0x3b8] sm:$0xff] %v283
        %v285 = vld [vmem:[%s43 + $0x3c0] sm:$0xff]
        %286 = vst [vmem:[%s44 + $0x3c0] sm:$0xff] %v285
        %v287 = vld [vmem:[%s43 + $0x3c8] sm:$0xff]
        %288 = vst [vmem:[%s44 + $0x3c8] sm:$0xff] %v287
        %v289 = vld [vmem:[%s43 + $0x3d0] sm:$0xff]
        %290 = vst [vmem:[%s44 + $0x3d0] sm:$0xff] %v289
        %v291 = vld [vmem:[%s43 + $0x3d8] sm:$0xff]
        %292 = vst [vmem:[%s44 + $0x3d8] sm:$0xff] %v291
        %v293 = vld [vmem:[%s43 + $0x3e0] sm:$0xff]
        %294 = vst [vmem:[%s44 + $0x3e0] sm:$0xff] %v293
        %v295 = vld [vmem:[%s43 + $0x3e8] sm:$0xff]
        %296 = vst [vmem:[%s44 + $0x3e8] sm:$0xff] %v295
        %v297 = vld [vmem:[%s43 + $0x3f0] sm:$0xff]
        %298 = vst [vmem:[%s44 + $0x3f0] sm:$0xff] %v297
        %v299 = vld [vmem:[%s43 + $0x3f8] sm:$0xff]
        %300 = vst [vmem:[%s44 + $0x3f8] sm:$0xff] %v299
        %v301 = vld [vmem:[%s43 + $0x400] sm:$0xff]
        %302 = vst [vmem:[%s44 + $0x400] sm:$0xff] %v301
        %v303 = vld [vmem:[%s43 + $0x408] sm:$0xff]
        %304 = vst [vmem:[%s44 + $0x408] sm:$0xff] %v303
        %v305 = vld [vmem:[%s43 + $0x410] sm:$0xff]
        %306 = vst [vmem:[%s44 + $0x410] sm:$0xff] %v305
        %v307 = vld [vmem:[%s43 + $0x418] sm:$0xff]
        %308 = vst [vmem:[%s44 + $0x418] sm:$0xff] %v307
        %v309 = vld [vmem:[%s43 + $0x420] sm:$0xff]
        %310 = vst [vmem:[%s44 + $0x420] sm:$0xff] %v309
        %v311 = vld [vmem:[%s43 + $0x428] sm:$0xff]
        %312 = vst [vmem:[%s44 + $0x428] sm:$0xff] %v311
        %v313 = vld [vmem:[%s43 + $0x430] sm:$0xff]
        %314 = vst [vmem:[%s44 + $0x430] sm:$0xff] %v313
        %v315 = vld [vmem:[%s43 + $0x438] sm:$0xff]
        %316 = vst [vmem:[%s44 + $0x438] sm:$0xff] %v315
        %v317 = vld [vmem:[%s43 + $0x440] sm:$0xff]
        %318 = vst [vmem:[%s44 + $0x440] sm:$0xff] %v317
        %v319 = vld [vmem:[%s43 + $0x448] sm:$0xff]
        %320 = vst [vmem:[%s44 + $0x448] sm:$0xff] %v319
        %v321 = vld [vmem:[%s43 + $0x450] sm:$0xff]
        %322 = vst [vmem:[%s44 + $0x450] sm:$0xff] %v321
        %v323 = vld [vmem:[%s43 + $0x458] sm:$0xff]
        %324 = vst [vmem:[%s44 + $0x458] sm:$0xff] %v323
        %v325 = vld [vmem:[%s43 + $0x460] sm:$0xff]
        %326 = vst [vmem:[%s44 + $0x460] sm:$0xff] %v325
        %v327 = vld [vmem:[%s43 + $0x468] sm:$0xff]
        %328 = vst [vmem:[%s44 + $0x468] sm:$0xff] %v327
        %v329 = vld [vmem:[%s43 + $0x470] sm:$0xff]
        %330 = vst [vmem:[%s44 + $0x470] sm:$0xff] %v329
        %v331 = vld [vmem:[%s43 + $0x478] sm:$0xff]
        %332 = vst [vmem:[%s44 + $0x478] sm:$0xff] %v331
        %v333 = vld [vmem:[%s43 + $0x480] sm:$0xff]
        %334 = vst [vmem:[%s44 + $0x480] sm:$0xff] %v333
        %v335 = vld [vmem:[%s43 + $0x488] sm:$0xff]
        %336 = vst [vmem:[%s44 + $0x488] sm:$0xff] %v335
        %v337 = vld [vmem:[%s43 + $0x490] sm:$0xff]
        %338 = vst [vmem:[%s44 + $0x490] sm:$0xff] %v337
        %v339 = vld [vmem:[%s43 + $0x498] sm:$0xff]
        %340 = vst [vmem:[%s44 + $0x498] sm:$0xff] %v339
        %v341 = vld [vmem:[%s43 + $0x4a0] sm:$0xff]
        %342 = vst [vmem:[%s44 + $0x4a0] sm:$0xff] %v341
        %v343 = vld [vmem:[%s43 + $0x4a8] sm:$0xff]
        %344 = vst [vmem:[%s44 + $0x4a8] sm:$0xff] %v343
        %v345 = vld [vmem:[%s43 + $0x4b0] sm:$0xff]
        %346 = vst [vmem:[%s44 + $0x4b0] sm:$0xff] %v345
        %v347 = vld [vmem:[%s43 + $0x4b8] sm:$0xff]
        %348 = vst [vmem:[%s44 + $0x4b8] sm:$0xff] %v347
        %v349 = vld [vmem:[%s43 + $0x4c0] sm:$0xff]
        %350 = vst [vmem:[%s44 + $0x4c0] sm:$0xff] %v349
        %v351 = vld [vmem:[%s43 + $0x4c8] sm:$0xff]
        %352 = vst [vmem:[%s44 + $0x4c8] sm:$0xff] %v351
        %v353 = vld [vmem:[%s43 + $0x4d0] sm:$0xff]
        %354 = vst [vmem:[%s44 + $0x4d0] sm:$0xff] %v353
        %v355 = vld [vmem:[%s43 + $0x4d8] sm:$0xff]
        %356 = vst [vmem:[%s44 + $0x4d8] sm:$0xff] %v355
        %v357 = vld [vmem:[%s43 + $0x4e0] sm:$0xff]
        %358 = vst [vmem:[%s44 + $0x4e0] sm:$0xff] %v357
        %v359 = vld [vmem:[%s43 + $0x4e8] sm:$0xff]
        %360 = vst [vmem:[%s44 + $0x4e8] sm:$0xff] %v359
        %v361 = vld [vmem:[%s43 + $0x4f0] sm:$0xff]
        %362 = vst [vmem:[%s44 + $0x4f0] sm:$0xff] %v361
        %v363 = vld [vmem:[%s43 + $0x4f8] sm:$0xff]
        %364 = vst [vmem:[%s44 + $0x4f8] sm:$0xff] %v363
        %v365 = vld [vmem:[%s43 + $0x500] sm:$0xff]
        %366 = vst [vmem:[%s44 + $0x500] sm:$0xff] %v365
        %v367 = vld [vmem:[%s43 + $0x508] sm:$0xff]
        %368 = vst [vmem:[%s44 + $0x508] sm:$0xff] %v367
        %v369 = vld [vmem:[%s43 + $0x510] sm:$0xff]
        %370 = vst [vmem:[%s44 + $0x510] sm:$0xff] %v369
        %v371 = vld [vmem:[%s43 + $0x518] sm:$0xff]
        %372 = vst [vmem:[%s44 + $0x518] sm:$0xff] %v371
        %v373 = vld [vmem:[%s43 + $0x520] sm:$0xff]
        %374 = vst [vmem:[%s44 + $0x520] sm:$0xff] %v373
        %v375 = vld [vmem:[%s43 + $0x528] sm:$0xff]
        %376 = vst [vmem:[%s44 + $0x528] sm:$0xff] %v375
        %v377 = vld [vmem:[%s43 + $0x530] sm:$0xff]
        %378 = vst [vmem:[%s44 + $0x530] sm:$0xff] %v377
        %v379 = vld [vmem:[%s43 + $0x538] sm:$0xff]
        %380 = vst [vmem:[%s44 + $0x538] sm:$0xff] %v379
        %v381 = vld [vmem:[%s43 + $0x540] sm:$0xff]
        %382 = vst [vmem:[%s44 + $0x540] sm:$0xff] %v381
        %v383 = vld [vmem:[%s43 + $0x548] sm:$0xff]
        %384 = vst [vmem:[%s44 + $0x548] sm:$0xff] %v383
        %v385 = vld [vmem:[%s43 + $0x550] sm:$0xff]
        %386 = vst [vmem:[%s44 + $0x550] sm:$0xff] %v385
        %v387 = vld [vmem:[%s43 + $0x558] sm:$0xff]
        %388 = vst [vmem:[%s44 + $0x558] sm:$0xff] %v387
        %v389 = vld [vmem:[%s43 + $0x560] sm:$0xff]
        %390 = vst [vmem:[%s44 + $0x560] sm:$0xff] %v389
        %v391 = vld [vmem:[%s43 + $0x568] sm:$0xff]
        %392 = vst [vmem:[%s44 + $0x568] sm:$0xff] %v391
        %v393 = vld [vmem:[%s43 + $0x570] sm:$0xff]
        %394 = vst [vmem:[%s44 + $0x570] sm:$0xff] %v393
        %v395 = vld [vmem:[%s43 + $0x578] sm:$0xff]
        %396 = vst [vmem:[%s44 + $0x578] sm:$0xff] %v395
        %v397 = vld [vmem:[%s43 + $0x580] sm:$0xff]
        %398 = vst [vmem:[%s44 + $0x580] sm:$0xff] %v397
        %v399 = vld [vmem:[%s43 + $0x588] sm:$0xff]
        %400 = vst [vmem:[%s44 + $0x588] sm:$0xff] %v399
        %v401 = vld [vmem:[%s43 + $0x590] sm:$0xff]
        %402 = vst [vmem:[%s44 + $0x590] sm:$0xff] %v401
        %v403 = vld [vmem:[%s43 + $0x598] sm:$0xff]
        %404 = vst [vmem:[%s44 + $0x598] sm:$0xff] %v403
        %v405 = vld [vmem:[%s43 + $0x5a0] sm:$0xff]
        %406 = vst [vmem:[%s44 + $0x5a0] sm:$0xff] %v405
        %v407 = vld [vmem:[%s43 + $0x5a8] sm:$0xff]
        %408 = vst [vmem:[%s44 + $0x5a8] sm:$0xff] %v407
        %v409 = vld [vmem:[%s43 + $0x5b0] sm:$0xff]
        %410 = vst [vmem:[%s44 + $0x5b0] sm:$0xff] %v409
        %v411 = vld [vmem:[%s43 + $0x5b8] sm:$0xff]
        %412 = vst [vmem:[%s44 + $0x5b8] sm:$0xff] %v411
        %v413 = vld [vmem:[%s43 + $0x5c0] sm:$0xff]
        %414 = vst [vmem:[%s44 + $0x5c0] sm:$0xff] %v413
        %v415 = vld [vmem:[%s43 + $0x5c8] sm:$0xff]
        %416 = vst [vmem:[%s44 + $0x5c8] sm:$0xff] %v415
        %v417 = vld [vmem:[%s43 + $0x5d0] sm:$0xff]
        %418 = vst [vmem:[%s44 + $0x5d0] sm:$0xff] %v417
        %v419 = vld [vmem:[%s43 + $0x5d8] sm:$0xff]
        %420 = vst [vmem:[%s44 + $0x5d8] sm:$0xff] %v419
        %v421 = vld [vmem:[%s43 + $0x5e0] sm:$0xff]
        %422 = vst [vmem:[%s44 + $0x5e0] sm:$0xff] %v421
        %v423 = vld [vmem:[%s43 + $0x5e8] sm:$0xff]
        %424 = vst [vmem:[%s44 + $0x5e8] sm:$0xff] %v423
        %v425 = vld [vmem:[%s43 + $0x5f0] sm:$0xff]
        %426 = vst [vmem:[%s44 + $0x5f0] sm:$0xff] %v425
        %v427 = vld [vmem:[%s43 + $0x5f8] sm:$0xff]
        %428 = vst [vmem:[%s44 + $0x5f8] sm:$0xff] %v427
        %v429 = vld [vmem:[%s43 + $0x600] sm:$0xff]
        %430 = vst [vmem:[%s44 + $0x600] sm:$0xff] %v429
        %v431 = vld [vmem:[%s43 + $0x608] sm:$0xff]
        %432 = vst [vmem:[%s44 + $0x608] sm:$0xff] %v431
        %v433 = vld [vmem:[%s43 + $0x610] sm:$0xff]
        %434 = vst [vmem:[%s44 + $0x610] sm:$0xff] %v433
        %v435 = vld [vmem:[%s43 + $0x618] sm:$0xff]
        %436 = vst [vmem:[%s44 + $0x618] sm:$0xff] %v435
        %v437 = vld [vmem:[%s43 + $0x620] sm:$0xff]
        %438 = vst [vmem:[%s44 + $0x620] sm:$0xff] %v437
        %v439 = vld [vmem:[%s43 + $0x628] sm:$0xff]
        %440 = vst [vmem:[%s44 + $0x628] sm:$0xff] %v439
        %v441 = vld [vmem:[%s43 + $0x630] sm:$0xff]
        %442 = vst [vmem:[%s44 + $0x630] sm:$0xff] %v441
        %v443 = vld [vmem:[%s43 + $0x638] sm:$0xff]
        %444 = vst [vmem:[%s44 + $0x638] sm:$0xff] %v443
        %v445 = vld [vmem:[%s43 + $0x640] sm:$0xff]
        %446 = vst [vmem:[%s44 + $0x640] sm:$0xff] %v445
        %v447 = vld [vmem:[%s43 + $0x648] sm:$0xff]
        %448 = vst [vmem:[%s44 + $0x648] sm:$0xff] %v447
        %v449 = vld [vmem:[%s43 + $0x650] sm:$0xff]
        %450 = vst [vmem:[%s44 + $0x650] sm:$0xff] %v449
        %v451 = vld [vmem:[%s43 + $0x658] sm:$0xff]
        %452 = vst [vmem:[%s44 + $0x658] sm:$0xff] %v451
        %v453 = vld [vmem:[%s43 + $0x660] sm:$0xff]
        %454 = vst [vmem:[%s44 + $0x660] sm:$0xff] %v453
        %v455 = vld [vmem:[%s43 + $0x668] sm:$0xff]
        %456 = vst [vmem:[%s44 + $0x668] sm:$0xff] %v455
        %v457 = vld [vmem:[%s43 + $0x670] sm:$0xff]
        %458 = vst [vmem:[%s44 + $0x670] sm:$0xff] %v457
        %v459 = vld [vmem:[%s43 + $0x678] sm:$0xff]
        %460 = vst [vmem:[%s44 + $0x678] sm:$0xff] %v459
        %v461 = vld [vmem:[%s43 + $0x680] sm:$0xff]
        %462 = vst [vmem:[%s44 + $0x680] sm:$0xff] %v461
        %v463 = vld [vmem:[%s43 + $0x688] sm:$0xff]
        %464 = vst [vmem:[%s44 + $0x688] sm:$0xff] %v463
        %v465 = vld [vmem:[%s43 + $0x690] sm:$0xff]
        %466 = vst [vmem:[%s44 + $0x690] sm:$0xff] %v465
        %v467 = vld [vmem:[%s43 + $0x698] sm:$0xff]
        %468 = vst [vmem:[%s44 + $0x698] sm:$0xff] %v467
        %v469 = vld [vmem:[%s43 + $0x6a0] sm:$0xff]
        %470 = vst [vmem:[%s44 + $0x6a0] sm:$0xff] %v469
        %v471 = vld [vmem:[%s43 + $0x6a8] sm:$0xff]
        %472 = vst [vmem:[%s44 + $0x6a8] sm:$0xff] %v471
        %v473 = vld [vmem:[%s43 + $0x6b0] sm:$0xff]
        %474 = vst [vmem:[%s44 + $0x6b0] sm:$0xff] %v473
        %v475 = vld [vmem:[%s43 + $0x6b8] sm:$0xff]
        %476 = vst [vmem:[%s44 + $0x6b8] sm:$0xff] %v475
        %v477 = vld [vmem:[%s43 + $0x6c0] sm:$0xff]
        %478 = vst [vmem:[%s44 + $0x6c0] sm:$0xff] %v477
        %v479 = vld [vmem:[%s43 + $0x6c8] sm:$0xff]
        %480 = vst [vmem:[%s44 + $0x6c8] sm:$0xff] %v479
        %v481 = vld [vmem:[%s43 + $0x6d0] sm:$0xff]
        %482 = vst [vmem:[%s44 + $0x6d0] sm:$0xff] %v481
        %v483 = vld [vmem:[%s43 + $0x6d8] sm:$0xff]
        %484 = vst [vmem:[%s44 + $0x6d8] sm:$0xff] %v483
        %v485 = vld [vmem:[%s43 + $0x6e0] sm:$0xff]
        %486 = vst [vmem:[%s44 + $0x6e0] sm:$0xff] %v485
        %v487 = vld [vmem:[%s43 + $0x6e8] sm:$0xff]
        %488 = vst [vmem:[%s44 + $0x6e8] sm:$0xff] %v487
        %v489 = vld [vmem:[%s43 + $0x6f0] sm:$0xff]
        %490 = vst [vmem:[%s44 + $0x6f0] sm:$0xff] %v489
        %v491 = vld [vmem:[%s43 + $0x6f8] sm:$0xff]
        %492 = vst [vmem:[%s44 + $0x6f8] sm:$0xff] %v491
        %v493 = vld [vmem:[%s43 + $0x700] sm:$0xff]
        %494 = vst [vmem:[%s44 + $0x700] sm:$0xff] %v493
        %v495 = vld [vmem:[%s43 + $0x708] sm:$0xff]
        %496 = vst [vmem:[%s44 + $0x708] sm:$0xff] %v495
        %v497 = vld [vmem:[%s43 + $0x710] sm:$0xff]
        %498 = vst [vmem:[%s44 + $0x710] sm:$0xff] %v497
        %v499 = vld [vmem:[%s43 + $0x718] sm:$0xff]
        %500 = vst [vmem:[%s44 + $0x718] sm:$0xff] %v499
        %v501 = vld [vmem:[%s43 + $0x720] sm:$0xff]
        %502 = vst [vmem:[%s44 + $0x720] sm:$0xff] %v501
        %v503 = vld [vmem:[%s43 + $0x728] sm:$0xff]
        %504 = vst [vmem:[%s44 + $0x728] sm:$0xff] %v503
        %v505 = vld [vmem:[%s43 + $0x730] sm:$0xff]
        %506 = vst [vmem:[%s44 + $0x730] sm:$0xff] %v505
        %v507 = vld [vmem:[%s43 + $0x738] sm:$0xff]
        %508 = vst [vmem:[%s44 + $0x738] sm:$0xff] %v507
        %v509 = vld [vmem:[%s43 + $0x740] sm:$0xff]
        %510 = vst [vmem:[%s44 + $0x740] sm:$0xff] %v509
        %v511 = vld [vmem:[%s43 + $0x748] sm:$0xff]
        %512 = vst [vmem:[%s44 + $0x748] sm:$0xff] %v511
        %v513 = vld [vmem:[%s43 + $0x750] sm:$0xff]
        %514 = vst [vmem:[%s44 + $0x750] sm:$0xff] %v513
        %v515 = vld [vmem:[%s43 + $0x758] sm:$0xff]
        %516 = vst [vmem:[%s44 + $0x758] sm:$0xff] %v515
        %v517 = vld [vmem:[%s43 + $0x760] sm:$0xff]
        %518 = vst [vmem:[%s44 + $0x760] sm:$0xff] %v517
        %v519 = vld [vmem:[%s43 + $0x768] sm:$0xff]
        %520 = vst [vmem:[%s44 + $0x768] sm:$0xff] %v519
        %v521 = vld [vmem:[%s43 + $0x770] sm:$0xff]
        %522 = vst [vmem:[%s44 + $0x770] sm:$0xff] %v521
        %v523 = vld [vmem:[%s43 + $0x778] sm:$0xff]
        %524 = vst [vmem:[%s44 + $0x778] sm:$0xff] %v523
        %v525 = vld [vmem:[%s43 + $0x780] sm:$0xff]
        %526 = vst [vmem:[%s44 + $0x780] sm:$0xff] %v525
        %v527 = vld [vmem:[%s43 + $0x788] sm:$0xff]
        %528 = vst [vmem:[%s44 + $0x788] sm:$0xff] %v527
        %v529 = vld [vmem:[%s43 + $0x790] sm:$0xff]
        %530 = vst [vmem:[%s44 + $0x790] sm:$0xff] %v529
        %v531 = vld [vmem:[%s43 + $0x798] sm:$0xff]
        %532 = vst [vmem:[%s44 + $0x798] sm:$0xff] %v531
        %v533 = vld [vmem:[%s43 + $0x7a0] sm:$0xff]
        %534 = vst [vmem:[%s44 + $0x7a0] sm:$0xff] %v533
        %v535 = vld [vmem:[%s43 + $0x7a8] sm:$0xff]
        %536 = vst [vmem:[%s44 + $0x7a8] sm:$0xff] %v535
        %v537 = vld [vmem:[%s43 + $0x7b0] sm:$0xff]
        %538 = vst [vmem:[%s44 + $0x7b0] sm:$0xff] %v537
        %v539 = vld [vmem:[%s43 + $0x7b8] sm:$0xff]
        %540 = vst [vmem:[%s44 + $0x7b8] sm:$0xff] %v539
        %v541 = vld [vmem:[%s43 + $0x7c0] sm:$0xff]
        %542 = vst [vmem:[%s44 + $0x7c0] sm:$0xff] %v541
        %v543 = vld [vmem:[%s43 + $0x7c8] sm:$0xff]
        %544 = vst [vmem:[%s44 + $0x7c8] sm:$0xff] %v543
        %v545 = vld [vmem:[%s43 + $0x7d0] sm:$0xff]
        %546 = vst [vmem:[%s44 + $0x7d0] sm:$0xff] %v545
        %v547 = vld [vmem:[%s43 + $0x7d8] sm:$0xff]
        %548 = vst [vmem:[%s44 + $0x7d8] sm:$0xff] %v547
        %v549 = vld [vmem:[%s43 + $0x7e0] sm:$0xff]
        %550 = vst [vmem:[%s44 + $0x7e0] sm:$0xff] %v549
        %v551 = vld [vmem:[%s43 + $0x7e8] sm:$0xff]
        %552 = vst [vmem:[%s44 + $0x7e8] sm:$0xff] %v551
        %v553 = vld [vmem:[%s43 + $0x7f0] sm:$0xff]
        %554 = vst [vmem:[%s44 + $0x7f0] sm:$0xff] %v553
        %v555 = vld [vmem:[%s43 + $0x7f8] sm:$0xff]
        %556 = vst [vmem:[%s44 + $0x7f8] sm:$0xff] %v555
      $region46: #{forward.1} parent=40 // loop_footer
        %s42 = sadd.s32 1, %s38
      $region47: #{forward.1} parent=40 // loop_footer_branch
        %37 = sbr.rel target = $region43
      $region48: #{forward.1} parent=40 // loop_exit
        _
    $region41: #{forward.1} parent=1 // pred_fallthru
      _
    // Predicated region
    $region49: #{forward.1} parent=1 // pred_check
      _
    $region50: #{forward.1} parent=1 // pred_check_branch
      %558 = sbr.rel target = $region52
    $region51: #{forward.1} parent=1 // pred_region
      _
    $region52: #{forward.1} parent=1 // pred_fallthru
      _
    // Predicated region
    $region53: #{forward.1} parent=1 // pred_check
      _
    $region54: #{forward.1} parent=1 // pred_check_branch
      %561 = sbr.rel (0) target = $region56
    $region55: #{forward.1} parent=1 // pred_region
      %562 = vsyncadd [#allocation3], 32768
    $region56: #{forward.1} parent=1 // pred_fallthru
      _
    %v563 = vld [vmem:[%s0] sm:$0xf]
    %v564 = vld [vmem:[%s0 + $0x4] sm:$0xf]
    %v565 = vld [vmem:[%s0 + $0x8] sm:$0xf]
    %v566 = vld [vmem:[%s0 + $0xc] sm:$0xf]
    %v567 = vld [vmem:[%s0 + $0x10] sm:$0xf]
    %v568 = vld [vmem:[%s0 + $0x14] sm:$0xf]
    %v569 = vld [vmem:[%s0 + $0x18] sm:$0xf]
    %v570 = vld [vmem:[%s0 + $0x1c] sm:$0xf]
    %v571 = vld [vmem:[%s0 + $0x20] sm:$0xf]
    %v572 = vld [vmem:[%s0 + $0x24] sm:$0xf]
    %v573 = vld [vmem:[%s0 + $0x28] sm:$0xf]
    %v574 = vld [vmem:[%s0 + $0x2c] sm:$0xf]
    %v575 = vld [vmem:[%s0 + $0x30] sm:$0xf]
    %v576 = vld [vmem:[%s0 + $0x34] sm:$0xf]
    %v577 = vld [vmem:[%s0 + $0x38] sm:$0xf]
    %v578 = vld [vmem:[%s0 + $0x3c] sm:$0xf]
    %v579 = vld [vmem:[%s0 + $0x40] sm:$0xf]
    %v580 = vld [vmem:[%s0 + $0x44] sm:$0xf]
    %v581 = vld [vmem:[%s0 + $0x48] sm:$0xf]
    %v582 = vld [vmem:[%s0 + $0x4c] sm:$0xf]
    %v583 = vld [vmem:[%s0 + $0x50] sm:$0xf]
    %v584 = vld [vmem:[%s0 + $0x54] sm:$0xf]
    %v585 = vld [vmem:[%s0 + $0x58] sm:$0xf]
    %v586 = vld [vmem:[%s0 + $0x5c] sm:$0xf]
    %v587 = vld [vmem:[%s0 + $0x60] sm:$0xf]
    %v588 = vld [vmem:[%s0 + $0x64] sm:$0xf]
    %v589 = vld [vmem:[%s0 + $0x68] sm:$0xf]
    %v590 = vld [vmem:[%s0 + $0x6c] sm:$0xf]
    %v591 = vld [vmem:[%s0 + $0x70] sm:$0x1]
    %v592 = vld [vmem:[%s2] sm:$0xf]
    %v593 = vld [vmem:[%s2 + $0x4] sm:$0xf]
    %v594 = vld [vmem:[%s2 + $0x8] sm:$0xf]
    %v595 = vld [vmem:[%s2 + $0xc] sm:$0xf]
    %v596 = vld [vmem:[%s2 + $0x10] sm:$0xf]
    %v597 = vld [vmem:[%s2 + $0x14] sm:$0xf]
    %v598 = vld [vmem:[%s2 + $0x18] sm:$0xf]
    %v599 = vld [vmem:[%s2 + $0x1c] sm:$0xf]
    %v629 = vunpack.c.l.b16 %v563
    %v630 = vunpack.c.l.b16 %v564
    %v631 = vunpack.c.l.b16 %v565
    %v632 = vunpack.c.l.b16 %v566
    %v633 = vunpack.c.l.b16 %v567
    %v634 = vunpack.c.l.b16 %v568
    %v635 = vunpack.c.l.b16 %v569
    %v636 = vunpack.c.l.b16 %v570
    %v637 = vunpack.c.l.b16 %v571
    %v638 = vunpack.c.l.b16 %v572
    %v639 = vunpack.c.l.b16 %v573
    %v640 = vunpack.c.l.b16 %v574
    %v641 = vunpack.c.l.b16 %v575
    %v642 = vunpack.c.l.b16 %v576
    %v643 = vunpack.c.l.b16 %v577
    %v644 = vunpack.c.l.b16 %v578
    %v645 = vunpack.c.l.b16 %v579
    %v646 = vunpack.c.l.b16 %v580
    %v647 = vunpack.c.l.b16 %v581
    %v648 = vunpack.c.l.b16 %v582
    %v649 = vunpack.c.l.b16 %v583
    %v650 = vunpack.c.l.b16 %v584
    %v651 = vunpack.c.l.b16 %v585
    %v652 = vunpack.c.l.b16 %v586
    %v653 = vunpack.c.l.b16 %v587
    %v654 = vunpack.c.l.b16 %v588
    %v655 = vunpack.c.l.b16 %v589
    %v656 = vunpack.c.l.b16 %v590
    %v657 = vunpack.c.l.b16 %v591
    %v658 = vpack.c.b16 %v630, %v629
    %v659 = vpack.c.b16 %v632, %v631
    %v660 = vpack.c.b16 %v634, %v633
    %v661 = vpack.c.b16 %v636, %v635
    %v662 = vpack.c.b16 %v638, %v637
    %v663 = vpack.c.b16 %v640, %v639
    %v664 = vpack.c.b16 %v642, %v641
    %v665 = vpack.c.b16 %v644, %v643
    %v666 = vpack.c.b16 %v646, %v645
    %v667 = vpack.c.b16 %v648, %v647
    %v668 = vpack.c.b16 %v650, %v649
    %v669 = vpack.c.b16 %v652, %v651
    %v670 = vpack.c.b16 %v654, %v653
    %v671 = vpack.c.b16 %v656, %v655
    %v672 = vpack.c.b16 %v657, %v657
    %v681 = vunpack.c.l.b16 %v592
    %v682 = vunpack.c.l.b16 %v593
    %v683 = vunpack.c.l.b16 %v594
    %v684 = vunpack.c.l.b16 %v595
    %v685 = vunpack.c.l.b16 %v596
    %v686 = vunpack.c.l.b16 %v597
    %v687 = vunpack.c.l.b16 %v598
    %v688 = vunpack.c.l.b16 %v599
    %v689 = vpack.c.b16 %v682, %v681
    %v690 = vpack.c.b16 %v684, %v683
    %v691 = vpack.c.b16 %v686, %v685
    %v692 = vpack.c.b16 %v688, %v687
    %vm697 = vcmask 523264
    %v699 = vsel %vm697, %v658, 0
    %v702 = vsel %vm697, %v659, 0
    %v705 = vsel %vm697, %v660, 0
    %v708 = vsel %vm697, %v661, 0
    %v711 = vsel %vm697, %v662, 0
    %v714 = vsel %vm697, %v663, 0
    %v717 = vsel %vm697, %v664, 0
    %v720 = vsel %vm697, %v665, 0
    %v723 = vsel %vm697, %v666, 0
    %v726 = vsel %vm697, %v667, 0
    %v729 = vsel %vm697, %v668, 0
    %v732 = vsel %vm697, %v669, 0
    %v735 = vsel %vm697, %v670, 0
    %v738 = vsel %vm697, %v671, 0
    %v741 = vsel %vm697, %v672, 0
    %743 = vmatpush.bf16.msra.mxu0 0
    %744 = vmatpush.bf16.msra.mxu0 0
    %745 = vmatpush.bf16.msra.mxu0 0
    %746 = vmatpush.bf16.msra.mxu0 0
    %747 = vmatpush.bf16.msra.mxu0 %v692
    %748 = vmatpush.bf16.msra.mxu0 %v691
    %749 = vmatpush.bf16.msra.mxu0 %v690
    %750 = vmatpush.bf16.msra.mxu0 %v689
    %751 = vmatmul.bf16.gmra.mxu0 %v699
    %v752 = vpop.f32.mrf.mxu0
    %v753 = vadd.f32 0.0, %v752
    %v754 = vpop.f32.mrf.mxu0
    %v755 = vadd.f32 0.0, %v754
    %756 = vmatmul.bf16.gmra.mxu0 %v702
    %v757 = vpop.f32.mrf.mxu0
    %v758 = vadd.f32 0.0, %v757
    %v759 = vpop.f32.mrf.mxu0
    %v760 = vadd.f32 0.0, %v759
    %761 = vmatmul.bf16.gmra.mxu0 %v705
    %v762 = vpop.f32.mrf.mxu0
    %v763 = vadd.f32 0.0, %v762
    %v764 = vpop.f32.mrf.mxu0
    %v765 = vadd.f32 0.0, %v764
    %766 = vmatmul.bf16.gmra.mxu0 %v708
    %v767 = vpop.f32.mrf.mxu0
    %v768 = vadd.f32 0.0, %v767
    %v769 = vpop.f32.mrf.mxu0
    %v770 = vadd.f32 0.0, %v769
    %771 = vmatmul.bf16.gmra.mxu0 %v711
    %v772 = vpop.f32.mrf.mxu0
    %v773 = vadd.f32 0.0, %v772
    %v774 = vpop.f32.mrf.mxu0
    %v775 = vadd.f32 0.0, %v774
    %776 = vmatmul.bf16.gmra.mxu0 %v714
    %v777 = vpop.f32.mrf.mxu0
    %v778 = vadd.f32 0.0, %v777
    %v779 = vpop.f32.mrf.mxu0
    %v780 = vadd.f32 0.0, %v779
    %781 = vmatmul.bf16.gmra.mxu0 %v717
    %v782 = vpop.f32.mrf.mxu0
    %v783 = vadd.f32 0.0, %v782
    %v784 = vpop.f32.mrf.mxu0
    %v785 = vadd.f32 0.0, %v784
    %786 = vmatmul.bf16.gmra.mxu0 %v720
    %v787 = vpop.f32.mrf.mxu0
    %v788 = vadd.f32 0.0, %v787
    %v789 = vpop.f32.mrf.mxu0
    %v790 = vadd.f32 0.0, %v789
    %791 = vmatmul.bf16.gmra.mxu0 %v723
    %v792 = vpop.f32.mrf.mxu0
    %v793 = vadd.f32 0.0, %v792
    %v794 = vpop.f32.mrf.mxu0
    %v795 = vadd.f32 0.0, %v794
    %796 = vmatmul.bf16.gmra.mxu0 %v726
    %v797 = vpop.f32.mrf.mxu0
    %v798 = vadd.f32 0.0, %v797
    %v799 = vpop.f32.mrf.mxu0
    %v800 = vadd.f32 0.0, %v799
    %801 = vmatmul.bf16.gmra.mxu0 %v729
    %v802 = vpop.f32.mrf.mxu0
    %v803 = vadd.f32 0.0, %v802
    %v804 = vpop.f32.mrf.mxu0
    %v805 = vadd.f32 0.0, %v804
    %806 = vmatmul.bf16.gmra.mxu0 %v732
    %v807 = vpop.f32.mrf.mxu0
    %v808 = vadd.f32 0.0, %v807
    %v809 = vpop.f32.mrf.mxu0
    %v810 = vadd.f32 0.0, %v809
    %811 = vmatmul.bf16.gmra.mxu0 %v735
    %v812 = vpop.f32.mrf.mxu0
    %v813 = vadd.f32 0.0, %v812
    %v814 = vpop.f32.mrf.mxu0
    %v815 = vadd.f32 0.0, %v814
    %816 = vmatmul.bf16.gmra.mxu0 %v738
    %v817 = vpop.f32.mrf.mxu0
    %v818 = vadd.f32 0.0, %v817
    %v819 = vpop.f32.mrf.mxu0
    %v820 = vadd.f32 0.0, %v819
    %821 = vmatmul.bf16.gmra.mxu0 %v741
    %v822 = vpop.f32.mrf.mxu0
    %v823 = vadd.f32 0.0, %v822
    %v824 = vpop.f32.mrf.mxu0
    %825 = vdwg.mxu0
    %v826 = vld [vmem:[%s1] sm:$0xff]
    %v827 = vld [vmem:[%s1 + $0x8] sm:$0xff]
    %v828 = vld [vmem:[%s1 + $0x10] sm:$0xff]
    %v829 = vld [vmem:[%s1 + $0x18] sm:$0xff]
    %v830 = vld [vmem:[%s1 + $0x20] sm:$0xff]
    %v831 = vld [vmem:[%s1 + $0x28] sm:$0xff]
    %v832 = vld [vmem:[%s1 + $0x30] sm:$0xff]
    %v833 = vld [vmem:[%s1 + $0x38] sm:$0xff]
    %v834 = vld [vmem:[%s1 + $0x40] sm:$0xff]
    %v835 = vld [vmem:[%s1 + $0x48] sm:$0xff]
    %v836 = vld [vmem:[%s1 + $0x50] sm:$0xff]
    %v837 = vld [vmem:[%s1 + $0x58] sm:$0xff]
    %v838 = vld [vmem:[%s1 + $0x60] sm:$0xff]
    %v839 = vld [vmem:[%s1 + $0x68] sm:$0xff]
    %v840 = vld [vmem:[%s1 + $0x70] sm:$0xff]
    %v841 = vld [vmem:[%s1 + $0x78] sm:$0xff]
    %v842 = vld [vmem:[%s1 + $0x80] sm:$0xff]
    %v843 = vld [vmem:[%s1 + $0x88] sm:$0xff]
    %v844 = vld [vmem:[%s1 + $0x90] sm:$0xff]
    %v845 = vld [vmem:[%s1 + $0x98] sm:$0xff]
    %v846 = vld [vmem:[%s1 + $0xa0] sm:$0xff]
    %v847 = vld [vmem:[%s1 + $0xa8] sm:$0xff]
    %v848 = vld [vmem:[%s1 + $0xb0] sm:$0xff]
    %v849 = vld [vmem:[%s1 + $0xb8] sm:$0xff]
    %v850 = vld [vmem:[%s1 + $0xc0] sm:$0x33]
    %v851 = vpack.c.bf16 %v755, %v753
    %v852 = vpack.c.bf16 %v760, %v758
    %v853 = vpack.c.bf16 %v765, %v763
    %v854 = vpack.c.bf16 %v770, %v768
    %v855 = vpack.c.bf16 %v775, %v773
    %v856 = vpack.c.bf16 %v780, %v778
    %v857 = vpack.c.bf16 %v785, %v783
    %v858 = vpack.c.bf16 %v790, %v788
    %v859 = vpack.c.bf16 %v795, %v793
    %v860 = vpack.c.bf16 %v800, %v798
    %v861 = vpack.c.bf16 %v805, %v803
    %v862 = vpack.c.bf16 %v810, %v808
    %v863 = vpack.c.bf16 %v815, %v813
    %v864 = vpack.c.bf16 %v820, %v818
    %v865 = vpack.c.bf16 %v823, %v823
    %s866 = scalar_lea.vmem %s2, 32
    %v867 = vld [vmem:[%s866] sm:$0xf]
    %v868 = vld [vmem:[%s866 + $0x4] sm:$0xf]
    %v869 = vld [vmem:[%s866 + $0x8] sm:$0xf]
    %v870 = vld [vmem:[%s866 + $0xc] sm:$0xf]
    %v871 = vld [vmem:[%s866 + $0x10] sm:$0xf]
    %v872 = vld [vmem:[%s866 + $0x14] sm:$0xf]
    %v873 = vld [vmem:[%s866 + $0x18] sm:$0xf]
    %v874 = vld [vmem:[%s866 + $0x1c] sm:$0xf]
    %v883 = vunpack.c.l.b16 %v867
    %v884 = vunpack.c.l.b16 %v868
    %v885 = vunpack.c.l.b16 %v869
    %v886 = vunpack.c.l.b16 %v870
    %v887 = vunpack.c.l.b16 %v871
    %v888 = vunpack.c.l.b16 %v872
    %v889 = vunpack.c.l.b16 %v873
    %v890 = vunpack.c.l.b16 %v874
    %v891 = vpack.c.b16 %v884, %v883
    %v892 = vpack.c.b16 %v886, %v885
    %v893 = vpack.c.b16 %v888, %v887
    %v894 = vpack.c.b16 %v890, %v889
    %899 = vmatpush.bf16.msra.mxu0 0
    %900 = vmatpush.bf16.msra.mxu0 0
    %901 = vmatpush.bf16.msra.mxu0 0
    %902 = vmatpush.bf16.msra.mxu0 0
    %903 = vmatpush.bf16.msra.mxu0 %v894
    %904 = vmatpush.bf16.msra.mxu0 %v893
    %905 = vmatpush.bf16.msra.mxu0 %v892
    %906 = vmatpush.bf16.msra.mxu0 %v891
    %907 = vmatmul.bf16.gmra.mxu0 %v699
    %v908 = vpop.f32.mrf.mxu0
    %v909 = vadd.f32 0.0, %v908
    %v910 = vpop.f32.mrf.mxu0
    %v911 = vadd.f32 0.0, %v910
    %912 = vmatmul.bf16.gmra.mxu0 %v702
    %v913 = vpop.f32.mrf.mxu0
    %v914 = vadd.f32 0.0, %v913
    %v915 = vpop.f32.mrf.mxu0
    %v916 = vadd.f32 0.0, %v915
    %917 = vmatmul.bf16.gmra.mxu0 %v705
    %v918 = vpop.f32.mrf.mxu0
    %v919 = vadd.f32 0.0, %v918
    %v920 = vpop.f32.mrf.mxu0
    %v921 = vadd.f32 0.0, %v920
    %922 = vmatmul.bf16.gmra.mxu0 %v708
    %v923 = vpop.f32.mrf.mxu0
    %v924 = vadd.f32 0.0, %v923
    %v925 = vpop.f32.mrf.mxu0
    %v926 = vadd.f32 0.0, %v925
    %927 = vmatmul.bf16.gmra.mxu0 %v711
    %v928 = vpop.f32.mrf.mxu0
    %v929 = vadd.f32 0.0, %v928
    %v930 = vpop.f32.mrf.mxu0
    %v931 = vadd.f32 0.0, %v930
    %932 = vmatmul.bf16.gmra.mxu0 %v714
    %v933 = vpop.f32.mrf.mxu0
    %v934 = vadd.f32 0.0, %v933
    %v935 = vpop.f32.mrf.mxu0
    %v936 = vadd.f32 0.0, %v935
    %937 = vmatmul.bf16.gmra.mxu0 %v717
    %v938 = vpop.f32.mrf.mxu0
    %v939 = vadd.f32 0.0, %v938
    %v940 = vpop.f32.mrf.mxu0
    %v941 = vadd.f32 0.0, %v940
    %942 = vmatmul.bf16.gmra.mxu0 %v720
    %v943 = vpop.f32.mrf.mxu0
    %v944 = vadd.f32 0.0, %v943
    %v945 = vpop.f32.mrf.mxu0
    %v946 = vadd.f32 0.0, %v945
    %947 = vmatmul.bf16.gmra.mxu0 %v723
    %v948 = vpop.f32.mrf.mxu0
    %v949 = vadd.f32 0.0, %v948
    %v950 = vpop.f32.mrf.mxu0
    %v951 = vadd.f32 0.0, %v950
    %952 = vmatmul.bf16.gmra.mxu0 %v726
    %v953 = vpop.f32.mrf.mxu0
    %v954 = vadd.f32 0.0, %v953
    %v955 = vpop.f32.mrf.mxu0
    %v956 = vadd.f32 0.0, %v955
    %957 = vmatmul.bf16.gmra.mxu0 %v729
    %v958 = vpop.f32.mrf.mxu0
    %v959 = vadd.f32 0.0, %v958
    %v960 = vpop.f32.mrf.mxu0
    %v961 = vadd.f32 0.0, %v960
    %962 = vmatmul.bf16.gmra.mxu0 %v732
    %v963 = vpop.f32.mrf.mxu0
    %v964 = vadd.f32 0.0, %v963
    %v965 = vpop.f32.mrf.mxu0
    %v966 = vadd.f32 0.0, %v965
    %967 = vmatmul.bf16.gmra.mxu0 %v735
    %v968 = vpop.f32.mrf.mxu0
    %v969 = vadd.f32 0.0, %v968
    %v970 = vpop.f32.mrf.mxu0
    %v971 = vadd.f32 0.0, %v970
    %972 = vmatmul.bf16.gmra.mxu0 %v738
    %v973 = vpop.f32.mrf.mxu0
    %v974 = vadd.f32 0.0, %v973
    %v975 = vpop.f32.mrf.mxu0
    %v976 = vadd.f32 0.0, %v975
    %977 = vmatmul.bf16.gmra.mxu0 %v741
    %v978 = vpop.f32.mrf.mxu0
    %v979 = vadd.f32 0.0, %v978
    %v980 = vpop.f32.mrf.mxu0
    %981 = vdwg.mxu0
    %s982 = scalar_lea.vmem %s1, 200
    %v983 = vld [vmem:[%s982] sm:$0xff]
    %v984 = vld [vmem:[%s982 + $0x8] sm:$0xff]
    %v985 = vld [vmem:[%s982 + $0x10] sm:$0xff]
    %v986 = vld [vmem:[%s982 + $0x18] sm:$0xff]
    %v987 = vld [vmem:[%s982 + $0x20] sm:$0xff]
    %v988 = vld [vmem:[%s982 + $0x28] sm:$0xff]
    %v989 = vld [vmem:[%s982 + $0x30] sm:$0xff]
    %v990 = vld [vmem:[%s982 + $0x38] sm:$0xff]
    %v991 = vld [vmem:[%s982 + $0x40] sm:$0xff]
    %v992 = vld [vmem:[%s982 + $0x48] sm:$0xff]
    %v993 = vld [vmem:[%s982 + $0x50] sm:$0xff]
    %v994 = vld [vmem:[%s982 + $0x58] sm:$0xff]
    %v995 = vld [vmem:[%s982 + $0x60] sm:$0xff]
    %v996 = vld [vmem:[%s982 + $0x68] sm:$0xff]
    %v997 = vld [vmem:[%s982 + $0x70] sm:$0xff]
    %v998 = vld [vmem:[%s982 + $0x78] sm:$0xff]
    %v999 = vld [vmem:[%s982 + $0x80] sm:$0xff]
    %v1000 = vld [vmem:[%s982 + $0x88] sm:$0xff]
    %v1001 = vld [vmem:[%s982 + $0x90] sm:$0xff]
    %v1002 = vld [vmem:[%s982 + $0x98] sm:$0xff]
    %v1003 = vld [vmem:[%s982 + $0xa0] sm:$0xff]
    %v1004 = vld [vmem:[%s982 + $0xa8] sm:$0xff]
    %v1005 = vld [vmem:[%s982 + $0xb0] sm:$0xff]
    %v1006 = vld [vmem:[%s982 + $0xb8] sm:$0xff]
    %v1007 = vld [vmem:[%s982 + $0xc0] sm:$0x33]
    %v1008 = vpack.c.bf16 %v911, %v909
    %v1009 = vpack.c.bf16 %v916, %v914
    %v1010 = vpack.c.bf16 %v921, %v919
    %v1011 = vpack.c.bf16 %v926, %v924
    %v1012 = vpack.c.bf16 %v931, %v929
    %v1013 = vpack.c.bf16 %v936, %v934
    %v1014 = vpack.c.bf16 %v941, %v939
    %v1015 = vpack.c.bf16 %v946, %v944
    %v1016 = vpack.c.bf16 %v951, %v949
    %v1017 = vpack.c.bf16 %v956, %v954
    %v1018 = vpack.c.bf16 %v961, %v959
    %v1019 = vpack.c.bf16 %v966, %v964
    %v1020 = vpack.c.bf16 %v971, %v969
    %v1021 = vpack.c.bf16 %v976, %v974
    %v1022 = vpack.c.bf16 %v979, %v979
    %v1048 = vunpack.c.l.b16 %v983
    %v1049 = vunpack.c.h.b16 %v983
    %v1050 = vunpack.c.l.b16 %v984
    %v1051 = vunpack.c.h.b16 %v984
    %v1052 = vunpack.c.l.b16 %v985
    %v1053 = vunpack.c.h.b16 %v985
    %v1054 = vunpack.c.l.b16 %v986
    %v1055 = vunpack.c.h.b16 %v986
    %v1056 = vunpack.c.l.b16 %v987
    %v1057 = vunpack.c.h.b16 %v987
    %v1058 = vunpack.c.l.b16 %v988
    %v1059 = vunpack.c.h.b16 %v988
    %v1060 = vunpack.c.l.b16 %v989
    %v1061 = vunpack.c.h.b16 %v989
    %v1062 = vunpack.c.l.b16 %v990
    %v1063 = vunpack.c.h.b16 %v990
    %v1064 = vunpack.c.l.b16 %v991
    %v1065 = vunpack.c.h.b16 %v991
    %v1066 = vunpack.c.l.b16 %v992
    %v1067 = vunpack.c.h.b16 %v992
    %v1068 = vunpack.c.l.b16 %v993
    %v1069 = vunpack.c.h.b16 %v993
    %v1070 = vunpack.c.l.b16 %v994
    %v1071 = vunpack.c.h.b16 %v994
    %v1072 = vunpack.c.l.b16 %v995
    %v1073 = vunpack.c.h.b16 %v995
    %v1074 = vunpack.c.l.b16 %v996
    %v1075 = vunpack.c.h.b16 %v996
    %v1076 = vunpack.c.l.b16 %v997
    %v1077 = vunpack.c.h.b16 %v997
    %v1078 = vunpack.c.l.b16 %v998
    %v1079 = vunpack.c.h.b16 %v998
    %v1080 = vunpack.c.l.b16 %v999
    %v1081 = vunpack.c.h.b16 %v999
    %v1082 = vunpack.c.l.b16 %v1000
    %v1083 = vunpack.c.h.b16 %v1000
    %v1084 = vunpack.c.l.b16 %v1001
    %v1085 = vunpack.c.h.b16 %v1001
    %v1086 = vunpack.c.l.b16 %v1002
    %v1087 = vunpack.c.h.b16 %v1002
    %v1088 = vunpack.c.l.b16 %v1003
    %v1089 = vunpack.c.h.b16 %v1003
    %v1090 = vunpack.c.l.b16 %v1004
    %v1091 = vunpack.c.h.b16 %v1004
    %v1092 = vunpack.c.l.b16 %v1005
    %v1093 = vunpack.c.h.b16 %v1005
    %v1094 = vunpack.c.l.b16 %v1006
    %v1095 = vunpack.c.h.b16 %v1006
    %v1096 = vunpack.c.l.b16 %v1007
    %v1097 = vunpack.c.h.b16 %v1007
    %v1098 = vpack.c.b16 %v1050, %v1048
    %v1099 = vpack.c.b16 %v1051, %v1049
    %v1100 = vpack.c.b16 %v1054, %v1052
    %v1101 = vpack.c.b16 %v1055, %v1053
    %v1102 = vpack.c.b16 %v1058, %v1056
    %v1103 = vpack.c.b16 %v1059, %v1057
    %v1104 = vpack.c.b16 %v1062, %v1060
    %v1105 = vpack.c.b16 %v1063, %v1061
    %v1106 = vpack.c.b16 %v1066, %v1064
    %v1107 = vpack.c.b16 %v1067, %v1065
    %v1108 = vpack.c.b16 %v1070, %v1068
    %v1109 = vpack.c.b16 %v1071, %v1069
    %v1110 = vpack.c.b16 %v1074, %v1072
    %v1111 = vpack.c.b16 %v1075, %v1073
    %v1112 = vpack.c.b16 %v1078, %v1076
    %v1113 = vpack.c.b16 %v1079, %v1077
    %v1114 = vpack.c.b16 %v1082, %v1080
    %v1115 = vpack.c.b16 %v1083, %v1081
    %v1116 = vpack.c.b16 %v1086, %v1084
    %v1117 = vpack.c.b16 %v1087, %v1085
    %v1118 = vpack.c.b16 %v1090, %v1088
    %v1119 = vpack.c.b16 %v1091, %v1089
    %v1120 = vpack.c.b16 %v1094, %v1092
    %v1121 = vpack.c.b16 %v1095, %v1093
    %v1122 = vpack.c.b16 %v1096, %v1096
    %v1123 = vpack.c.b16 %v1097, %v1097
    %vm1137 = vcmask 793600
    %v1139 = vsel %vm1137, %v1099, 0
    %v1142 = vsel %vm1137, %v1101, 0
    %v1145 = vsel %vm1137, %v1103, 0
    %v1148 = vsel %vm1137, %v1105, 0
    %v1151 = vsel %vm1137, %v1107, 0
    %v1154 = vsel %vm1137, %v1109, 0
    %v1157 = vsel %vm1137, %v1111, 0
    %v1160 = vsel %vm1137, %v1113, 0
    %v1163 = vsel %vm1137, %v1115, 0
    %v1166 = vsel %vm1137, %v1117, 0
    %v1169 = vsel %vm1137, %v1119, 0
    %v1172 = vsel %vm1137, %v1121, 0
    %v1175 = vsel %vm1137, %v1123, 0
    %vm1177 = vcmask 1040384
    %v1178 = vsel 0, 4294967295, 65535
    %v1179 = vsel %vm1177, %v1178, 0
    %v1181 = vand.u32 %v1022, %v1179
    %1183 = vmatpush.bf16.msra.mxu0 %v1015
    %1184 = vmatpush.bf16.msra.mxu0 %v1014
    %1185 = vmatpush.bf16.msra.mxu0 %v1013
    %1186 = vmatpush.bf16.msra.mxu0 %v1012
    %1187 = vmatpush.bf16.msra.mxu0 %v1011
    %1188 = vmatpush.bf16.msra.mxu0 %v1010
    %1189 = vmatpush.bf16.msra.mxu0 %v1009
    %1190 = vmatpush.bf16.msra.mxu0 %v1008
    %1191 = vmatmul.bf16.gmra.mxu0 %v1098
    %v1192 = vpop.f32.mrf.mxu0
    %v1193 = vadd.f32 0.0, %v1192
    %v1194 = vpop.f32.mrf.mxu0
    %v1195 = vadd.f32 0.0, %v1194
    %1196 = vmatmul.bf16.gmra.mxu0 %v1100
    %v1197 = vpop.f32.mrf.mxu0
    %v1198 = vadd.f32 0.0, %v1197
    %v1199 = vpop.f32.mrf.mxu0
    %v1200 = vadd.f32 0.0, %v1199
    %1201 = vmatmul.bf16.gmra.mxu0 %v1102
    %v1202 = vpop.f32.mrf.mxu0
    %v1203 = vadd.f32 0.0, %v1202
    %v1204 = vpop.f32.mrf.mxu0
    %v1205 = vadd.f32 0.0, %v1204
    %1206 = vmatmul.bf16.gmra.mxu0 %v1104
    %v1207 = vpop.f32.mrf.mxu0
    %v1208 = vadd.f32 0.0, %v1207
    %v1209 = vpop.f32.mrf.mxu0
    %v1210 = vadd.f32 0.0, %v1209
    %1211 = vmatmul.bf16.gmra.mxu0 %v1106
    %v1212 = vpop.f32.mrf.mxu0
    %v1213 = vadd.f32 0.0, %v1212
    %v1214 = vpop.f32.mrf.mxu0
    %v1215 = vadd.f32 0.0, %v1214
    %1216 = vmatmul.bf16.gmra.mxu0 %v1108
    %v1217 = vpop.f32.mrf.mxu0
    %v1218 = vadd.f32 0.0, %v1217
    %v1219 = vpop.f32.mrf.mxu0
    %v1220 = vadd.f32 0.0, %v1219
    %1221 = vmatmul.bf16.gmra.mxu0 %v1110
    %v1222 = vpop.f32.mrf.mxu0
    %v1223 = vadd.f32 0.0, %v1222
    %v1224 = vpop.f32.mrf.mxu0
    %v1225 = vadd.f32 0.0, %v1224
    %1226 = vmatmul.bf16.gmra.mxu0 %v1112
    %v1227 = vpop.f32.mrf.mxu0
    %v1228 = vadd.f32 0.0, %v1227
    %v1229 = vpop.f32.mrf.mxu0
    %v1230 = vadd.f32 0.0, %v1229
    %1231 = vmatmul.bf16.gmra.mxu0 %v1114
    %v1232 = vpop.f32.mrf.mxu0
    %v1233 = vadd.f32 0.0, %v1232
    %v1234 = vpop.f32.mrf.mxu0
    %v1235 = vadd.f32 0.0, %v1234
    %1236 = vmatmul.bf16.gmra.mxu0 %v1116
    %v1237 = vpop.f32.mrf.mxu0
    %v1238 = vadd.f32 0.0, %v1237
    %v1239 = vpop.f32.mrf.mxu0
    %v1240 = vadd.f32 0.0, %v1239
    %1241 = vmatmul.bf16.gmra.mxu0 %v1118
    %v1242 = vpop.f32.mrf.mxu0
    %v1243 = vadd.f32 0.0, %v1242
    %v1244 = vpop.f32.mrf.mxu0
    %v1245 = vadd.f32 0.0, %v1244
    %1246 = vmatmul.bf16.gmra.mxu0 %v1120
    %v1247 = vpop.f32.mrf.mxu0
    %v1248 = vadd.f32 0.0, %v1247
    %v1249 = vpop.f32.mrf.mxu0
    %v1250 = vadd.f32 0.0, %v1249
    %1251 = vmatmul.bf16.gmra.mxu0 %v1122
    %v1252 = vpop.f32.mrf.mxu0
    %v1253 = vadd.f32 0.0, %v1252
    %v1254 = vpop.f32.mrf.mxu0
    %1255 = vdwg.mxu0
    %1256 = vmatpush.bf16.msra.mxu0 0
    %1257 = vmatpush.bf16.msra.mxu0 %v1181
    %1258 = vmatpush.bf16.msra.mxu0 %v1021
    %1259 = vmatpush.bf16.msra.mxu0 %v1020
    %1260 = vmatpush.bf16.msra.mxu0 %v1019
    %1261 = vmatpush.bf16.msra.mxu0 %v1018
    %1262 = vmatpush.bf16.msra.mxu0 %v1017
    %1263 = vmatpush.bf16.msra.mxu0 %v1016
    %1264 = vmatmul.bf16.gmra.mxu0 %v1139
    %v1265 = vpop.f32.mrf.mxu0
    %v1266 = vadd.f32 %v1193, %v1265
    %v1267 = vpop.f32.mrf.mxu0
    %v1268 = vadd.f32 %v1195, %v1267
    %1269 = vmatmul.bf16.gmra.mxu0 %v1142
    %v1270 = vpop.f32.mrf.mxu0
    %v1271 = vadd.f32 %v1198, %v1270
    %v1272 = vpop.f32.mrf.mxu0
    %v1273 = vadd.f32 %v1200, %v1272
    %1274 = vmatmul.bf16.gmra.mxu0 %v1145
    %v1275 = vpop.f32.mrf.mxu0
    %v1276 = vadd.f32 %v1203, %v1275
    %v1277 = vpop.f32.mrf.mxu0
    %v1278 = vadd.f32 %v1205, %v1277
    %1279 = vmatmul.bf16.gmra.mxu0 %v1148
    %v1280 = vpop.f32.mrf.mxu0
    %v1281 = vadd.f32 %v1208, %v1280
    %v1282 = vpop.f32.mrf.mxu0
    %v1283 = vadd.f32 %v1210, %v1282
    %1284 = vmatmul.bf16.gmra.mxu0 %v1151
    %v1285 = vpop.f32.mrf.mxu0
    %v1286 = vadd.f32 %v1213, %v1285
    %v1287 = vpop.f32.mrf.mxu0
    %v1288 = vadd.f32 %v1215, %v1287
    %1289 = vmatmul.bf16.gmra.mxu0 %v1154
    %v1290 = vpop.f32.mrf.mxu0
    %v1291 = vadd.f32 %v1218, %v1290
    %v1292 = vpop.f32.mrf.mxu0
    %v1293 = vadd.f32 %v1220, %v1292
    %1294 = vmatmul.bf16.gmra.mxu0 %v1157
    %v1295 = vpop.f32.mrf.mxu0
    %v1296 = vadd.f32 %v1223, %v1295
    %v1297 = vpop.f32.mrf.mxu0
    %v1298 = vadd.f32 %v1225, %v1297
    %1299 = vmatmul.bf16.gmra.mxu0 %v1160
    %v1300 = vpop.f32.mrf.mxu0
    %v1301 = vadd.f32 %v1228, %v1300
    %v1302 = vpop.f32.mrf.mxu0
    %v1303 = vadd.f32 %v1230, %v1302
    %1304 = vmatmul.bf16.gmra.mxu0 %v1163
    %v1305 = vpop.f32.mrf.mxu0
    %v1306 = vadd.f32 %v1233, %v1305
    %v1307 = vpop.f32.mrf.mxu0
    %v1308 = vadd.f32 %v1235, %v1307
    %1309 = vmatmul.bf16.gmra.mxu0 %v1166
    %v1310 = vpop.f32.mrf.mxu0
    %v1311 = vadd.f32 %v1238, %v1310
    %v1312 = vpop.f32.mrf.mxu0
    %v1313 = vadd.f32 %v1240, %v1312
    %1314 = vmatmul.bf16.gmra.mxu0 %v1169
    %v1315 = vpop.f32.mrf.mxu0
    %v1316 = vadd.f32 %v1243, %v1315
    %v1317 = vpop.f32.mrf.mxu0
    %v1318 = vadd.f32 %v1245, %v1317
    %1319 = vmatmul.bf16.gmra.mxu0 %v1172
    %v1320 = vpop.f32.mrf.mxu0
    %v1321 = vadd.f32 %v1248, %v1320
    %v1322 = vpop.f32.mrf.mxu0
    %v1323 = vadd.f32 %v1250, %v1322
    %1324 = vmatmul.bf16.gmra.mxu0 %v1175
    %v1325 = vpop.f32.mrf.mxu0
    %v1326 = vadd.f32 %v1253, %v1325
    %v1327 = vpop.f32.mrf.mxu0
    %1328 = vdwg.mxu0
    %s1329 = scalar_lea.vmem %s2, 64
    %v1330 = vld [vmem:[%s1329] sm:$0xf]
    %v1331 = vld [vmem:[%s1329 + $0x4] sm:$0xf]
    %v1332 = vld [vmem:[%s1329 + $0x8] sm:$0xf]
    %v1333 = vld [vmem:[%s1329 + $0xc] sm:$0xf]
    %v1334 = vld [vmem:[%s1329 + $0x10] sm:$0xf]
    %v1335 = vld [vmem:[%s1329 + $0x14] sm:$0xf]
    %v1336 = vld [vmem:[%s1329 + $0x18] sm:$0xf]
    %v1337 = vld [vmem:[%s1329 + $0x1c] sm:$0xf]
    %v1346 = vunpack.c.l.b16 %v1330
    %v1347 = vunpack.c.l.b16 %v1331
    %v1348 = vunpack.c.l.b16 %v1332
    %v1349 = vunpack.c.l.b16 %v1333
    %v1350 = vunpack.c.l.b16 %v1334
    %v1351 = vunpack.c.l.b16 %v1335
    %v1352 = vunpack.c.l.b16 %v1336
    %v1353 = vunpack.c.l.b16 %v1337
    %v1354 = vpack.c.b16 %v1347, %v1346
    %v1355 = vpack.c.b16 %v1349, %v1348
    %v1356 = vpack.c.b16 %v1351, %v1350
    %v1357 = vpack.c.b16 %v1353, %v1352
    %1362 = vmatpush.bf16.msra.mxu0 0
    %1363 = vmatpush.bf16.msra.mxu0 0
    %1364 = vmatpush.bf16.msra.mxu0 0
    %1365 = vmatpush.bf16.msra.mxu0 0
    %1366 = vmatpush.bf16.msra.mxu0 %v1357
    %1367 = vmatpush.bf16.msra.mxu0 %v1356
    %1368 = vmatpush.bf16.msra.mxu0 %v1355
    %1369 = vmatpush.bf16.msra.mxu0 %v1354
    %1370 = vmatmul.bf16.gmra.mxu0 %v699
    %v1371 = vpop.f32.mrf.mxu0
    %v1372 = vadd.f32 0.0, %v1371
    %v1373 = vpop.f32.mrf.mxu0
    %v1374 = vadd.f32 0.0, %v1373
    %1375 = vmatmul.bf16.gmra.mxu0 %v702
    %v1376 = vpop.f32.mrf.mxu0
    %v1377 = vadd.f32 0.0, %v1376
    %v1378 = vpop.f32.mrf.mxu0
    %v1379 = vadd.f32 0.0, %v1378
    %1380 = vmatmul.bf16.gmra.mxu0 %v705
    %v1381 = vpop.f32.mrf.mxu0
    %v1382 = vadd.f32 0.0, %v1381
    %v1383 = vpop.f32.mrf.mxu0
    %v1384 = vadd.f32 0.0, %v1383
    %1385 = vmatmul.bf16.gmra.mxu0 %v708
    %v1386 = vpop.f32.mrf.mxu0
    %v1387 = vadd.f32 0.0, %v1386
    %v1388 = vpop.f32.mrf.mxu0
    %v1389 = vadd.f32 0.0, %v1388
    %1390 = vmatmul.bf16.gmra.mxu0 %v711
    %v1391 = vpop.f32.mrf.mxu0
    %v1392 = vadd.f32 0.0, %v1391
    %v1393 = vpop.f32.mrf.mxu0
    %v1394 = vadd.f32 0.0, %v1393
    %1395 = vmatmul.bf16.gmra.mxu0 %v714
    %v1396 = vpop.f32.mrf.mxu0
    %v1397 = vadd.f32 0.0, %v1396
    %v1398 = vpop.f32.mrf.mxu0
    %v1399 = vadd.f32 0.0, %v1398
    %1400 = vmatmul.bf16.gmra.mxu0 %v717
    %v1401 = vpop.f32.mrf.mxu0
    %v1402 = vadd.f32 0.0, %v1401
    %v1403 = vpop.f32.mrf.mxu0
    %v1404 = vadd.f32 0.0, %v1403
    %1405 = vmatmul.bf16.gmra.mxu0 %v720
    %v1406 = vpop.f32.mrf.mxu0
    %v1407 = vadd.f32 0.0, %v1406
    %v1408 = vpop.f32.mrf.mxu0
    %v1409 = vadd.f32 0.0, %v1408
    %1410 = vmatmul.bf16.gmra.mxu0 %v723
    %v1411 = vpop.f32.mrf.mxu0
    %v1412 = vadd.f32 0.0, %v1411
    %v1413 = vpop.f32.mrf.mxu0
    %v1414 = vadd.f32 0.0, %v1413
    %1415 = vmatmul.bf16.gmra.mxu0 %v726
    %v1416 = vpop.f32.mrf.mxu0
    %v1417 = vadd.f32 0.0, %v1416
    %v1418 = vpop.f32.mrf.mxu0
    %v1419 = vadd.f32 0.0, %v1418
    %1420 = vmatmul.bf16.gmra.mxu0 %v729
    %v1421 = vpop.f32.mrf.mxu0
    %v1422 = vadd.f32 0.0, %v1421
    %v1423 = vpop.f32.mrf.mxu0
    %v1424 = vadd.f32 0.0, %v1423
    %1425 = vmatmul.bf16.gmra.mxu0 %v732
    %v1426 = vpop.f32.mrf.mxu0
    %v1427 = vadd.f32 0.0, %v1426
    %v1428 = vpop.f32.mrf.mxu0
    %v1429 = vadd.f32 0.0, %v1428
    %1430 = vmatmul.bf16.gmra.mxu0 %v735
    %v1431 = vpop.f32.mrf.mxu0
    %v1432 = vadd.f32 0.0, %v1431
    %v1433 = vpop.f32.mrf.mxu0
    %v1434 = vadd.f32 0.0, %v1433
    %1435 = vmatmul.bf16.gmra.mxu0 %v738
    %v1436 = vpop.f32.mrf.mxu0
    %v1437 = vadd.f32 0.0, %v1436
    %v1438 = vpop.f32.mrf.mxu0
    %v1439 = vadd.f32 0.0, %v1438
    %1440 = vmatmul.bf16.gmra.mxu0 %v741
    %v1441 = vpop.f32.mrf.mxu0
    %v1442 = vadd.f32 0.0, %v1441
    %v1443 = vpop.f32.mrf.mxu0
    %1444 = vdwg.mxu0
    %s1445 = scalar_lea.vmem %s1, 400
    %v1446 = vld [vmem:[%s1445] sm:$0xff]
    %v1447 = vld [vmem:[%s1445 + $0x8] sm:$0xff]
    %v1448 = vld [vmem:[%s1445 + $0x10] sm:$0xff]
    %v1449 = vld [vmem:[%s1445 + $0x18] sm:$0xff]
    %v1450 = vld [vmem:[%s1445 + $0x20] sm:$0xff]
    %v1451 = vld [vmem:[%s1445 + $0x28] sm:$0xff]
    %v1452 = vld [vmem:[%s1445 + $0x30] sm:$0xff]
    %v1453 = vld [vmem:[%s1445 + $0x38] sm:$0xff]
    %v1454 = vld [vmem:[%s1445 + $0x40] sm:$0xff]
    %v1455 = vld [vmem:[%s1445 + $0x48] sm:$0xff]
    %v1456 = vld [vmem:[%s1445 + $0x50] sm:$0xff]
    %v1457 = vld [vmem:[%s1445 + $0x58] sm:$0xff]
    %v1458 = vld [vmem:[%s1445 + $0x60] sm:$0xff]
    %v1459 = vld [vmem:[%s1445 + $0x68] sm:$0xff]
    %v1460 = vld [vmem:[%s1445 + $0x70] sm:$0xff]
    %v1461 = vld [vmem:[%s1445 + $0x78] sm:$0xff]
    %v1462 = vld [vmem:[%s1445 + $0x80] sm:$0xff]
    %v1463 = vld [vmem:[%s1445 + $0x88] sm:$0xff]
    %v1464 = vld [vmem:[%s1445 + $0x90] sm:$0xff]
    %v1465 = vld [vmem:[%s1445 + $0x98] sm:$0xff]
    %v1466 = vld [vmem:[%s1445 + $0xa0] sm:$0xff]
    %v1467 = vld [vmem:[%s1445 + $0xa8] sm:$0xff]
    %v1468 = vld [vmem:[%s1445 + $0xb0] sm:$0xff]
    %v1469 = vld [vmem:[%s1445 + $0xb8] sm:$0xff]
    %v1470 = vld [vmem:[%s1445 + $0xc0] sm:$0x33]
    %v1471 = vpack.c.bf16 %v1374, %v1372
    %v1472 = vpack.c.bf16 %v1379, %v1377
    %v1473 = vpack.c.bf16 %v1384, %v1382
    %v1474 = vpack.c.bf16 %v1389, %v1387
    %v1475 = vpack.c.bf16 %v1394, %v1392
    %v1476 = vpack.c.bf16 %v1399, %v1397
    %v1477 = vpack.c.bf16 %v1404, %v1402
    %v1478 = vpack.c.bf16 %v1409, %v1407
    %v1479 = vpack.c.bf16 %v1414, %v1412
    %v1480 = vpack.c.bf16 %v1419, %v1417
    %v1481 = vpack.c.bf16 %v1424, %v1422
    %v1482 = vpack.c.bf16 %v1429, %v1427
    %v1483 = vpack.c.bf16 %v1434, %v1432
    %v1484 = vpack.c.bf16 %v1439, %v1437
    %v1485 = vpack.c.bf16 %v1442, %v1442
    %s1486 = scalar_lea.vmem %s2, 96
    %v1487 = vld [vmem:[%s1486] sm:$0xf]
    %v1488 = vld [vmem:[%s1486 + $0x4] sm:$0xf]
    %v1489 = vld [vmem:[%s1486 + $0x8] sm:$0xf]
    %v1490 = vld [vmem:[%s1486 + $0xc] sm:$0xf]
    %v1491 = vld [vmem:[%s1486 + $0x10] sm:$0xf]
    %v1492 = vld [vmem:[%s1486 + $0x14] sm:$0xf]
    %v1493 = vld [vmem:[%s1486 + $0x18] sm:$0xf]
    %v1494 = vld [vmem:[%s1486 + $0x1c] sm:$0xf]
    %v1503 = vunpack.c.l.b16 %v1487
    %v1504 = vunpack.c.l.b16 %v1488
    %v1505 = vunpack.c.l.b16 %v1489
    %v1506 = vunpack.c.l.b16 %v1490
    %v1507 = vunpack.c.l.b16 %v1491
    %v1508 = vunpack.c.l.b16 %v1492
    %v1509 = vunpack.c.l.b16 %v1493
    %v1510 = vunpack.c.l.b16 %v1494
    %v1511 = vpack.c.b16 %v1504, %v1503
    %v1512 = vpack.c.b16 %v1506, %v1505
    %v1513 = vpack.c.b16 %v1508, %v1507
    %v1514 = vpack.c.b16 %v1510, %v1509
    %1519 = vmatpush.bf16.msra.mxu0 0
    %1520 = vmatpush.bf16.msra.mxu0 0
    %1521 = vmatpush.bf16.msra.mxu0 0
    %1522 = vmatpush.bf16.msra.mxu0 0
    %1523 = vmatpush.bf16.msra.mxu0 %v1514
    %1524 = vmatpush.bf16.msra.mxu0 %v1513
    %1525 = vmatpush.bf16.msra.mxu0 %v1512
    %1526 = vmatpush.bf16.msra.mxu0 %v1511
    %1527 = vmatmul.bf16.gmra.mxu0 %v699
    %v1528 = vpop.f32.mrf.mxu0
    %v1529 = vadd.f32 0.0, %v1528
    %v1530 = vpop.f32.mrf.mxu0
    %v1531 = vadd.f32 0.0, %v1530
    %1532 = vmatmul.bf16.gmra.mxu0 %v702
    %v1533 = vpop.f32.mrf.mxu0
    %v1534 = vadd.f32 0.0, %v1533
    %v1535 = vpop.f32.mrf.mxu0
    %v1536 = vadd.f32 0.0, %v1535
    %1537 = vmatmul.bf16.gmra.mxu0 %v705
    %v1538 = vpop.f32.mrf.mxu0
    %v1539 = vadd.f32 0.0, %v1538
    %v1540 = vpop.f32.mrf.mxu0
    %v1541 = vadd.f32 0.0, %v1540
    %1542 = vmatmul.bf16.gmra.mxu0 %v708
    %v1543 = vpop.f32.mrf.mxu0
    %v1544 = vadd.f32 0.0, %v1543
    %v1545 = vpop.f32.mrf.mxu0
    %v1546 = vadd.f32 0.0, %v1545
    %1547 = vmatmul.bf16.gmra.mxu0 %v711
    %v1548 = vpop.f32.mrf.mxu0
    %v1549 = vadd.f32 0.0, %v1548
    %v1550 = vpop.f32.mrf.mxu0
    %v1551 = vadd.f32 0.0, %v1550
    %1552 = vmatmul.bf16.gmra.mxu0 %v714
    %v1553 = vpop.f32.mrf.mxu0
    %v1554 = vadd.f32 0.0, %v1553
    %v1555 = vpop.f32.mrf.mxu0
    %v1556 = vadd.f32 0.0, %v1555
    %1557 = vmatmul.bf16.gmra.mxu0 %v717
    %v1558 = vpop.f32.mrf.mxu0
    %v1559 = vadd.f32 0.0, %v1558
    %v1560 = vpop.f32.mrf.mxu0
    %v1561 = vadd.f32 0.0, %v1560
    %1562 = vmatmul.bf16.gmra.mxu0 %v720
    %v1563 = vpop.f32.mrf.mxu0
    %v1564 = vadd.f32 0.0, %v1563
    %v1565 = vpop.f32.mrf.mxu0
    %v1566 = vadd.f32 0.0, %v1565
    %1567 = vmatmul.bf16.gmra.mxu0 %v723
    %v1568 = vpop.f32.mrf.mxu0
    %v1569 = vadd.f32 0.0, %v1568
    %v1570 = vpop.f32.mrf.mxu0
    %v1571 = vadd.f32 0.0, %v1570
    %1572 = vmatmul.bf16.gmra.mxu0 %v726
    %v1573 = vpop.f32.mrf.mxu0
    %v1574 = vadd.f32 0.0, %v1573
    %v1575 = vpop.f32.mrf.mxu0
    %v1576 = vadd.f32 0.0, %v1575
    %1577 = vmatmul.bf16.gmra.mxu0 %v729
    %v1578 = vpop.f32.mrf.mxu0
    %v1579 = vadd.f32 0.0, %v1578
    %v1580 = vpop.f32.mrf.mxu0
    %v1581 = vadd.f32 0.0, %v1580
    %1582 = vmatmul.bf16.gmra.mxu0 %v732
    %v1583 = vpop.f32.mrf.mxu0
    %v1584 = vadd.f32 0.0, %v1583
    %v1585 = vpop.f32.mrf.mxu0
    %v1586 = vadd.f32 0.0, %v1585
    %1587 = vmatmul.bf16.gmra.mxu0 %v735
    %v1588 = vpop.f32.mrf.mxu0
    %v1589 = vadd.f32 0.0, %v1588
    %v1590 = vpop.f32.mrf.mxu0
    %v1591 = vadd.f32 0.0, %v1590
    %1592 = vmatmul.bf16.gmra.mxu0 %v738
    %v1593 = vpop.f32.mrf.mxu0
    %v1594 = vadd.f32 0.0, %v1593
    %v1595 = vpop.f32.mrf.mxu0
    %v1596 = vadd.f32 0.0, %v1595
    %1597 = vmatmul.bf16.gmra.mxu0 %v741
    %v1598 = vpop.f32.mrf.mxu0
    %v1599 = vadd.f32 0.0, %v1598
    %v1600 = vpop.f32.mrf.mxu0
    %1601 = vdwg.mxu0
    %s1602 = scalar_lea.vmem %s1, 600
    %v1603 = vld [vmem:[%s1602] sm:$0xff]
    %v1604 = vld [vmem:[%s1602 + $0x8] sm:$0xff]
    %v1605 = vld [vmem:[%s1602 + $0x10] sm:$0xff]
    %v1606 = vld [vmem:[%s1602 + $0x18] sm:$0xff]
    %v1607 = vld [vmem:[%s1602 + $0x20] sm:$0xff]
    %v1608 = vld [vmem:[%s1602 + $0x28] sm:$0xff]
    %v1609 = vld [vmem:[%s1602 + $0x30] sm:$0xff]
    %v1610 = vld [vmem:[%s1602 + $0x38] sm:$0xff]
    %v1611 = vld [vmem:[%s1602 + $0x40] sm:$0xff]
    %v1612 = vld [vmem:[%s1602 + $0x48] sm:$0xff]
    %v1613 = vld [vmem:[%s1602 + $0x50] sm:$0xff]
    %v1614 = vld [vmem:[%s1602 + $0x58] sm:$0xff]
    %v1615 = vld [vmem:[%s1602 + $0x60] sm:$0xff]
    %v1616 = vld [vmem:[%s1602 + $0x68] sm:$0xff]
    %v1617 = vld [vmem:[%s1602 + $0x70] sm:$0xff]
    %v1618 = vld [vmem:[%s1602 + $0x78] sm:$0xff]
    %v1619 = vld [vmem:[%s1602 + $0x80] sm:$0xff]
    %v1620 = vld [vmem:[%s1602 + $0x88] sm:$0xff]
    %v1621 = vld [vmem:[%s1602 + $0x90] sm:$0xff]
    %v1622 = vld [vmem:[%s1602 + $0x98] sm:$0xff]
    %v1623 = vld [vmem:[%s1602 + $0xa0] sm:$0xff]
    %v1624 = vld [vmem:[%s1602 + $0xa8] sm:$0xff]
    %v1625 = vld [vmem:[%s1602 + $0xb0] sm:$0xff]
    %v1626 = vld [vmem:[%s1602 + $0xb8] sm:$0xff]
    %v1627 = vld [vmem:[%s1602 + $0xc0] sm:$0x33]
    %v1628 = vpack.c.bf16 %v1531, %v1529
    %v1629 = vpack.c.bf16 %v1536, %v1534
    %v1630 = vpack.c.bf16 %v1541, %v1539
    %v1631 = vpack.c.bf16 %v1546, %v1544
    %v1632 = vpack.c.bf16 %v1551, %v1549
    %v1633 = vpack.c.bf16 %v1556, %v1554
    %v1634 = vpack.c.bf16 %v1561, %v1559
    %v1635 = vpack.c.bf16 %v1566, %v1564
    %v1636 = vpack.c.bf16 %v1571, %v1569
    %v1637 = vpack.c.bf16 %v1576, %v1574
    %v1638 = vpack.c.bf16 %v1581, %v1579
    %v1639 = vpack.c.bf16 %v1586, %v1584
    %v1640 = vpack.c.bf16 %v1591, %v1589
    %v1641 = vpack.c.bf16 %v1596, %v1594
    %v1642 = vpack.c.bf16 %v1599, %v1599
    %v1668 = vunpack.c.l.b16 %v1603
    %v1669 = vunpack.c.h.b16 %v1603
    %v1670 = vunpack.c.l.b16 %v1604
    %v1671 = vunpack.c.h.b16 %v1604
    %v1672 = vunpack.c.l.b16 %v1605
    %v1673 = vunpack.c.h.b16 %v1605
    %v1674 = vunpack.c.l.b16 %v1606
    %v1675 = vunpack.c.h.b16 %v1606
    %v1676 = vunpack.c.l.b16 %v1607
    %v1677 = vunpack.c.h.b16 %v1607
    %v1678 = vunpack.c.l.b16 %v1608
    %v1679 = vunpack.c.h.b16 %v1608
    %v1680 = vunpack.c.l.b16 %v1609
    %v1681 = vunpack.c.h.b16 %v1609
    %v1682 = vunpack.c.l.b16 %v1610
    %v1683 = vunpack.c.h.b16 %v1610
    %v1684 = vunpack.c.l.b16 %v1611
    %v1685 = vunpack.c.h.b16 %v1611
    %v1686 = vunpack.c.l.b16 %v1612
    %v1687 = vunpack.c.h.b16 %v1612
    %v1688 = vunpack.c.l.b16 %v1613
    %v1689 = vunpack.c.h.b16 %v1613
    %v1690 = vunpack.c.l.b16 %v1614
    %v1691 = vunpack.c.h.b16 %v1614
    %v1692 = vunpack.c.l.b16 %v1615
    %v1693 = vunpack.c.h.b16 %v1615
    %v1694 = vunpack.c.l.b16 %v1616
    %v1695 = vunpack.c.h.b16 %v1616
    %v1696 = vunpack.c.l.b16 %v1617
    %v1697 = vunpack.c.h.b16 %v1617
    %v1698 = vunpack.c.l.b16 %v1618
    %v1699 = vunpack.c.h.b16 %v1618
    %v1700 = vunpack.c.l.b16 %v1619
    %v1701 = vunpack.c.h.b16 %v1619
    %v1702 = vunpack.c.l.b16 %v1620
    %v1703 = vunpack.c.h.b16 %v1620
    %v1704 = vunpack.c.l.b16 %v1621
    %v1705 = vunpack.c.h.b16 %v1621
    %v1706 = vunpack.c.l.b16 %v1622
    %v1707 = vunpack.c.h.b16 %v1622
    %v1708 = vunpack.c.l.b16 %v1623
    %v1709 = vunpack.c.h.b16 %v1623
    %v1710 = vunpack.c.l.b16 %v1624
    %v1711 = vunpack.c.h.b16 %v1624
    %v1712 = vunpack.c.l.b16 %v1625
    %v1713 = vunpack.c.h.b16 %v1625
    %v1714 = vunpack.c.l.b16 %v1626
    %v1715 = vunpack.c.h.b16 %v1626
    %v1716 = vunpack.c.l.b16 %v1627
    %v1717 = vunpack.c.h.b16 %v1627
    %v1718 = vpack.c.b16 %v1670, %v1668
    %v1719 = vpack.c.b16 %v1671, %v1669
    %v1720 = vpack.c.b16 %v1674, %v1672
    %v1721 = vpack.c.b16 %v1675, %v1673
    %v1722 = vpack.c.b16 %v1678, %v1676
    %v1723 = vpack.c.b16 %v1679, %v1677
    %v1724 = vpack.c.b16 %v1682, %v1680
    %v1725 = vpack.c.b16 %v1683, %v1681
    %v1726 = vpack.c.b16 %v1686, %v1684
    %v1727 = vpack.c.b16 %v1687, %v1685
    %v1728 = vpack.c.b16 %v1690, %v1688
    %v1729 = vpack.c.b16 %v1691, %v1689
    %v1730 = vpack.c.b16 %v1694, %v1692
    %v1731 = vpack.c.b16 %v1695, %v1693
    %v1732 = vpack.c.b16 %v1698, %v1696
    %v1733 = vpack.c.b16 %v1699, %v1697
    %v1734 = vpack.c.b16 %v1702, %v1700
    %v1735 = vpack.c.b16 %v1703, %v1701
    %v1736 = vpack.c.b16 %v1706, %v1704
    %v1737 = vpack.c.b16 %v1707, %v1705
    %v1738 = vpack.c.b16 %v1710, %v1708
    %v1739 = vpack.c.b16 %v1711, %v1709
    %v1740 = vpack.c.b16 %v1714, %v1712
    %v1741 = vpack.c.b16 %v1715, %v1713
    %v1742 = vpack.c.b16 %v1716, %v1716
    %v1743 = vpack.c.b16 %v1717, %v1717
    %v1758 = vsel %vm1137, %v1719, 0
    %v1761 = vsel %vm1137, %v1721, 0
    %v1764 = vsel %vm1137, %v1723, 0
    %v1767 = vsel %vm1137, %v1725, 0
    %v1770 = vsel %vm1137, %v1727, 0
    %v1773 = vsel %vm1137, %v1729, 0
    %v1776 = vsel %vm1137, %v1731, 0
    %v1779 = vsel %vm1137, %v1733, 0
    %v1782 = vsel %vm1137, %v1735, 0
    %v1785 = vsel %vm1137, %v1737, 0
    %v1788 = vsel %vm1137, %v1739, 0
    %v1791 = vsel %vm1137, %v1741, 0
    %v1794 = vsel %vm1137, %v1743, 0
    %v1797 = vand.u32 %v1642, %v1179
    %1799 = vmatpush.bf16.msra.mxu0 %v1635
    %1800 = vmatpush.bf16.msra.mxu0 %v1634
    %1801 = vmatpush.bf16.msra.mxu0 %v1633
    %1802 = vmatpush.bf16.msra.mxu0 %v1632
    %1803 = vmatpush.bf16.msra.mxu0 %v1631
    %1804 = vmatpush.bf16.msra.mxu0 %v1630
    %1805 = vmatpush.bf16.msra.mxu0 %v1629
    %1806 = vmatpush.bf16.msra.mxu0 %v1628
    %1807 = vmatmul.bf16.gmra.mxu0 %v1718
    %v1808 = vpop.f32.mrf.mxu0
    %v1809 = vadd.f32 0.0, %v1808
    %v1810 = vpop.f32.mrf.mxu0
    %v1811 = vadd.f32 0.0, %v1810
    %1812 = vmatmul.bf16.gmra.mxu0 %v1720
    %v1813 = vpop.f32.mrf.mxu0
    %v1814 = vadd.f32 0.0, %v1813
    %v1815 = vpop.f32.mrf.mxu0
    %v1816 = vadd.f32 0.0, %v1815
    %1817 = vmatmul.bf16.gmra.mxu0 %v1722
    %v1818 = vpop.f32.mrf.mxu0
    %v1819 = vadd.f32 0.0, %v1818
    %v1820 = vpop.f32.mrf.mxu0
    %v1821 = vadd.f32 0.0, %v1820
    %1822 = vmatmul.bf16.gmra.mxu0 %v1724
    %v1823 = vpop.f32.mrf.mxu0
    %v1824 = vadd.f32 0.0, %v1823
    %v1825 = vpop.f32.mrf.mxu0
    %v1826 = vadd.f32 0.0, %v1825
    %1827 = vmatmul.bf16.gmra.mxu0 %v1726
    %v1828 = vpop.f32.mrf.mxu0
    %v1829 = vadd.f32 0.0, %v1828
    %v1830 = vpop.f32.mrf.mxu0
    %v1831 = vadd.f32 0.0, %v1830
    %1832 = vmatmul.bf16.gmra.mxu0 %v1728
    %v1833 = vpop.f32.mrf.mxu0
    %v1834 = vadd.f32 0.0, %v1833
    %v1835 = vpop.f32.mrf.mxu0
    %v1836 = vadd.f32 0.0, %v1835
    %1837 = vmatmul.bf16.gmra.mxu0 %v1730
    %v1838 = vpop.f32.mrf.mxu0
    %v1839 = vadd.f32 0.0, %v1838
    %v1840 = vpop.f32.mrf.mxu0
    %v1841 = vadd.f32 0.0, %v1840
    %1842 = vmatmul.bf16.gmra.mxu0 %v1732
    %v1843 = vpop.f32.mrf.mxu0
    %v1844 = vadd.f32 0.0, %v1843
    %v1845 = vpop.f32.mrf.mxu0
    %v1846 = vadd.f32 0.0, %v1845
    %1847 = vmatmul.bf16.gmra.mxu0 %v1734
    %v1848 = vpop.f32.mrf.mxu0
    %v1849 = vadd.f32 0.0, %v1848
    %v1850 = vpop.f32.mrf.mxu0
    %v1851 = vadd.f32 0.0, %v1850
    %1852 = vmatmul.bf16.gmra.mxu0 %v1736
    %v1853 = vpop.f32.mrf.mxu0
    %v1854 = vadd.f32 0.0, %v1853
    %v1855 = vpop.f32.mrf.mxu0
    %v1856 = vadd.f32 0.0, %v1855
    %1857 = vmatmul.bf16.gmra.mxu0 %v1738
    %v1858 = vpop.f32.mrf.mxu0
    %v1859 = vadd.f32 0.0, %v1858
    %v1860 = vpop.f32.mrf.mxu0
    %v1861 = vadd.f32 0.0, %v1860
    %1862 = vmatmul.bf16.gmra.mxu0 %v1740
    %v1863 = vpop.f32.mrf.mxu0
    %v1864 = vadd.f32 0.0, %v1863
    %v1865 = vpop.f32.mrf.mxu0
    %v1866 = vadd.f32 0.0, %v1865
    %1867 = vmatmul.bf16.gmra.mxu0 %v1742
    %v1868 = vpop.f32.mrf.mxu0
    %v1869 = vadd.f32 0.0, %v1868
    %v1870 = vpop.f32.mrf.mxu0
    %1871 = vdwg.mxu0
    %1872 = vmatpush.bf16.msra.mxu0 0
    %1873 = vmatpush.bf16.msra.mxu0 %v1797
    %1874 = vmatpush.bf16.msra.mxu0 %v1641
    %1875 = vmatpush.bf16.msra.mxu0 %v1640
    %1876 = vmatpush.bf16.msra.mxu0 %v1639
    %1877 = vmatpush.bf16.msra.mxu0 %v1638
    %1878 = vmatpush.bf16.msra.mxu0 %v1637
    %1879 = vmatpush.bf16.msra.mxu0 %v1636
    %1880 = vmatmul.bf16.gmra.mxu0 %v1758
    %v1881 = vpop.f32.mrf.mxu0
    %v1882 = vadd.f32 %v1809, %v1881
    %v1883 = vpop.f32.mrf.mxu0
    %v1884 = vadd.f32 %v1811, %v1883
    %1885 = vmatmul.bf16.gmra.mxu0 %v1761
    %v1886 = vpop.f32.mrf.mxu0
    %v1887 = vadd.f32 %v1814, %v1886
    %v1888 = vpop.f32.mrf.mxu0
    %v1889 = vadd.f32 %v1816, %v1888
    %1890 = vmatmul.bf16.gmra.mxu0 %v1764
    %v1891 = vpop.f32.mrf.mxu0
    %v1892 = vadd.f32 %v1819, %v1891
    %v1893 = vpop.f32.mrf.mxu0
    %v1894 = vadd.f32 %v1821, %v1893
    %1895 = vmatmul.bf16.gmra.mxu0 %v1767
    %v1896 = vpop.f32.mrf.mxu0
    %v1897 = vadd.f32 %v1824, %v1896
    %v1898 = vpop.f32.mrf.mxu0
    %v1899 = vadd.f32 %v1826, %v1898
    %1900 = vmatmul.bf16.gmra.mxu0 %v1770
    %v1901 = vpop.f32.mrf.mxu0
    %v1902 = vadd.f32 %v1829, %v1901
    %v1903 = vpop.f32.mrf.mxu0
    %v1904 = vadd.f32 %v1831, %v1903
    %1905 = vmatmul.bf16.gmra.mxu0 %v1773
    %v1906 = vpop.f32.mrf.mxu0
    %v1907 = vadd.f32 %v1834, %v1906
    %v1908 = vpop.f32.mrf.mxu0
    %v1909 = vadd.f32 %v1836, %v1908
    %1910 = vmatmul.bf16.gmra.mxu0 %v1776
    %v1911 = vpop.f32.mrf.mxu0
    %v1912 = vadd.f32 %v1839, %v1911
    %v1913 = vpop.f32.mrf.mxu0
    %v1914 = vadd.f32 %v1841, %v1913
    %1915 = vmatmul.bf16.gmra.mxu0 %v1779
    %v1916 = vpop.f32.mrf.mxu0
    %v1917 = vadd.f32 %v1844, %v1916
    %v1918 = vpop.f32.mrf.mxu0
    %v1919 = vadd.f32 %v1846, %v1918
    %1920 = vmatmul.bf16.gmra.mxu0 %v1782
    %v1921 = vpop.f32.mrf.mxu0
    %v1922 = vadd.f32 %v1849, %v1921
    %v1923 = vpop.f32.mrf.mxu0
    %v1924 = vadd.f32 %v1851, %v1923
    %1925 = vmatmul.bf16.gmra.mxu0 %v1785
    %v1926 = vpop.f32.mrf.mxu0
    %v1927 = vadd.f32 %v1854, %v1926
    %v1928 = vpop.f32.mrf.mxu0
    %v1929 = vadd.f32 %v1856, %v1928
    %1930 = vmatmul.bf16.gmra.mxu0 %v1788
    %v1931 = vpop.f32.mrf.mxu0
    %v1932 = vadd.f32 %v1859, %v1931
    %v1933 = vpop.f32.mrf.mxu0
    %v1934 = vadd.f32 %v1861, %v1933
    %1935 = vmatmul.bf16.gmra.mxu0 %v1791
    %v1936 = vpop.f32.mrf.mxu0
    %v1937 = vadd.f32 %v1864, %v1936
    %v1938 = vpop.f32.mrf.mxu0
    %v1939 = vadd.f32 %v1866, %v1938
    %1940 = vmatmul.bf16.gmra.mxu0 %v1794
    %v1941 = vpop.f32.mrf.mxu0
    %v1942 = vadd.f32 %v1869, %v1941
    %v1943 = vpop.f32.mrf.mxu0
    %1944 = vdwg.mxu0
    %v1970 = vunpack.c.l.b16 %v826
    %v1971 = vunpack.c.h.b16 %v826
    %v1972 = vunpack.c.l.b16 %v827
    %v1973 = vunpack.c.h.b16 %v827
    %v1974 = vunpack.c.l.b16 %v828
    %v1975 = vunpack.c.h.b16 %v828
    %v1976 = vunpack.c.l.b16 %v829
    %v1977 = vunpack.c.h.b16 %v829
    %v1978 = vunpack.c.l.b16 %v830
    %v1979 = vunpack.c.h.b16 %v830
    %v1980 = vunpack.c.l.b16 %v831
    %v1981 = vunpack.c.h.b16 %v831
    %v1982 = vunpack.c.l.b16 %v832
    %v1983 = vunpack.c.h.b16 %v832
    %v1984 = vunpack.c.l.b16 %v833
    %v1985 = vunpack.c.h.b16 %v833
    %v1986 = vunpack.c.l.b16 %v834
    %v1987 = vunpack.c.h.b16 %v834
    %v1988 = vunpack.c.l.b16 %v835
    %v1989 = vunpack.c.h.b16 %v835
    %v1990 = vunpack.c.l.b16 %v836
    %v1991 = vunpack.c.h.b16 %v836
    %v1992 = vunpack.c.l.b16 %v837
    %v1993 = vunpack.c.h.b16 %v837
    %v1994 = vunpack.c.l.b16 %v838
    %v1995 = vunpack.c.h.b16 %v838
    %v1996 = vunpack.c.l.b16 %v839
    %v1997 = vunpack.c.h.b16 %v839
    %v1998 = vunpack.c.l.b16 %v840
    %v1999 = vunpack.c.h.b16 %v840
    %v2000 = vunpack.c.l.b16 %v841
    %v2001 = vunpack.c.h.b16 %v841
    %v2002 = vunpack.c.l.b16 %v842
    %v2003 = vunpack.c.h.b16 %v842
    %v2004 = vunpack.c.l.b16 %v843
    %v2005 = vunpack.c.h.b16 %v843
    %v2006 = vunpack.c.l.b16 %v844
    %v2007 = vunpack.c.h.b16 %v844
    %v2008 = vunpack.c.l.b16 %v845
    %v2009 = vunpack.c.h.b16 %v845
    %v2010 = vunpack.c.l.b16 %v846
    %v2011 = vunpack.c.h.b16 %v846
    %v2012 = vunpack.c.l.b16 %v847
    %v2013 = vunpack.c.h.b16 %v847
    %v2014 = vunpack.c.l.b16 %v848
    %v2015 = vunpack.c.h.b16 %v848
    %v2016 = vunpack.c.l.b16 %v849
    %v2017 = vunpack.c.h.b16 %v849
    %v2018 = vunpack.c.l.b16 %v850
    %v2019 = vunpack.c.h.b16 %v850
    %v2020 = vpack.c.b16 %v1972, %v1970
    %v2021 = vpack.c.b16 %v1973, %v1971
    %v2022 = vpack.c.b16 %v1976, %v1974
    %v2023 = vpack.c.b16 %v1977, %v1975
    %v2024 = vpack.c.b16 %v1980, %v1978
    %v2025 = vpack.c.b16 %v1981, %v1979
    %v2026 = vpack.c.b16 %v1984, %v1982
    %v2027 = vpack.c.b16 %v1985, %v1983
    %v2028 = vpack.c.b16 %v1988, %v1986
    %v2029 = vpack.c.b16 %v1989, %v1987
    %v2030 = vpack.c.b16 %v1992, %v1990
    %v2031 = vpack.c.b16 %v1993, %v1991
    %v2032 = vpack.c.b16 %v1996, %v1994
    %v2033 = vpack.c.b16 %v1997, %v1995
    %v2034 = vpack.c.b16 %v2000, %v1998
    %v2035 = vpack.c.b16 %v2001, %v1999
    %v2036 = vpack.c.b16 %v2004, %v2002
    %v2037 = vpack.c.b16 %v2005, %v2003
    %v2038 = vpack.c.b16 %v2008, %v2006
    %v2039 = vpack.c.b16 %v2009, %v2007
    %v2040 = vpack.c.b16 %v2012, %v2010
    %v2041 = vpack.c.b16 %v2013, %v2011
    %v2042 = vpack.c.b16 %v2016, %v2014
    %v2043 = vpack.c.b16 %v2017, %v2015
    %v2044 = vpack.c.b16 %v2018, %v2018
    %v2045 = vpack.c.b16 %v2019, %v2019
    %v2060 = vsel %vm1137, %v2021, 0
    %v2063 = vsel %vm1137, %v2023, 0
    %v2066 = vsel %vm1137, %v2025, 0
    %v2069 = vsel %vm1137, %v2027, 0
    %v2072 = vsel %vm1137, %v2029, 0
    %v2075 = vsel %vm1137, %v2031, 0
    %v2078 = vsel %vm1137, %v2033, 0
    %v2081 = vsel %vm1137, %v2035, 0
    %v2084 = vsel %vm1137, %v2037, 0
    %v2087 = vsel %vm1137, %v2039, 0
    %v2090 = vsel %vm1137, %v2041, 0
    %v2093 = vsel %vm1137, %v2043, 0
    %v2096 = vsel %vm1137, %v2045, 0
    %v2099 = vand.u32 %v865, %v1179
    %2101 = vmatpush.bf16.msra.mxu0 %v858
    %2102 = vmatpush.bf16.msra.mxu0 %v857
    %2103 = vmatpush.bf16.msra.mxu0 %v856
    %2104 = vmatpush.bf16.msra.mxu0 %v855
    %2105 = vmatpush.bf16.msra.mxu0 %v854
    %2106 = vmatpush.bf16.msra.mxu0 %v853
    %2107 = vmatpush.bf16.msra.mxu0 %v852
    %2108 = vmatpush.bf16.msra.mxu0 %v851
    %2109 = vmatmul.bf16.gmra.mxu0 %v2020
    %v2110 = vpop.f32.mrf.mxu0
    %v2111 = vadd.f32 %v1266, %v2110
    %v2112 = vpop.f32.mrf.mxu0
    %v2113 = vadd.f32 %v1268, %v2112
    %2114 = vmatmul.bf16.gmra.mxu0 %v2022
    %v2115 = vpop.f32.mrf.mxu0
    %v2116 = vadd.f32 %v1271, %v2115
    %v2117 = vpop.f32.mrf.mxu0
    %v2118 = vadd.f32 %v1273, %v2117
    %2119 = vmatmul.bf16.gmra.mxu0 %v2024
    %v2120 = vpop.f32.mrf.mxu0
    %v2121 = vadd.f32 %v1276, %v2120
    %v2122 = vpop.f32.mrf.mxu0
    %v2123 = vadd.f32 %v1278, %v2122
    %2124 = vmatmul.bf16.gmra.mxu0 %v2026
    %v2125 = vpop.f32.mrf.mxu0
    %v2126 = vadd.f32 %v1281, %v2125
    %v2127 = vpop.f32.mrf.mxu0
    %v2128 = vadd.f32 %v1283, %v2127
    %2129 = vmatmul.bf16.gmra.mxu0 %v2028
    %v2130 = vpop.f32.mrf.mxu0
    %v2131 = vadd.f32 %v1286, %v2130
    %v2132 = vpop.f32.mrf.mxu0
    %v2133 = vadd.f32 %v1288, %v2132
    %2134 = vmatmul.bf16.gmra.mxu0 %v2030
    %v2135 = vpop.f32.mrf.mxu0
    %v2136 = vadd.f32 %v1291, %v2135
    %v2137 = vpop.f32.mrf.mxu0
    %v2138 = vadd.f32 %v1293, %v2137
    %2139 = vmatmul.bf16.gmra.mxu0 %v2032
    %v2140 = vpop.f32.mrf.mxu0
    %v2141 = vadd.f32 %v1296, %v2140
    %v2142 = vpop.f32.mrf.mxu0
    %v2143 = vadd.f32 %v1298, %v2142
    %2144 = vmatmul.bf16.gmra.mxu0 %v2034
    %v2145 = vpop.f32.mrf.mxu0
    %v2146 = vadd.f32 %v1301, %v2145
    %v2147 = vpop.f32.mrf.mxu0
    %v2148 = vadd.f32 %v1303, %v2147
    %2149 = vmatmul.bf16.gmra.mxu0 %v2036
    %v2150 = vpop.f32.mrf.mxu0
    %v2151 = vadd.f32 %v1306, %v2150
    %v2152 = vpop.f32.mrf.mxu0
    %v2153 = vadd.f32 %v1308, %v2152
    %2154 = vmatmul.bf16.gmra.mxu0 %v2038
    %v2155 = vpop.f32.mrf.mxu0
    %v2156 = vadd.f32 %v1311, %v2155
    %v2157 = vpop.f32.mrf.mxu0
    %v2158 = vadd.f32 %v1313, %v2157
    %2159 = vmatmul.bf16.gmra.mxu0 %v2040
    %v2160 = vpop.f32.mrf.mxu0
    %v2161 = vadd.f32 %v1316, %v2160
    %v2162 = vpop.f32.mrf.mxu0
    %v2163 = vadd.f32 %v1318, %v2162
    %2164 = vmatmul.bf16.gmra.mxu0 %v2042
    %v2165 = vpop.f32.mrf.mxu0
    %v2166 = vadd.f32 %v1321, %v2165
    %v2167 = vpop.f32.mrf.mxu0
    %v2168 = vadd.f32 %v1323, %v2167
    %2169 = vmatmul.bf16.gmra.mxu0 %v2044
    %v2170 = vpop.f32.mrf.mxu0
    %v2171 = vadd.f32 %v1326, %v2170
    %v2172 = vpop.f32.mrf.mxu0
    %2173 = vdwg.mxu0
    %2174 = vmatpush.bf16.msra.mxu0 0
    %2175 = vmatpush.bf16.msra.mxu0 %v2099
    %2176 = vmatpush.bf16.msra.mxu0 %v864
    %2177 = vmatpush.bf16.msra.mxu0 %v863
    %2178 = vmatpush.bf16.msra.mxu0 %v862
    %2179 = vmatpush.bf16.msra.mxu0 %v861
    %2180 = vmatpush.bf16.msra.mxu0 %v860
    %2181 = vmatpush.bf16.msra.mxu0 %v859
    %2182 = vmatmul.bf16.gmra.mxu0 %v2060
    %v2183 = vpop.f32.mrf.mxu0
    %v2184 = vadd.f32 %v2111, %v2183
    %v2185 = vpop.f32.mrf.mxu0
    %v2186 = vadd.f32 %v2113, %v2185
    %2187 = vmatmul.bf16.gmra.mxu0 %v2063
    %v2188 = vpop.f32.mrf.mxu0
    %v2189 = vadd.f32 %v2116, %v2188
    %v2190 = vpop.f32.mrf.mxu0
    %v2191 = vadd.f32 %v2118, %v2190
    %2192 = vmatmul.bf16.gmra.mxu0 %v2066
    %v2193 = vpop.f32.mrf.mxu0
    %v2194 = vadd.f32 %v2121, %v2193
    %v2195 = vpop.f32.mrf.mxu0
    %v2196 = vadd.f32 %v2123, %v2195
    %2197 = vmatmul.bf16.gmra.mxu0 %v2069
    %v2198 = vpop.f32.mrf.mxu0
    %v2199 = vadd.f32 %v2126, %v2198
    %v2200 = vpop.f32.mrf.mxu0
    %v2201 = vadd.f32 %v2128, %v2200
    %2202 = vmatmul.bf16.gmra.mxu0 %v2072
    %v2203 = vpop.f32.mrf.mxu0
    %v2204 = vadd.f32 %v2131, %v2203
    %v2205 = vpop.f32.mrf.mxu0
    %v2206 = vadd.f32 %v2133, %v2205
    %2207 = vmatmul.bf16.gmra.mxu0 %v2075
    %v2208 = vpop.f32.mrf.mxu0
    %v2209 = vadd.f32 %v2136, %v2208
    %v2210 = vpop.f32.mrf.mxu0
    %v2211 = vadd.f32 %v2138, %v2210
    %2212 = vmatmul.bf16.gmra.mxu0 %v2078
    %v2213 = vpop.f32.mrf.mxu0
    %v2214 = vadd.f32 %v2141, %v2213
    %v2215 = vpop.f32.mrf.mxu0
    %v2216 = vadd.f32 %v2143, %v2215
    %2217 = vmatmul.bf16.gmra.mxu0 %v2081
    %v2218 = vpop.f32.mrf.mxu0
    %v2219 = vadd.f32 %v2146, %v2218
    %v2220 = vpop.f32.mrf.mxu0
    %v2221 = vadd.f32 %v2148, %v2220
    %2222 = vmatmul.bf16.gmra.mxu0 %v2084
    %v2223 = vpop.f32.mrf.mxu0
    %v2224 = vadd.f32 %v2151, %v2223
    %v2225 = vpop.f32.mrf.mxu0
    %v2226 = vadd.f32 %v2153, %v2225
    %2227 = vmatmul.bf16.gmra.mxu0 %v2087
    %v2228 = vpop.f32.mrf.mxu0
    %v2229 = vadd.f32 %v2156, %v2228
    %v2230 = vpop.f32.mrf.mxu0
    %v2231 = vadd.f32 %v2158, %v2230
    %2232 = vmatmul.bf16.gmra.mxu0 %v2090
    %v2233 = vpop.f32.mrf.mxu0
    %v2234 = vadd.f32 %v2161, %v2233
    %v2235 = vpop.f32.mrf.mxu0
    %v2236 = vadd.f32 %v2163, %v2235
    %2237 = vmatmul.bf16.gmra.mxu0 %v2093
    %v2238 = vpop.f32.mrf.mxu0
    %v2239 = vadd.f32 %v2166, %v2238
    %v2240 = vpop.f32.mrf.mxu0
    %v2241 = vadd.f32 %v2168, %v2240
    %2242 = vmatmul.bf16.gmra.mxu0 %v2096
    %v2243 = vpop.f32.mrf.mxu0
    %v2244 = vadd.f32 %v2171, %v2243
    %v2245 = vpop.f32.mrf.mxu0
    %2246 = vdwg.mxu0
    %v2272 = vunpack.c.l.b16 %v1446
    %v2273 = vunpack.c.h.b16 %v1446
    %v2274 = vunpack.c.l.b16 %v1447
    %v2275 = vunpack.c.h.b16 %v1447
    %v2276 = vunpack.c.l.b16 %v1448
    %v2277 = vunpack.c.h.b16 %v1448
    %v2278 = vunpack.c.l.b16 %v1449
    %v2279 = vunpack.c.h.b16 %v1449
    %v2280 = vunpack.c.l.b16 %v1450
    %v2281 = vunpack.c.h.b16 %v1450
    %v2282 = vunpack.c.l.b16 %v1451
    %v2283 = vunpack.c.h.b16 %v1451
    %v2284 = vunpack.c.l.b16 %v1452
    %v2285 = vunpack.c.h.b16 %v1452
    %v2286 = vunpack.c.l.b16 %v1453
    %v2287 = vunpack.c.h.b16 %v1453
    %v2288 = vunpack.c.l.b16 %v1454
    %v2289 = vunpack.c.h.b16 %v1454
    %v2290 = vunpack.c.l.b16 %v1455
    %v2291 = vunpack.c.h.b16 %v1455
    %v2292 = vunpack.c.l.b16 %v1456
    %v2293 = vunpack.c.h.b16 %v1456
    %v2294 = vunpack.c.l.b16 %v1457
    %v2295 = vunpack.c.h.b16 %v1457
    %v2296 = vunpack.c.l.b16 %v1458
    %v2297 = vunpack.c.h.b16 %v1458
    %v2298 = vunpack.c.l.b16 %v1459
    %v2299 = vunpack.c.h.b16 %v1459
    %v2300 = vunpack.c.l.b16 %v1460
    %v2301 = vunpack.c.h.b16 %v1460
    %v2302 = vunpack.c.l.b16 %v1461
    %v2303 = vunpack.c.h.b16 %v1461
    %v2304 = vunpack.c.l.b16 %v1462
    %v2305 = vunpack.c.h.b16 %v1462
    %v2306 = vunpack.c.l.b16 %v1463
    %v2307 = vunpack.c.h.b16 %v1463
    %v2308 = vunpack.c.l.b16 %v1464
    %v2309 = vunpack.c.h.b16 %v1464
    %v2310 = vunpack.c.l.b16 %v1465
    %v2311 = vunpack.c.h.b16 %v1465
    %v2312 = vunpack.c.l.b16 %v1466
    %v2313 = vunpack.c.h.b16 %v1466
    %v2314 = vunpack.c.l.b16 %v1467
    %v2315 = vunpack.c.h.b16 %v1467
    %v2316 = vunpack.c.l.b16 %v1468
    %v2317 = vunpack.c.h.b16 %v1468
    %v2318 = vunpack.c.l.b16 %v1469
    %v2319 = vunpack.c.h.b16 %v1469
    %v2320 = vunpack.c.l.b16 %v1470
    %v2321 = vunpack.c.h.b16 %v1470
    %v2322 = vpack.c.b16 %v2274, %v2272
    %v2323 = vpack.c.b16 %v2275, %v2273
    %v2324 = vpack.c.b16 %v2278, %v2276
    %v2325 = vpack.c.b16 %v2279, %v2277
    %v2326 = vpack.c.b16 %v2282, %v2280
    %v2327 = vpack.c.b16 %v2283, %v2281
    %v2328 = vpack.c.b16 %v2286, %v2284
    %v2329 = vpack.c.b16 %v2287, %v2285
    %v2330 = vpack.c.b16 %v2290, %v2288
    %v2331 = vpack.c.b16 %v2291, %v2289
    %v2332 = vpack.c.b16 %v2294, %v2292
    %v2333 = vpack.c.b16 %v2295, %v2293
    %v2334 = vpack.c.b16 %v2298, %v2296
    %v2335 = vpack.c.b16 %v2299, %v2297
    %v2336 = vpack.c.b16 %v2302, %v2300
    %v2337 = vpack.c.b16 %v2303, %v2301
    %v2338 = vpack.c.b16 %v2306, %v2304
    %v2339 = vpack.c.b16 %v2307, %v2305
    %v2340 = vpack.c.b16 %v2310, %v2308
    %v2341 = vpack.c.b16 %v2311, %v2309
    %v2342 = vpack.c.b16 %v2314, %v2312
    %v2343 = vpack.c.b16 %v2315, %v2313
    %v2344 = vpack.c.b16 %v2318, %v2316
    %v2345 = vpack.c.b16 %v2319, %v2317
    %v2346 = vpack.c.b16 %v2320, %v2320
    %v2347 = vpack.c.b16 %v2321, %v2321
    %v2362 = vsel %vm1137, %v2323, 0
    %v2365 = vsel %vm1137, %v2325, 0
    %v2368 = vsel %vm1137, %v2327, 0
    %v2371 = vsel %vm1137, %v2329, 0
    %v2374 = vsel %vm1137, %v2331, 0
    %v2377 = vsel %vm1137, %v2333, 0
    %v2380 = vsel %vm1137, %v2335, 0
    %v2383 = vsel %vm1137, %v2337, 0
    %v2386 = vsel %vm1137, %v2339, 0
    %v2389 = vsel %vm1137, %v2341, 0
    %v2392 = vsel %vm1137, %v2343, 0
    %v2395 = vsel %vm1137, %v2345, 0
    %v2398 = vsel %vm1137, %v2347, 0
    %v2401 = vand.u32 %v1485, %v1179
    %2403 = vmatpush.bf16.msra.mxu0 %v1478
    %2404 = vmatpush.bf16.msra.mxu0 %v1477
    %2405 = vmatpush.bf16.msra.mxu0 %v1476
    %2406 = vmatpush.bf16.msra.mxu0 %v1475
    %2407 = vmatpush.bf16.msra.mxu0 %v1474
    %2408 = vmatpush.bf16.msra.mxu0 %v1473
    %2409 = vmatpush.bf16.msra.mxu0 %v1472
    %2410 = vmatpush.bf16.msra.mxu0 %v1471
    %2411 = vmatmul.bf16.gmra.mxu0 %v2322
    %v2412 = vpop.f32.mrf.mxu0
    %v2413 = vadd.f32 %v1882, %v2412
    %v2414 = vpop.f32.mrf.mxu0
    %v2415 = vadd.f32 %v1884, %v2414
    %2416 = vmatmul.bf16.gmra.mxu0 %v2324
    %v2417 = vpop.f32.mrf.mxu0
    %v2418 = vadd.f32 %v1887, %v2417
    %v2419 = vpop.f32.mrf.mxu0
    %v2420 = vadd.f32 %v1889, %v2419
    %2421 = vmatmul.bf16.gmra.mxu0 %v2326
    %v2422 = vpop.f32.mrf.mxu0
    %v2423 = vadd.f32 %v1892, %v2422
    %v2424 = vpop.f32.mrf.mxu0
    %v2425 = vadd.f32 %v1894, %v2424
    %2426 = vmatmul.bf16.gmra.mxu0 %v2328
    %v2427 = vpop.f32.mrf.mxu0
    %v2428 = vadd.f32 %v1897, %v2427
    %v2429 = vpop.f32.mrf.mxu0
    %v2430 = vadd.f32 %v1899, %v2429
    %2431 = vmatmul.bf16.gmra.mxu0 %v2330
    %v2432 = vpop.f32.mrf.mxu0
    %v2433 = vadd.f32 %v1902, %v2432
    %v2434 = vpop.f32.mrf.mxu0
    %v2435 = vadd.f32 %v1904, %v2434
    %2436 = vmatmul.bf16.gmra.mxu0 %v2332
    %v2437 = vpop.f32.mrf.mxu0
    %v2438 = vadd.f32 %v1907, %v2437
    %v2439 = vpop.f32.mrf.mxu0
    %v2440 = vadd.f32 %v1909, %v2439
    %2441 = vmatmul.bf16.gmra.mxu0 %v2334
    %v2442 = vpop.f32.mrf.mxu0
    %v2443 = vadd.f32 %v1912, %v2442
    %v2444 = vpop.f32.mrf.mxu0
    %v2445 = vadd.f32 %v1914, %v2444
    %2446 = vmatmul.bf16.gmra.mxu0 %v2336
    %v2447 = vpop.f32.mrf.mxu0
    %v2448 = vadd.f32 %v1917, %v2447
    %v2449 = vpop.f32.mrf.mxu0
    %v2450 = vadd.f32 %v1919, %v2449
    %2451 = vmatmul.bf16.gmra.mxu0 %v2338
    %v2452 = vpop.f32.mrf.mxu0
    %v2453 = vadd.f32 %v1922, %v2452
    %v2454 = vpop.f32.mrf.mxu0
    %v2455 = vadd.f32 %v1924, %v2454
    %2456 = vmatmul.bf16.gmra.mxu0 %v2340
    %v2457 = vpop.f32.mrf.mxu0
    %v2458 = vadd.f32 %v1927, %v2457
    %v2459 = vpop.f32.mrf.mxu0
    %v2460 = vadd.f32 %v1929, %v2459
    %2461 = vmatmul.bf16.gmra.mxu0 %v2342
    %v2462 = vpop.f32.mrf.mxu0
    %v2463 = vadd.f32 %v1932, %v2462
    %v2464 = vpop.f32.mrf.mxu0
    %v2465 = vadd.f32 %v1934, %v2464
    %2466 = vmatmul.bf16.gmra.mxu0 %v2344
    %v2467 = vpop.f32.mrf.mxu0
    %v2468 = vadd.f32 %v1937, %v2467
    %v2469 = vpop.f32.mrf.mxu0
    %v2470 = vadd.f32 %v1939, %v2469
    %2471 = vmatmul.bf16.gmra.mxu0 %v2346
    %v2472 = vpop.f32.mrf.mxu0
    %v2473 = vadd.f32 %v1942, %v2472
    %v2474 = vpop.f32.mrf.mxu0
    %2475 = vdwg.mxu0
    %2476 = vmatpush.bf16.msra.mxu0 0
    %2477 = vmatpush.bf16.msra.mxu0 %v2401
    %2478 = vmatpush.bf16.msra.mxu0 %v1484
    %2479 = vmatpush.bf16.msra.mxu0 %v1483
    %2480 = vmatpush.bf16.msra.mxu0 %v1482
    %2481 = vmatpush.bf16.msra.mxu0 %v1481
    %2482 = vmatpush.bf16.msra.mxu0 %v1480
    %2483 = vmatpush.bf16.msra.mxu0 %v1479
    %2484 = vmatmul.bf16.gmra.mxu0 %v2362
    %v2485 = vpop.f32.mrf.mxu0
    %v2486 = vadd.f32 %v2413, %v2485
    %v2487 = vpop.f32.mrf.mxu0
    %v2488 = vadd.f32 %v2415, %v2487
    %2489 = vmatmul.bf16.gmra.mxu0 %v2365
    %v2490 = vpop.f32.mrf.mxu0
    %v2491 = vadd.f32 %v2418, %v2490
    %v2492 = vpop.f32.mrf.mxu0
    %v2493 = vadd.f32 %v2420, %v2492
    %2494 = vmatmul.bf16.gmra.mxu0 %v2368
    %v2495 = vpop.f32.mrf.mxu0
    %v2496 = vadd.f32 %v2423, %v2495
    %v2497 = vpop.f32.mrf.mxu0
    %v2498 = vadd.f32 %v2425, %v2497
    %2499 = vmatmul.bf16.gmra.mxu0 %v2371
    %v2500 = vpop.f32.mrf.mxu0
    %v2501 = vadd.f32 %v2428, %v2500
    %v2502 = vpop.f32.mrf.mxu0
    %v2503 = vadd.f32 %v2430, %v2502
    %2504 = vmatmul.bf16.gmra.mxu0 %v2374
    %v2505 = vpop.f32.mrf.mxu0
    %v2506 = vadd.f32 %v2433, %v2505
    %v2507 = vpop.f32.mrf.mxu0
    %v2508 = vadd.f32 %v2435, %v2507
    %2509 = vmatmul.bf16.gmra.mxu0 %v2377
    %v2510 = vpop.f32.mrf.mxu0
    %v2511 = vadd.f32 %v2438, %v2510
    %v2512 = vpop.f32.mrf.mxu0
    %v2513 = vadd.f32 %v2440, %v2512
    %2514 = vmatmul.bf16.gmra.mxu0 %v2380
    %v2515 = vpop.f32.mrf.mxu0
    %v2516 = vadd.f32 %v2443, %v2515
    %v2517 = vpop.f32.mrf.mxu0
    %v2518 = vadd.f32 %v2445, %v2517
    %2519 = vmatmul.bf16.gmra.mxu0 %v2383
    %v2520 = vpop.f32.mrf.mxu0
    %v2521 = vadd.f32 %v2448, %v2520
    %v2522 = vpop.f32.mrf.mxu0
    %v2523 = vadd.f32 %v2450, %v2522
    %2524 = vmatmul.bf16.gmra.mxu0 %v2386
    %v2525 = vpop.f32.mrf.mxu0
    %v2526 = vadd.f32 %v2453, %v2525
    %v2527 = vpop.f32.mrf.mxu0
    %v2528 = vadd.f32 %v2455, %v2527
    %2529 = vmatmul.bf16.gmra.mxu0 %v2389
    %v2530 = vpop.f32.mrf.mxu0
    %v2531 = vadd.f32 %v2458, %v2530
    %v2532 = vpop.f32.mrf.mxu0
    %v2533 = vadd.f32 %v2460, %v2532
    %2534 = vmatmul.bf16.gmra.mxu0 %v2392
    %v2535 = vpop.f32.mrf.mxu0
    %v2536 = vadd.f32 %v2463, %v2535
    %v2537 = vpop.f32.mrf.mxu0
    %v2538 = vadd.f32 %v2465, %v2537
    %2539 = vmatmul.bf16.gmra.mxu0 %v2395
    %v2540 = vpop.f32.mrf.mxu0
    %v2541 = vadd.f32 %v2468, %v2540
    %v2542 = vpop.f32.mrf.mxu0
    %v2543 = vadd.f32 %v2470, %v2542
    %2544 = vmatmul.bf16.gmra.mxu0 %v2398
    %v2545 = vpop.f32.mrf.mxu0
    %v2546 = vadd.f32 %v2473, %v2545
    %v2547 = vpop.f32.mrf.mxu0
    %2548 = vdwg.mxu0
    %v2549 = vadd.f32 %v2184, %v2486
    %v2550 = vadd.f32 %v2186, %v2488
    %v2551 = vadd.f32 %v2189, %v2491
    %v2552 = vadd.f32 %v2191, %v2493
    %v2553 = vadd.f32 %v2194, %v2496
    %v2554 = vadd.f32 %v2196, %v2498
    %v2555 = vadd.f32 %v2199, %v2501
    %v2556 = vadd.f32 %v2201, %v2503
    %v2557 = vadd.f32 %v2204, %v2506
    %v2558 = vadd.f32 %v2206, %v2508
    %v2559 = vadd.f32 %v2209, %v2511
    %v2560 = vadd.f32 %v2211, %v2513
    %v2561 = vadd.f32 %v2214, %v2516
    %v2562 = vadd.f32 %v2216, %v2518
    %v2563 = vadd.f32 %v2219, %v2521
    %v2564 = vadd.f32 %v2221, %v2523
    %v2565 = vadd.f32 %v2224, %v2526
    %v2566 = vadd.f32 %v2226, %v2528
    %v2567 = vadd.f32 %v2229, %v2531
    %v2568 = vadd.f32 %v2231, %v2533
    %v2569 = vadd.f32 %v2234, %v2536
    %v2570 = vadd.f32 %v2236, %v2538
    %v2571 = vadd.f32 %v2239, %v2541
    %v2572 = vadd.f32 %v2241, %v2543
    %v2573 = vadd.f32 %v2244, %v2546
    %v2574 = vld [vmem:[%s7] sm:$0x1]
    %v2576 = vperm.slane %v2574, 0
    %v2578 = vadd.f32 %v2549, %v2576
    %v2579 = vadd.f32 %v2550, %v2576
    %v2580 = vadd.f32 %v2551, %v2576
    %v2581 = vadd.f32 %v2552, %v2576
    %v2582 = vadd.f32 %v2553, %v2576
    %v2583 = vadd.f32 %v2554, %v2576
    %v2584 = vadd.f32 %v2555, %v2576
    %v2585 = vadd.f32 %v2556, %v2576
    %v2586 = vadd.f32 %v2557, %v2576
    %v2587 = vadd.f32 %v2558, %v2576
    %v2588 = vadd.f32 %v2559, %v2576
    %v2589 = vadd.f32 %v2560, %v2576
    %v2590 = vadd.f32 %v2561, %v2576
    %v2591 = vadd.f32 %v2562, %v2576
    %v2592 = vadd.f32 %v2563, %v2576
    %v2593 = vadd.f32 %v2564, %v2576
    %v2594 = vadd.f32 %v2565, %v2576
    %v2595 = vadd.f32 %v2566, %v2576
    %v2596 = vadd.f32 %v2567, %v2576
    %v2597 = vadd.f32 %v2568, %v2576
    %v2598 = vadd.f32 %v2569, %v2576
    %v2599 = vadd.f32 %v2570, %v2576
    %v2600 = vadd.f32 %v2571, %v2576
    %v2601 = vadd.f32 %v2572, %v2576
    %v2602 = vadd.f32 %v2573, %v2576
    %v2603 = vmax.f32 %v2578, 0.0
    %v2604 = vmax.f32 %v2579, 0.0
    %v2605 = vmax.f32 %v2580, 0.0
    %v2606 = vmax.f32 %v2581, 0.0
    %v2607 = vmax.f32 %v2582, 0.0
    %v2608 = vmax.f32 %v2583, 0.0
    %v2609 = vmax.f32 %v2584, 0.0
    %v2610 = vmax.f32 %v2585, 0.0
    %v2611 = vmax.f32 %v2586, 0.0
    %v2612 = vmax.f32 %v2587, 0.0
    %v2613 = vmax.f32 %v2588, 0.0
    %v2614 = vmax.f32 %v2589, 0.0
    %v2615 = vmax.f32 %v2590, 0.0
    %v2616 = vmax.f32 %v2591, 0.0
    %v2617 = vmax.f32 %v2592, 0.0
    %v2618 = vmax.f32 %v2593, 0.0
    %v2619 = vmax.f32 %v2594, 0.0
    %v2620 = vmax.f32 %v2595, 0.0
    %v2621 = vmax.f32 %v2596, 0.0
    %v2622 = vmax.f32 %v2597, 0.0
    %v2623 = vmax.f32 %v2598, 0.0
    %v2624 = vmax.f32 %v2599, 0.0
    %v2625 = vmax.f32 %v2600, 0.0
    %v2626 = vmax.f32 %v2601, 0.0
    %v2627 = vmax.f32 %v2602, 0.0
    %v2628 = vpack.c.bf16 %v2604, %v2603
    %v2629 = vpack.c.bf16 %v2606, %v2605
    %v2630 = vpack.c.bf16 %v2608, %v2607
    %v2631 = vpack.c.bf16 %v2610, %v2609
    %v2632 = vpack.c.bf16 %v2612, %v2611
    %v2633 = vpack.c.bf16 %v2614, %v2613
    %v2634 = vpack.c.bf16 %v2616, %v2615
    %v2635 = vpack.c.bf16 %v2618, %v2617
    %v2636 = vpack.c.bf16 %v2620, %v2619
    %v2637 = vpack.c.bf16 %v2622, %v2621
    %v2638 = vpack.c.bf16 %v2624, %v2623
    %v2639 = vpack.c.bf16 %v2626, %v2625
    %v2640 = vpack.c.bf16 %v2627, %v2627
    %v2641 = vld [vmem:[%s3] sm:$0xff]
    %v2642 = vld [vmem:[%s3 + $0x8] sm:$0xff]
    %v2643 = vld [vmem:[%s3 + $0x10] sm:$0xff]
    %v2644 = vld [vmem:[%s3 + $0x18] sm:$0xff]
    %v2645 = vld [vmem:[%s3 + $0x20] sm:$0x33]
    %v2651 = vunpack.c.l.b16 %v2641
    %v2652 = vunpack.c.h.b16 %v2641
    %v2653 = vunpack.c.l.b16 %v2642
    %v2654 = vunpack.c.h.b16 %v2642
    %v2655 = vunpack.c.l.b16 %v2643
    %v2656 = vunpack.c.h.b16 %v2643
    %v2657 = vunpack.c.l.b16 %v2644
    %v2658 = vunpack.c.h.b16 %v2644
    %v2659 = vunpack.c.l.b16 %v2645
    %v2660 = vunpack.c.h.b16 %v2645
    %v2661 = vpack.c.b16 %v2653, %v2651
    %v2662 = vpack.c.b16 %v2654, %v2652
    %v2663 = vpack.c.b16 %v2657, %v2655
    %v2664 = vpack.c.b16 %v2658, %v2656
    %v2665 = vpack.c.b16 %v2659, %v2659
    %v2666 = vpack.c.b16 %v2660, %v2660
    %vm2670 = vcmask 556032
    %v2672 = vsel %vm2670, %v2662, 0
    %v2675 = vsel %vm2670, %v2664, 0
    %v2678 = vsel %vm2670, %v2666, 0
    %vm2680 = vcmask 1041408
    %v2682 = vsel %vm2680, %v2640, 0
    %2684 = vmatpush.bf16.msra.mxu0 %v2635
    %2685 = vmatpush.bf16.msra.mxu0 %v2634
    %2686 = vmatpush.bf16.msra.mxu0 %v2633
    %2687 = vmatpush.bf16.msra.mxu0 %v2632
    %2688 = vmatpush.bf16.msra.mxu0 %v2631
    %2689 = vmatpush.bf16.msra.mxu0 %v2630
    %2690 = vmatpush.bf16.msra.mxu0 %v2629
    %2691 = vmatpush.bf16.msra.mxu0 %v2628
    %2692 = vmatmul.bf16.gmra.mxu0 %v2661
    %v2693 = vpop.f32.mrf.mxu0
    %v2694 = vadd.f32 0.0, %v2693
    %v2695 = vpop.f32.mrf.mxu0
    %v2696 = vadd.f32 0.0, %v2695
    %2697 = vmatmul.bf16.gmra.mxu0 %v2663
    %v2698 = vpop.f32.mrf.mxu0
    %v2699 = vadd.f32 0.0, %v2698
    %v2700 = vpop.f32.mrf.mxu0
    %v2701 = vadd.f32 0.0, %v2700
    %2702 = vmatmul.bf16.gmra.mxu0 %v2665
    %v2703 = vpop.f32.mrf.mxu0
    %v2704 = vadd.f32 0.0, %v2703
    %v2705 = vpop.f32.mrf.mxu0
    %2706 = vdwg.mxu0
    %2707 = vmatpush.bf16.msra.mxu0 0
    %2708 = vmatpush.bf16.msra.mxu0 0
    %2709 = vmatpush.bf16.msra.mxu0 0
    %2710 = vmatpush.bf16.msra.mxu0 %v2682
    %2711 = vmatpush.bf16.msra.mxu0 %v2639
    %2712 = vmatpush.bf16.msra.mxu0 %v2638
    %2713 = vmatpush.bf16.msra.mxu0 %v2637
    %2714 = vmatpush.bf16.msra.mxu0 %v2636
    %2715 = vmatmul.bf16.gmra.mxu0 %v2672
    %v2716 = vpop.f32.mrf.mxu0
    %v2717 = vadd.f32 %v2694, %v2716
    %v2718 = vpop.f32.mrf.mxu0
    %v2719 = vadd.f32 %v2696, %v2718
    %2720 = vmatmul.bf16.gmra.mxu0 %v2675
    %v2721 = vpop.f32.mrf.mxu0
    %v2722 = vadd.f32 %v2699, %v2721
    %v2723 = vpop.f32.mrf.mxu0
    %v2724 = vadd.f32 %v2701, %v2723
    %2725 = vmatmul.bf16.gmra.mxu0 %v2678
    %v2726 = vpop.f32.mrf.mxu0
    %v2727 = vadd.f32 %v2704, %v2726
    %v2728 = vpop.f32.mrf.mxu0
    %2729 = vdwg.mxu0
    %v2730 = vpack.c.bf16 %v2719, %v2717
    %v2731 = vpack.c.bf16 %v2724, %v2722
    %v2732 = vpack.c.bf16 %v2727, %v2727
    %v2733 = vld [vmem:[%s4] sm:$0xf]
    %v2734 = vld [vmem:[%s4 + $0x4] sm:$0xf]
    %v2735 = vld [vmem:[%s4 + $0x8] sm:$0xf]
    %v2736 = vld [vmem:[%s4 + $0xc] sm:$0xf]
    %s2737 = scalar_lea.vmem %s3, 40
    %v2738 = vld [vmem:[%s2737] sm:$0xff]
    %v2739 = vld [vmem:[%s2737 + $0x8] sm:$0xff]
    %v2740 = vld [vmem:[%s2737 + $0x10] sm:$0xff]
    %v2741 = vld [vmem:[%s2737 + $0x18] sm:$0xff]
    %v2742 = vld [vmem:[%s2737 + $0x20] sm:$0x33]
    %v2748 = vunpack.c.l.b16 %v2738
    %v2749 = vunpack.c.h.b16 %v2738
    %v2750 = vunpack.c.l.b16 %v2739
    %v2751 = vunpack.c.h.b16 %v2739
    %v2752 = vunpack.c.l.b16 %v2740
    %v2753 = vunpack.c.h.b16 %v2740
    %v2754 = vunpack.c.l.b16 %v2741
    %v2755 = vunpack.c.h.b16 %v2741
    %v2756 = vunpack.c.l.b16 %v2742
    %v2757 = vunpack.c.h.b16 %v2742
    %v2758 = vpack.c.b16 %v2750, %v2748
    %v2759 = vpack.c.b16 %v2751, %v2749
    %v2760 = vpack.c.b16 %v2754, %v2752
    %v2761 = vpack.c.b16 %v2755, %v2753
    %v2762 = vpack.c.b16 %v2756, %v2756
    %v2763 = vpack.c.b16 %v2757, %v2757
    %v2768 = vsel %vm2670, %v2759, 0
    %v2771 = vsel %vm2670, %v2761, 0
    %v2774 = vsel %vm2670, %v2763, 0
    %2776 = vmatpush.bf16.msra.mxu0 %v2635
    %2777 = vmatpush.bf16.msra.mxu0 %v2634
    %2778 = vmatpush.bf16.msra.mxu0 %v2633
    %2779 = vmatpush.bf16.msra.mxu0 %v2632
    %2780 = vmatpush.bf16.msra.mxu0 %v2631
    %2781 = vmatpush.bf16.msra.mxu0 %v2630
    %2782 = vmatpush.bf16.msra.mxu0 %v2629
    %2783 = vmatpush.bf16.msra.mxu0 %v2628
    %2784 = vmatmul.bf16.gmra.mxu0 %v2758
    %v2785 = vpop.f32.mrf.mxu0
    %v2786 = vadd.f32 0.0, %v2785
    %v2787 = vpop.f32.mrf.mxu0
    %v2788 = vadd.f32 0.0, %v2787
    %2789 = vmatmul.bf16.gmra.mxu0 %v2760
    %v2790 = vpop.f32.mrf.mxu0
    %v2791 = vadd.f32 0.0, %v2790
    %v2792 = vpop.f32.mrf.mxu0
    %v2793 = vadd.f32 0.0, %v2792
    %2794 = vmatmul.bf16.gmra.mxu0 %v2762
    %v2795 = vpop.f32.mrf.mxu0
    %v2796 = vadd.f32 0.0, %v2795
    %v2797 = vpop.f32.mrf.mxu0
    %2798 = vdwg.mxu0
    %2799 = vmatpush.bf16.msra.mxu0 0
    %2800 = vmatpush.bf16.msra.mxu0 0
    %2801 = vmatpush.bf16.msra.mxu0 0
    %2802 = vmatpush.bf16.msra.mxu0 %v2682
    %2803 = vmatpush.bf16.msra.mxu0 %v2639
    %2804 = vmatpush.bf16.msra.mxu0 %v2638
    %2805 = vmatpush.bf16.msra.mxu0 %v2637
    %2806 = vmatpush.bf16.msra.mxu0 %v2636
    %2807 = vmatmul.bf16.gmra.mxu0 %v2768
    %v2808 = vpop.f32.mrf.mxu0
    %v2809 = vadd.f32 %v2786, %v2808
    %v2810 = vpop.f32.mrf.mxu0
    %v2811 = vadd.f32 %v2788, %v2810
    %2812 = vmatmul.bf16.gmra.mxu0 %v2771
    %v2813 = vpop.f32.mrf.mxu0
    %v2814 = vadd.f32 %v2791, %v2813
    %v2815 = vpop.f32.mrf.mxu0
    %v2816 = vadd.f32 %v2793, %v2815
    %2817 = vmatmul.bf16.gmra.mxu0 %v2774
    %v2818 = vpop.f32.mrf.mxu0
    %v2819 = vadd.f32 %v2796, %v2818
    %v2820 = vpop.f32.mrf.mxu0
    %2821 = vdwg.mxu0
    %v2822 = vpack.c.bf16 %v2811, %v2809
    %v2823 = vpack.c.bf16 %v2816, %v2814
    %v2824 = vpack.c.bf16 %v2819, %v2819
    %s2825 = scalar_lea.vmem %s4, 16
    %v2826 = vld [vmem:[%s2825] sm:$0xf]
    %v2827 = vld [vmem:[%s2825 + $0x4] sm:$0xf]
    %v2828 = vld [vmem:[%s2825 + $0x8] sm:$0xf]
    %v2829 = vld [vmem:[%s2825 + $0xc] sm:$0xf]
    %v2834 = vunpack.c.l.b16 %v2826
    %v2835 = vunpack.c.l.b16 %v2827
    %v2836 = vunpack.c.l.b16 %v2828
    %v2837 = vunpack.c.l.b16 %v2829
    %v2838 = vpack.c.b16 %v2835, %v2834
    %v2839 = vpack.c.b16 %v2837, %v2836
    %vm2842 = vcmask 261120
    %v2844 = vsel %vm2842, %v2822, 0
    %v2847 = vsel %vm2842, %v2823, 0
    %v2850 = vsel %vm2842, %v2824, 0
    %2852 = vmatpush.bf16.msra.mxu0 0
    %2853 = vmatpush.bf16.msra.mxu0 0
    %2854 = vmatpush.bf16.msra.mxu0 0
    %2855 = vmatpush.bf16.msra.mxu0 0
    %2856 = vmatpush.bf16.msra.mxu0 0
    %2857 = vmatpush.bf16.msra.mxu0 0
    %2858 = vmatpush.bf16.msra.mxu0 %v2839
    %2859 = vmatpush.bf16.msra.mxu0 %v2838
    %2860 = vmatmul.bf16.gmra.mxu0 %v2844
    %v2861 = vpop.f32.mrf.mxu0
    %v2862 = vadd.f32 0.0, %v2861
    %v2863 = vpop.f32.mrf.mxu0
    %v2864 = vadd.f32 0.0, %v2863
    %2865 = vmatmul.bf16.gmra.mxu0 %v2847
    %v2866 = vpop.f32.mrf.mxu0
    %v2867 = vadd.f32 0.0, %v2866
    %v2868 = vpop.f32.mrf.mxu0
    %v2869 = vadd.f32 0.0, %v2868
    %2870 = vmatmul.bf16.gmra.mxu0 %v2850
    %v2871 = vpop.f32.mrf.mxu0
    %v2872 = vadd.f32 0.0, %v2871
    %v2873 = vpop.f32.mrf.mxu0
    %2874 = vdwg.mxu0
    %s2875 = scalar_lea.vmem %s3, 80
    %v2876 = vld [vmem:[%s2875] sm:$0xff]
    %v2877 = vld [vmem:[%s2875 + $0x8] sm:$0xff]
    %v2878 = vld [vmem:[%s2875 + $0x10] sm:$0xff]
    %v2879 = vld [vmem:[%s2875 + $0x18] sm:$0xff]
    %v2880 = vld [vmem:[%s2875 + $0x20] sm:$0x33]
    %v2886 = vunpack.c.l.b16 %v2876
    %v2887 = vunpack.c.h.b16 %v2876
    %v2888 = vunpack.c.l.b16 %v2877
    %v2889 = vunpack.c.h.b16 %v2877
    %v2890 = vunpack.c.l.b16 %v2878
    %v2891 = vunpack.c.h.b16 %v2878
    %v2892 = vunpack.c.l.b16 %v2879
    %v2893 = vunpack.c.h.b16 %v2879
    %v2894 = vunpack.c.l.b16 %v2880
    %v2895 = vunpack.c.h.b16 %v2880
    %v2896 = vpack.c.b16 %v2888, %v2886
    %v2897 = vpack.c.b16 %v2889, %v2887
    %v2898 = vpack.c.b16 %v2892, %v2890
    %v2899 = vpack.c.b16 %v2893, %v2891
    %v2900 = vpack.c.b16 %v2894, %v2894
    %v2901 = vpack.c.b16 %v2895, %v2895
    %v2906 = vsel %vm2670, %v2897, 0
    %v2909 = vsel %vm2670, %v2899, 0
    %v2912 = vsel %vm2670, %v2901, 0
    %2914 = vmatpush.bf16.msra.mxu0 %v2635
    %2915 = vmatpush.bf16.msra.mxu0 %v2634
    %2916 = vmatpush.bf16.msra.mxu0 %v2633
    %2917 = vmatpush.bf16.msra.mxu0 %v2632
    %2918 = vmatpush.bf16.msra.mxu0 %v2631
    %2919 = vmatpush.bf16.msra.mxu0 %v2630
    %2920 = vmatpush.bf16.msra.mxu0 %v2629
    %2921 = vmatpush.bf16.msra.mxu0 %v2628
    %2922 = vmatmul.bf16.gmra.mxu0 %v2896
    %v2923 = vpop.f32.mrf.mxu0
    %v2924 = vadd.f32 0.0, %v2923
    %v2925 = vpop.f32.mrf.mxu0
    %v2926 = vadd.f32 0.0, %v2925
    %2927 = vmatmul.bf16.gmra.mxu0 %v2898
    %v2928 = vpop.f32.mrf.mxu0
    %v2929 = vadd.f32 0.0, %v2928
    %v2930 = vpop.f32.mrf.mxu0
    %v2931 = vadd.f32 0.0, %v2930
    %2932 = vmatmul.bf16.gmra.mxu0 %v2900
    %v2933 = vpop.f32.mrf.mxu0
    %v2934 = vadd.f32 0.0, %v2933
    %v2935 = vpop.f32.mrf.mxu0
    %2936 = vdwg.mxu0
    %2937 = vmatpush.bf16.msra.mxu0 0
    %2938 = vmatpush.bf16.msra.mxu0 0
    %2939 = vmatpush.bf16.msra.mxu0 0
    %2940 = vmatpush.bf16.msra.mxu0 %v2682
    %2941 = vmatpush.bf16.msra.mxu0 %v2639
    %2942 = vmatpush.bf16.msra.mxu0 %v2638
    %2943 = vmatpush.bf16.msra.mxu0 %v2637
    %2944 = vmatpush.bf16.msra.mxu0 %v2636
    %2945 = vmatmul.bf16.gmra.mxu0 %v2906
    %v2946 = vpop.f32.mrf.mxu0
    %v2947 = vadd.f32 %v2924, %v2946
    %v2948 = vpop.f32.mrf.mxu0
    %v2949 = vadd.f32 %v2926, %v2948
    %2950 = vmatmul.bf16.gmra.mxu0 %v2909
    %v2951 = vpop.f32.mrf.mxu0
    %v2952 = vadd.f32 %v2929, %v2951
    %v2953 = vpop.f32.mrf.mxu0
    %v2954 = vadd.f32 %v2931, %v2953
    %2955 = vmatmul.bf16.gmra.mxu0 %v2912
    %v2956 = vpop.f32.mrf.mxu0
    %v2957 = vadd.f32 %v2934, %v2956
    %v2958 = vpop.f32.mrf.mxu0
    %2959 = vdwg.mxu0
    %v2960 = vpack.c.bf16 %v2949, %v2947
    %v2961 = vpack.c.bf16 %v2954, %v2952
    %v2962 = vpack.c.bf16 %v2957, %v2957
    %s2963 = scalar_lea.vmem %s4, 32
    %v2964 = vld [vmem:[%s2963] sm:$0xf]
    %v2965 = vld [vmem:[%s2963 + $0x4] sm:$0xf]
    %v2966 = vld [vmem:[%s2963 + $0x8] sm:$0xf]
    %v2967 = vld [vmem:[%s2963 + $0xc] sm:$0xf]
    %s2968 = scalar_lea.vmem %s3, 120
    %v2969 = vld [vmem:[%s2968] sm:$0xff]
    %v2970 = vld [vmem:[%s2968 + $0x8] sm:$0xff]
    %v2971 = vld [vmem:[%s2968 + $0x10] sm:$0xff]
    %v2972 = vld [vmem:[%s2968 + $0x18] sm:$0xff]
    %v2973 = vld [vmem:[%s2968 + $0x20] sm:$0x33]
    %v2979 = vunpack.c.l.b16 %v2969
    %v2980 = vunpack.c.h.b16 %v2969
    %v2981 = vunpack.c.l.b16 %v2970
    %v2982 = vunpack.c.h.b16 %v2970
    %v2983 = vunpack.c.l.b16 %v2971
    %v2984 = vunpack.c.h.b16 %v2971
    %v2985 = vunpack.c.l.b16 %v2972
    %v2986 = vunpack.c.h.b16 %v2972
    %v2987 = vunpack.c.l.b16 %v2973
    %v2988 = vunpack.c.h.b16 %v2973
    %v2989 = vpack.c.b16 %v2981, %v2979
    %v2990 = vpack.c.b16 %v2982, %v2980
    %v2991 = vpack.c.b16 %v2985, %v2983
    %v2992 = vpack.c.b16 %v2986, %v2984
    %v2993 = vpack.c.b16 %v2987, %v2987
    %v2994 = vpack.c.b16 %v2988, %v2988
    %v2999 = vsel %vm2670, %v2990, 0
    %v3002 = vsel %vm2670, %v2992, 0
    %v3005 = vsel %vm2670, %v2994, 0
    %3007 = vmatpush.bf16.msra.mxu0 %v2635
    %3008 = vmatpush.bf16.msra.mxu0 %v2634
    %3009 = vmatpush.bf16.msra.mxu0 %v2633
    %3010 = vmatpush.bf16.msra.mxu0 %v2632
    %3011 = vmatpush.bf16.msra.mxu0 %v2631
    %3012 = vmatpush.bf16.msra.mxu0 %v2630
    %3013 = vmatpush.bf16.msra.mxu0 %v2629
    %3014 = vmatpush.bf16.msra.mxu0 %v2628
    %3015 = vmatmul.bf16.gmra.mxu0 %v2989
    %v3016 = vpop.f32.mrf.mxu0
    %v3017 = vadd.f32 0.0, %v3016
    %v3018 = vpop.f32.mrf.mxu0
    %v3019 = vadd.f32 0.0, %v3018
    %3020 = vmatmul.bf16.gmra.mxu0 %v2991
    %v3021 = vpop.f32.mrf.mxu0
    %v3022 = vadd.f32 0.0, %v3021
    %v3023 = vpop.f32.mrf.mxu0
    %v3024 = vadd.f32 0.0, %v3023
    %3025 = vmatmul.bf16.gmra.mxu0 %v2993
    %v3026 = vpop.f32.mrf.mxu0
    %v3027 = vadd.f32 0.0, %v3026
    %v3028 = vpop.f32.mrf.mxu0
    %3029 = vdwg.mxu0
    %3030 = vmatpush.bf16.msra.mxu0 0
    %3031 = vmatpush.bf16.msra.mxu0 0
    %3032 = vmatpush.bf16.msra.mxu0 0
    %3033 = vmatpush.bf16.msra.mxu0 %v2682
    %3034 = vmatpush.bf16.msra.mxu0 %v2639
    %3035 = vmatpush.bf16.msra.mxu0 %v2638
    %3036 = vmatpush.bf16.msra.mxu0 %v2637
    %3037 = vmatpush.bf16.msra.mxu0 %v2636
    %3038 = vmatmul.bf16.gmra.mxu0 %v2999
    %v3039 = vpop.f32.mrf.mxu0
    %v3040 = vadd.f32 %v3017, %v3039
    %v3041 = vpop.f32.mrf.mxu0
    %v3042 = vadd.f32 %v3019, %v3041
    %3043 = vmatmul.bf16.gmra.mxu0 %v3002
    %v3044 = vpop.f32.mrf.mxu0
    %v3045 = vadd.f32 %v3022, %v3044
    %v3046 = vpop.f32.mrf.mxu0
    %v3047 = vadd.f32 %v3024, %v3046
    %3048 = vmatmul.bf16.gmra.mxu0 %v3005
    %v3049 = vpop.f32.mrf.mxu0
    %v3050 = vadd.f32 %v3027, %v3049
    %v3051 = vpop.f32.mrf.mxu0
    %3052 = vdwg.mxu0
    %v3053 = vpack.c.bf16 %v3042, %v3040
    %v3054 = vpack.c.bf16 %v3047, %v3045
    %v3055 = vpack.c.bf16 %v3050, %v3050
    %s3056 = scalar_lea.vmem %s4, 48
    %v3057 = vld [vmem:[%s3056] sm:$0xf]
    %v3058 = vld [vmem:[%s3056 + $0x4] sm:$0xf]
    %v3059 = vld [vmem:[%s3056 + $0x8] sm:$0xf]
    %v3060 = vld [vmem:[%s3056 + $0xc] sm:$0xf]
    %v3065 = vunpack.c.l.b16 %v3057
    %v3066 = vunpack.c.l.b16 %v3058
    %v3067 = vunpack.c.l.b16 %v3059
    %v3068 = vunpack.c.l.b16 %v3060
    %v3069 = vpack.c.b16 %v3066, %v3065
    %v3070 = vpack.c.b16 %v3068, %v3067
    %v3074 = vsel %vm2842, %v3053, 0
    %v3077 = vsel %vm2842, %v3054, 0
    %v3080 = vsel %vm2842, %v3055, 0
    %3082 = vmatpush.bf16.msra.mxu0 0
    %3083 = vmatpush.bf16.msra.mxu0 0
    %3084 = vmatpush.bf16.msra.mxu0 0
    %3085 = vmatpush.bf16.msra.mxu0 0
    %3086 = vmatpush.bf16.msra.mxu0 0
    %3087 = vmatpush.bf16.msra.mxu0 0
    %3088 = vmatpush.bf16.msra.mxu0 %v3070
    %3089 = vmatpush.bf16.msra.mxu0 %v3069
    %3090 = vmatmul.bf16.gmra.mxu0 %v3074
    %v3091 = vpop.f32.mrf.mxu0
    %v3092 = vadd.f32 0.0, %v3091
    %v3093 = vpop.f32.mrf.mxu0
    %v3094 = vadd.f32 0.0, %v3093
    %3095 = vmatmul.bf16.gmra.mxu0 %v3077
    %v3096 = vpop.f32.mrf.mxu0
    %v3097 = vadd.f32 0.0, %v3096
    %v3098 = vpop.f32.mrf.mxu0
    %v3099 = vadd.f32 0.0, %v3098
    %3100 = vmatmul.bf16.gmra.mxu0 %v3080
    %v3101 = vpop.f32.mrf.mxu0
    %v3102 = vadd.f32 0.0, %v3101
    %v3103 = vpop.f32.mrf.mxu0
    %3104 = vdwg.mxu0
    %s3105 = scalar_lea.vmem %s3, 160
    %v3106 = vld [vmem:[%s3105] sm:$0xff]
    %v3107 = vld [vmem:[%s3105 + $0x8] sm:$0xff]
    %v3108 = vld [vmem:[%s3105 + $0x10] sm:$0xff]
    %v3109 = vld [vmem:[%s3105 + $0x18] sm:$0xff]
    %v3110 = vld [vmem:[%s3105 + $0x20] sm:$0x33]
    %v3116 = vunpack.c.l.b16 %v3106
    %v3117 = vunpack.c.h.b16 %v3106
    %v3118 = vunpack.c.l.b16 %v3107
    %v3119 = vunpack.c.h.b16 %v3107
    %v3120 = vunpack.c.l.b16 %v3108
    %v3121 = vunpack.c.h.b16 %v3108
    %v3122 = vunpack.c.l.b16 %v3109
    %v3123 = vunpack.c.h.b16 %v3109
    %v3124 = vunpack.c.l.b16 %v3110
    %v3125 = vunpack.c.h.b16 %v3110
    %v3126 = vpack.c.b16 %v3118, %v3116
    %v3127 = vpack.c.b16 %v3119, %v3117
    %v3128 = vpack.c.b16 %v3122, %v3120
    %v3129 = vpack.c.b16 %v3123, %v3121
    %v3130 = vpack.c.b16 %v3124, %v3124
    %v3131 = vpack.c.b16 %v3125, %v3125
    %v3136 = vsel %vm2670, %v3127, 0
    %v3139 = vsel %vm2670, %v3129, 0
    %v3142 = vsel %vm2670, %v3131, 0
    %3144 = vmatpush.bf16.msra.mxu0 %v2635
    %3145 = vmatpush.bf16.msra.mxu0 %v2634
    %3146 = vmatpush.bf16.msra.mxu0 %v2633
    %3147 = vmatpush.bf16.msra.mxu0 %v2632
    %3148 = vmatpush.bf16.msra.mxu0 %v2631
    %3149 = vmatpush.bf16.msra.mxu0 %v2630
    %3150 = vmatpush.bf16.msra.mxu0 %v2629
    %3151 = vmatpush.bf16.msra.mxu0 %v2628
    %3152 = vmatmul.bf16.gmra.mxu0 %v3126
    %v3153 = vpop.f32.mrf.mxu0
    %v3154 = vadd.f32 0.0, %v3153
    %v3155 = vpop.f32.mrf.mxu0
    %v3156 = vadd.f32 0.0, %v3155
    %3157 = vmatmul.bf16.gmra.mxu0 %v3128
    %v3158 = vpop.f32.mrf.mxu0
    %v3159 = vadd.f32 0.0, %v3158
    %v3160 = vpop.f32.mrf.mxu0
    %v3161 = vadd.f32 0.0, %v3160
    %3162 = vmatmul.bf16.gmra.mxu0 %v3130
    %v3163 = vpop.f32.mrf.mxu0
    %v3164 = vadd.f32 0.0, %v3163
    %v3165 = vpop.f32.mrf.mxu0
    %3166 = vdwg.mxu0
    %3167 = vmatpush.bf16.msra.mxu0 0
    %3168 = vmatpush.bf16.msra.mxu0 0
    %3169 = vmatpush.bf16.msra.mxu0 0
    %3170 = vmatpush.bf16.msra.mxu0 %v2682
    %3171 = vmatpush.bf16.msra.mxu0 %v2639
    %3172 = vmatpush.bf16.msra.mxu0 %v2638
    %3173 = vmatpush.bf16.msra.mxu0 %v2637
    %3174 = vmatpush.bf16.msra.mxu0 %v2636
    %3175 = vmatmul.bf16.gmra.mxu0 %v3136
    %v3176 = vpop.f32.mrf.mxu0
    %v3177 = vadd.f32 %v3154, %v3176
    %v3178 = vpop.f32.mrf.mxu0
    %v3179 = vadd.f32 %v3156, %v3178
    %3180 = vmatmul.bf16.gmra.mxu0 %v3139
    %v3181 = vpop.f32.mrf.mxu0
    %v3182 = vadd.f32 %v3159, %v3181
    %v3183 = vpop.f32.mrf.mxu0
    %v3184 = vadd.f32 %v3161, %v3183
    %3185 = vmatmul.bf16.gmra.mxu0 %v3142
    %v3186 = vpop.f32.mrf.mxu0
    %v3187 = vadd.f32 %v3164, %v3186
    %v3188 = vpop.f32.mrf.mxu0
    %3189 = vdwg.mxu0
    %v3190 = vpack.c.bf16 %v3179, %v3177
    %v3191 = vpack.c.bf16 %v3184, %v3182
    %v3192 = vpack.c.bf16 %v3187, %v3187
    %s3193 = scalar_lea.vmem %s4, 64
    %v3194 = vld [vmem:[%s3193] sm:$0xf]
    %v3195 = vld [vmem:[%s3193 + $0x4] sm:$0xf]
    %v3196 = vld [vmem:[%s3193 + $0x8] sm:$0xf]
    %v3197 = vld [vmem:[%s3193 + $0xc] sm:$0xf]
    %s3198 = scalar_lea.vmem %s3, 200
    %v3199 = vld [vmem:[%s3198] sm:$0xff]
    %v3200 = vld [vmem:[%s3198 + $0x8] sm:$0xff]
    %v3201 = vld [vmem:[%s3198 + $0x10] sm:$0xff]
    %v3202 = vld [vmem:[%s3198 + $0x18] sm:$0xff]
    %v3203 = vld [vmem:[%s3198 + $0x20] sm:$0x33]
    %v3209 = vunpack.c.l.b16 %v3199
    %v3210 = vunpack.c.h.b16 %v3199
    %v3211 = vunpack.c.l.b16 %v3200
    %v3212 = vunpack.c.h.b16 %v3200
    %v3213 = vunpack.c.l.b16 %v3201
    %v3214 = vunpack.c.h.b16 %v3201
    %v3215 = vunpack.c.l.b16 %v3202
    %v3216 = vunpack.c.h.b16 %v3202
    %v3217 = vunpack.c.l.b16 %v3203
    %v3218 = vunpack.c.h.b16 %v3203
    %v3219 = vpack.c.b16 %v3211, %v3209
    %v3220 = vpack.c.b16 %v3212, %v3210
    %v3221 = vpack.c.b16 %v3215, %v3213
    %v3222 = vpack.c.b16 %v3216, %v3214
    %v3223 = vpack.c.b16 %v3217, %v3217
    %v3224 = vpack.c.b16 %v3218, %v3218
    %v3229 = vsel %vm2670, %v3220, 0
    %v3232 = vsel %vm2670, %v3222, 0
    %v3235 = vsel %vm2670, %v3224, 0
    %3237 = vmatpush.bf16.msra.mxu0 %v2635
    %3238 = vmatpush.bf16.msra.mxu0 %v2634
    %3239 = vmatpush.bf16.msra.mxu0 %v2633
    %3240 = vmatpush.bf16.msra.mxu0 %v2632
    %3241 = vmatpush.bf16.msra.mxu0 %v2631
    %3242 = vmatpush.bf16.msra.mxu0 %v2630
    %3243 = vmatpush.bf16.msra.mxu0 %v2629
    %3244 = vmatpush.bf16.msra.mxu0 %v2628
    %3245 = vmatmul.bf16.gmra.mxu0 %v3219
    %v3246 = vpop.f32.mrf.mxu0
    %v3247 = vadd.f32 0.0, %v3246
    %v3248 = vpop.f32.mrf.mxu0
    %v3249 = vadd.f32 0.0, %v3248
    %3250 = vmatmul.bf16.gmra.mxu0 %v3221
    %v3251 = vpop.f32.mrf.mxu0
    %v3252 = vadd.f32 0.0, %v3251
    %v3253 = vpop.f32.mrf.mxu0
    %v3254 = vadd.f32 0.0, %v3253
    %3255 = vmatmul.bf16.gmra.mxu0 %v3223
    %v3256 = vpop.f32.mrf.mxu0
    %v3257 = vadd.f32 0.0, %v3256
    %v3258 = vpop.f32.mrf.mxu0
    %3259 = vdwg.mxu0
    %3260 = vmatpush.bf16.msra.mxu0 0
    %3261 = vmatpush.bf16.msra.mxu0 0
    %3262 = vmatpush.bf16.msra.mxu0 0
    %3263 = vmatpush.bf16.msra.mxu0 %v2682
    %3264 = vmatpush.bf16.msra.mxu0 %v2639
    %3265 = vmatpush.bf16.msra.mxu0 %v2638
    %3266 = vmatpush.bf16.msra.mxu0 %v2637
    %3267 = vmatpush.bf16.msra.mxu0 %v2636
    %3268 = vmatmul.bf16.gmra.mxu0 %v3229
    %v3269 = vpop.f32.mrf.mxu0
    %v3270 = vadd.f32 %v3247, %v3269
    %v3271 = vpop.f32.mrf.mxu0
    %v3272 = vadd.f32 %v3249, %v3271
    %3273 = vmatmul.bf16.gmra.mxu0 %v3232
    %v3274 = vpop.f32.mrf.mxu0
    %v3275 = vadd.f32 %v3252, %v3274
    %v3276 = vpop.f32.mrf.mxu0
    %v3277 = vadd.f32 %v3254, %v3276
    %3278 = vmatmul.bf16.gmra.mxu0 %v3235
    %v3279 = vpop.f32.mrf.mxu0
    %v3280 = vadd.f32 %v3257, %v3279
    %v3281 = vpop.f32.mrf.mxu0
    %3282 = vdwg.mxu0
    %v3283 = vpack.c.bf16 %v3272, %v3270
    %v3284 = vpack.c.bf16 %v3277, %v3275
    %v3285 = vpack.c.bf16 %v3280, %v3280
    %s3286 = scalar_lea.vmem %s4, 80
    %v3287 = vld [vmem:[%s3286] sm:$0xf]
    %v3288 = vld [vmem:[%s3286 + $0x4] sm:$0xf]
    %v3289 = vld [vmem:[%s3286 + $0x8] sm:$0xf]
    %v3290 = vld [vmem:[%s3286 + $0xc] sm:$0xf]
    %v3295 = vunpack.c.l.b16 %v3287
    %v3296 = vunpack.c.l.b16 %v3288
    %v3297 = vunpack.c.l.b16 %v3289
    %v3298 = vunpack.c.l.b16 %v3290
    %v3299 = vpack.c.b16 %v3296, %v3295
    %v3300 = vpack.c.b16 %v3298, %v3297
    %v3304 = vsel %vm2842, %v3283, 0
    %v3307 = vsel %vm2842, %v3284, 0
    %v3310 = vsel %vm2842, %v3285, 0
    %3312 = vmatpush.bf16.msra.mxu0 0
    %3313 = vmatpush.bf16.msra.mxu0 0
    %3314 = vmatpush.bf16.msra.mxu0 0
    %3315 = vmatpush.bf16.msra.mxu0 0
    %3316 = vmatpush.bf16.msra.mxu0 0
    %3317 = vmatpush.bf16.msra.mxu0 0
    %3318 = vmatpush.bf16.msra.mxu0 %v3300
    %3319 = vmatpush.bf16.msra.mxu0 %v3299
    %3320 = vmatmul.bf16.gmra.mxu0 %v3304
    %v3321 = vpop.f32.mrf.mxu0
    %v3322 = vadd.f32 0.0, %v3321
    %v3323 = vpop.f32.mrf.mxu0
    %v3324 = vadd.f32 0.0, %v3323
    %3325 = vmatmul.bf16.gmra.mxu0 %v3307
    %v3326 = vpop.f32.mrf.mxu0
    %v3327 = vadd.f32 0.0, %v3326
    %v3328 = vpop.f32.mrf.mxu0
    %v3329 = vadd.f32 0.0, %v3328
    %3330 = vmatmul.bf16.gmra.mxu0 %v3310
    %v3331 = vpop.f32.mrf.mxu0
    %v3332 = vadd.f32 0.0, %v3331
    %v3333 = vpop.f32.mrf.mxu0
    %3334 = vdwg.mxu0
    %s3335 = scalar_lea.vmem %s3, 240
    %v3336 = vld [vmem:[%s3335] sm:$0xff]
    %v3337 = vld [vmem:[%s3335 + $0x8] sm:$0xff]
    %v3338 = vld [vmem:[%s3335 + $0x10] sm:$0xff]
    %v3339 = vld [vmem:[%s3335 + $0x18] sm:$0xff]
    %v3340 = vld [vmem:[%s3335 + $0x20] sm:$0x33]
    %v3346 = vunpack.c.l.b16 %v3336
    %v3347 = vunpack.c.h.b16 %v3336
    %v3348 = vunpack.c.l.b16 %v3337
    %v3349 = vunpack.c.h.b16 %v3337
    %v3350 = vunpack.c.l.b16 %v3338
    %v3351 = vunpack.c.h.b16 %v3338
    %v3352 = vunpack.c.l.b16 %v3339
    %v3353 = vunpack.c.h.b16 %v3339
    %v3354 = vunpack.c.l.b16 %v3340
    %v3355 = vunpack.c.h.b16 %v3340
    %v3356 = vpack.c.b16 %v3348, %v3346
    %v3357 = vpack.c.b16 %v3349, %v3347
    %v3358 = vpack.c.b16 %v3352, %v3350
    %v3359 = vpack.c.b16 %v3353, %v3351
    %v3360 = vpack.c.b16 %v3354, %v3354
    %v3361 = vpack.c.b16 %v3355, %v3355
    %v3366 = vsel %vm2670, %v3357, 0
    %v3369 = vsel %vm2670, %v3359, 0
    %v3372 = vsel %vm2670, %v3361, 0
    %3374 = vmatpush.bf16.msra.mxu0 %v2635
    %3375 = vmatpush.bf16.msra.mxu0 %v2634
    %3376 = vmatpush.bf16.msra.mxu0 %v2633
    %3377 = vmatpush.bf16.msra.mxu0 %v2632
    %3378 = vmatpush.bf16.msra.mxu0 %v2631
    %3379 = vmatpush.bf16.msra.mxu0 %v2630
    %3380 = vmatpush.bf16.msra.mxu0 %v2629
    %3381 = vmatpush.bf16.msra.mxu0 %v2628
    %3382 = vmatmul.bf16.gmra.mxu0 %v3356
    %v3383 = vpop.f32.mrf.mxu0
    %v3384 = vadd.f32 0.0, %v3383
    %v3385 = vpop.f32.mrf.mxu0
    %v3386 = vadd.f32 0.0, %v3385
    %3387 = vmatmul.bf16.gmra.mxu0 %v3358
    %v3388 = vpop.f32.mrf.mxu0
    %v3389 = vadd.f32 0.0, %v3388
    %v3390 = vpop.f32.mrf.mxu0
    %v3391 = vadd.f32 0.0, %v3390
    %3392 = vmatmul.bf16.gmra.mxu0 %v3360
    %v3393 = vpop.f32.mrf.mxu0
    %v3394 = vadd.f32 0.0, %v3393
    %v3395 = vpop.f32.mrf.mxu0
    %3396 = vdwg.mxu0
    %3397 = vmatpush.bf16.msra.mxu0 0
    %3398 = vmatpush.bf16.msra.mxu0 0
    %3399 = vmatpush.bf16.msra.mxu0 0
    %3400 = vmatpush.bf16.msra.mxu0 %v2682
    %3401 = vmatpush.bf16.msra.mxu0 %v2639
    %3402 = vmatpush.bf16.msra.mxu0 %v2638
    %3403 = vmatpush.bf16.msra.mxu0 %v2637
    %3404 = vmatpush.bf16.msra.mxu0 %v2636
    %3405 = vmatmul.bf16.gmra.mxu0 %v3366
    %v3406 = vpop.f32.mrf.mxu0
    %v3407 = vadd.f32 %v3384, %v3406
    %v3408 = vpop.f32.mrf.mxu0
    %v3409 = vadd.f32 %v3386, %v3408
    %3410 = vmatmul.bf16.gmra.mxu0 %v3369
    %v3411 = vpop.f32.mrf.mxu0
    %v3412 = vadd.f32 %v3389, %v3411
    %v3413 = vpop.f32.mrf.mxu0
    %v3414 = vadd.f32 %v3391, %v3413
    %3415 = vmatmul.bf16.gmra.mxu0 %v3372
    %v3416 = vpop.f32.mrf.mxu0
    %v3417 = vadd.f32 %v3394, %v3416
    %v3418 = vpop.f32.mrf.mxu0
    %3419 = vdwg.mxu0
    %v3420 = vpack.c.bf16 %v3409, %v3407
    %v3421 = vpack.c.bf16 %v3414, %v3412
    %v3422 = vpack.c.bf16 %v3417, %v3417
    %s3423 = scalar_lea.vmem %s4, 96
    %v3424 = vld [vmem:[%s3423] sm:$0xf]
    %v3425 = vld [vmem:[%s3423 + $0x4] sm:$0xf]
    %v3426 = vld [vmem:[%s3423 + $0x8] sm:$0xf]
    %v3427 = vld [vmem:[%s3423 + $0xc] sm:$0xf]
    %s3428 = scalar_lea.vmem %s3, 280
    %v3429 = vld [vmem:[%s3428] sm:$0xff]
    %v3430 = vld [vmem:[%s3428 + $0x8] sm:$0xff]
    %v3431 = vld [vmem:[%s3428 + $0x10] sm:$0xff]
    %v3432 = vld [vmem:[%s3428 + $0x18] sm:$0xff]
    %v3433 = vld [vmem:[%s3428 + $0x20] sm:$0x33]
    %v3439 = vunpack.c.l.b16 %v3429
    %v3440 = vunpack.c.h.b16 %v3429
    %v3441 = vunpack.c.l.b16 %v3430
    %v3442 = vunpack.c.h.b16 %v3430
    %v3443 = vunpack.c.l.b16 %v3431
    %v3444 = vunpack.c.h.b16 %v3431
    %v3445 = vunpack.c.l.b16 %v3432
    %v3446 = vunpack.c.h.b16 %v3432
    %v3447 = vunpack.c.l.b16 %v3433
    %v3448 = vunpack.c.h.b16 %v3433
    %v3449 = vpack.c.b16 %v3441, %v3439
    %v3450 = vpack.c.b16 %v3442, %v3440
    %v3451 = vpack.c.b16 %v3445, %v3443
    %v3452 = vpack.c.b16 %v3446, %v3444
    %v3453 = vpack.c.b16 %v3447, %v3447
    %v3454 = vpack.c.b16 %v3448, %v3448
    %v3459 = vsel %vm2670, %v3450, 0
    %v3462 = vsel %vm2670, %v3452, 0
    %v3465 = vsel %vm2670, %v3454, 0
    %3467 = vmatpush.bf16.msra.mxu0 %v2635
    %3468 = vmatpush.bf16.msra.mxu0 %v2634
    %3469 = vmatpush.bf16.msra.mxu0 %v2633
    %3470 = vmatpush.bf16.msra.mxu0 %v2632
    %3471 = vmatpush.bf16.msra.mxu0 %v2631
    %3472 = vmatpush.bf16.msra.mxu0 %v2630
    %3473 = vmatpush.bf16.msra.mxu0 %v2629
    %3474 = vmatpush.bf16.msra.mxu0 %v2628
    %3475 = vmatmul.bf16.gmra.mxu0 %v3449
    %v3476 = vpop.f32.mrf.mxu0
    %v3477 = vadd.f32 0.0, %v3476
    %v3478 = vpop.f32.mrf.mxu0
    %v3479 = vadd.f32 0.0, %v3478
    %3480 = vmatmul.bf16.gmra.mxu0 %v3451
    %v3481 = vpop.f32.mrf.mxu0
    %v3482 = vadd.f32 0.0, %v3481
    %v3483 = vpop.f32.mrf.mxu0
    %v3484 = vadd.f32 0.0, %v3483
    %3485 = vmatmul.bf16.gmra.mxu0 %v3453
    %v3486 = vpop.f32.mrf.mxu0
    %v3487 = vadd.f32 0.0, %v3486
    %v3488 = vpop.f32.mrf.mxu0
    %3489 = vdwg.mxu0
    %3490 = vmatpush.bf16.msra.mxu0 0
    %3491 = vmatpush.bf16.msra.mxu0 0
    %3492 = vmatpush.bf16.msra.mxu0 0
    %3493 = vmatpush.bf16.msra.mxu0 %v2682
    %3494 = vmatpush.bf16.msra.mxu0 %v2639
    %3495 = vmatpush.bf16.msra.mxu0 %v2638
    %3496 = vmatpush.bf16.msra.mxu0 %v2637
    %3497 = vmatpush.bf16.msra.mxu0 %v2636
    %3498 = vmatmul.bf16.gmra.mxu0 %v3459
    %v3499 = vpop.f32.mrf.mxu0
    %v3500 = vadd.f32 %v3477, %v3499
    %v3501 = vpop.f32.mrf.mxu0
    %v3502 = vadd.f32 %v3479, %v3501
    %3503 = vmatmul.bf16.gmra.mxu0 %v3462
    %v3504 = vpop.f32.mrf.mxu0
    %v3505 = vadd.f32 %v3482, %v3504
    %v3506 = vpop.f32.mrf.mxu0
    %v3507 = vadd.f32 %v3484, %v3506
    %3508 = vmatmul.bf16.gmra.mxu0 %v3465
    %v3509 = vpop.f32.mrf.mxu0
    %v3510 = vadd.f32 %v3487, %v3509
    %v3511 = vpop.f32.mrf.mxu0
    %3512 = vdwg.mxu0
    %v3513 = vpack.c.bf16 %v3502, %v3500
    %v3514 = vpack.c.bf16 %v3507, %v3505
    %v3515 = vpack.c.bf16 %v3510, %v3510
    %s3516 = scalar_lea.vmem %s4, 112
    %v3517 = vld [vmem:[%s3516] sm:$0xf]
    %v3518 = vld [vmem:[%s3516 + $0x4] sm:$0xf]
    %v3519 = vld [vmem:[%s3516 + $0x8] sm:$0xf]
    %v3520 = vld [vmem:[%s3516 + $0xc] sm:$0xf]
    %v3525 = vunpack.c.l.b16 %v3517
    %v3526 = vunpack.c.l.b16 %v3518
    %v3527 = vunpack.c.l.b16 %v3519
    %v3528 = vunpack.c.l.b16 %v3520
    %v3529 = vpack.c.b16 %v3526, %v3525
    %v3530 = vpack.c.b16 %v3528, %v3527
    %v3534 = vsel %vm2842, %v3513, 0
    %v3537 = vsel %vm2842, %v3514, 0
    %v3540 = vsel %vm2842, %v3515, 0
    %3542 = vmatpush.bf16.msra.mxu0 0
    %3543 = vmatpush.bf16.msra.mxu0 0
    %3544 = vmatpush.bf16.msra.mxu0 0
    %3545 = vmatpush.bf16.msra.mxu0 0
    %3546 = vmatpush.bf16.msra.mxu0 0
    %3547 = vmatpush.bf16.msra.mxu0 0
    %3548 = vmatpush.bf16.msra.mxu0 %v3530
    %3549 = vmatpush.bf16.msra.mxu0 %v3529
    %3550 = vmatmul.bf16.gmra.mxu0 %v3534
    %v3551 = vpop.f32.mrf.mxu0
    %v3552 = vadd.f32 0.0, %v3551
    %v3553 = vpop.f32.mrf.mxu0
    %v3554 = vadd.f32 0.0, %v3553
    %3555 = vmatmul.bf16.gmra.mxu0 %v3537
    %v3556 = vpop.f32.mrf.mxu0
    %v3557 = vadd.f32 0.0, %v3556
    %v3558 = vpop.f32.mrf.mxu0
    %v3559 = vadd.f32 0.0, %v3558
    %3560 = vmatmul.bf16.gmra.mxu0 %v3540
    %v3561 = vpop.f32.mrf.mxu0
    %v3562 = vadd.f32 0.0, %v3561
    %v3563 = vpop.f32.mrf.mxu0
    %3564 = vdwg.mxu0
    %s3565 = scalar_lea.vmem %s3, 320
    %v3566 = vld [vmem:[%s3565] sm:$0xff]
    %v3567 = vld [vmem:[%s3565 + $0x8] sm:$0xff]
    %v3568 = vld [vmem:[%s3565 + $0x10] sm:$0xff]
    %v3569 = vld [vmem:[%s3565 + $0x18] sm:$0xff]
    %v3570 = vld [vmem:[%s3565 + $0x20] sm:$0x33]
    %v3576 = vunpack.c.l.b16 %v3566
    %v3577 = vunpack.c.h.b16 %v3566
    %v3578 = vunpack.c.l.b16 %v3567
    %v3579 = vunpack.c.h.b16 %v3567
    %v3580 = vunpack.c.l.b16 %v3568
    %v3581 = vunpack.c.h.b16 %v3568
    %v3582 = vunpack.c.l.b16 %v3569
    %v3583 = vunpack.c.h.b16 %v3569
    %v3584 = vunpack.c.l.b16 %v3570
    %v3585 = vunpack.c.h.b16 %v3570
    %v3586 = vpack.c.b16 %v3578, %v3576
    %v3587 = vpack.c.b16 %v3579, %v3577
    %v3588 = vpack.c.b16 %v3582, %v3580
    %v3589 = vpack.c.b16 %v3583, %v3581
    %v3590 = vpack.c.b16 %v3584, %v3584
    %v3591 = vpack.c.b16 %v3585, %v3585
    %v3596 = vsel %vm2670, %v3587, 0
    %v3599 = vsel %vm2670, %v3589, 0
    %v3602 = vsel %vm2670, %v3591, 0
    %3604 = vmatpush.bf16.msra.mxu0 %v2635
    %3605 = vmatpush.bf16.msra.mxu0 %v2634
    %3606 = vmatpush.bf16.msra.mxu0 %v2633
    %3607 = vmatpush.bf16.msra.mxu0 %v2632
    %3608 = vmatpush.bf16.msra.mxu0 %v2631
    %3609 = vmatpush.bf16.msra.mxu0 %v2630
    %3610 = vmatpush.bf16.msra.mxu0 %v2629
    %3611 = vmatpush.bf16.msra.mxu0 %v2628
    %3612 = vmatmul.bf16.gmra.mxu0 %v3586
    %v3613 = vpop.f32.mrf.mxu0
    %v3614 = vadd.f32 0.0, %v3613
    %v3615 = vpop.f32.mrf.mxu0
    %v3616 = vadd.f32 0.0, %v3615
    %3617 = vmatmul.bf16.gmra.mxu0 %v3588
    %v3618 = vpop.f32.mrf.mxu0
    %v3619 = vadd.f32 0.0, %v3618
    %v3620 = vpop.f32.mrf.mxu0
    %v3621 = vadd.f32 0.0, %v3620
    %3622 = vmatmul.bf16.gmra.mxu0 %v3590
    %v3623 = vpop.f32.mrf.mxu0
    %v3624 = vadd.f32 0.0, %v3623
    %v3625 = vpop.f32.mrf.mxu0
    %3626 = vdwg.mxu0
    %3627 = vmatpush.bf16.msra.mxu0 0
    %3628 = vmatpush.bf16.msra.mxu0 0
    %3629 = vmatpush.bf16.msra.mxu0 0
    %3630 = vmatpush.bf16.msra.mxu0 %v2682
    %3631 = vmatpush.bf16.msra.mxu0 %v2639
    %3632 = vmatpush.bf16.msra.mxu0 %v2638
    %3633 = vmatpush.bf16.msra.mxu0 %v2637
    %3634 = vmatpush.bf16.msra.mxu0 %v2636
    %3635 = vmatmul.bf16.gmra.mxu0 %v3596
    %v3636 = vpop.f32.mrf.mxu0
    %v3637 = vadd.f32 %v3614, %v3636
    %v3638 = vpop.f32.mrf.mxu0
    %v3639 = vadd.f32 %v3616, %v3638
    %3640 = vmatmul.bf16.gmra.mxu0 %v3599
    %v3641 = vpop.f32.mrf.mxu0
    %v3642 = vadd.f32 %v3619, %v3641
    %v3643 = vpop.f32.mrf.mxu0
    %v3644 = vadd.f32 %v3621, %v3643
    %3645 = vmatmul.bf16.gmra.mxu0 %v3602
    %v3646 = vpop.f32.mrf.mxu0
    %v3647 = vadd.f32 %v3624, %v3646
    %v3648 = vpop.f32.mrf.mxu0
    %3649 = vdwg.mxu0
    %v3650 = vpack.c.bf16 %v3639, %v3637
    %v3651 = vpack.c.bf16 %v3644, %v3642
    %v3652 = vpack.c.bf16 %v3647, %v3647
    %s3653 = scalar_lea.vmem %s4, 128
    %v3654 = vld [vmem:[%s3653] sm:$0xf]
    %v3655 = vld [vmem:[%s3653 + $0x4] sm:$0xf]
    %v3656 = vld [vmem:[%s3653 + $0x8] sm:$0xf]
    %v3657 = vld [vmem:[%s3653 + $0xc] sm:$0xf]
    %s3658 = scalar_lea.vmem %s3, 360
    %v3659 = vld [vmem:[%s3658] sm:$0xff]
    %v3660 = vld [vmem:[%s3658 + $0x8] sm:$0xff]
    %v3661 = vld [vmem:[%s3658 + $0x10] sm:$0xff]
    %v3662 = vld [vmem:[%s3658 + $0x18] sm:$0xff]
    %v3663 = vld [vmem:[%s3658 + $0x20] sm:$0x33]
    %v3669 = vunpack.c.l.b16 %v3659
    %v3670 = vunpack.c.h.b16 %v3659
    %v3671 = vunpack.c.l.b16 %v3660
    %v3672 = vunpack.c.h.b16 %v3660
    %v3673 = vunpack.c.l.b16 %v3661
    %v3674 = vunpack.c.h.b16 %v3661
    %v3675 = vunpack.c.l.b16 %v3662
    %v3676 = vunpack.c.h.b16 %v3662
    %v3677 = vunpack.c.l.b16 %v3663
    %v3678 = vunpack.c.h.b16 %v3663
    %v3679 = vpack.c.b16 %v3671, %v3669
    %v3680 = vpack.c.b16 %v3672, %v3670
    %v3681 = vpack.c.b16 %v3675, %v3673
    %v3682 = vpack.c.b16 %v3676, %v3674
    %v3683 = vpack.c.b16 %v3677, %v3677
    %v3684 = vpack.c.b16 %v3678, %v3678
    %v3689 = vsel %vm2670, %v3680, 0
    %v3692 = vsel %vm2670, %v3682, 0
    %v3695 = vsel %vm2670, %v3684, 0
    %3697 = vmatpush.bf16.msra.mxu0 %v2635
    %3698 = vmatpush.bf16.msra.mxu0 %v2634
    %3699 = vmatpush.bf16.msra.mxu0 %v2633
    %3700 = vmatpush.bf16.msra.mxu0 %v2632
    %3701 = vmatpush.bf16.msra.mxu0 %v2631
    %3702 = vmatpush.bf16.msra.mxu0 %v2630
    %3703 = vmatpush.bf16.msra.mxu0 %v2629
    %3704 = vmatpush.bf16.msra.mxu0 %v2628
    %3705 = vmatmul.bf16.gmra.mxu0 %v3679
    %v3706 = vpop.f32.mrf.mxu0
    %v3707 = vadd.f32 0.0, %v3706
    %v3708 = vpop.f32.mrf.mxu0
    %v3709 = vadd.f32 0.0, %v3708
    %3710 = vmatmul.bf16.gmra.mxu0 %v3681
    %v3711 = vpop.f32.mrf.mxu0
    %v3712 = vadd.f32 0.0, %v3711
    %v3713 = vpop.f32.mrf.mxu0
    %v3714 = vadd.f32 0.0, %v3713
    %3715 = vmatmul.bf16.gmra.mxu0 %v3683
    %v3716 = vpop.f32.mrf.mxu0
    %v3717 = vadd.f32 0.0, %v3716
    %v3718 = vpop.f32.mrf.mxu0
    %3719 = vdwg.mxu0
    %3720 = vmatpush.bf16.msra.mxu0 0
    %3721 = vmatpush.bf16.msra.mxu0 0
    %3722 = vmatpush.bf16.msra.mxu0 0
    %3723 = vmatpush.bf16.msra.mxu0 %v2682
    %3724 = vmatpush.bf16.msra.mxu0 %v2639
    %3725 = vmatpush.bf16.msra.mxu0 %v2638
    %3726 = vmatpush.bf16.msra.mxu0 %v2637
    %3727 = vmatpush.bf16.msra.mxu0 %v2636
    %3728 = vmatmul.bf16.gmra.mxu0 %v3689
    %v3729 = vpop.f32.mrf.mxu0
    %v3730 = vadd.f32 %v3707, %v3729
    %v3731 = vpop.f32.mrf.mxu0
    %v3732 = vadd.f32 %v3709, %v3731
    %3733 = vmatmul.bf16.gmra.mxu0 %v3692
    %v3734 = vpop.f32.mrf.mxu0
    %v3735 = vadd.f32 %v3712, %v3734
    %v3736 = vpop.f32.mrf.mxu0
    %v3737 = vadd.f32 %v3714, %v3736
    %3738 = vmatmul.bf16.gmra.mxu0 %v3695
    %v3739 = vpop.f32.mrf.mxu0
    %v3740 = vadd.f32 %v3717, %v3739
    %v3741 = vpop.f32.mrf.mxu0
    %3742 = vdwg.mxu0
    %v3743 = vpack.c.bf16 %v3732, %v3730
    %v3744 = vpack.c.bf16 %v3737, %v3735
    %v3745 = vpack.c.bf16 %v3740, %v3740
    %s3746 = scalar_lea.vmem %s4, 144
    %v3747 = vld [vmem:[%s3746] sm:$0xf]
    %v3748 = vld [vmem:[%s3746 + $0x4] sm:$0xf]
    %v3749 = vld [vmem:[%s3746 + $0x8] sm:$0xf]
    %v3750 = vld [vmem:[%s3746 + $0xc] sm:$0xf]
    %v3755 = vunpack.c.l.b16 %v3747
    %v3756 = vunpack.c.l.b16 %v3748
    %v3757 = vunpack.c.l.b16 %v3749
    %v3758 = vunpack.c.l.b16 %v3750
    %v3759 = vpack.c.b16 %v3756, %v3755
    %v3760 = vpack.c.b16 %v3758, %v3757
    %v3764 = vsel %vm2842, %v3743, 0
    %v3767 = vsel %vm2842, %v3744, 0
    %v3770 = vsel %vm2842, %v3745, 0
    %3772 = vmatpush.bf16.msra.mxu0 0
    %3773 = vmatpush.bf16.msra.mxu0 0
    %3774 = vmatpush.bf16.msra.mxu0 0
    %3775 = vmatpush.bf16.msra.mxu0 0
    %3776 = vmatpush.bf16.msra.mxu0 0
    %3777 = vmatpush.bf16.msra.mxu0 0
    %3778 = vmatpush.bf16.msra.mxu0 %v3760
    %3779 = vmatpush.bf16.msra.mxu0 %v3759
    %3780 = vmatmul.bf16.gmra.mxu0 %v3764
    %v3781 = vpop.f32.mrf.mxu0
    %v3782 = vadd.f32 0.0, %v3781
    %v3783 = vpop.f32.mrf.mxu0
    %v3784 = vadd.f32 0.0, %v3783
    %3785 = vmatmul.bf16.gmra.mxu0 %v3767
    %v3786 = vpop.f32.mrf.mxu0
    %v3787 = vadd.f32 0.0, %v3786
    %v3788 = vpop.f32.mrf.mxu0
    %v3789 = vadd.f32 0.0, %v3788
    %3790 = vmatmul.bf16.gmra.mxu0 %v3770
    %v3791 = vpop.f32.mrf.mxu0
    %v3792 = vadd.f32 0.0, %v3791
    %v3793 = vpop.f32.mrf.mxu0
    %3794 = vdwg.mxu0
    %s3795 = scalar_lea.vmem %s3, 400
    %v3796 = vld [vmem:[%s3795] sm:$0xff]
    %v3797 = vld [vmem:[%s3795 + $0x8] sm:$0xff]
    %v3798 = vld [vmem:[%s3795 + $0x10] sm:$0xff]
    %v3799 = vld [vmem:[%s3795 + $0x18] sm:$0xff]
    %v3800 = vld [vmem:[%s3795 + $0x20] sm:$0x33]
    %v3806 = vunpack.c.l.b16 %v3796
    %v3807 = vunpack.c.h.b16 %v3796
    %v3808 = vunpack.c.l.b16 %v3797
    %v3809 = vunpack.c.h.b16 %v3797
    %v3810 = vunpack.c.l.b16 %v3798
    %v3811 = vunpack.c.h.b16 %v3798
    %v3812 = vunpack.c.l.b16 %v3799
    %v3813 = vunpack.c.h.b16 %v3799
    %v3814 = vunpack.c.l.b16 %v3800
    %v3815 = vunpack.c.h.b16 %v3800
    %v3816 = vpack.c.b16 %v3808, %v3806
    %v3817 = vpack.c.b16 %v3809, %v3807
    %v3818 = vpack.c.b16 %v3812, %v3810
    %v3819 = vpack.c.b16 %v3813, %v3811
    %v3820 = vpack.c.b16 %v3814, %v3814
    %v3821 = vpack.c.b16 %v3815, %v3815
    %v3826 = vsel %vm2670, %v3817, 0
    %v3829 = vsel %vm2670, %v3819, 0
    %v3832 = vsel %vm2670, %v3821, 0
    %3834 = vmatpush.bf16.msra.mxu0 %v2635
    %3835 = vmatpush.bf16.msra.mxu0 %v2634
    %3836 = vmatpush.bf16.msra.mxu0 %v2633
    %3837 = vmatpush.bf16.msra.mxu0 %v2632
    %3838 = vmatpush.bf16.msra.mxu0 %v2631
    %3839 = vmatpush.bf16.msra.mxu0 %v2630
    %3840 = vmatpush.bf16.msra.mxu0 %v2629
    %3841 = vmatpush.bf16.msra.mxu0 %v2628
    %3842 = vmatmul.bf16.gmra.mxu0 %v3816
    %v3843 = vpop.f32.mrf.mxu0
    %v3844 = vadd.f32 0.0, %v3843
    %v3845 = vpop.f32.mrf.mxu0
    %v3846 = vadd.f32 0.0, %v3845
    %3847 = vmatmul.bf16.gmra.mxu0 %v3818
    %v3848 = vpop.f32.mrf.mxu0
    %v3849 = vadd.f32 0.0, %v3848
    %v3850 = vpop.f32.mrf.mxu0
    %v3851 = vadd.f32 0.0, %v3850
    %3852 = vmatmul.bf16.gmra.mxu0 %v3820
    %v3853 = vpop.f32.mrf.mxu0
    %v3854 = vadd.f32 0.0, %v3853
    %v3855 = vpop.f32.mrf.mxu0
    %3856 = vdwg.mxu0
    %3857 = vmatpush.bf16.msra.mxu0 0
    %3858 = vmatpush.bf16.msra.mxu0 0
    %3859 = vmatpush.bf16.msra.mxu0 0
    %3860 = vmatpush.bf16.msra.mxu0 %v2682
    %3861 = vmatpush.bf16.msra.mxu0 %v2639
    %3862 = vmatpush.bf16.msra.mxu0 %v2638
    %3863 = vmatpush.bf16.msra.mxu0 %v2637
    %3864 = vmatpush.bf16.msra.mxu0 %v2636
    %3865 = vmatmul.bf16.gmra.mxu0 %v3826
    %v3866 = vpop.f32.mrf.mxu0
    %v3867 = vadd.f32 %v3844, %v3866
    %v3868 = vpop.f32.mrf.mxu0
    %v3869 = vadd.f32 %v3846, %v3868
    %3870 = vmatmul.bf16.gmra.mxu0 %v3829
    %v3871 = vpop.f32.mrf.mxu0
    %v3872 = vadd.f32 %v3849, %v3871
    %v3873 = vpop.f32.mrf.mxu0
    %v3874 = vadd.f32 %v3851, %v3873
    %3875 = vmatmul.bf16.gmra.mxu0 %v3832
    %v3876 = vpop.f32.mrf.mxu0
    %v3877 = vadd.f32 %v3854, %v3876
    %v3878 = vpop.f32.mrf.mxu0
    %3879 = vdwg.mxu0
    %v3880 = vpack.c.bf16 %v3869, %v3867
    %v3881 = vpack.c.bf16 %v3874, %v3872
    %v3882 = vpack.c.bf16 %v3877, %v3877
    %s3883 = scalar_lea.vmem %s4, 160
    %v3884 = vld [vmem:[%s3883] sm:$0xf]
    %v3885 = vld [vmem:[%s3883 + $0x4] sm:$0xf]
    %v3886 = vld [vmem:[%s3883 + $0x8] sm:$0xf]
    %v3887 = vld [vmem:[%s3883 + $0xc] sm:$0xf]
    %s3888 = scalar_lea.vmem %s3, 440
    %v3889 = vld [vmem:[%s3888] sm:$0xff]
    %v3890 = vld [vmem:[%s3888 + $0x8] sm:$0xff]
    %v3891 = vld [vmem:[%s3888 + $0x10] sm:$0xff]
    %v3892 = vld [vmem:[%s3888 + $0x18] sm:$0xff]
    %v3893 = vld [vmem:[%s3888 + $0x20] sm:$0x33]
    %v3899 = vunpack.c.l.b16 %v3889
    %v3900 = vunpack.c.h.b16 %v3889
    %v3901 = vunpack.c.l.b16 %v3890
    %v3902 = vunpack.c.h.b16 %v3890
    %v3903 = vunpack.c.l.b16 %v3891
    %v3904 = vunpack.c.h.b16 %v3891
    %v3905 = vunpack.c.l.b16 %v3892
    %v3906 = vunpack.c.h.b16 %v3892
    %v3907 = vunpack.c.l.b16 %v3893
    %v3908 = vunpack.c.h.b16 %v3893
    %v3909 = vpack.c.b16 %v3901, %v3899
    %v3910 = vpack.c.b16 %v3902, %v3900
    %v3911 = vpack.c.b16 %v3905, %v3903
    %v3912 = vpack.c.b16 %v3906, %v3904
    %v3913 = vpack.c.b16 %v3907, %v3907
    %v3914 = vpack.c.b16 %v3908, %v3908
    %v3919 = vsel %vm2670, %v3910, 0
    %v3922 = vsel %vm2670, %v3912, 0
    %v3925 = vsel %vm2670, %v3914, 0
    %3927 = vmatpush.bf16.msra.mxu0 %v2635
    %3928 = vmatpush.bf16.msra.mxu0 %v2634
    %3929 = vmatpush.bf16.msra.mxu0 %v2633
    %3930 = vmatpush.bf16.msra.mxu0 %v2632
    %3931 = vmatpush.bf16.msra.mxu0 %v2631
    %3932 = vmatpush.bf16.msra.mxu0 %v2630
    %3933 = vmatpush.bf16.msra.mxu0 %v2629
    %3934 = vmatpush.bf16.msra.mxu0 %v2628
    %3935 = vmatmul.bf16.gmra.mxu0 %v3909
    %v3936 = vpop.f32.mrf.mxu0
    %v3937 = vadd.f32 0.0, %v3936
    %v3938 = vpop.f32.mrf.mxu0
    %v3939 = vadd.f32 0.0, %v3938
    %3940 = vmatmul.bf16.gmra.mxu0 %v3911
    %v3941 = vpop.f32.mrf.mxu0
    %v3942 = vadd.f32 0.0, %v3941
    %v3943 = vpop.f32.mrf.mxu0
    %v3944 = vadd.f32 0.0, %v3943
    %3945 = vmatmul.bf16.gmra.mxu0 %v3913
    %v3946 = vpop.f32.mrf.mxu0
    %v3947 = vadd.f32 0.0, %v3946
    %v3948 = vpop.f32.mrf.mxu0
    %3949 = vdwg.mxu0
    %3950 = vmatpush.bf16.msra.mxu0 0
    %3951 = vmatpush.bf16.msra.mxu0 0
    %3952 = vmatpush.bf16.msra.mxu0 0
    %3953 = vmatpush.bf16.msra.mxu0 %v2682
    %3954 = vmatpush.bf16.msra.mxu0 %v2639
    %3955 = vmatpush.bf16.msra.mxu0 %v2638
    %3956 = vmatpush.bf16.msra.mxu0 %v2637
    %3957 = vmatpush.bf16.msra.mxu0 %v2636
    %3958 = vmatmul.bf16.gmra.mxu0 %v3919
    %v3959 = vpop.f32.mrf.mxu0
    %v3960 = vadd.f32 %v3937, %v3959
    %v3961 = vpop.f32.mrf.mxu0
    %v3962 = vadd.f32 %v3939, %v3961
    %3963 = vmatmul.bf16.gmra.mxu0 %v3922
    %v3964 = vpop.f32.mrf.mxu0
    %v3965 = vadd.f32 %v3942, %v3964
    %v3966 = vpop.f32.mrf.mxu0
    %v3967 = vadd.f32 %v3944, %v3966
    %3968 = vmatmul.bf16.gmra.mxu0 %v3925
    %v3969 = vpop.f32.mrf.mxu0
    %v3970 = vadd.f32 %v3947, %v3969
    %v3971 = vpop.f32.mrf.mxu0
    %3972 = vdwg.mxu0
    %v3973 = vpack.c.bf16 %v3962, %v3960
    %v3974 = vpack.c.bf16 %v3967, %v3965
    %v3975 = vpack.c.bf16 %v3970, %v3970
    %s3976 = scalar_lea.vmem %s4, 176
    %v3977 = vld [vmem:[%s3976] sm:$0xf]
    %v3978 = vld [vmem:[%s3976 + $0x4] sm:$0xf]
    %v3979 = vld [vmem:[%s3976 + $0x8] sm:$0xf]
    %v3980 = vld [vmem:[%s3976 + $0xc] sm:$0xf]
    %v3985 = vunpack.c.l.b16 %v3977
    %v3986 = vunpack.c.l.b16 %v3978
    %v3987 = vunpack.c.l.b16 %v3979
    %v3988 = vunpack.c.l.b16 %v3980
    %v3989 = vpack.c.b16 %v3986, %v3985
    %v3990 = vpack.c.b16 %v3988, %v3987
    %v3994 = vsel %vm2842, %v3973, 0
    %v3997 = vsel %vm2842, %v3974, 0
    %v4000 = vsel %vm2842, %v3975, 0
    %4002 = vmatpush.bf16.msra.mxu0 0
    %4003 = vmatpush.bf16.msra.mxu0 0
    %4004 = vmatpush.bf16.msra.mxu0 0
    %4005 = vmatpush.bf16.msra.mxu0 0
    %4006 = vmatpush.bf16.msra.mxu0 0
    %4007 = vmatpush.bf16.msra.mxu0 0
    %4008 = vmatpush.bf16.msra.mxu0 %v3990
    %4009 = vmatpush.bf16.msra.mxu0 %v3989
    %4010 = vmatmul.bf16.gmra.mxu0 %v3994
    %v4011 = vpop.f32.mrf.mxu0
    %v4012 = vadd.f32 0.0, %v4011
    %v4013 = vpop.f32.mrf.mxu0
    %v4014 = vadd.f32 0.0, %v4013
    %4015 = vmatmul.bf16.gmra.mxu0 %v3997
    %v4016 = vpop.f32.mrf.mxu0
    %v4017 = vadd.f32 0.0, %v4016
    %v4018 = vpop.f32.mrf.mxu0
    %v4019 = vadd.f32 0.0, %v4018
    %4020 = vmatmul.bf16.gmra.mxu0 %v4000
    %v4021 = vpop.f32.mrf.mxu0
    %v4022 = vadd.f32 0.0, %v4021
    %v4023 = vpop.f32.mrf.mxu0
    %4024 = vdwg.mxu0
    %s4025 = scalar_lea.vmem %s3, 480
    %v4026 = vld [vmem:[%s4025] sm:$0xff]
    %v4027 = vld [vmem:[%s4025 + $0x8] sm:$0xff]
    %v4028 = vld [vmem:[%s4025 + $0x10] sm:$0xff]
    %v4029 = vld [vmem:[%s4025 + $0x18] sm:$0xff]
    %v4030 = vld [vmem:[%s4025 + $0x20] sm:$0x33]
    %v4036 = vunpack.c.l.b16 %v4026
    %v4037 = vunpack.c.h.b16 %v4026
    %v4038 = vunpack.c.l.b16 %v4027
    %v4039 = vunpack.c.h.b16 %v4027
    %v4040 = vunpack.c.l.b16 %v4028
    %v4041 = vunpack.c.h.b16 %v4028
    %v4042 = vunpack.c.l.b16 %v4029
    %v4043 = vunpack.c.h.b16 %v4029
    %v4044 = vunpack.c.l.b16 %v4030
    %v4045 = vunpack.c.h.b16 %v4030
    %v4046 = vpack.c.b16 %v4038, %v4036
    %v4047 = vpack.c.b16 %v4039, %v4037
    %v4048 = vpack.c.b16 %v4042, %v4040
    %v4049 = vpack.c.b16 %v4043, %v4041
    %v4050 = vpack.c.b16 %v4044, %v4044
    %v4051 = vpack.c.b16 %v4045, %v4045
    %v4056 = vsel %vm2670, %v4047, 0
    %v4059 = vsel %vm2670, %v4049, 0
    %v4062 = vsel %vm2670, %v4051, 0
    %4064 = vmatpush.bf16.msra.mxu0 %v2635
    %4065 = vmatpush.bf16.msra.mxu0 %v2634
    %4066 = vmatpush.bf16.msra.mxu0 %v2633
    %4067 = vmatpush.bf16.msra.mxu0 %v2632
    %4068 = vmatpush.bf16.msra.mxu0 %v2631
    %4069 = vmatpush.bf16.msra.mxu0 %v2630
    %4070 = vmatpush.bf16.msra.mxu0 %v2629
    %4071 = vmatpush.bf16.msra.mxu0 %v2628
    %4072 = vmatmul.bf16.gmra.mxu0 %v4046
    %v4073 = vpop.f32.mrf.mxu0
    %v4074 = vadd.f32 0.0, %v4073
    %v4075 = vpop.f32.mrf.mxu0
    %v4076 = vadd.f32 0.0, %v4075
    %4077 = vmatmul.bf16.gmra.mxu0 %v4048
    %v4078 = vpop.f32.mrf.mxu0
    %v4079 = vadd.f32 0.0, %v4078
    %v4080 = vpop.f32.mrf.mxu0
    %v4081 = vadd.f32 0.0, %v4080
    %4082 = vmatmul.bf16.gmra.mxu0 %v4050
    %v4083 = vpop.f32.mrf.mxu0
    %v4084 = vadd.f32 0.0, %v4083
    %v4085 = vpop.f32.mrf.mxu0
    %4086 = vdwg.mxu0
    %4087 = vmatpush.bf16.msra.mxu0 0
    %4088 = vmatpush.bf16.msra.mxu0 0
    %4089 = vmatpush.bf16.msra.mxu0 0
    %4090 = vmatpush.bf16.msra.mxu0 %v2682
    %4091 = vmatpush.bf16.msra.mxu0 %v2639
    %4092 = vmatpush.bf16.msra.mxu0 %v2638
    %4093 = vmatpush.bf16.msra.mxu0 %v2637
    %4094 = vmatpush.bf16.msra.mxu0 %v2636
    %4095 = vmatmul.bf16.gmra.mxu0 %v4056
    %v4096 = vpop.f32.mrf.mxu0
    %v4097 = vadd.f32 %v4074, %v4096
    %v4098 = vpop.f32.mrf.mxu0
    %v4099 = vadd.f32 %v4076, %v4098
    %4100 = vmatmul.bf16.gmra.mxu0 %v4059
    %v4101 = vpop.f32.mrf.mxu0
    %v4102 = vadd.f32 %v4079, %v4101
    %v4103 = vpop.f32.mrf.mxu0
    %v4104 = vadd.f32 %v4081, %v4103
    %4105 = vmatmul.bf16.gmra.mxu0 %v4062
    %v4106 = vpop.f32.mrf.mxu0
    %v4107 = vadd.f32 %v4084, %v4106
    %v4108 = vpop.f32.mrf.mxu0
    %4109 = vdwg.mxu0
    %v4110 = vpack.c.bf16 %v4099, %v4097
    %v4111 = vpack.c.bf16 %v4104, %v4102
    %v4112 = vpack.c.bf16 %v4107, %v4107
    %s4113 = scalar_lea.vmem %s4, 192
    %v4114 = vld [vmem:[%s4113] sm:$0xf]
    %v4115 = vld [vmem:[%s4113 + $0x4] sm:$0xf]
    %v4116 = vld [vmem:[%s4113 + $0x8] sm:$0xf]
    %v4117 = vld [vmem:[%s4113 + $0xc] sm:$0xf]
    %s4118 = scalar_lea.vmem %s3, 520
    %v4119 = vld [vmem:[%s4118] sm:$0xff]
    %v4120 = vld [vmem:[%s4118 + $0x8] sm:$0xff]
    %v4121 = vld [vmem:[%s4118 + $0x10] sm:$0xff]
    %v4122 = vld [vmem:[%s4118 + $0x18] sm:$0xff]
    %v4123 = vld [vmem:[%s4118 + $0x20] sm:$0x33]
    %v4129 = vunpack.c.l.b16 %v4119
    %v4130 = vunpack.c.h.b16 %v4119
    %v4131 = vunpack.c.l.b16 %v4120
    %v4132 = vunpack.c.h.b16 %v4120
    %v4133 = vunpack.c.l.b16 %v4121
    %v4134 = vunpack.c.h.b16 %v4121
    %v4135 = vunpack.c.l.b16 %v4122
    %v4136 = vunpack.c.h.b16 %v4122
    %v4137 = vunpack.c.l.b16 %v4123
    %v4138 = vunpack.c.h.b16 %v4123
    %v4139 = vpack.c.b16 %v4131, %v4129
    %v4140 = vpack.c.b16 %v4132, %v4130
    %v4141 = vpack.c.b16 %v4135, %v4133
    %v4142 = vpack.c.b16 %v4136, %v4134
    %v4143 = vpack.c.b16 %v4137, %v4137
    %v4144 = vpack.c.b16 %v4138, %v4138
    %v4149 = vsel %vm2670, %v4140, 0
    %v4152 = vsel %vm2670, %v4142, 0
    %v4155 = vsel %vm2670, %v4144, 0
    %4157 = vmatpush.bf16.msra.mxu0 %v2635
    %4158 = vmatpush.bf16.msra.mxu0 %v2634
    %4159 = vmatpush.bf16.msra.mxu0 %v2633
    %4160 = vmatpush.bf16.msra.mxu0 %v2632
    %4161 = vmatpush.bf16.msra.mxu0 %v2631
    %4162 = vmatpush.bf16.msra.mxu0 %v2630
    %4163 = vmatpush.bf16.msra.mxu0 %v2629
    %4164 = vmatpush.bf16.msra.mxu0 %v2628
    %4165 = vmatmul.bf16.gmra.mxu0 %v4139
    %v4166 = vpop.f32.mrf.mxu0
    %v4167 = vadd.f32 0.0, %v4166
    %v4168 = vpop.f32.mrf.mxu0
    %v4169 = vadd.f32 0.0, %v4168
    %4170 = vmatmul.bf16.gmra.mxu0 %v4141
    %v4171 = vpop.f32.mrf.mxu0
    %v4172 = vadd.f32 0.0, %v4171
    %v4173 = vpop.f32.mrf.mxu0
    %v4174 = vadd.f32 0.0, %v4173
    %4175 = vmatmul.bf16.gmra.mxu0 %v4143
    %v4176 = vpop.f32.mrf.mxu0
    %v4177 = vadd.f32 0.0, %v4176
    %v4178 = vpop.f32.mrf.mxu0
    %4179 = vdwg.mxu0
    %4180 = vmatpush.bf16.msra.mxu0 0
    %4181 = vmatpush.bf16.msra.mxu0 0
    %4182 = vmatpush.bf16.msra.mxu0 0
    %4183 = vmatpush.bf16.msra.mxu0 %v2682
    %4184 = vmatpush.bf16.msra.mxu0 %v2639
    %4185 = vmatpush.bf16.msra.mxu0 %v2638
    %4186 = vmatpush.bf16.msra.mxu0 %v2637
    %4187 = vmatpush.bf16.msra.mxu0 %v2636
    %4188 = vmatmul.bf16.gmra.mxu0 %v4149
    %v4189 = vpop.f32.mrf.mxu0
    %v4190 = vadd.f32 %v4167, %v4189
    %v4191 = vpop.f32.mrf.mxu0
    %v4192 = vadd.f32 %v4169, %v4191
    %4193 = vmatmul.bf16.gmra.mxu0 %v4152
    %v4194 = vpop.f32.mrf.mxu0
    %v4195 = vadd.f32 %v4172, %v4194
    %v4196 = vpop.f32.mrf.mxu0
    %v4197 = vadd.f32 %v4174, %v4196
    %4198 = vmatmul.bf16.gmra.mxu0 %v4155
    %v4199 = vpop.f32.mrf.mxu0
    %v4200 = vadd.f32 %v4177, %v4199
    %v4201 = vpop.f32.mrf.mxu0
    %4202 = vdwg.mxu0
    %v4203 = vpack.c.bf16 %v4192, %v4190
    %v4204 = vpack.c.bf16 %v4197, %v4195
    %v4205 = vpack.c.bf16 %v4200, %v4200
    %s4206 = scalar_lea.vmem %s4, 208
    %v4207 = vld [vmem:[%s4206] sm:$0xf]
    %v4208 = vld [vmem:[%s4206 + $0x4] sm:$0xf]
    %v4209 = vld [vmem:[%s4206 + $0x8] sm:$0xf]
    %v4210 = vld [vmem:[%s4206 + $0xc] sm:$0xf]
    %v4215 = vunpack.c.l.b16 %v4207
    %v4216 = vunpack.c.l.b16 %v4208
    %v4217 = vunpack.c.l.b16 %v4209
    %v4218 = vunpack.c.l.b16 %v4210
    %v4219 = vpack.c.b16 %v4216, %v4215
    %v4220 = vpack.c.b16 %v4218, %v4217
    %v4224 = vsel %vm2842, %v4203, 0
    %v4227 = vsel %vm2842, %v4204, 0
    %v4230 = vsel %vm2842, %v4205, 0
    %4232 = vmatpush.bf16.msra.mxu0 0
    %4233 = vmatpush.bf16.msra.mxu0 0
    %4234 = vmatpush.bf16.msra.mxu0 0
    %4235 = vmatpush.bf16.msra.mxu0 0
    %4236 = vmatpush.bf16.msra.mxu0 0
    %4237 = vmatpush.bf16.msra.mxu0 0
    %4238 = vmatpush.bf16.msra.mxu0 %v4220
    %4239 = vmatpush.bf16.msra.mxu0 %v4219
    %4240 = vmatmul.bf16.gmra.mxu0 %v4224
    %v4241 = vpop.f32.mrf.mxu0
    %v4242 = vadd.f32 0.0, %v4241
    %v4243 = vpop.f32.mrf.mxu0
    %v4244 = vadd.f32 0.0, %v4243
    %4245 = vmatmul.bf16.gmra.mxu0 %v4227
    %v4246 = vpop.f32.mrf.mxu0
    %v4247 = vadd.f32 0.0, %v4246
    %v4248 = vpop.f32.mrf.mxu0
    %v4249 = vadd.f32 0.0, %v4248
    %4250 = vmatmul.bf16.gmra.mxu0 %v4230
    %v4251 = vpop.f32.mrf.mxu0
    %v4252 = vadd.f32 0.0, %v4251
    %v4253 = vpop.f32.mrf.mxu0
    %4254 = vdwg.mxu0
    %s4255 = scalar_lea.vmem %s3, 560
    %v4256 = vld [vmem:[%s4255] sm:$0xff]
    %v4257 = vld [vmem:[%s4255 + $0x8] sm:$0xff]
    %v4258 = vld [vmem:[%s4255 + $0x10] sm:$0xff]
    %v4259 = vld [vmem:[%s4255 + $0x18] sm:$0xff]
    %v4260 = vld [vmem:[%s4255 + $0x20] sm:$0x33]
    %v4266 = vunpack.c.l.b16 %v4256
    %v4267 = vunpack.c.h.b16 %v4256
    %v4268 = vunpack.c.l.b16 %v4257
    %v4269 = vunpack.c.h.b16 %v4257
    %v4270 = vunpack.c.l.b16 %v4258
    %v4271 = vunpack.c.h.b16 %v4258
    %v4272 = vunpack.c.l.b16 %v4259
    %v4273 = vunpack.c.h.b16 %v4259
    %v4274 = vunpack.c.l.b16 %v4260
    %v4275 = vunpack.c.h.b16 %v4260
    %v4276 = vpack.c.b16 %v4268, %v4266
    %v4277 = vpack.c.b16 %v4269, %v4267
    %v4278 = vpack.c.b16 %v4272, %v4270
    %v4279 = vpack.c.b16 %v4273, %v4271
    %v4280 = vpack.c.b16 %v4274, %v4274
    %v4281 = vpack.c.b16 %v4275, %v4275
    %v4286 = vsel %vm2670, %v4277, 0
    %v4289 = vsel %vm2670, %v4279, 0
    %v4292 = vsel %vm2670, %v4281, 0
    %4294 = vmatpush.bf16.msra.mxu0 %v2635
    %4295 = vmatpush.bf16.msra.mxu0 %v2634
    %4296 = vmatpush.bf16.msra.mxu0 %v2633
    %4297 = vmatpush.bf16.msra.mxu0 %v2632
    %4298 = vmatpush.bf16.msra.mxu0 %v2631
    %4299 = vmatpush.bf16.msra.mxu0 %v2630
    %4300 = vmatpush.bf16.msra.mxu0 %v2629
    %4301 = vmatpush.bf16.msra.mxu0 %v2628
    %4302 = vmatmul.bf16.gmra.mxu0 %v4276
    %v4303 = vpop.f32.mrf.mxu0
    %v4304 = vadd.f32 0.0, %v4303
    %v4305 = vpop.f32.mrf.mxu0
    %v4306 = vadd.f32 0.0, %v4305
    %4307 = vmatmul.bf16.gmra.mxu0 %v4278
    %v4308 = vpop.f32.mrf.mxu0
    %v4309 = vadd.f32 0.0, %v4308
    %v4310 = vpop.f32.mrf.mxu0
    %v4311 = vadd.f32 0.0, %v4310
    %4312 = vmatmul.bf16.gmra.mxu0 %v4280
    %v4313 = vpop.f32.mrf.mxu0
    %v4314 = vadd.f32 0.0, %v4313
    %v4315 = vpop.f32.mrf.mxu0
    %4316 = vdwg.mxu0
    %4317 = vmatpush.bf16.msra.mxu0 0
    %4318 = vmatpush.bf16.msra.mxu0 0
    %4319 = vmatpush.bf16.msra.mxu0 0
    %4320 = vmatpush.bf16.msra.mxu0 %v2682
    %4321 = vmatpush.bf16.msra.mxu0 %v2639
    %4322 = vmatpush.bf16.msra.mxu0 %v2638
    %4323 = vmatpush.bf16.msra.mxu0 %v2637
    %4324 = vmatpush.bf16.msra.mxu0 %v2636
    %4325 = vmatmul.bf16.gmra.mxu0 %v4286
    %v4326 = vpop.f32.mrf.mxu0
    %v4327 = vadd.f32 %v4304, %v4326
    %v4328 = vpop.f32.mrf.mxu0
    %v4329 = vadd.f32 %v4306, %v4328
    %4330 = vmatmul.bf16.gmra.mxu0 %v4289
    %v4331 = vpop.f32.mrf.mxu0
    %v4332 = vadd.f32 %v4309, %v4331
    %v4333 = vpop.f32.mrf.mxu0
    %v4334 = vadd.f32 %v4311, %v4333
    %4335 = vmatmul.bf16.gmra.mxu0 %v4292
    %v4336 = vpop.f32.mrf.mxu0
    %v4337 = vadd.f32 %v4314, %v4336
    %v4338 = vpop.f32.mrf.mxu0
    %4339 = vdwg.mxu0
    %v4340 = vpack.c.bf16 %v4329, %v4327
    %v4341 = vpack.c.bf16 %v4334, %v4332
    %v4342 = vpack.c.bf16 %v4337, %v4337
    %s4343 = scalar_lea.vmem %s4, 224
    %v4344 = vld [vmem:[%s4343] sm:$0xf]
    %v4345 = vld [vmem:[%s4343 + $0x4] sm:$0xf]
    %v4346 = vld [vmem:[%s4343 + $0x8] sm:$0xf]
    %v4347 = vld [vmem:[%s4343 + $0xc] sm:$0xf]
    %s4348 = scalar_lea.vmem %s3, 600
    %v4349 = vld [vmem:[%s4348] sm:$0xff]
    %v4350 = vld [vmem:[%s4348 + $0x8] sm:$0xff]
    %v4351 = vld [vmem:[%s4348 + $0x10] sm:$0xff]
    %v4352 = vld [vmem:[%s4348 + $0x18] sm:$0xff]
    %v4353 = vld [vmem:[%s4348 + $0x20] sm:$0x33]
    %v4359 = vunpack.c.l.b16 %v4349
    %v4360 = vunpack.c.h.b16 %v4349
    %v4361 = vunpack.c.l.b16 %v4350
    %v4362 = vunpack.c.h.b16 %v4350
    %v4363 = vunpack.c.l.b16 %v4351
    %v4364 = vunpack.c.h.b16 %v4351
    %v4365 = vunpack.c.l.b16 %v4352
    %v4366 = vunpack.c.h.b16 %v4352
    %v4367 = vunpack.c.l.b16 %v4353
    %v4368 = vunpack.c.h.b16 %v4353
    %v4369 = vpack.c.b16 %v4361, %v4359
    %v4370 = vpack.c.b16 %v4362, %v4360
    %v4371 = vpack.c.b16 %v4365, %v4363
    %v4372 = vpack.c.b16 %v4366, %v4364
    %v4373 = vpack.c.b16 %v4367, %v4367
    %v4374 = vpack.c.b16 %v4368, %v4368
    %v4379 = vsel %vm2670, %v4370, 0
    %v4382 = vsel %vm2670, %v4372, 0
    %v4385 = vsel %vm2670, %v4374, 0
    %4387 = vmatpush.bf16.msra.mxu0 %v2635
    %4388 = vmatpush.bf16.msra.mxu0 %v2634
    %4389 = vmatpush.bf16.msra.mxu0 %v2633
    %4390 = vmatpush.bf16.msra.mxu0 %v2632
    %4391 = vmatpush.bf16.msra.mxu0 %v2631
    %4392 = vmatpush.bf16.msra.mxu0 %v2630
    %4393 = vmatpush.bf16.msra.mxu0 %v2629
    %4394 = vmatpush.bf16.msra.mxu0 %v2628
    %4395 = vmatmul.bf16.gmra.mxu0 %v4369
    %v4396 = vpop.f32.mrf.mxu0
    %v4397 = vadd.f32 0.0, %v4396
    %v4398 = vpop.f32.mrf.mxu0
    %v4399 = vadd.f32 0.0, %v4398
    %4400 = vmatmul.bf16.gmra.mxu0 %v4371
    %v4401 = vpop.f32.mrf.mxu0
    %v4402 = vadd.f32 0.0, %v4401
    %v4403 = vpop.f32.mrf.mxu0
    %v4404 = vadd.f32 0.0, %v4403
    %4405 = vmatmul.bf16.gmra.mxu0 %v4373
    %v4406 = vpop.f32.mrf.mxu0
    %v4407 = vadd.f32 0.0, %v4406
    %v4408 = vpop.f32.mrf.mxu0
    %4409 = vdwg.mxu0
    %4410 = vmatpush.bf16.msra.mxu0 0
    %4411 = vmatpush.bf16.msra.mxu0 0
    %4412 = vmatpush.bf16.msra.mxu0 0
    %4413 = vmatpush.bf16.msra.mxu0 %v2682
    %4414 = vmatpush.bf16.msra.mxu0 %v2639
    %4415 = vmatpush.bf16.msra.mxu0 %v2638
    %4416 = vmatpush.bf16.msra.mxu0 %v2637
    %4417 = vmatpush.bf16.msra.mxu0 %v2636
    %4418 = vmatmul.bf16.gmra.mxu0 %v4379
    %v4419 = vpop.f32.mrf.mxu0
    %v4420 = vadd.f32 %v4397, %v4419
    %v4421 = vpop.f32.mrf.mxu0
    %v4422 = vadd.f32 %v4399, %v4421
    %4423 = vmatmul.bf16.gmra.mxu0 %v4382
    %v4424 = vpop.f32.mrf.mxu0
    %v4425 = vadd.f32 %v4402, %v4424
    %v4426 = vpop.f32.mrf.mxu0
    %v4427 = vadd.f32 %v4404, %v4426
    %4428 = vmatmul.bf16.gmra.mxu0 %v4385
    %v4429 = vpop.f32.mrf.mxu0
    %v4430 = vadd.f32 %v4407, %v4429
    %v4431 = vpop.f32.mrf.mxu0
    %4432 = vdwg.mxu0
    %v4433 = vpack.c.bf16 %v4422, %v4420
    %v4434 = vpack.c.bf16 %v4427, %v4425
    %v4435 = vpack.c.bf16 %v4430, %v4430
    %s4436 = scalar_lea.vmem %s4, 240
    %v4437 = vld [vmem:[%s4436] sm:$0xf]
    %v4438 = vld [vmem:[%s4436 + $0x4] sm:$0xf]
    %v4439 = vld [vmem:[%s4436 + $0x8] sm:$0xf]
    %v4440 = vld [vmem:[%s4436 + $0xc] sm:$0xf]
    %v4445 = vunpack.c.l.b16 %v4437
    %v4446 = vunpack.c.l.b16 %v4438
    %v4447 = vunpack.c.l.b16 %v4439
    %v4448 = vunpack.c.l.b16 %v4440
    %v4449 = vpack.c.b16 %v4446, %v4445
    %v4450 = vpack.c.b16 %v4448, %v4447
    %v4454 = vsel %vm2842, %v4433, 0
    %v4457 = vsel %vm2842, %v4434, 0
    %v4460 = vsel %vm2842, %v4435, 0
    %4462 = vmatpush.bf16.msra.mxu0 0
    %4463 = vmatpush.bf16.msra.mxu0 0
    %4464 = vmatpush.bf16.msra.mxu0 0
    %4465 = vmatpush.bf16.msra.mxu0 0
    %4466 = vmatpush.bf16.msra.mxu0 0
    %4467 = vmatpush.bf16.msra.mxu0 0
    %4468 = vmatpush.bf16.msra.mxu0 %v4450
    %4469 = vmatpush.bf16.msra.mxu0 %v4449
    %4470 = vmatmul.bf16.gmra.mxu0 %v4454
    %v4471 = vpop.f32.mrf.mxu0
    %v4472 = vadd.f32 0.0, %v4471
    %v4473 = vpop.f32.mrf.mxu0
    %v4474 = vadd.f32 0.0, %v4473
    %4475 = vmatmul.bf16.gmra.mxu0 %v4457
    %v4476 = vpop.f32.mrf.mxu0
    %v4477 = vadd.f32 0.0, %v4476
    %v4478 = vpop.f32.mrf.mxu0
    %v4479 = vadd.f32 0.0, %v4478
    %4480 = vmatmul.bf16.gmra.mxu0 %v4460
    %v4481 = vpop.f32.mrf.mxu0
    %v4482 = vadd.f32 0.0, %v4481
    %v4483 = vpop.f32.mrf.mxu0
    %4484 = vdwg.mxu0
    %v4489 = vunpack.c.l.b16 %v2733
    %v4490 = vunpack.c.l.b16 %v2734
    %v4491 = vunpack.c.l.b16 %v2735
    %v4492 = vunpack.c.l.b16 %v2736
    %v4493 = vpack.c.b16 %v4490, %v4489
    %v4494 = vpack.c.b16 %v4492, %v4491
    %v4498 = vsel %vm2842, %v2730, 0
    %v4501 = vsel %vm2842, %v2731, 0
    %v4504 = vsel %vm2842, %v2732, 0
    %4506 = vmatpush.bf16.msra.mxu0 0
    %4507 = vmatpush.bf16.msra.mxu0 0
    %4508 = vmatpush.bf16.msra.mxu0 0
    %4509 = vmatpush.bf16.msra.mxu0 0
    %4510 = vmatpush.bf16.msra.mxu0 0
    %4511 = vmatpush.bf16.msra.mxu0 0
    %4512 = vmatpush.bf16.msra.mxu0 %v4494
    %4513 = vmatpush.bf16.msra.mxu0 %v4493
    %4514 = vmatmul.bf16.gmra.mxu0 %v4498
    %v4515 = vpop.f32.mrf.mxu0
    %v4516 = vadd.f32 %v2862, %v4515
    %v4517 = vpop.f32.mrf.mxu0
    %v4518 = vadd.f32 %v2864, %v4517
    %4519 = vmatmul.bf16.gmra.mxu0 %v4501
    %v4520 = vpop.f32.mrf.mxu0
    %v4521 = vadd.f32 %v2867, %v4520
    %v4522 = vpop.f32.mrf.mxu0
    %v4523 = vadd.f32 %v2869, %v4522
    %4524 = vmatmul.bf16.gmra.mxu0 %v4504
    %v4525 = vpop.f32.mrf.mxu0
    %v4526 = vadd.f32 %v2872, %v4525
    %v4527 = vpop.f32.mrf.mxu0
    %4528 = vdwg.mxu0
    %v4533 = vunpack.c.l.b16 %v2964
    %v4534 = vunpack.c.l.b16 %v2965
    %v4535 = vunpack.c.l.b16 %v2966
    %v4536 = vunpack.c.l.b16 %v2967
    %v4537 = vpack.c.b16 %v4534, %v4533
    %v4538 = vpack.c.b16 %v4536, %v4535
    %v4542 = vsel %vm2842, %v2960, 0
    %v4545 = vsel %vm2842, %v2961, 0
    %v4548 = vsel %vm2842, %v2962, 0
    %4550 = vmatpush.bf16.msra.mxu0 0
    %4551 = vmatpush.bf16.msra.mxu0 0
    %4552 = vmatpush.bf16.msra.mxu0 0
    %4553 = vmatpush.bf16.msra.mxu0 0
    %4554 = vmatpush.bf16.msra.mxu0 0
    %4555 = vmatpush.bf16.msra.mxu0 0
    %4556 = vmatpush.bf16.msra.mxu0 %v4538
    %4557 = vmatpush.bf16.msra.mxu0 %v4537
    %4558 = vmatmul.bf16.gmra.mxu0 %v4542
    %v4559 = vpop.f32.mrf.mxu0
    %v4560 = vadd.f32 %v3092, %v4559
    %v4561 = vpop.f32.mrf.mxu0
    %v4562 = vadd.f32 %v3094, %v4561
    %4563 = vmatmul.bf16.gmra.mxu0 %v4545
    %v4564 = vpop.f32.mrf.mxu0
    %v4565 = vadd.f32 %v3097, %v4564
    %v4566 = vpop.f32.mrf.mxu0
    %v4567 = vadd.f32 %v3099, %v4566
    %4568 = vmatmul.bf16.gmra.mxu0 %v4548
    %v4569 = vpop.f32.mrf.mxu0
    %v4570 = vadd.f32 %v3102, %v4569
    %v4571 = vpop.f32.mrf.mxu0
    %4572 = vdwg.mxu0
    %v4577 = vunpack.c.l.b16 %v3194
    %v4578 = vunpack.c.l.b16 %v3195
    %v4579 = vunpack.c.l.b16 %v3196
    %v4580 = vunpack.c.l.b16 %v3197
    %v4581 = vpack.c.b16 %v4578, %v4577
    %v4582 = vpack.c.b16 %v4580, %v4579
    %v4586 = vsel %vm2842, %v3190, 0
    %v4589 = vsel %vm2842, %v3191, 0
    %v4592 = vsel %vm2842, %v3192, 0
    %4594 = vmatpush.bf16.msra.mxu0 0
    %4595 = vmatpush.bf16.msra.mxu0 0
    %4596 = vmatpush.bf16.msra.mxu0 0
    %4597 = vmatpush.bf16.msra.mxu0 0
    %4598 = vmatpush.bf16.msra.mxu0 0
    %4599 = vmatpush.bf16.msra.mxu0 0
    %4600 = vmatpush.bf16.msra.mxu0 %v4582
    %4601 = vmatpush.bf16.msra.mxu0 %v4581
    %4602 = vmatmul.bf16.gmra.mxu0 %v4586
    %v4603 = vpop.f32.mrf.mxu0
    %v4604 = vadd.f32 %v3322, %v4603
    %v4605 = vpop.f32.mrf.mxu0
    %v4606 = vadd.f32 %v3324, %v4605
    %4607 = vmatmul.bf16.gmra.mxu0 %v4589
    %v4608 = vpop.f32.mrf.mxu0
    %v4609 = vadd.f32 %v3327, %v4608
    %v4610 = vpop.f32.mrf.mxu0
    %v4611 = vadd.f32 %v3329, %v4610
    %4612 = vmatmul.bf16.gmra.mxu0 %v4592
    %v4613 = vpop.f32.mrf.mxu0
    %v4614 = vadd.f32 %v3332, %v4613
    %v4615 = vpop.f32.mrf.mxu0
    %4616 = vdwg.mxu0
    %v4621 = vunpack.c.l.b16 %v3424
    %v4622 = vunpack.c.l.b16 %v3425
    %v4623 = vunpack.c.l.b16 %v3426
    %v4624 = vunpack.c.l.b16 %v3427
    %v4625 = vpack.c.b16 %v4622, %v4621
    %v4626 = vpack.c.b16 %v4624, %v4623
    %v4630 = vsel %vm2842, %v3420, 0
    %v4633 = vsel %vm2842, %v3421, 0
    %v4636 = vsel %vm2842, %v3422, 0
    %4638 = vmatpush.bf16.msra.mxu0 0
    %4639 = vmatpush.bf16.msra.mxu0 0
    %4640 = vmatpush.bf16.msra.mxu0 0
    %4641 = vmatpush.bf16.msra.mxu0 0
    %4642 = vmatpush.bf16.msra.mxu0 0
    %4643 = vmatpush.bf16.msra.mxu0 0
    %4644 = vmatpush.bf16.msra.mxu0 %v4626
    %4645 = vmatpush.bf16.msra.mxu0 %v4625
    %4646 = vmatmul.bf16.gmra.mxu0 %v4630
    %v4647 = vpop.f32.mrf.mxu0
    %v4648 = vadd.f32 %v3552, %v4647
    %v4649 = vpop.f32.mrf.mxu0
    %v4650 = vadd.f32 %v3554, %v4649
    %4651 = vmatmul.bf16.gmra.mxu0 %v4633
    %v4652 = vpop.f32.mrf.mxu0
    %v4653 = vadd.f32 %v3557, %v4652
    %v4654 = vpop.f32.mrf.mxu0
    %v4655 = vadd.f32 %v3559, %v4654
    %4656 = vmatmul.bf16.gmra.mxu0 %v4636
    %v4657 = vpop.f32.mrf.mxu0
    %v4658 = vadd.f32 %v3562, %v4657
    %v4659 = vpop.f32.mrf.mxu0
    %4660 = vdwg.mxu0
    %v4665 = vunpack.c.l.b16 %v3654
    %v4666 = vunpack.c.l.b16 %v3655
    %v4667 = vunpack.c.l.b16 %v3656
    %v4668 = vunpack.c.l.b16 %v3657
    %v4669 = vpack.c.b16 %v4666, %v4665
    %v4670 = vpack.c.b16 %v4668, %v4667
    %v4674 = vsel %vm2842, %v3650, 0
    %v4677 = vsel %vm2842, %v3651, 0
    %v4680 = vsel %vm2842, %v3652, 0
    %4682 = vmatpush.bf16.msra.mxu0 0
    %4683 = vmatpush.bf16.msra.mxu0 0
    %4684 = vmatpush.bf16.msra.mxu0 0
    %4685 = vmatpush.bf16.msra.mxu0 0
    %4686 = vmatpush.bf16.msra.mxu0 0
    %4687 = vmatpush.bf16.msra.mxu0 0
    %4688 = vmatpush.bf16.msra.mxu0 %v4670
    %4689 = vmatpush.bf16.msra.mxu0 %v4669
    %4690 = vmatmul.bf16.gmra.mxu0 %v4674
    %v4691 = vpop.f32.mrf.mxu0
    %v4692 = vadd.f32 %v3782, %v4691
    %v4693 = vpop.f32.mrf.mxu0
    %v4694 = vadd.f32 %v3784, %v4693
    %4695 = vmatmul.bf16.gmra.mxu0 %v4677
    %v4696 = vpop.f32.mrf.mxu0
    %v4697 = vadd.f32 %v3787, %v4696
    %v4698 = vpop.f32.mrf.mxu0
    %v4699 = vadd.f32 %v3789, %v4698
    %4700 = vmatmul.bf16.gmra.mxu0 %v4680
    %v4701 = vpop.f32.mrf.mxu0
    %v4702 = vadd.f32 %v3792, %v4701
    %v4703 = vpop.f32.mrf.mxu0
    %4704 = vdwg.mxu0
    %v4709 = vunpack.c.l.b16 %v3884
    %v4710 = vunpack.c.l.b16 %v3885
    %v4711 = vunpack.c.l.b16 %v3886
    %v4712 = vunpack.c.l.b16 %v3887
    %v4713 = vpack.c.b16 %v4710, %v4709
    %v4714 = vpack.c.b16 %v4712, %v4711
    %v4718 = vsel %vm2842, %v3880, 0
    %v4721 = vsel %vm2842, %v3881, 0
    %v4724 = vsel %vm2842, %v3882, 0
    %4726 = vmatpush.bf16.msra.mxu0 0
    %4727 = vmatpush.bf16.msra.mxu0 0
    %4728 = vmatpush.bf16.msra.mxu0 0
    %4729 = vmatpush.bf16.msra.mxu0 0
    %4730 = vmatpush.bf16.msra.mxu0 0
    %4731 = vmatpush.bf16.msra.mxu0 0
    %4732 = vmatpush.bf16.msra.mxu0 %v4714
    %4733 = vmatpush.bf16.msra.mxu0 %v4713
    %4734 = vmatmul.bf16.gmra.mxu0 %v4718
    %v4735 = vpop.f32.mrf.mxu0
    %v4736 = vadd.f32 %v4012, %v4735
    %v4737 = vpop.f32.mrf.mxu0
    %v4738 = vadd.f32 %v4014, %v4737
    %4739 = vmatmul.bf16.gmra.mxu0 %v4721
    %v4740 = vpop.f32.mrf.mxu0
    %v4741 = vadd.f32 %v4017, %v4740
    %v4742 = vpop.f32.mrf.mxu0
    %v4743 = vadd.f32 %v4019, %v4742
    %4744 = vmatmul.bf16.gmra.mxu0 %v4724
    %v4745 = vpop.f32.mrf.mxu0
    %v4746 = vadd.f32 %v4022, %v4745
    %v4747 = vpop.f32.mrf.mxu0
    %4748 = vdwg.mxu0
    %v4753 = vunpack.c.l.b16 %v4114
    %v4754 = vunpack.c.l.b16 %v4115
    %v4755 = vunpack.c.l.b16 %v4116
    %v4756 = vunpack.c.l.b16 %v4117
    %v4757 = vpack.c.b16 %v4754, %v4753
    %v4758 = vpack.c.b16 %v4756, %v4755
    %v4762 = vsel %vm2842, %v4110, 0
    %v4765 = vsel %vm2842, %v4111, 0
    %v4768 = vsel %vm2842, %v4112, 0
    %4770 = vmatpush.bf16.msra.mxu0 0
    %4771 = vmatpush.bf16.msra.mxu0 0
    %4772 = vmatpush.bf16.msra.mxu0 0
    %4773 = vmatpush.bf16.msra.mxu0 0
    %4774 = vmatpush.bf16.msra.mxu0 0
    %4775 = vmatpush.bf16.msra.mxu0 0
    %4776 = vmatpush.bf16.msra.mxu0 %v4758
    %4777 = vmatpush.bf16.msra.mxu0 %v4757
    %4778 = vmatmul.bf16.gmra.mxu0 %v4762
    %v4779 = vpop.f32.mrf.mxu0
    %v4780 = vadd.f32 %v4242, %v4779
    %v4781 = vpop.f32.mrf.mxu0
    %v4782 = vadd.f32 %v4244, %v4781
    %4783 = vmatmul.bf16.gmra.mxu0 %v4765
    %v4784 = vpop.f32.mrf.mxu0
    %v4785 = vadd.f32 %v4247, %v4784
    %v4786 = vpop.f32.mrf.mxu0
    %v4787 = vadd.f32 %v4249, %v4786
    %4788 = vmatmul.bf16.gmra.mxu0 %v4768
    %v4789 = vpop.f32.mrf.mxu0
    %v4790 = vadd.f32 %v4252, %v4789
    %v4791 = vpop.f32.mrf.mxu0
    %4792 = vdwg.mxu0
    %v4797 = vunpack.c.l.b16 %v4344
    %v4798 = vunpack.c.l.b16 %v4345
    %v4799 = vunpack.c.l.b16 %v4346
    %v4800 = vunpack.c.l.b16 %v4347
    %v4801 = vpack.c.b16 %v4798, %v4797
    %v4802 = vpack.c.b16 %v4800, %v4799
    %v4806 = vsel %vm2842, %v4340, 0
    %v4809 = vsel %vm2842, %v4341, 0
    %v4812 = vsel %vm2842, %v4342, 0
    %4814 = vmatpush.bf16.msra.mxu0 0
    %4815 = vmatpush.bf16.msra.mxu0 0
    %4816 = vmatpush.bf16.msra.mxu0 0
    %4817 = vmatpush.bf16.msra.mxu0 0
    %4818 = vmatpush.bf16.msra.mxu0 0
    %4819 = vmatpush.bf16.msra.mxu0 0
    %4820 = vmatpush.bf16.msra.mxu0 %v4802
    %4821 = vmatpush.bf16.msra.mxu0 %v4801
    %4822 = vmatmul.bf16.gmra.mxu0 %v4806
    %v4823 = vpop.f32.mrf.mxu0
    %v4824 = vadd.f32 %v4472, %v4823
    %v4825 = vpop.f32.mrf.mxu0
    %v4826 = vadd.f32 %v4474, %v4825
    %4827 = vmatmul.bf16.gmra.mxu0 %v4809
    %v4828 = vpop.f32.mrf.mxu0
    %v4829 = vadd.f32 %v4477, %v4828
    %v4830 = vpop.f32.mrf.mxu0
    %v4831 = vadd.f32 %v4479, %v4830
    %4832 = vmatmul.bf16.gmra.mxu0 %v4812
    %v4833 = vpop.f32.mrf.mxu0
    %v4834 = vadd.f32 %v4482, %v4833
    %v4835 = vpop.f32.mrf.mxu0
    %4836 = vdwg.mxu0
    %v4837 = vadd.f32 %v4516, %v4560
    %v4838 = vadd.f32 %v4518, %v4562
    %v4839 = vadd.f32 %v4521, %v4565
    %v4840 = vadd.f32 %v4523, %v4567
    %v4841 = vadd.f32 %v4526, %v4570
    %v4842 = vadd.f32 %v4604, %v4648
    %v4843 = vadd.f32 %v4606, %v4650
    %v4844 = vadd.f32 %v4609, %v4653
    %v4845 = vadd.f32 %v4611, %v4655
    %v4846 = vadd.f32 %v4614, %v4658
    %v4847 = vadd.f32 %v4692, %v4736
    %v4848 = vadd.f32 %v4694, %v4738
    %v4849 = vadd.f32 %v4697, %v4741
    %v4850 = vadd.f32 %v4699, %v4743
    %v4851 = vadd.f32 %v4702, %v4746
    %v4852 = vadd.f32 %v4780, %v4824
    %v4853 = vadd.f32 %v4782, %v4826
    %v4854 = vadd.f32 %v4785, %v4829
    %v4855 = vadd.f32 %v4787, %v4831
    %v4856 = vadd.f32 %v4790, %v4834
    %v4857 = vadd.f32 %v4837, %v4842
    %v4858 = vadd.f32 %v4838, %v4843
    %v4859 = vadd.f32 %v4839, %v4844
    %v4860 = vadd.f32 %v4840, %v4845
    %v4861 = vadd.f32 %v4841, %v4846
    %v4862 = vadd.f32 %v4847, %v4852
    %v4863 = vadd.f32 %v4848, %v4853
    %v4864 = vadd.f32 %v4849, %v4854
    %v4865 = vadd.f32 %v4850, %v4855
    %v4866 = vadd.f32 %v4851, %v4856
    %v4867 = vadd.f32 %v4857, %v4862
    %v4868 = vadd.f32 %v4858, %v4863
    %v4869 = vadd.f32 %v4859, %v4864
    %v4870 = vadd.f32 %v4860, %v4865
    %v4871 = vadd.f32 %v4861, %v4866
    %v4872 = vld [vmem:[%s7 + $0x1] sm:$0x1]
    %v4874 = vperm.slane %v4872, 0
    %v4876 = vadd.f32 %v4867, %v4874
    %v4877 = vadd.f32 %v4868, %v4874
    %v4878 = vadd.f32 %v4869, %v4874
    %v4879 = vadd.f32 %v4870, %v4874
    %v4880 = vadd.f32 %v4871, %v4874
    %v4881 = vmax.f32 %v4876, 0.0
    %v4882 = vmax.f32 %v4877, 0.0
    %v4883 = vmax.f32 %v4878, 0.0
    %v4884 = vmax.f32 %v4879, 0.0
    %v4885 = vmax.f32 %v4880, 0.0
    %v4886 = vpack.c.bf16 %v4882, %v4881
    %v4887 = vpack.c.bf16 %v4884, %v4883
    %v4888 = vpack.c.bf16 %v4885, %v4885
    %v4889 = vld [vmem:[%s5] sm:$0xf]
    %v4890 = vld [vmem:[%s5 + $0x4] sm:$0xf]
    %v4893 = vunpack.c.l.b16 %v4889
    %v4894 = vunpack.c.l.b16 %v4890
    %v4895 = vpack.c.b16 %v4894, %v4893
    %vm4896 = vcmask 293888
    %v4898 = vsel %vm4896, %v4895, 0
    %v4901 = vsel %vm2680, %v4888, 0
    %4903 = vmatpush.bf16.msra.mxu0 0
    %4904 = vmatpush.bf16.msra.mxu0 0
    %4905 = vmatpush.bf16.msra.mxu0 0
    %4906 = vmatpush.bf16.msra.mxu0 0
    %4907 = vmatpush.bf16.msra.mxu0 0
    %4908 = vmatpush.bf16.msra.mxu0 %v4901
    %4909 = vmatpush.bf16.msra.mxu0 %v4887
    %4910 = vmatpush.bf16.msra.mxu0 %v4886
    %4911 = vmatmul.bf16.gmra.mxu0 %v4898
    %v4912 = vpop.f32.mrf.mxu0
    %v4913 = vadd.f32 0.0, %v4912
    %v4914 = vpop.f32.mrf.mxu0
    %v4915 = vadd.f32 0.0, %v4914
    %4916 = vdwg.mxu0
    %v4917 = vpack.c.bf16 %v4915, %v4913
    %v4918 = vld [vmem:[%s6] sm:$0xf]
    %v4919 = vld [vmem:[%s6 + $0x4] sm:$0xf]
    %v4920 = vld [vmem:[%s6 + $0x8] sm:$0xf]
    %v4921 = vld [vmem:[%s6 + $0xc] sm:$0xf]
    %v4922 = vld [vmem:[%s6 + $0x10] sm:$0xf]
    %v4923 = vld [vmem:[%s6 + $0x14] sm:$0xf]
    %v4924 = vld [vmem:[%s6 + $0x18] sm:$0xf]
    %v4925 = vld [vmem:[%s6 + $0x1c] sm:$0xf]
    %s4926 = scalar_lea.vmem %s5, 8
    %v4927 = vld [vmem:[%s4926] sm:$0xf]
    %v4928 = vld [vmem:[%s4926 + $0x4] sm:$0xf]
    %v4931 = vunpack.c.l.b16 %v4927
    %v4932 = vunpack.c.l.b16 %v4928
    %v4933 = vpack.c.b16 %v4932, %v4931
    %v4935 = vsel %vm4896, %v4933, 0
    %4937 = vmatpush.bf16.msra.mxu0 0
    %4938 = vmatpush.bf16.msra.mxu0 0
    %4939 = vmatpush.bf16.msra.mxu0 0
    %4940 = vmatpush.bf16.msra.mxu0 0
    %4941 = vmatpush.bf16.msra.mxu0 0
    %4942 = vmatpush.bf16.msra.mxu0 %v4901
    %4943 = vmatpush.bf16.msra.mxu0 %v4887
    %4944 = vmatpush.bf16.msra.mxu0 %v4886
    %4945 = vmatmul.bf16.gmra.mxu0 %v4935
    %v4946 = vpop.f32.mrf.mxu0
    %v4947 = vadd.f32 0.0, %v4946
    %v4948 = vpop.f32.mrf.mxu0
    %v4949 = vadd.f32 0.0, %v4948
    %4950 = vdwg.mxu0
    %v4951 = vpack.c.bf16 %v4949, %v4947
    %s4952 = scalar_lea.vmem %s6, 32
    %v4953 = vld [vmem:[%s4952] sm:$0xf]
    %v4954 = vld [vmem:[%s4952 + $0x4] sm:$0xf]
    %v4955 = vld [vmem:[%s4952 + $0x8] sm:$0xf]
    %v4956 = vld [vmem:[%s4952 + $0xc] sm:$0xf]
    %v4957 = vld [vmem:[%s4952 + $0x10] sm:$0xf]
    %v4958 = vld [vmem:[%s4952 + $0x14] sm:$0xf]
    %v4959 = vld [vmem:[%s4952 + $0x18] sm:$0xf]
    %v4960 = vld [vmem:[%s4952 + $0x1c] sm:$0xf]
    %v4969 = vunpack.c.l.b16 %v4953
    %v4970 = vunpack.c.l.b16 %v4954
    %v4971 = vunpack.c.l.b16 %v4955
    %v4972 = vunpack.c.l.b16 %v4956
    %v4973 = vunpack.c.l.b16 %v4957
    %v4974 = vunpack.c.l.b16 %v4958
    %v4975 = vunpack.c.l.b16 %v4959
    %v4976 = vunpack.c.l.b16 %v4960
    %v4977 = vpack.c.b16 %v4970, %v4969
    %v4978 = vpack.c.b16 %v4972, %v4971
    %v4979 = vpack.c.b16 %v4974, %v4973
    %v4980 = vpack.c.b16 %v4976, %v4975
    %v4986 = vsel %vm697, %v4951, 0
    %4988 = vmatpush.bf16.msra.mxu0 0
    %4989 = vmatpush.bf16.msra.mxu0 0
    %4990 = vmatpush.bf16.msra.mxu0 0
    %4991 = vmatpush.bf16.msra.mxu0 0
    %4992 = vmatpush.bf16.msra.mxu0 %v4980
    %4993 = vmatpush.bf16.msra.mxu0 %v4979
    %4994 = vmatpush.bf16.msra.mxu0 %v4978
    %4995 = vmatpush.bf16.msra.mxu0 %v4977
    %4996 = vmatmul.bf16.gmra.mxu0 %v4986
    %v4997 = vpop.f32.mrf.mxu0
    %v4998 = vadd.f32 0.0, %v4997
    %v4999 = vpop.f32.mrf.mxu0
    %v5000 = vadd.f32 0.0, %v4999
    %5001 = vdwg.mxu0
    %s5002 = scalar_lea.vmem %s5, 16
    %v5003 = vld [vmem:[%s5002] sm:$0xf]
    %v5004 = vld [vmem:[%s5002 + $0x4] sm:$0xf]
    %v5007 = vunpack.c.l.b16 %v5003
    %v5008 = vunpack.c.l.b16 %v5004
    %v5009 = vpack.c.b16 %v5008, %v5007
    %v5011 = vsel %vm4896, %v5009, 0
    %5013 = vmatpush.bf16.msra.mxu0 0
    %5014 = vmatpush.bf16.msra.mxu0 0
    %5015 = vmatpush.bf16.msra.mxu0 0
    %5016 = vmatpush.bf16.msra.mxu0 0
    %5017 = vmatpush.bf16.msra.mxu0 0
    %5018 = vmatpush.bf16.msra.mxu0 %v4901
    %5019 = vmatpush.bf16.msra.mxu0 %v4887
    %5020 = vmatpush.bf16.msra.mxu0 %v4886
    %5021 = vmatmul.bf16.gmra.mxu0 %v5011
    %v5022 = vpop.f32.mrf.mxu0
    %v5023 = vadd.f32 0.0, %v5022
    %v5024 = vpop.f32.mrf.mxu0
    %v5025 = vadd.f32 0.0, %v5024
    %5026 = vdwg.mxu0
    %v5027 = vpack.c.bf16 %v5025, %v5023
    %s5028 = scalar_lea.vmem %s6, 64
    %v5029 = vld [vmem:[%s5028] sm:$0xf]
    %v5030 = vld [vmem:[%s5028 + $0x4] sm:$0xf]
    %v5031 = vld [vmem:[%s5028 + $0x8] sm:$0xf]
    %v5032 = vld [vmem:[%s5028 + $0xc] sm:$0xf]
    %v5033 = vld [vmem:[%s5028 + $0x10] sm:$0xf]
    %v5034 = vld [vmem:[%s5028 + $0x14] sm:$0xf]
    %v5035 = vld [vmem:[%s5028 + $0x18] sm:$0xf]
    %v5036 = vld [vmem:[%s5028 + $0x1c] sm:$0xf]
    %s5037 = scalar_lea.vmem %s5, 24
    %v5038 = vld [vmem:[%s5037] sm:$0xf]
    %v5039 = vld [vmem:[%s5037 + $0x4] sm:$0xf]
    %v5042 = vunpack.c.l.b16 %v5038
    %v5043 = vunpack.c.l.b16 %v5039
    %v5044 = vpack.c.b16 %v5043, %v5042
    %v5046 = vsel %vm4896, %v5044, 0
    %5048 = vmatpush.bf16.msra.mxu0 0
    %5049 = vmatpush.bf16.msra.mxu0 0
    %5050 = vmatpush.bf16.msra.mxu0 0
    %5051 = vmatpush.bf16.msra.mxu0 0
    %5052 = vmatpush.bf16.msra.mxu0 0
    %5053 = vmatpush.bf16.msra.mxu0 %v4901
    %5054 = vmatpush.bf16.msra.mxu0 %v4887
    %5055 = vmatpush.bf16.msra.mxu0 %v4886
    %5056 = vmatmul.bf16.gmra.mxu0 %v5046
    %v5057 = vpop.f32.mrf.mxu0
    %v5058 = vadd.f32 0.0, %v5057
    %v5059 = vpop.f32.mrf.mxu0
    %v5060 = vadd.f32 0.0, %v5059
    %5061 = vdwg.mxu0
    %v5062 = vpack.c.bf16 %v5060, %v5058
    %s5063 = scalar_lea.vmem %s6, 96
    %v5064 = vld [vmem:[%s5063] sm:$0xf]
    %v5065 = vld [vmem:[%s5063 + $0x4] sm:$0xf]
    %v5066 = vld [vmem:[%s5063 + $0x8] sm:$0xf]
    %v5067 = vld [vmem:[%s5063 + $0xc] sm:$0xf]
    %v5068 = vld [vmem:[%s5063 + $0x10] sm:$0xf]
    %v5069 = vld [vmem:[%s5063 + $0x14] sm:$0xf]
    %v5070 = vld [vmem:[%s5063 + $0x18] sm:$0xf]
    %v5071 = vld [vmem:[%s5063 + $0x1c] sm:$0xf]
    %v5080 = vunpack.c.l.b16 %v5064
    %v5081 = vunpack.c.l.b16 %v5065
    %v5082 = vunpack.c.l.b16 %v5066
    %v5083 = vunpack.c.l.b16 %v5067
    %v5084 = vunpack.c.l.b16 %v5068
    %v5085 = vunpack.c.l.b16 %v5069
    %v5086 = vunpack.c.l.b16 %v5070
    %v5087 = vunpack.c.l.b16 %v5071
    %v5088 = vpack.c.b16 %v5081, %v5080
    %v5089 = vpack.c.b16 %v5083, %v5082
    %v5090 = vpack.c.b16 %v5085, %v5084
    %v5091 = vpack.c.b16 %v5087, %v5086
    %v5097 = vsel %vm697, %v5062, 0
    %5099 = vmatpush.bf16.msra.mxu0 0
    %5100 = vmatpush.bf16.msra.mxu0 0
    %5101 = vmatpush.bf16.msra.mxu0 0
    %5102 = vmatpush.bf16.msra.mxu0 0
    %5103 = vmatpush.bf16.msra.mxu0 %v5091
    %5104 = vmatpush.bf16.msra.mxu0 %v5090
    %5105 = vmatpush.bf16.msra.mxu0 %v5089
    %5106 = vmatpush.bf16.msra.mxu0 %v5088
    %5107 = vmatmul.bf16.gmra.mxu0 %v5097
    %v5108 = vpop.f32.mrf.mxu0
    %v5109 = vadd.f32 0.0, %v5108
    %v5110 = vpop.f32.mrf.mxu0
    %v5111 = vadd.f32 0.0, %v5110
    %5112 = vdwg.mxu0
    %s5113 = scalar_lea.vmem %s5, 32
    %v5114 = vld [vmem:[%s5113] sm:$0xf]
    %v5115 = vld [vmem:[%s5113 + $0x4] sm:$0xf]
    %v5118 = vunpack.c.l.b16 %v5114
    %v5119 = vunpack.c.l.b16 %v5115
    %v5120 = vpack.c.b16 %v5119, %v5118
    %v5122 = vsel %vm4896, %v5120, 0
    %5124 = vmatpush.bf16.msra.mxu0 0
    %5125 = vmatpush.bf16.msra.mxu0 0
    %5126 = vmatpush.bf16.msra.mxu0 0
    %5127 = vmatpush.bf16.msra.mxu0 0
    %5128 = vmatpush.bf16.msra.mxu0 0
    %5129 = vmatpush.bf16.msra.mxu0 %v4901
    %5130 = vmatpush.bf16.msra.mxu0 %v4887
    %5131 = vmatpush.bf16.msra.mxu0 %v4886
    %5132 = vmatmul.bf16.gmra.mxu0 %v5122
    %v5133 = vpop.f32.mrf.mxu0
    %v5134 = vadd.f32 0.0, %v5133
    %v5135 = vpop.f32.mrf.mxu0
    %v5136 = vadd.f32 0.0, %v5135
    %5137 = vdwg.mxu0
    %v5138 = vpack.c.bf16 %v5136, %v5134
    %s5139 = scalar_lea.vmem %s6, 128
    %v5140 = vld [vmem:[%s5139] sm:$0xf]
    %v5141 = vld [vmem:[%s5139 + $0x4] sm:$0xf]
    %v5142 = vld [vmem:[%s5139 + $0x8] sm:$0xf]
    %v5143 = vld [vmem:[%s5139 + $0xc] sm:$0xf]
    %v5144 = vld [vmem:[%s5139 + $0x10] sm:$0xf]
    %v5145 = vld [vmem:[%s5139 + $0x14] sm:$0xf]
    %v5146 = vld [vmem:[%s5139 + $0x18] sm:$0xf]
    %v5147 = vld [vmem:[%s5139 + $0x1c] sm:$0xf]
    %s5148 = scalar_lea.vmem %s5, 40
    %v5149 = vld [vmem:[%s5148] sm:$0xf]
    %v5150 = vld [vmem:[%s5148 + $0x4] sm:$0xf]
    %v5153 = vunpack.c.l.b16 %v5149
    %v5154 = vunpack.c.l.b16 %v5150
    %v5155 = vpack.c.b16 %v5154, %v5153
    %v5157 = vsel %vm4896, %v5155, 0
    %5159 = vmatpush.bf16.msra.mxu0 0
    %5160 = vmatpush.bf16.msra.mxu0 0
    %5161 = vmatpush.bf16.msra.mxu0 0
    %5162 = vmatpush.bf16.msra.mxu0 0
    %5163 = vmatpush.bf16.msra.mxu0 0
    %5164 = vmatpush.bf16.msra.mxu0 %v4901
    %5165 = vmatpush.bf16.msra.mxu0 %v4887
    %5166 = vmatpush.bf16.msra.mxu0 %v4886
    %5167 = vmatmul.bf16.gmra.mxu0 %v5157
    %v5168 = vpop.f32.mrf.mxu0
    %v5169 = vadd.f32 0.0, %v5168
    %v5170 = vpop.f32.mrf.mxu0
    %v5171 = vadd.f32 0.0, %v5170
    %5172 = vdwg.mxu0
    %v5173 = vpack.c.bf16 %v5171, %v5169
    %s5174 = scalar_lea.vmem %s6, 160
    %v5175 = vld [vmem:[%s5174] sm:$0xf]
    %v5176 = vld [vmem:[%s5174 + $0x4] sm:$0xf]
    %v5177 = vld [vmem:[%s5174 + $0x8] sm:$0xf]
    %v5178 = vld [vmem:[%s5174 + $0xc] sm:$0xf]
    %v5179 = vld [vmem:[%s5174 + $0x10] sm:$0xf]
    %v5180 = vld [vmem:[%s5174 + $0x14] sm:$0xf]
    %v5181 = vld [vmem:[%s5174 + $0x18] sm:$0xf]
    %v5182 = vld [vmem:[%s5174 + $0x1c] sm:$0xf]
    %v5191 = vunpack.c.l.b16 %v5175
    %v5192 = vunpack.c.l.b16 %v5176
    %v5193 = vunpack.c.l.b16 %v5177
    %v5194 = vunpack.c.l.b16 %v5178
    %v5195 = vunpack.c.l.b16 %v5179
    %v5196 = vunpack.c.l.b16 %v5180
    %v5197 = vunpack.c.l.b16 %v5181
    %v5198 = vunpack.c.l.b16 %v5182
    %v5199 = vpack.c.b16 %v5192, %v5191
    %v5200 = vpack.c.b16 %v5194, %v5193
    %v5201 = vpack.c.b16 %v5196, %v5195
    %v5202 = vpack.c.b16 %v5198, %v5197
    %v5208 = vsel %vm697, %v5173, 0
    %5210 = vmatpush.bf16.msra.mxu0 0
    %5211 = vmatpush.bf16.msra.mxu0 0
    %5212 = vmatpush.bf16.msra.mxu0 0
    %5213 = vmatpush.bf16.msra.mxu0 0
    %5214 = vmatpush.bf16.msra.mxu0 %v5202
    %5215 = vmatpush.bf16.msra.mxu0 %v5201
    %5216 = vmatpush.bf16.msra.mxu0 %v5200
    %5217 = vmatpush.bf16.msra.mxu0 %v5199
    %5218 = vmatmul.bf16.gmra.mxu0 %v5208
    %v5219 = vpop.f32.mrf.mxu0
    %v5220 = vadd.f32 0.0, %v5219
    %v5221 = vpop.f32.mrf.mxu0
    %v5222 = vadd.f32 0.0, %v5221
    %5223 = vdwg.mxu0
    %s5224 = scalar_lea.vmem %s5, 48
    %v5225 = vld [vmem:[%s5224] sm:$0xf]
    %v5226 = vld [vmem:[%s5224 + $0x4] sm:$0xf]
    %v5229 = vunpack.c.l.b16 %v5225
    %v5230 = vunpack.c.l.b16 %v5226
    %v5231 = vpack.c.b16 %v5230, %v5229
    %v5233 = vsel %vm4896, %v5231, 0
    %5235 = vmatpush.bf16.msra.mxu0 0
    %5236 = vmatpush.bf16.msra.mxu0 0
    %5237 = vmatpush.bf16.msra.mxu0 0
    %5238 = vmatpush.bf16.msra.mxu0 0
    %5239 = vmatpush.bf16.msra.mxu0 0
    %5240 = vmatpush.bf16.msra.mxu0 %v4901
    %5241 = vmatpush.bf16.msra.mxu0 %v4887
    %5242 = vmatpush.bf16.msra.mxu0 %v4886
    %5243 = vmatmul.bf16.gmra.mxu0 %v5233
    %v5244 = vpop.f32.mrf.mxu0
    %v5245 = vadd.f32 0.0, %v5244
    %v5246 = vpop.f32.mrf.mxu0
    %v5247 = vadd.f32 0.0, %v5246
    %5248 = vdwg.mxu0
    %v5249 = vpack.c.bf16 %v5247, %v5245
    %s5250 = scalar_lea.vmem %s6, 192
    %v5251 = vld [vmem:[%s5250] sm:$0xf]
    %v5252 = vld [vmem:[%s5250 + $0x4] sm:$0xf]
    %v5253 = vld [vmem:[%s5250 + $0x8] sm:$0xf]
    %v5254 = vld [vmem:[%s5250 + $0xc] sm:$0xf]
    %v5255 = vld [vmem:[%s5250 + $0x10] sm:$0xf]
    %v5256 = vld [vmem:[%s5250 + $0x14] sm:$0xf]
    %v5257 = vld [vmem:[%s5250 + $0x18] sm:$0xf]
    %v5258 = vld [vmem:[%s5250 + $0x1c] sm:$0xf]
    %s5259 = scalar_lea.vmem %s5, 56
    %v5260 = vld [vmem:[%s5259] sm:$0xf]
    %v5261 = vld [vmem:[%s5259 + $0x4] sm:$0xf]
    %v5264 = vunpack.c.l.b16 %v5260
    %v5265 = vunpack.c.l.b16 %v5261
    %v5266 = vpack.c.b16 %v5265, %v5264
    %v5268 = vsel %vm4896, %v5266, 0
    %5270 = vmatpush.bf16.msra.mxu0 0
    %5271 = vmatpush.bf16.msra.mxu0 0
    %5272 = vmatpush.bf16.msra.mxu0 0
    %5273 = vmatpush.bf16.msra.mxu0 0
    %5274 = vmatpush.bf16.msra.mxu0 0
    %5275 = vmatpush.bf16.msra.mxu0 %v4901
    %5276 = vmatpush.bf16.msra.mxu0 %v4887
    %5277 = vmatpush.bf16.msra.mxu0 %v4886
    %5278 = vmatmul.bf16.gmra.mxu0 %v5268
    %v5279 = vpop.f32.mrf.mxu0
    %v5280 = vadd.f32 0.0, %v5279
    %v5281 = vpop.f32.mrf.mxu0
    %v5282 = vadd.f32 0.0, %v5281
    %5283 = vdwg.mxu0
    %v5284 = vpack.c.bf16 %v5282, %v5280
    %s5285 = scalar_lea.vmem %s6, 224
    %v5286 = vld [vmem:[%s5285] sm:$0xf]
    %v5287 = vld [vmem:[%s5285 + $0x4] sm:$0xf]
    %v5288 = vld [vmem:[%s5285 + $0x8] sm:$0xf]
    %v5289 = vld [vmem:[%s5285 + $0xc] sm:$0xf]
    %v5290 = vld [vmem:[%s5285 + $0x10] sm:$0xf]
    %v5291 = vld [vmem:[%s5285 + $0x14] sm:$0xf]
    %v5292 = vld [vmem:[%s5285 + $0x18] sm:$0xf]
    %v5293 = vld [vmem:[%s5285 + $0x1c] sm:$0xf]
    %v5302 = vunpack.c.l.b16 %v5286
    %v5303 = vunpack.c.l.b16 %v5287
    %v5304 = vunpack.c.l.b16 %v5288
    %v5305 = vunpack.c.l.b16 %v5289
    %v5306 = vunpack.c.l.b16 %v5290
    %v5307 = vunpack.c.l.b16 %v5291
    %v5308 = vunpack.c.l.b16 %v5292
    %v5309 = vunpack.c.l.b16 %v5293
    %v5310 = vpack.c.b16 %v5303, %v5302
    %v5311 = vpack.c.b16 %v5305, %v5304
    %v5312 = vpack.c.b16 %v5307, %v5306
    %v5313 = vpack.c.b16 %v5309, %v5308
    %v5319 = vsel %vm697, %v5284, 0
    %5321 = vmatpush.bf16.msra.mxu0 0
    %5322 = vmatpush.bf16.msra.mxu0 0
    %5323 = vmatpush.bf16.msra.mxu0 0
    %5324 = vmatpush.bf16.msra.mxu0 0
    %5325 = vmatpush.bf16.msra.mxu0 %v5313
    %5326 = vmatpush.bf16.msra.mxu0 %v5312
    %5327 = vmatpush.bf16.msra.mxu0 %v5311
    %5328 = vmatpush.bf16.msra.mxu0 %v5310
    %5329 = vmatmul.bf16.gmra.mxu0 %v5319
    %v5330 = vpop.f32.mrf.mxu0
    %v5331 = vadd.f32 0.0, %v5330
    %v5332 = vpop.f32.mrf.mxu0
    %v5333 = vadd.f32 0.0, %v5332
    %5334 = vdwg.mxu0
    %s5335 = scalar_lea.vmem %s5, 64
    %v5336 = vld [vmem:[%s5335] sm:$0xf]
    %v5337 = vld [vmem:[%s5335 + $0x4] sm:$0xf]
    %v5340 = vunpack.c.l.b16 %v5336
    %v5341 = vunpack.c.l.b16 %v5337
    %v5342 = vpack.c.b16 %v5341, %v5340
    %v5344 = vsel %vm4896, %v5342, 0
    %5346 = vmatpush.bf16.msra.mxu0 0
    %5347 = vmatpush.bf16.msra.mxu0 0
    %5348 = vmatpush.bf16.msra.mxu0 0
    %5349 = vmatpush.bf16.msra.mxu0 0
    %5350 = vmatpush.bf16.msra.mxu0 0
    %5351 = vmatpush.bf16.msra.mxu0 %v4901
    %5352 = vmatpush.bf16.msra.mxu0 %v4887
    %5353 = vmatpush.bf16.msra.mxu0 %v4886
    %5354 = vmatmul.bf16.gmra.mxu0 %v5344
    %v5355 = vpop.f32.mrf.mxu0
    %v5356 = vadd.f32 0.0, %v5355
    %v5357 = vpop.f32.mrf.mxu0
    %v5358 = vadd.f32 0.0, %v5357
    %5359 = vdwg.mxu0
    %v5360 = vpack.c.bf16 %v5358, %v5356
    %s5361 = scalar_lea.vmem %s6, 256
    %v5362 = vld [vmem:[%s5361] sm:$0xf]
    %v5363 = vld [vmem:[%s5361 + $0x4] sm:$0xf]
    %v5364 = vld [vmem:[%s5361 + $0x8] sm:$0xf]
    %v5365 = vld [vmem:[%s5361 + $0xc] sm:$0xf]
    %v5366 = vld [vmem:[%s5361 + $0x10] sm:$0xf]
    %v5367 = vld [vmem:[%s5361 + $0x14] sm:$0xf]
    %v5368 = vld [vmem:[%s5361 + $0x18] sm:$0xf]
    %v5369 = vld [vmem:[%s5361 + $0x1c] sm:$0xf]
    %v5378 = vunpack.c.l.b16 %v5362
    %v5379 = vunpack.c.l.b16 %v5363
    %v5380 = vunpack.c.l.b16 %v5364
    %v5381 = vunpack.c.l.b16 %v5365
    %v5382 = vunpack.c.l.b16 %v5366
    %v5383 = vunpack.c.l.b16 %v5367
    %v5384 = vunpack.c.l.b16 %v5368
    %v5385 = vunpack.c.l.b16 %v5369
    %v5386 = vpack.c.b16 %v5379, %v5378
    %v5387 = vpack.c.b16 %v5381, %v5380
    %v5388 = vpack.c.b16 %v5383, %v5382
    %v5389 = vpack.c.b16 %v5385, %v5384
    %v5395 = vsel %vm697, %v5360, 0
    %5397 = vmatpush.bf16.msra.mxu0 0
    %5398 = vmatpush.bf16.msra.mxu0 0
    %5399 = vmatpush.bf16.msra.mxu0 0
    %5400 = vmatpush.bf16.msra.mxu0 0
    %5401 = vmatpush.bf16.msra.mxu0 %v5389
    %5402 = vmatpush.bf16.msra.mxu0 %v5388
    %5403 = vmatpush.bf16.msra.mxu0 %v5387
    %5404 = vmatpush.bf16.msra.mxu0 %v5386
    %5405 = vmatmul.bf16.gmra.mxu0 %v5395
    %v5406 = vpop.f32.mrf.mxu0
    %v5407 = vadd.f32 0.0, %v5406
    %v5408 = vpop.f32.mrf.mxu0
    %v5409 = vadd.f32 0.0, %v5408
    %5410 = vdwg.mxu0
    %v5419 = vunpack.c.l.b16 %v4918
    %v5420 = vunpack.c.l.b16 %v4919
    %v5421 = vunpack.c.l.b16 %v4920
    %v5422 = vunpack.c.l.b16 %v4921
    %v5423 = vunpack.c.l.b16 %v4922
    %v5424 = vunpack.c.l.b16 %v4923
    %v5425 = vunpack.c.l.b16 %v4924
    %v5426 = vunpack.c.l.b16 %v4925
    %v5427 = vpack.c.b16 %v5420, %v5419
    %v5428 = vpack.c.b16 %v5422, %v5421
    %v5429 = vpack.c.b16 %v5424, %v5423
    %v5430 = vpack.c.b16 %v5426, %v5425
    %v5436 = vsel %vm697, %v4917, 0
    %5438 = vmatpush.bf16.msra.mxu0 0
    %5439 = vmatpush.bf16.msra.mxu0 0
    %5440 = vmatpush.bf16.msra.mxu0 0
    %5441 = vmatpush.bf16.msra.mxu0 0
    %5442 = vmatpush.bf16.msra.mxu0 %v5430
    %5443 = vmatpush.bf16.msra.mxu0 %v5429
    %5444 = vmatpush.bf16.msra.mxu0 %v5428
    %5445 = vmatpush.bf16.msra.mxu0 %v5427
    %5446 = vmatmul.bf16.gmra.mxu0 %v5436
    %v5447 = vpop.f32.mrf.mxu0
    %v5448 = vadd.f32 %v4998, %v5447
    %v5449 = vpop.f32.mrf.mxu0
    %v5450 = vadd.f32 %v5000, %v5449
    %5451 = vdwg.mxu0
    %v5460 = vunpack.c.l.b16 %v5029
    %v5461 = vunpack.c.l.b16 %v5030
    %v5462 = vunpack.c.l.b16 %v5031
    %v5463 = vunpack.c.l.b16 %v5032
    %v5464 = vunpack.c.l.b16 %v5033
    %v5465 = vunpack.c.l.b16 %v5034
    %v5466 = vunpack.c.l.b16 %v5035
    %v5467 = vunpack.c.l.b16 %v5036
    %v5468 = vpack.c.b16 %v5461, %v5460
    %v5469 = vpack.c.b16 %v5463, %v5462
    %v5470 = vpack.c.b16 %v5465, %v5464
    %v5471 = vpack.c.b16 %v5467, %v5466
    %v5477 = vsel %vm697, %v5027, 0
    %5479 = vmatpush.bf16.msra.mxu0 0
    %5480 = vmatpush.bf16.msra.mxu0 0
    %5481 = vmatpush.bf16.msra.mxu0 0
    %5482 = vmatpush.bf16.msra.mxu0 0
    %5483 = vmatpush.bf16.msra.mxu0 %v5471
    %5484 = vmatpush.bf16.msra.mxu0 %v5470
    %5485 = vmatpush.bf16.msra.mxu0 %v5469
    %5486 = vmatpush.bf16.msra.mxu0 %v5468
    %5487 = vmatmul.bf16.gmra.mxu0 %v5477
    %v5488 = vpop.f32.mrf.mxu0
    %v5489 = vadd.f32 %v5109, %v5488
    %v5490 = vpop.f32.mrf.mxu0
    %v5491 = vadd.f32 %v5111, %v5490
    %5492 = vdwg.mxu0
    %v5501 = vunpack.c.l.b16 %v5140
    %v5502 = vunpack.c.l.b16 %v5141
    %v5503 = vunpack.c.l.b16 %v5142
    %v5504 = vunpack.c.l.b16 %v5143
    %v5505 = vunpack.c.l.b16 %v5144
    %v5506 = vunpack.c.l.b16 %v5145
    %v5507 = vunpack.c.l.b16 %v5146
    %v5508 = vunpack.c.l.b16 %v5147
    %v5509 = vpack.c.b16 %v5502, %v5501
    %v5510 = vpack.c.b16 %v5504, %v5503
    %v5511 = vpack.c.b16 %v5506, %v5505
    %v5512 = vpack.c.b16 %v5508, %v5507
    %v5518 = vsel %vm697, %v5138, 0
    %5520 = vmatpush.bf16.msra.mxu0 0
    %5521 = vmatpush.bf16.msra.mxu0 0
    %5522 = vmatpush.bf16.msra.mxu0 0
    %5523 = vmatpush.bf16.msra.mxu0 0
    %5524 = vmatpush.bf16.msra.mxu0 %v5512
    %5525 = vmatpush.bf16.msra.mxu0 %v5511
    %5526 = vmatpush.bf16.msra.mxu0 %v5510
    %5527 = vmatpush.bf16.msra.mxu0 %v5509
    %5528 = vmatmul.bf16.gmra.mxu0 %v5518
    %v5529 = vpop.f32.mrf.mxu0
    %v5530 = vadd.f32 %v5220, %v5529
    %v5531 = vpop.f32.mrf.mxu0
    %v5532 = vadd.f32 %v5222, %v5531
    %5533 = vdwg.mxu0
    %v5542 = vunpack.c.l.b16 %v5251
    %v5543 = vunpack.c.l.b16 %v5252
    %v5544 = vunpack.c.l.b16 %v5253
    %v5545 = vunpack.c.l.b16 %v5254
    %v5546 = vunpack.c.l.b16 %v5255
    %v5547 = vunpack.c.l.b16 %v5256
    %v5548 = vunpack.c.l.b16 %v5257
    %v5549 = vunpack.c.l.b16 %v5258
    %v5550 = vpack.c.b16 %v5543, %v5542
    %v5551 = vpack.c.b16 %v5545, %v5544
    %v5552 = vpack.c.b16 %v5547, %v5546
    %v5553 = vpack.c.b16 %v5549, %v5548
    %v5559 = vsel %vm697, %v5249, 0
    %5561 = vmatpush.bf16.msra.mxu0 0
    %5562 = vmatpush.bf16.msra.mxu0 0
    %5563 = vmatpush.bf16.msra.mxu0 0
    %5564 = vmatpush.bf16.msra.mxu0 0
    %5565 = vmatpush.bf16.msra.mxu0 %v5553
    %5566 = vmatpush.bf16.msra.mxu0 %v5552
    %5567 = vmatpush.bf16.msra.mxu0 %v5551
    %5568 = vmatpush.bf16.msra.mxu0 %v5550
    %5569 = vmatmul.bf16.gmra.mxu0 %v5559
    %v5570 = vpop.f32.mrf.mxu0
    %v5571 = vadd.f32 %v5331, %v5570
    %v5572 = vpop.f32.mrf.mxu0
    %v5573 = vadd.f32 %v5333, %v5572
    %5574 = vdwg.mxu0
    %v5575 = vadd.f32 %v5448, %v5489
    %v5576 = vadd.f32 %v5450, %v5491
    %v5577 = vadd.f32 %v5530, %v5571
    %v5578 = vadd.f32 %v5532, %v5573
    %v5579 = vadd.f32 %v5575, %v5577
    %v5580 = vadd.f32 %v5576, %v5578
    %v5581 = vadd.f32 %v5579, %v5407
    %v5582 = vadd.f32 %v5580, %v5409
    %v5583 = vld [vmem:[%s7 + $0x2] sm:$0x1]
    %v5585 = vperm.slane %v5583, 0
    %v5587 = vadd.f32 %v5581, %v5585
    %v5588 = vadd.f32 %v5582, %v5585
    %v5589 = vmax.f32 %v5587, 0.0
    %v5590 = vmax.f32 %v5588, 0.0
    %v5591 = vpack.c.bf16 %v5589, %v5589
    %v5592 = vpack.c.bf16 %v5590, %v5590
    %vm5593 = vcmask 519168
    %5594 = vst.msk [vmem:[#allocation4] sm:$0xf] %vm5593, %v5591
    %5595 = vst.msk [vmem:[#allocation4 + $0x4] sm:$0xf] %vm5593, %v5592
    %s5596 = smul.u32 4, 16
    %s5597 = smul.u32 %s5596, 8
    %s5598 = smul.u32 %s5597, 4
    %s5599 = sshll.u32 %s5598, 4
    %5600 = dma.done [#allocation3], %s5599
    %v5601 = vld [vmem:[#allocation4] sm:$0x1]
    %v5602 = vld [vmem:[#allocation2] sm:$0xff]
    %v5603 = vld [vmem:[#allocation2 + $0x8] sm:$0xff]
    %v5604 = vld [vmem:[#allocation2 + $0x10] sm:$0xff]
    %v5605 = vld [vmem:[#allocation2 + $0x18] sm:$0xff]
    %v5606 = vld [vmem:[#allocation2 + $0x20] sm:$0xff]
    %v5607 = vld [vmem:[#allocation2 + $0x28] sm:$0xff]
    %v5608 = vld [vmem:[#allocation2 + $0x30] sm:$0xff]
    %v5609 = vld [vmem:[#allocation2 + $0x38] sm:$0xff]
    %v5610 = vld [vmem:[#allocation2 + $0x40] sm:$0xff]
    %v5611 = vld [vmem:[#allocation2 + $0x48] sm:$0xff]
    %v5612 = vld [vmem:[#allocation2 + $0x50] sm:$0xff]
    %v5613 = vld [vmem:[#allocation2 + $0x58] sm:$0xff]
    %v5614 = vld [vmem:[#allocation2 + $0x60] sm:$0xff]
    %v5615 = vld [vmem:[#allocation2 + $0x68] sm:$0xff]
    %v5616 = vld [vmem:[#allocation2 + $0x70] sm:$0xff]
    %v5617 = vld [vmem:[#allocation2 + $0x78] sm:$0xff]
    %s5618 = scalar_lea.vmem [#allocation2], 128
    %v5619 = vld [vmem:[%s5618] sm:$0xff]
    %v5620 = vld [vmem:[%s5618 + $0x8] sm:$0xff]
    %v5621 = vld [vmem:[%s5618 + $0x10] sm:$0xff]
    %v5622 = vld [vmem:[%s5618 + $0x18] sm:$0xff]
    %v5623 = vld [vmem:[%s5618 + $0x20] sm:$0xff]
    %v5624 = vld [vmem:[%s5618 + $0x28] sm:$0xff]
    %v5625 = vld [vmem:[%s5618 + $0x30] sm:$0xff]
    %v5626 = vld [vmem:[%s5618 + $0x38] sm:$0xff]
    %v5627 = vld [vmem:[%s5618 + $0x40] sm:$0xff]
    %v5628 = vld [vmem:[%s5618 + $0x48] sm:$0xff]
    %v5629 = vld [vmem:[%s5618 + $0x50] sm:$0xff]
    %v5630 = vld [vmem:[%s5618 + $0x58] sm:$0xff]
    %v5631 = vld [vmem:[%s5618 + $0x60] sm:$0xff]
    %v5632 = vld [vmem:[%s5618 + $0x68] sm:$0xff]
    %v5633 = vld [vmem:[%s5618 + $0x70] sm:$0xff]
    %v5634 = vld [vmem:[%s5618 + $0x78] sm:$0xff]
    %v5636 = vunpack.c.l.b16 %v5601
    %v5637 = vpack.c.b16 %v5636, %v5636
    %v5639 = vshrl.u32 %v5637, 16
    %v5657 = vunpack.c.l.b16 %v5619
    %v5658 = vunpack.c.h.b16 %v5619
    %v5659 = vunpack.c.l.b16 %v5620
    %v5660 = vunpack.c.h.b16 %v5620
    %v5661 = vunpack.c.l.b16 %v5621
    %v5662 = vunpack.c.h.b16 %v5621
    %v5663 = vunpack.c.l.b16 %v5622
    %v5664 = vunpack.c.h.b16 %v5622
    %v5665 = vunpack.c.l.b16 %v5623
    %v5666 = vunpack.c.h.b16 %v5623
    %v5667 = vunpack.c.l.b16 %v5624
    %v5668 = vunpack.c.h.b16 %v5624
    %v5669 = vunpack.c.l.b16 %v5625
    %v5670 = vunpack.c.h.b16 %v5625
    %v5671 = vunpack.c.l.b16 %v5626
    %v5672 = vunpack.c.h.b16 %v5626
    %v5673 = vunpack.c.l.b16 %v5627
    %v5674 = vunpack.c.h.b16 %v5627
    %v5675 = vunpack.c.l.b16 %v5628
    %v5676 = vunpack.c.h.b16 %v5628
    %v5677 = vunpack.c.l.b16 %v5629
    %v5678 = vunpack.c.h.b16 %v5629
    %v5679 = vunpack.c.l.b16 %v5630
    %v5680 = vunpack.c.h.b16 %v5630
    %v5681 = vunpack.c.l.b16 %v5631
    %v5682 = vunpack.c.h.b16 %v5631
    %v5683 = vunpack.c.l.b16 %v5632
    %v5684 = vunpack.c.h.b16 %v5632
    %v5685 = vunpack.c.l.b16 %v5633
    %v5686 = vunpack.c.h.b16 %v5633
    %v5687 = vunpack.c.l.b16 %v5634
    %v5688 = vunpack.c.h.b16 %v5634
    %v5689 = vpack.c.b16 %v5661, %v5657
    %v5690 = vpack.c.b16 %v5662, %v5658
    %v5691 = vpack.c.b16 %v5663, %v5659
    %v5692 = vpack.c.b16 %v5664, %v5660
    %v5693 = vpack.c.b16 %v5669, %v5665
    %v5694 = vpack.c.b16 %v5670, %v5666
    %v5695 = vpack.c.b16 %v5671, %v5667
    %v5696 = vpack.c.b16 %v5672, %v5668
    %v5697 = vpack.c.b16 %v5677, %v5673
    %v5698 = vpack.c.b16 %v5678, %v5674
    %v5699 = vpack.c.b16 %v5679, %v5675
    %v5700 = vpack.c.b16 %v5680, %v5676
    %v5701 = vpack.c.b16 %v5685, %v5681
    %v5702 = vpack.c.b16 %v5686, %v5682
    %v5703 = vpack.c.b16 %v5687, %v5683
    %v5704 = vpack.c.b16 %v5688, %v5684
    %v5722 = vsel %vm697, %v5639, 0
    %5724 = vmatpush.bf16.msra.mxu0 0
    %5725 = vmatpush.bf16.msra.mxu0 0
    %5726 = vmatpush.bf16.msra.mxu0 0
    %5727 = vmatpush.bf16.msra.mxu0 0
    %5728 = vmatpush.bf16.msra.mxu0 %v5701
    %5729 = vmatpush.bf16.msra.mxu0 %v5697
    %5730 = vmatpush.bf16.msra.mxu0 %v5693
    %5731 = vmatpush.bf16.msra.mxu0 %v5689
    %5732 = vmatmul.bf16.gmra.mxu0 %v5722
    %v5733 = vpop.f32.mrf.mxu0
    %v5734 = vadd.f32 0.0, %v5733
    %v5735 = vpop.f32.mrf.mxu0
    %5736 = vdwg.mxu0
    %5737 = vmatpush.bf16.msra.mxu0 0
    %5738 = vmatpush.bf16.msra.mxu0 0
    %5739 = vmatpush.bf16.msra.mxu0 0
    %5740 = vmatpush.bf16.msra.mxu0 0
    %5741 = vmatpush.bf16.msra.mxu0 %v5702
    %5742 = vmatpush.bf16.msra.mxu0 %v5698
    %5743 = vmatpush.bf16.msra.mxu0 %v5694
    %5744 = vmatpush.bf16.msra.mxu0 %v5690
    %5745 = vmatmul.bf16.gmra.mxu0 %v5722
    %v5746 = vpop.f32.mrf.mxu0
    %v5747 = vadd.f32 0.0, %v5746
    %v5748 = vpop.f32.mrf.mxu0
    %5749 = vdwg.mxu0
    %5750 = vmatpush.bf16.msra.mxu0 0
    %5751 = vmatpush.bf16.msra.mxu0 0
    %5752 = vmatpush.bf16.msra.mxu0 0
    %5753 = vmatpush.bf16.msra.mxu0 0
    %5754 = vmatpush.bf16.msra.mxu0 %v5703
    %5755 = vmatpush.bf16.msra.mxu0 %v5699
    %5756 = vmatpush.bf16.msra.mxu0 %v5695
    %5757 = vmatpush.bf16.msra.mxu0 %v5691
    %5758 = vmatmul.bf16.gmra.mxu0 %v5722
    %v5759 = vpop.f32.mrf.mxu0
    %v5760 = vadd.f32 0.0, %v5759
    %v5761 = vpop.f32.mrf.mxu0
    %5762 = vdwg.mxu0
    %5763 = vmatpush.bf16.msra.mxu0 0
    %5764 = vmatpush.bf16.msra.mxu0 0
    %5765 = vmatpush.bf16.msra.mxu0 0
    %5766 = vmatpush.bf16.msra.mxu0 0
    %5767 = vmatpush.bf16.msra.mxu0 %v5704
    %5768 = vmatpush.bf16.msra.mxu0 %v5700
    %5769 = vmatpush.bf16.msra.mxu0 %v5696
    %5770 = vmatpush.bf16.msra.mxu0 %v5692
    %5771 = vmatmul.bf16.gmra.mxu0 %v5722
    %v5772 = vpop.f32.mrf.mxu0
    %v5773 = vadd.f32 0.0, %v5772
    %v5774 = vpop.f32.mrf.mxu0
    %5775 = vdwg.mxu0
    %v5776 = vld [vmem:[#allocation4] sm:$0x2]
    %s5777 = scalar_lea.vmem [#allocation2], 256
    %v5778 = vld [vmem:[%s5777] sm:$0xff]
    %v5779 = vld [vmem:[%s5777 + $0x8] sm:$0xff]
    %v5780 = vld [vmem:[%s5777 + $0x10] sm:$0xff]
    %v5781 = vld [vmem:[%s5777 + $0x18] sm:$0xff]
    %v5782 = vld [vmem:[%s5777 + $0x20] sm:$0xff]
    %v5783 = vld [vmem:[%s5777 + $0x28] sm:$0xff]
    %v5784 = vld [vmem:[%s5777 + $0x30] sm:$0xff]
    %v5785 = vld [vmem:[%s5777 + $0x38] sm:$0xff]
    %v5786 = vld [vmem:[%s5777 + $0x40] sm:$0xff]
    %v5787 = vld [vmem:[%s5777 + $0x48] sm:$0xff]
    %v5788 = vld [vmem:[%s5777 + $0x50] sm:$0xff]
    %v5789 = vld [vmem:[%s5777 + $0x58] sm:$0xff]
    %v5790 = vld [vmem:[%s5777 + $0x60] sm:$0xff]
    %v5791 = vld [vmem:[%s5777 + $0x68] sm:$0xff]
    %v5792 = vld [vmem:[%s5777 + $0x70] sm:$0xff]
    %v5793 = vld [vmem:[%s5777 + $0x78] sm:$0xff]
    %s5794 = scalar_lea.vmem [#allocation2], 384
    %v5795 = vld [vmem:[%s5794] sm:$0xff]
    %v5796 = vld [vmem:[%s5794 + $0x8] sm:$0xff]
    %v5797 = vld [vmem:[%s5794 + $0x10] sm:$0xff]
    %v5798 = vld [vmem:[%s5794 + $0x18] sm:$0xff]
    %v5799 = vld [vmem:[%s5794 + $0x20] sm:$0xff]
    %v5800 = vld [vmem:[%s5794 + $0x28] sm:$0xff]
    %v5801 = vld [vmem:[%s5794 + $0x30] sm:$0xff]
    %v5802 = vld [vmem:[%s5794 + $0x38] sm:$0xff]
    %v5803 = vld [vmem:[%s5794 + $0x40] sm:$0xff]
    %v5804 = vld [vmem:[%s5794 + $0x48] sm:$0xff]
    %v5805 = vld [vmem:[%s5794 + $0x50] sm:$0xff]
    %v5806 = vld [vmem:[%s5794 + $0x58] sm:$0xff]
    %v5807 = vld [vmem:[%s5794 + $0x60] sm:$0xff]
    %v5808 = vld [vmem:[%s5794 + $0x68] sm:$0xff]
    %v5809 = vld [vmem:[%s5794 + $0x70] sm:$0xff]
    %v5810 = vld [vmem:[%s5794 + $0x78] sm:$0xff]
    %v5812 = vunpack.c.l.b16 %v5776
    %v5813 = vpack.c.b16 %v5812, %v5812
    %v5815 = vshrl.u32 %v5813, 16
    %v5817 = vrot.slane %v5815, 1
    %v5834 = vunpack.c.l.b16 %v5795
    %v5835 = vunpack.c.h.b16 %v5795
    %v5836 = vunpack.c.l.b16 %v5796
    %v5837 = vunpack.c.h.b16 %v5796
    %v5838 = vunpack.c.l.b16 %v5797
    %v5839 = vunpack.c.h.b16 %v5797
    %v5840 = vunpack.c.l.b16 %v5798
    %v5841 = vunpack.c.h.b16 %v5798
    %v5842 = vunpack.c.l.b16 %v5799
    %v5843 = vunpack.c.h.b16 %v5799
    %v5844 = vunpack.c.l.b16 %v5800
    %v5845 = vunpack.c.h.b16 %v5800
    %v5846 = vunpack.c.l.b16 %v5801
    %v5847 = vunpack.c.h.b16 %v5801
    %v5848 = vunpack.c.l.b16 %v5802
    %v5849 = vunpack.c.h.b16 %v5802
    %v5850 = vunpack.c.l.b16 %v5803
    %v5851 = vunpack.c.h.b16 %v5803
    %v5852 = vunpack.c.l.b16 %v5804
    %v5853 = vunpack.c.h.b16 %v5804
    %v5854 = vunpack.c.l.b16 %v5805
    %v5855 = vunpack.c.h.b16 %v5805
    %v5856 = vunpack.c.l.b16 %v5806
    %v5857 = vunpack.c.h.b16 %v5806
    %v5858 = vunpack.c.l.b16 %v5807
    %v5859 = vunpack.c.h.b16 %v5807
    %v5860 = vunpack.c.l.b16 %v5808
    %v5861 = vunpack.c.h.b16 %v5808
    %v5862 = vunpack.c.l.b16 %v5809
    %v5863 = vunpack.c.h.b16 %v5809
    %v5864 = vunpack.c.l.b16 %v5810
    %v5865 = vunpack.c.h.b16 %v5810
    %v5866 = vpack.c.b16 %v5838, %v5834
    %v5867 = vpack.c.b16 %v5839, %v5835
    %v5868 = vpack.c.b16 %v5840, %v5836
    %v5869 = vpack.c.b16 %v5841, %v5837
    %v5870 = vpack.c.b16 %v5846, %v5842
    %v5871 = vpack.c.b16 %v5847, %v5843
    %v5872 = vpack.c.b16 %v5848, %v5844
    %v5873 = vpack.c.b16 %v5849, %v5845
    %v5874 = vpack.c.b16 %v5854, %v5850
    %v5875 = vpack.c.b16 %v5855, %v5851
    %v5876 = vpack.c.b16 %v5856, %v5852
    %v5877 = vpack.c.b16 %v5857, %v5853
    %v5878 = vpack.c.b16 %v5862, %v5858
    %v5879 = vpack.c.b16 %v5863, %v5859
    %v5880 = vpack.c.b16 %v5864, %v5860
    %v5881 = vpack.c.b16 %v5865, %v5861
    %v5899 = vsel %vm697, %v5817, 0
    %5901 = vmatpush.bf16.msra.mxu0 0
    %5902 = vmatpush.bf16.msra.mxu0 0
    %5903 = vmatpush.bf16.msra.mxu0 0
    %5904 = vmatpush.bf16.msra.mxu0 0
    %5905 = vmatpush.bf16.msra.mxu0 %v5878
    %5906 = vmatpush.bf16.msra.mxu0 %v5874
    %5907 = vmatpush.bf16.msra.mxu0 %v5870
    %5908 = vmatpush.bf16.msra.mxu0 %v5866
    %5909 = vmatmul.bf16.gmra.mxu0 %v5899
    %v5910 = vpop.f32.mrf.mxu0
    %v5911 = vadd.f32 0.0, %v5910
    %v5912 = vpop.f32.mrf.mxu0
    %5913 = vdwg.mxu0
    %5914 = vmatpush.bf16.msra.mxu0 0
    %5915 = vmatpush.bf16.msra.mxu0 0
    %5916 = vmatpush.bf16.msra.mxu0 0
    %5917 = vmatpush.bf16.msra.mxu0 0
    %5918 = vmatpush.bf16.msra.mxu0 %v5879
    %5919 = vmatpush.bf16.msra.mxu0 %v5875
    %5920 = vmatpush.bf16.msra.mxu0 %v5871
    %5921 = vmatpush.bf16.msra.mxu0 %v5867
    %5922 = vmatmul.bf16.gmra.mxu0 %v5899
    %v5923 = vpop.f32.mrf.mxu0
    %v5924 = vadd.f32 0.0, %v5923
    %v5925 = vpop.f32.mrf.mxu0
    %5926 = vdwg.mxu0
    %5927 = vmatpush.bf16.msra.mxu0 0
    %5928 = vmatpush.bf16.msra.mxu0 0
    %5929 = vmatpush.bf16.msra.mxu0 0
    %5930 = vmatpush.bf16.msra.mxu0 0
    %5931 = vmatpush.bf16.msra.mxu0 %v5880
    %5932 = vmatpush.bf16.msra.mxu0 %v5876
    %5933 = vmatpush.bf16.msra.mxu0 %v5872
    %5934 = vmatpush.bf16.msra.mxu0 %v5868
    %5935 = vmatmul.bf16.gmra.mxu0 %v5899
    %v5936 = vpop.f32.mrf.mxu0
    %v5937 = vadd.f32 0.0, %v5936
    %v5938 = vpop.f32.mrf.mxu0
    %5939 = vdwg.mxu0
    %5940 = vmatpush.bf16.msra.mxu0 0
    %5941 = vmatpush.bf16.msra.mxu0 0
    %5942 = vmatpush.bf16.msra.mxu0 0
    %5943 = vmatpush.bf16.msra.mxu0 0
    %5944 = vmatpush.bf16.msra.mxu0 %v5881
    %5945 = vmatpush.bf16.msra.mxu0 %v5877
    %5946 = vmatpush.bf16.msra.mxu0 %v5873
    %5947 = vmatpush.bf16.msra.mxu0 %v5869
    %5948 = vmatmul.bf16.gmra.mxu0 %v5899
    %v5949 = vpop.f32.mrf.mxu0
    %v5950 = vadd.f32 0.0, %v5949
    %v5951 = vpop.f32.mrf.mxu0
    %5952 = vdwg.mxu0
    %v5953 = vld [vmem:[#allocation4] sm:$0x4]
    %s5954 = scalar_lea.vmem [#allocation2], 512
    %v5955 = vld [vmem:[%s5954] sm:$0xff]
    %v5956 = vld [vmem:[%s5954 + $0x8] sm:$0xff]
    %v5957 = vld [vmem:[%s5954 + $0x10] sm:$0xff]
    %v5958 = vld [vmem:[%s5954 + $0x18] sm:$0xff]
    %v5959 = vld [vmem:[%s5954 + $0x20] sm:$0xff]
    %v5960 = vld [vmem:[%s5954 + $0x28] sm:$0xff]
    %v5961 = vld [vmem:[%s5954 + $0x30] sm:$0xff]
    %v5962 = vld [vmem:[%s5954 + $0x38] sm:$0xff]
    %v5963 = vld [vmem:[%s5954 + $0x40] sm:$0xff]
    %v5964 = vld [vmem:[%s5954 + $0x48] sm:$0xff]
    %v5965 = vld [vmem:[%s5954 + $0x50] sm:$0xff]
    %v5966 = vld [vmem:[%s5954 + $0x58] sm:$0xff]
    %v5967 = vld [vmem:[%s5954 + $0x60] sm:$0xff]
    %v5968 = vld [vmem:[%s5954 + $0x68] sm:$0xff]
    %v5969 = vld [vmem:[%s5954 + $0x70] sm:$0xff]
    %v5970 = vld [vmem:[%s5954 + $0x78] sm:$0xff]
    %s5971 = scalar_lea.vmem [#allocation2], 640
    %v5972 = vld [vmem:[%s5971] sm:$0xff]
    %v5973 = vld [vmem:[%s5971 + $0x8] sm:$0xff]
    %v5974 = vld [vmem:[%s5971 + $0x10] sm:$0xff]
    %v5975 = vld [vmem:[%s5971 + $0x18] sm:$0xff]
    %v5976 = vld [vmem:[%s5971 + $0x20] sm:$0xff]
    %v5977 = vld [vmem:[%s5971 + $0x28] sm:$0xff]
    %v5978 = vld [vmem:[%s5971 + $0x30] sm:$0xff]
    %v5979 = vld [vmem:[%s5971 + $0x38] sm:$0xff]
    %v5980 = vld [vmem:[%s5971 + $0x40] sm:$0xff]
    %v5981 = vld [vmem:[%s5971 + $0x48] sm:$0xff]
    %v5982 = vld [vmem:[%s5971 + $0x50] sm:$0xff]
    %v5983 = vld [vmem:[%s5971 + $0x58] sm:$0xff]
    %v5984 = vld [vmem:[%s5971 + $0x60] sm:$0xff]
    %v5985 = vld [vmem:[%s5971 + $0x68] sm:$0xff]
    %v5986 = vld [vmem:[%s5971 + $0x70] sm:$0xff]
    %v5987 = vld [vmem:[%s5971 + $0x78] sm:$0xff]
    %v5989 = vunpack.c.l.b16 %v5953
    %v5990 = vpack.c.b16 %v5989, %v5989
    %v5992 = vshrl.u32 %v5990, 16
    %v5994 = vrot.slane %v5992, 2
    %v6011 = vunpack.c.l.b16 %v5972
    %v6012 = vunpack.c.h.b16 %v5972
    %v6013 = vunpack.c.l.b16 %v5973
    %v6014 = vunpack.c.h.b16 %v5973
    %v6015 = vunpack.c.l.b16 %v5974
    %v6016 = vunpack.c.h.b16 %v5974
    %v6017 = vunpack.c.l.b16 %v5975
    %v6018 = vunpack.c.h.b16 %v5975
    %v6019 = vunpack.c.l.b16 %v5976
    %v6020 = vunpack.c.h.b16 %v5976
    %v6021 = vunpack.c.l.b16 %v5977
    %v6022 = vunpack.c.h.b16 %v5977
    %v6023 = vunpack.c.l.b16 %v5978
    %v6024 = vunpack.c.h.b16 %v5978
    %v6025 = vunpack.c.l.b16 %v5979
    %v6026 = vunpack.c.h.b16 %v5979
    %v6027 = vunpack.c.l.b16 %v5980
    %v6028 = vunpack.c.h.b16 %v5980
    %v6029 = vunpack.c.l.b16 %v5981
    %v6030 = vunpack.c.h.b16 %v5981
    %v6031 = vunpack.c.l.b16 %v5982
    %v6032 = vunpack.c.h.b16 %v5982
    %v6033 = vunpack.c.l.b16 %v5983
    %v6034 = vunpack.c.h.b16 %v5983
    %v6035 = vunpack.c.l.b16 %v5984
    %v6036 = vunpack.c.h.b16 %v5984
    %v6037 = vunpack.c.l.b16 %v5985
    %v6038 = vunpack.c.h.b16 %v5985
    %v6039 = vunpack.c.l.b16 %v5986
    %v6040 = vunpack.c.h.b16 %v5986
    %v6041 = vunpack.c.l.b16 %v5987
    %v6042 = vunpack.c.h.b16 %v5987
    %v6043 = vpack.c.b16 %v6015, %v6011
    %v6044 = vpack.c.b16 %v6016, %v6012
    %v6045 = vpack.c.b16 %v6017, %v6013
    %v6046 = vpack.c.b16 %v6018, %v6014
    %v6047 = vpack.c.b16 %v6023, %v6019
    %v6048 = vpack.c.b16 %v6024, %v6020
    %v6049 = vpack.c.b16 %v6025, %v6021
    %v6050 = vpack.c.b16 %v6026, %v6022
    %v6051 = vpack.c.b16 %v6031, %v6027
    %v6052 = vpack.c.b16 %v6032, %v6028
    %v6053 = vpack.c.b16 %v6033, %v6029
    %v6054 = vpack.c.b16 %v6034, %v6030
    %v6055 = vpack.c.b16 %v6039, %v6035
    %v6056 = vpack.c.b16 %v6040, %v6036
    %v6057 = vpack.c.b16 %v6041, %v6037
    %v6058 = vpack.c.b16 %v6042, %v6038
    %v6076 = vsel %vm697, %v5994, 0
    %6078 = vmatpush.bf16.msra.mxu0 0
    %6079 = vmatpush.bf16.msra.mxu0 0
    %6080 = vmatpush.bf16.msra.mxu0 0
    %6081 = vmatpush.bf16.msra.mxu0 0
    %6082 = vmatpush.bf16.msra.mxu0 %v6055
    %6083 = vmatpush.bf16.msra.mxu0 %v6051
    %6084 = vmatpush.bf16.msra.mxu0 %v6047
    %6085 = vmatpush.bf16.msra.mxu0 %v6043
    %6086 = vmatmul.bf16.gmra.mxu0 %v6076
    %v6087 = vpop.f32.mrf.mxu0
    %v6088 = vadd.f32 0.0, %v6087
    %v6089 = vpop.f32.mrf.mxu0
    %6090 = vdwg.mxu0
    %6091 = vmatpush.bf16.msra.mxu0 0
    %6092 = vmatpush.bf16.msra.mxu0 0
    %6093 = vmatpush.bf16.msra.mxu0 0
    %6094 = vmatpush.bf16.msra.mxu0 0
    %6095 = vmatpush.bf16.msra.mxu0 %v6056
    %6096 = vmatpush.bf16.msra.mxu0 %v6052
    %6097 = vmatpush.bf16.msra.mxu0 %v6048
    %6098 = vmatpush.bf16.msra.mxu0 %v6044
    %6099 = vmatmul.bf16.gmra.mxu0 %v6076
    %v6100 = vpop.f32.mrf.mxu0
    %v6101 = vadd.f32 0.0, %v6100
    %v6102 = vpop.f32.mrf.mxu0
    %6103 = vdwg.mxu0
    %6104 = vmatpush.bf16.msra.mxu0 0
    %6105 = vmatpush.bf16.msra.mxu0 0
    %6106 = vmatpush.bf16.msra.mxu0 0
    %6107 = vmatpush.bf16.msra.mxu0 0
    %6108 = vmatpush.bf16.msra.mxu0 %v6057
    %6109 = vmatpush.bf16.msra.mxu0 %v6053
    %6110 = vmatpush.bf16.msra.mxu0 %v6049
    %6111 = vmatpush.bf16.msra.mxu0 %v6045
    %6112 = vmatmul.bf16.gmra.mxu0 %v6076
    %v6113 = vpop.f32.mrf.mxu0
    %v6114 = vadd.f32 0.0, %v6113
    %v6115 = vpop.f32.mrf.mxu0
    %6116 = vdwg.mxu0
    %6117 = vmatpush.bf16.msra.mxu0 0
    %6118 = vmatpush.bf16.msra.mxu0 0
    %6119 = vmatpush.bf16.msra.mxu0 0
    %6120 = vmatpush.bf16.msra.mxu0 0
    %6121 = vmatpush.bf16.msra.mxu0 %v6058
    %6122 = vmatpush.bf16.msra.mxu0 %v6054
    %6123 = vmatpush.bf16.msra.mxu0 %v6050
    %6124 = vmatpush.bf16.msra.mxu0 %v6046
    %6125 = vmatmul.bf16.gmra.mxu0 %v6076
    %v6126 = vpop.f32.mrf.mxu0
    %v6127 = vadd.f32 0.0, %v6126
    %v6128 = vpop.f32.mrf.mxu0
    %6129 = vdwg.mxu0
    %v6130 = vld [vmem:[#allocation4] sm:$0x8]
    %s6131 = scalar_lea.vmem [#allocation2], 768
    %v6132 = vld [vmem:[%s6131] sm:$0xff]
    %v6133 = vld [vmem:[%s6131 + $0x8] sm:$0xff]
    %v6134 = vld [vmem:[%s6131 + $0x10] sm:$0xff]
    %v6135 = vld [vmem:[%s6131 + $0x18] sm:$0xff]
    %v6136 = vld [vmem:[%s6131 + $0x20] sm:$0xff]
    %v6137 = vld [vmem:[%s6131 + $0x28] sm:$0xff]
    %v6138 = vld [vmem:[%s6131 + $0x30] sm:$0xff]
    %v6139 = vld [vmem:[%s6131 + $0x38] sm:$0xff]
    %v6140 = vld [vmem:[%s6131 + $0x40] sm:$0xff]
    %v6141 = vld [vmem:[%s6131 + $0x48] sm:$0xff]
    %v6142 = vld [vmem:[%s6131 + $0x50] sm:$0xff]
    %v6143 = vld [vmem:[%s6131 + $0x58] sm:$0xff]
    %v6144 = vld [vmem:[%s6131 + $0x60] sm:$0xff]
    %v6145 = vld [vmem:[%s6131 + $0x68] sm:$0xff]
    %v6146 = vld [vmem:[%s6131 + $0x70] sm:$0xff]
    %v6147 = vld [vmem:[%s6131 + $0x78] sm:$0xff]
    %s6148 = scalar_lea.vmem [#allocation2], 896
    %v6149 = vld [vmem:[%s6148] sm:$0xff]
    %v6150 = vld [vmem:[%s6148 + $0x8] sm:$0xff]
    %v6151 = vld [vmem:[%s6148 + $0x10] sm:$0xff]
    %v6152 = vld [vmem:[%s6148 + $0x18] sm:$0xff]
    %v6153 = vld [vmem:[%s6148 + $0x20] sm:$0xff]
    %v6154 = vld [vmem:[%s6148 + $0x28] sm:$0xff]
    %v6155 = vld [vmem:[%s6148 + $0x30] sm:$0xff]
    %v6156 = vld [vmem:[%s6148 + $0x38] sm:$0xff]
    %v6157 = vld [vmem:[%s6148 + $0x40] sm:$0xff]
    %v6158 = vld [vmem:[%s6148 + $0x48] sm:$0xff]
    %v6159 = vld [vmem:[%s6148 + $0x50] sm:$0xff]
    %v6160 = vld [vmem:[%s6148 + $0x58] sm:$0xff]
    %v6161 = vld [vmem:[%s6148 + $0x60] sm:$0xff]
    %v6162 = vld [vmem:[%s6148 + $0x68] sm:$0xff]
    %v6163 = vld [vmem:[%s6148 + $0x70] sm:$0xff]
    %v6164 = vld [vmem:[%s6148 + $0x78] sm:$0xff]
    %v6166 = vunpack.c.l.b16 %v6130
    %v6167 = vpack.c.b16 %v6166, %v6166
    %v6169 = vshrl.u32 %v6167, 16
    %v6171 = vrot.slane %v6169, 3
    %v6188 = vunpack.c.l.b16 %v6149
    %v6189 = vunpack.c.h.b16 %v6149
    %v6190 = vunpack.c.l.b16 %v6150
    %v6191 = vunpack.c.h.b16 %v6150
    %v6192 = vunpack.c.l.b16 %v6151
    %v6193 = vunpack.c.h.b16 %v6151
    %v6194 = vunpack.c.l.b16 %v6152
    %v6195 = vunpack.c.h.b16 %v6152
    %v6196 = vunpack.c.l.b16 %v6153
    %v6197 = vunpack.c.h.b16 %v6153
    %v6198 = vunpack.c.l.b16 %v6154
    %v6199 = vunpack.c.h.b16 %v6154
    %v6200 = vunpack.c.l.b16 %v6155
    %v6201 = vunpack.c.h.b16 %v6155
    %v6202 = vunpack.c.l.b16 %v6156
    %v6203 = vunpack.c.h.b16 %v6156
    %v6204 = vunpack.c.l.b16 %v6157
    %v6205 = vunpack.c.h.b16 %v6157
    %v6206 = vunpack.c.l.b16 %v6158
    %v6207 = vunpack.c.h.b16 %v6158
    %v6208 = vunpack.c.l.b16 %v6159
    %v6209 = vunpack.c.h.b16 %v6159
    %v6210 = vunpack.c.l.b16 %v6160
    %v6211 = vunpack.c.h.b16 %v6160
    %v6212 = vunpack.c.l.b16 %v6161
    %v6213 = vunpack.c.h.b16 %v6161
    %v6214 = vunpack.c.l.b16 %v6162
    %v6215 = vunpack.c.h.b16 %v6162
    %v6216 = vunpack.c.l.b16 %v6163
    %v6217 = vunpack.c.h.b16 %v6163
    %v6218 = vunpack.c.l.b16 %v6164
    %v6219 = vunpack.c.h.b16 %v6164
    %v6220 = vpack.c.b16 %v6192, %v6188
    %v6221 = vpack.c.b16 %v6193, %v6189
    %v6222 = vpack.c.b16 %v6194, %v6190
    %v6223 = vpack.c.b16 %v6195, %v6191
    %v6224 = vpack.c.b16 %v6200, %v6196
    %v6225 = vpack.c.b16 %v6201, %v6197
    %v6226 = vpack.c.b16 %v6202, %v6198
    %v6227 = vpack.c.b16 %v6203, %v6199
    %v6228 = vpack.c.b16 %v6208, %v6204
    %v6229 = vpack.c.b16 %v6209, %v6205
    %v6230 = vpack.c.b16 %v6210, %v6206
    %v6231 = vpack.c.b16 %v6211, %v6207
    %v6232 = vpack.c.b16 %v6216, %v6212
    %v6233 = vpack.c.b16 %v6217, %v6213
    %v6234 = vpack.c.b16 %v6218, %v6214
    %v6235 = vpack.c.b16 %v6219, %v6215
    %v6253 = vsel %vm697, %v6171, 0
    %6255 = vmatpush.bf16.msra.mxu0 0
    %6256 = vmatpush.bf16.msra.mxu0 0
    %6257 = vmatpush.bf16.msra.mxu0 0
    %6258 = vmatpush.bf16.msra.mxu0 0
    %6259 = vmatpush.bf16.msra.mxu0 %v6232
    %6260 = vmatpush.bf16.msra.mxu0 %v6228
    %6261 = vmatpush.bf16.msra.mxu0 %v6224
    %6262 = vmatpush.bf16.msra.mxu0 %v6220
    %6263 = vmatmul.bf16.gmra.mxu0 %v6253
    %v6264 = vpop.f32.mrf.mxu0
    %v6265 = vadd.f32 0.0, %v6264
    %v6266 = vpop.f32.mrf.mxu0
    %6267 = vdwg.mxu0
    %6268 = vmatpush.bf16.msra.mxu0 0
    %6269 = vmatpush.bf16.msra.mxu0 0
    %6270 = vmatpush.bf16.msra.mxu0 0
    %6271 = vmatpush.bf16.msra.mxu0 0
    %6272 = vmatpush.bf16.msra.mxu0 %v6233
    %6273 = vmatpush.bf16.msra.mxu0 %v6229
    %6274 = vmatpush.bf16.msra.mxu0 %v6225
    %6275 = vmatpush.bf16.msra.mxu0 %v6221
    %6276 = vmatmul.bf16.gmra.mxu0 %v6253
    %v6277 = vpop.f32.mrf.mxu0
    %v6278 = vadd.f32 0.0, %v6277
    %v6279 = vpop.f32.mrf.mxu0
    %6280 = vdwg.mxu0
    %6281 = vmatpush.bf16.msra.mxu0 0
    %6282 = vmatpush.bf16.msra.mxu0 0
    %6283 = vmatpush.bf16.msra.mxu0 0
    %6284 = vmatpush.bf16.msra.mxu0 0
    %6285 = vmatpush.bf16.msra.mxu0 %v6234
    %6286 = vmatpush.bf16.msra.mxu0 %v6230
    %6287 = vmatpush.bf16.msra.mxu0 %v6226
    %6288 = vmatpush.bf16.msra.mxu0 %v6222
    %6289 = vmatmul.bf16.gmra.mxu0 %v6253
    %v6290 = vpop.f32.mrf.mxu0
    %v6291 = vadd.f32 0.0, %v6290
    %v6292 = vpop.f32.mrf.mxu0
    %6293 = vdwg.mxu0
    %6294 = vmatpush.bf16.msra.mxu0 0
    %6295 = vmatpush.bf16.msra.mxu0 0
    %6296 = vmatpush.bf16.msra.mxu0 0
    %6297 = vmatpush.bf16.msra.mxu0 0
    %6298 = vmatpush.bf16.msra.mxu0 %v6235
    %6299 = vmatpush.bf16.msra.mxu0 %v6231
    %6300 = vmatpush.bf16.msra.mxu0 %v6227
    %6301 = vmatpush.bf16.msra.mxu0 %v6223
    %6302 = vmatmul.bf16.gmra.mxu0 %v6253
    %v6303 = vpop.f32.mrf.mxu0
    %v6304 = vadd.f32 0.0, %v6303
    %v6305 = vpop.f32.mrf.mxu0
    %6306 = vdwg.mxu0
    %v6307 = vld [vmem:[#allocation4 + $0x4] sm:$0x1]
    %s6308 = scalar_lea.vmem [#allocation2], 1024
    %v6309 = vld [vmem:[%s6308] sm:$0xff]
    %v6310 = vld [vmem:[%s6308 + $0x8] sm:$0xff]
    %v6311 = vld [vmem:[%s6308 + $0x10] sm:$0xff]
    %v6312 = vld [vmem:[%s6308 + $0x18] sm:$0xff]
    %v6313 = vld [vmem:[%s6308 + $0x20] sm:$0xff]
    %v6314 = vld [vmem:[%s6308 + $0x28] sm:$0xff]
    %v6315 = vld [vmem:[%s6308 + $0x30] sm:$0xff]
    %v6316 = vld [vmem:[%s6308 + $0x38] sm:$0xff]
    %v6317 = vld [vmem:[%s6308 + $0x40] sm:$0xff]
    %v6318 = vld [vmem:[%s6308 + $0x48] sm:$0xff]
    %v6319 = vld [vmem:[%s6308 + $0x50] sm:$0xff]
    %v6320 = vld [vmem:[%s6308 + $0x58] sm:$0xff]
    %v6321 = vld [vmem:[%s6308 + $0x60] sm:$0xff]
    %v6322 = vld [vmem:[%s6308 + $0x68] sm:$0xff]
    %v6323 = vld [vmem:[%s6308 + $0x70] sm:$0xff]
    %v6324 = vld [vmem:[%s6308 + $0x78] sm:$0xff]
    %s6325 = scalar_lea.vmem [#allocation2], 1152
    %v6326 = vld [vmem:[%s6325] sm:$0xff]
    %v6327 = vld [vmem:[%s6325 + $0x8] sm:$0xff]
    %v6328 = vld [vmem:[%s6325 + $0x10] sm:$0xff]
    %v6329 = vld [vmem:[%s6325 + $0x18] sm:$0xff]
    %v6330 = vld [vmem:[%s6325 + $0x20] sm:$0xff]
    %v6331 = vld [vmem:[%s6325 + $0x28] sm:$0xff]
    %v6332 = vld [vmem:[%s6325 + $0x30] sm:$0xff]
    %v6333 = vld [vmem:[%s6325 + $0x38] sm:$0xff]
    %v6334 = vld [vmem:[%s6325 + $0x40] sm:$0xff]
    %v6335 = vld [vmem:[%s6325 + $0x48] sm:$0xff]
    %v6336 = vld [vmem:[%s6325 + $0x50] sm:$0xff]
    %v6337 = vld [vmem:[%s6325 + $0x58] sm:$0xff]
    %v6338 = vld [vmem:[%s6325 + $0x60] sm:$0xff]
    %v6339 = vld [vmem:[%s6325 + $0x68] sm:$0xff]
    %v6340 = vld [vmem:[%s6325 + $0x70] sm:$0xff]
    %v6341 = vld [vmem:[%s6325 + $0x78] sm:$0xff]
    %v6343 = vunpack.c.l.b16 %v6307
    %v6344 = vpack.c.b16 %v6343, %v6343
    %v6346 = vshrl.u32 %v6344, 16
    %v6364 = vunpack.c.l.b16 %v6326
    %v6365 = vunpack.c.h.b16 %v6326
    %v6366 = vunpack.c.l.b16 %v6327
    %v6367 = vunpack.c.h.b16 %v6327
    %v6368 = vunpack.c.l.b16 %v6328
    %v6369 = vunpack.c.h.b16 %v6328
    %v6370 = vunpack.c.l.b16 %v6329
    %v6371 = vunpack.c.h.b16 %v6329
    %v6372 = vunpack.c.l.b16 %v6330
    %v6373 = vunpack.c.h.b16 %v6330
    %v6374 = vunpack.c.l.b16 %v6331
    %v6375 = vunpack.c.h.b16 %v6331
    %v6376 = vunpack.c.l.b16 %v6332
    %v6377 = vunpack.c.h.b16 %v6332
    %v6378 = vunpack.c.l.b16 %v6333
    %v6379 = vunpack.c.h.b16 %v6333
    %v6380 = vunpack.c.l.b16 %v6334
    %v6381 = vunpack.c.h.b16 %v6334
    %v6382 = vunpack.c.l.b16 %v6335
    %v6383 = vunpack.c.h.b16 %v6335
    %v6384 = vunpack.c.l.b16 %v6336
    %v6385 = vunpack.c.h.b16 %v6336
    %v6386 = vunpack.c.l.b16 %v6337
    %v6387 = vunpack.c.h.b16 %v6337
    %v6388 = vunpack.c.l.b16 %v6338
    %v6389 = vunpack.c.h.b16 %v6338
    %v6390 = vunpack.c.l.b16 %v6339
    %v6391 = vunpack.c.h.b16 %v6339
    %v6392 = vunpack.c.l.b16 %v6340
    %v6393 = vunpack.c.h.b16 %v6340
    %v6394 = vunpack.c.l.b16 %v6341
    %v6395 = vunpack.c.h.b16 %v6341
    %v6396 = vpack.c.b16 %v6368, %v6364
    %v6397 = vpack.c.b16 %v6369, %v6365
    %v6398 = vpack.c.b16 %v6370, %v6366
    %v6399 = vpack.c.b16 %v6371, %v6367
    %v6400 = vpack.c.b16 %v6376, %v6372
    %v6401 = vpack.c.b16 %v6377, %v6373
    %v6402 = vpack.c.b16 %v6378, %v6374
    %v6403 = vpack.c.b16 %v6379, %v6375
    %v6404 = vpack.c.b16 %v6384, %v6380
    %v6405 = vpack.c.b16 %v6385, %v6381
    %v6406 = vpack.c.b16 %v6386, %v6382
    %v6407 = vpack.c.b16 %v6387, %v6383
    %v6408 = vpack.c.b16 %v6392, %v6388
    %v6409 = vpack.c.b16 %v6393, %v6389
    %v6410 = vpack.c.b16 %v6394, %v6390
    %v6411 = vpack.c.b16 %v6395, %v6391
    %v6429 = vsel %vm697, %v6346, 0
    %6431 = vmatpush.bf16.msra.mxu0 0
    %6432 = vmatpush.bf16.msra.mxu0 0
    %6433 = vmatpush.bf16.msra.mxu0 0
    %6434 = vmatpush.bf16.msra.mxu0 0
    %6435 = vmatpush.bf16.msra.mxu0 %v6408
    %6436 = vmatpush.bf16.msra.mxu0 %v6404
    %6437 = vmatpush.bf16.msra.mxu0 %v6400
    %6438 = vmatpush.bf16.msra.mxu0 %v6396
    %6439 = vmatmul.bf16.gmra.mxu0 %v6429
    %v6440 = vpop.f32.mrf.mxu0
    %v6441 = vadd.f32 0.0, %v6440
    %v6442 = vpop.f32.mrf.mxu0
    %6443 = vdwg.mxu0
    %6444 = vmatpush.bf16.msra.mxu0 0
    %6445 = vmatpush.bf16.msra.mxu0 0
    %6446 = vmatpush.bf16.msra.mxu0 0
    %6447 = vmatpush.bf16.msra.mxu0 0
    %6448 = vmatpush.bf16.msra.mxu0 %v6409
    %6449 = vmatpush.bf16.msra.mxu0 %v6405
    %6450 = vmatpush.bf16.msra.mxu0 %v6401
    %6451 = vmatpush.bf16.msra.mxu0 %v6397
    %6452 = vmatmul.bf16.gmra.mxu0 %v6429
    %v6453 = vpop.f32.mrf.mxu0
    %v6454 = vadd.f32 0.0, %v6453
    %v6455 = vpop.f32.mrf.mxu0
    %6456 = vdwg.mxu0
    %6457 = vmatpush.bf16.msra.mxu0 0
    %6458 = vmatpush.bf16.msra.mxu0 0
    %6459 = vmatpush.bf16.msra.mxu0 0
    %6460 = vmatpush.bf16.msra.mxu0 0
    %6461 = vmatpush.bf16.msra.mxu0 %v6410
    %6462 = vmatpush.bf16.msra.mxu0 %v6406
    %6463 = vmatpush.bf16.msra.mxu0 %v6402
    %6464 = vmatpush.bf16.msra.mxu0 %v6398
    %6465 = vmatmul.bf16.gmra.mxu0 %v6429
    %v6466 = vpop.f32.mrf.mxu0
    %v6467 = vadd.f32 0.0, %v6466
    %v6468 = vpop.f32.mrf.mxu0
    %6469 = vdwg.mxu0
    %6470 = vmatpush.bf16.msra.mxu0 0
    %6471 = vmatpush.bf16.msra.mxu0 0
    %6472 = vmatpush.bf16.msra.mxu0 0
    %6473 = vmatpush.bf16.msra.mxu0 0
    %6474 = vmatpush.bf16.msra.mxu0 %v6411
    %6475 = vmatpush.bf16.msra.mxu0 %v6407
    %6476 = vmatpush.bf16.msra.mxu0 %v6403
    %6477 = vmatpush.bf16.msra.mxu0 %v6399
    %6478 = vmatmul.bf16.gmra.mxu0 %v6429
    %v6479 = vpop.f32.mrf.mxu0
    %v6480 = vadd.f32 0.0, %v6479
    %v6481 = vpop.f32.mrf.mxu0
    %6482 = vdwg.mxu0
    %v6483 = vld [vmem:[#allocation4 + $0x4] sm:$0x2]
    %s6484 = scalar_lea.vmem [#allocation2], 1280
    %v6485 = vld [vmem:[%s6484] sm:$0xff]
    %v6486 = vld [vmem:[%s6484 + $0x8] sm:$0xff]
    %v6487 = vld [vmem:[%s6484 + $0x10] sm:$0xff]
    %v6488 = vld [vmem:[%s6484 + $0x18] sm:$0xff]
    %v6489 = vld [vmem:[%s6484 + $0x20] sm:$0xff]
    %v6490 = vld [vmem:[%s6484 + $0x28] sm:$0xff]
    %v6491 = vld [vmem:[%s6484 + $0x30] sm:$0xff]
    %v6492 = vld [vmem:[%s6484 + $0x38] sm:$0xff]
    %v6493 = vld [vmem:[%s6484 + $0x40] sm:$0xff]
    %v6494 = vld [vmem:[%s6484 + $0x48] sm:$0xff]
    %v6495 = vld [vmem:[%s6484 + $0x50] sm:$0xff]
    %v6496 = vld [vmem:[%s6484 + $0x58] sm:$0xff]
    %v6497 = vld [vmem:[%s6484 + $0x60] sm:$0xff]
    %v6498 = vld [vmem:[%s6484 + $0x68] sm:$0xff]
    %v6499 = vld [vmem:[%s6484 + $0x70] sm:$0xff]
    %v6500 = vld [vmem:[%s6484 + $0x78] sm:$0xff]
    %s6501 = scalar_lea.vmem [#allocation2], 1408
    %v6502 = vld [vmem:[%s6501] sm:$0xff]
    %v6503 = vld [vmem:[%s6501 + $0x8] sm:$0xff]
    %v6504 = vld [vmem:[%s6501 + $0x10] sm:$0xff]
    %v6505 = vld [vmem:[%s6501 + $0x18] sm:$0xff]
    %v6506 = vld [vmem:[%s6501 + $0x20] sm:$0xff]
    %v6507 = vld [vmem:[%s6501 + $0x28] sm:$0xff]
    %v6508 = vld [vmem:[%s6501 + $0x30] sm:$0xff]
    %v6509 = vld [vmem:[%s6501 + $0x38] sm:$0xff]
    %v6510 = vld [vmem:[%s6501 + $0x40] sm:$0xff]
    %v6511 = vld [vmem:[%s6501 + $0x48] sm:$0xff]
    %v6512 = vld [vmem:[%s6501 + $0x50] sm:$0xff]
    %v6513 = vld [vmem:[%s6501 + $0x58] sm:$0xff]
    %v6514 = vld [vmem:[%s6501 + $0x60] sm:$0xff]
    %v6515 = vld [vmem:[%s6501 + $0x68] sm:$0xff]
    %v6516 = vld [vmem:[%s6501 + $0x70] sm:$0xff]
    %v6517 = vld [vmem:[%s6501 + $0x78] sm:$0xff]
    %v6519 = vunpack.c.l.b16 %v6483
    %v6520 = vpack.c.b16 %v6519, %v6519
    %v6522 = vshrl.u32 %v6520, 16
    %v6524 = vrot.slane %v6522, 1
    %v6541 = vunpack.c.l.b16 %v6502
    %v6542 = vunpack.c.h.b16 %v6502
    %v6543 = vunpack.c.l.b16 %v6503
    %v6544 = vunpack.c.h.b16 %v6503
    %v6545 = vunpack.c.l.b16 %v6504
    %v6546 = vunpack.c.h.b16 %v6504
    %v6547 = vunpack.c.l.b16 %v6505
    %v6548 = vunpack.c.h.b16 %v6505
    %v6549 = vunpack.c.l.b16 %v6506
    %v6550 = vunpack.c.h.b16 %v6506
    %v6551 = vunpack.c.l.b16 %v6507
    %v6552 = vunpack.c.h.b16 %v6507
    %v6553 = vunpack.c.l.b16 %v6508
    %v6554 = vunpack.c.h.b16 %v6508
    %v6555 = vunpack.c.l.b16 %v6509
    %v6556 = vunpack.c.h.b16 %v6509
    %v6557 = vunpack.c.l.b16 %v6510
    %v6558 = vunpack.c.h.b16 %v6510
    %v6559 = vunpack.c.l.b16 %v6511
    %v6560 = vunpack.c.h.b16 %v6511
    %v6561 = vunpack.c.l.b16 %v6512
    %v6562 = vunpack.c.h.b16 %v6512
    %v6563 = vunpack.c.l.b16 %v6513
    %v6564 = vunpack.c.h.b16 %v6513
    %v6565 = vunpack.c.l.b16 %v6514
    %v6566 = vunpack.c.h.b16 %v6514
    %v6567 = vunpack.c.l.b16 %v6515
    %v6568 = vunpack.c.h.b16 %v6515
    %v6569 = vunpack.c.l.b16 %v6516
    %v6570 = vunpack.c.h.b16 %v6516
    %v6571 = vunpack.c.l.b16 %v6517
    %v6572 = vunpack.c.h.b16 %v6517
    %v6573 = vpack.c.b16 %v6545, %v6541
    %v6574 = vpack.c.b16 %v6546, %v6542
    %v6575 = vpack.c.b16 %v6547, %v6543
    %v6576 = vpack.c.b16 %v6548, %v6544
    %v6577 = vpack.c.b16 %v6553, %v6549
    %v6578 = vpack.c.b16 %v6554, %v6550
    %v6579 = vpack.c.b16 %v6555, %v6551
    %v6580 = vpack.c.b16 %v6556, %v6552
    %v6581 = vpack.c.b16 %v6561, %v6557
    %v6582 = vpack.c.b16 %v6562, %v6558
    %v6583 = vpack.c.b16 %v6563, %v6559
    %v6584 = vpack.c.b16 %v6564, %v6560
    %v6585 = vpack.c.b16 %v6569, %v6565
    %v6586 = vpack.c.b16 %v6570, %v6566
    %v6587 = vpack.c.b16 %v6571, %v6567
    %v6588 = vpack.c.b16 %v6572, %v6568
    %v6606 = vsel %vm697, %v6524, 0
    %6608 = vmatpush.bf16.msra.mxu0 0
    %6609 = vmatpush.bf16.msra.mxu0 0
    %6610 = vmatpush.bf16.msra.mxu0 0
    %6611 = vmatpush.bf16.msra.mxu0 0
    %6612 = vmatpush.bf16.msra.mxu0 %v6585
    %6613 = vmatpush.bf16.msra.mxu0 %v6581
    %6614 = vmatpush.bf16.msra.mxu0 %v6577
    %6615 = vmatpush.bf16.msra.mxu0 %v6573
    %6616 = vmatmul.bf16.gmra.mxu0 %v6606
    %v6617 = vpop.f32.mrf.mxu0
    %v6618 = vadd.f32 0.0, %v6617
    %v6619 = vpop.f32.mrf.mxu0
    %6620 = vdwg.mxu0
    %6621 = vmatpush.bf16.msra.mxu0 0
    %6622 = vmatpush.bf16.msra.mxu0 0
    %6623 = vmatpush.bf16.msra.mxu0 0
    %6624 = vmatpush.bf16.msra.mxu0 0
    %6625 = vmatpush.bf16.msra.mxu0 %v6586
    %6626 = vmatpush.bf16.msra.mxu0 %v6582
    %6627 = vmatpush.bf16.msra.mxu0 %v6578
    %6628 = vmatpush.bf16.msra.mxu0 %v6574
    %6629 = vmatmul.bf16.gmra.mxu0 %v6606
    %v6630 = vpop.f32.mrf.mxu0
    %v6631 = vadd.f32 0.0, %v6630
    %v6632 = vpop.f32.mrf.mxu0
    %6633 = vdwg.mxu0
    %6634 = vmatpush.bf16.msra.mxu0 0
    %6635 = vmatpush.bf16.msra.mxu0 0
    %6636 = vmatpush.bf16.msra.mxu0 0
    %6637 = vmatpush.bf16.msra.mxu0 0
    %6638 = vmatpush.bf16.msra.mxu0 %v6587
    %6639 = vmatpush.bf16.msra.mxu0 %v6583
    %6640 = vmatpush.bf16.msra.mxu0 %v6579
    %6641 = vmatpush.bf16.msra.mxu0 %v6575
    %6642 = vmatmul.bf16.gmra.mxu0 %v6606
    %v6643 = vpop.f32.mrf.mxu0
    %v6644 = vadd.f32 0.0, %v6643
    %v6645 = vpop.f32.mrf.mxu0
    %6646 = vdwg.mxu0
    %6647 = vmatpush.bf16.msra.mxu0 0
    %6648 = vmatpush.bf16.msra.mxu0 0
    %6649 = vmatpush.bf16.msra.mxu0 0
    %6650 = vmatpush.bf16.msra.mxu0 0
    %6651 = vmatpush.bf16.msra.mxu0 %v6588
    %6652 = vmatpush.bf16.msra.mxu0 %v6584
    %6653 = vmatpush.bf16.msra.mxu0 %v6580
    %6654 = vmatpush.bf16.msra.mxu0 %v6576
    %6655 = vmatmul.bf16.gmra.mxu0 %v6606
    %v6656 = vpop.f32.mrf.mxu0
    %v6657 = vadd.f32 0.0, %v6656
    %v6658 = vpop.f32.mrf.mxu0
    %6659 = vdwg.mxu0
    %v6660 = vld [vmem:[#allocation4 + $0x4] sm:$0x4]
    %s6661 = scalar_lea.vmem [#allocation2], 1536
    %v6662 = vld [vmem:[%s6661] sm:$0xff]
    %v6663 = vld [vmem:[%s6661 + $0x8] sm:$0xff]
    %v6664 = vld [vmem:[%s6661 + $0x10] sm:$0xff]
    %v6665 = vld [vmem:[%s6661 + $0x18] sm:$0xff]
    %v6666 = vld [vmem:[%s6661 + $0x20] sm:$0xff]
    %v6667 = vld [vmem:[%s6661 + $0x28] sm:$0xff]
    %v6668 = vld [vmem:[%s6661 + $0x30] sm:$0xff]
    %v6669 = vld [vmem:[%s6661 + $0x38] sm:$0xff]
    %v6670 = vld [vmem:[%s6661 + $0x40] sm:$0xff]
    %v6671 = vld [vmem:[%s6661 + $0x48] sm:$0xff]
    %v6672 = vld [vmem:[%s6661 + $0x50] sm:$0xff]
    %v6673 = vld [vmem:[%s6661 + $0x58] sm:$0xff]
    %v6674 = vld [vmem:[%s6661 + $0x60] sm:$0xff]
    %v6675 = vld [vmem:[%s6661 + $0x68] sm:$0xff]
    %v6676 = vld [vmem:[%s6661 + $0x70] sm:$0xff]
    %v6677 = vld [vmem:[%s6661 + $0x78] sm:$0xff]
    %s6678 = scalar_lea.vmem [#allocation2], 1664
    %v6679 = vld [vmem:[%s6678] sm:$0xff]
    %v6680 = vld [vmem:[%s6678 + $0x8] sm:$0xff]
    %v6681 = vld [vmem:[%s6678 + $0x10] sm:$0xff]
    %v6682 = vld [vmem:[%s6678 + $0x18] sm:$0xff]
    %v6683 = vld [vmem:[%s6678 + $0x20] sm:$0xff]
    %v6684 = vld [vmem:[%s6678 + $0x28] sm:$0xff]
    %v6685 = vld [vmem:[%s6678 + $0x30] sm:$0xff]
    %v6686 = vld [vmem:[%s6678 + $0x38] sm:$0xff]
    %v6687 = vld [vmem:[%s6678 + $0x40] sm:$0xff]
    %v6688 = vld [vmem:[%s6678 + $0x48] sm:$0xff]
    %v6689 = vld [vmem:[%s6678 + $0x50] sm:$0xff]
    %v6690 = vld [vmem:[%s6678 + $0x58] sm:$0xff]
    %v6691 = vld [vmem:[%s6678 + $0x60] sm:$0xff]
    %v6692 = vld [vmem:[%s6678 + $0x68] sm:$0xff]
    %v6693 = vld [vmem:[%s6678 + $0x70] sm:$0xff]
    %v6694 = vld [vmem:[%s6678 + $0x78] sm:$0xff]
    %v6696 = vunpack.c.l.b16 %v6660
    %v6697 = vpack.c.b16 %v6696, %v6696
    %v6699 = vshrl.u32 %v6697, 16
    %v6701 = vrot.slane %v6699, 2
    %v6718 = vunpack.c.l.b16 %v6679
    %v6719 = vunpack.c.h.b16 %v6679
    %v6720 = vunpack.c.l.b16 %v6680
    %v6721 = vunpack.c.h.b16 %v6680
    %v6722 = vunpack.c.l.b16 %v6681
    %v6723 = vunpack.c.h.b16 %v6681
    %v6724 = vunpack.c.l.b16 %v6682
    %v6725 = vunpack.c.h.b16 %v6682
    %v6726 = vunpack.c.l.b16 %v6683
    %v6727 = vunpack.c.h.b16 %v6683
    %v6728 = vunpack.c.l.b16 %v6684
    %v6729 = vunpack.c.h.b16 %v6684
    %v6730 = vunpack.c.l.b16 %v6685
    %v6731 = vunpack.c.h.b16 %v6685
    %v6732 = vunpack.c.l.b16 %v6686
    %v6733 = vunpack.c.h.b16 %v6686
    %v6734 = vunpack.c.l.b16 %v6687
    %v6735 = vunpack.c.h.b16 %v6687
    %v6736 = vunpack.c.l.b16 %v6688
    %v6737 = vunpack.c.h.b16 %v6688
    %v6738 = vunpack.c.l.b16 %v6689
    %v6739 = vunpack.c.h.b16 %v6689
    %v6740 = vunpack.c.l.b16 %v6690
    %v6741 = vunpack.c.h.b16 %v6690
    %v6742 = vunpack.c.l.b16 %v6691
    %v6743 = vunpack.c.h.b16 %v6691
    %v6744 = vunpack.c.l.b16 %v6692
    %v6745 = vunpack.c.h.b16 %v6692
    %v6746 = vunpack.c.l.b16 %v6693
    %v6747 = vunpack.c.h.b16 %v6693
    %v6748 = vunpack.c.l.b16 %v6694
    %v6749 = vunpack.c.h.b16 %v6694
    %v6750 = vpack.c.b16 %v6722, %v6718
    %v6751 = vpack.c.b16 %v6723, %v6719
    %v6752 = vpack.c.b16 %v6724, %v6720
    %v6753 = vpack.c.b16 %v6725, %v6721
    %v6754 = vpack.c.b16 %v6730, %v6726
    %v6755 = vpack.c.b16 %v6731, %v6727
    %v6756 = vpack.c.b16 %v6732, %v6728
    %v6757 = vpack.c.b16 %v6733, %v6729
    %v6758 = vpack.c.b16 %v6738, %v6734
    %v6759 = vpack.c.b16 %v6739, %v6735
    %v6760 = vpack.c.b16 %v6740, %v6736
    %v6761 = vpack.c.b16 %v6741, %v6737
    %v6762 = vpack.c.b16 %v6746, %v6742
    %v6763 = vpack.c.b16 %v6747, %v6743
    %v6764 = vpack.c.b16 %v6748, %v6744
    %v6765 = vpack.c.b16 %v6749, %v6745
    %v6783 = vsel %vm697, %v6701, 0
    %6785 = vmatpush.bf16.msra.mxu0 0
    %6786 = vmatpush.bf16.msra.mxu0 0
    %6787 = vmatpush.bf16.msra.mxu0 0
    %6788 = vmatpush.bf16.msra.mxu0 0
    %6789 = vmatpush.bf16.msra.mxu0 %v6762
    %6790 = vmatpush.bf16.msra.mxu0 %v6758
    %6791 = vmatpush.bf16.msra.mxu0 %v6754
    %6792 = vmatpush.bf16.msra.mxu0 %v6750
    %6793 = vmatmul.bf16.gmra.mxu0 %v6783
    %v6794 = vpop.f32.mrf.mxu0
    %v6795 = vadd.f32 0.0, %v6794
    %v6796 = vpop.f32.mrf.mxu0
    %6797 = vdwg.mxu0
    %6798 = vmatpush.bf16.msra.mxu0 0
    %6799 = vmatpush.bf16.msra.mxu0 0
    %6800 = vmatpush.bf16.msra.mxu0 0
    %6801 = vmatpush.bf16.msra.mxu0 0
    %6802 = vmatpush.bf16.msra.mxu0 %v6763
    %6803 = vmatpush.bf16.msra.mxu0 %v6759
    %6804 = vmatpush.bf16.msra.mxu0 %v6755
    %6805 = vmatpush.bf16.msra.mxu0 %v6751
    %6806 = vmatmul.bf16.gmra.mxu0 %v6783
    %v6807 = vpop.f32.mrf.mxu0
    %v6808 = vadd.f32 0.0, %v6807
    %v6809 = vpop.f32.mrf.mxu0
    %6810 = vdwg.mxu0
    %6811 = vmatpush.bf16.msra.mxu0 0
    %6812 = vmatpush.bf16.msra.mxu0 0
    %6813 = vmatpush.bf16.msra.mxu0 0
    %6814 = vmatpush.bf16.msra.mxu0 0
    %6815 = vmatpush.bf16.msra.mxu0 %v6764
    %6816 = vmatpush.bf16.msra.mxu0 %v6760
    %6817 = vmatpush.bf16.msra.mxu0 %v6756
    %6818 = vmatpush.bf16.msra.mxu0 %v6752
    %6819 = vmatmul.bf16.gmra.mxu0 %v6783
    %v6820 = vpop.f32.mrf.mxu0
    %v6821 = vadd.f32 0.0, %v6820
    %v6822 = vpop.f32.mrf.mxu0
    %6823 = vdwg.mxu0
    %6824 = vmatpush.bf16.msra.mxu0 0
    %6825 = vmatpush.bf16.msra.mxu0 0
    %6826 = vmatpush.bf16.msra.mxu0 0
    %6827 = vmatpush.bf16.msra.mxu0 0
    %6828 = vmatpush.bf16.msra.mxu0 %v6765
    %6829 = vmatpush.bf16.msra.mxu0 %v6761
    %6830 = vmatpush.bf16.msra.mxu0 %v6757
    %6831 = vmatpush.bf16.msra.mxu0 %v6753
    %6832 = vmatmul.bf16.gmra.mxu0 %v6783
    %v6833 = vpop.f32.mrf.mxu0
    %v6834 = vadd.f32 0.0, %v6833
    %v6835 = vpop.f32.mrf.mxu0
    %6836 = vdwg.mxu0
    %v6837 = vld [vmem:[#allocation4 + $0x4] sm:$0x8]
    %s6838 = scalar_lea.vmem [#allocation2], 1792
    %v6839 = vld [vmem:[%s6838] sm:$0xff]
    %v6840 = vld [vmem:[%s6838 + $0x8] sm:$0xff]
    %v6841 = vld [vmem:[%s6838 + $0x10] sm:$0xff]
    %v6842 = vld [vmem:[%s6838 + $0x18] sm:$0xff]
    %v6843 = vld [vmem:[%s6838 + $0x20] sm:$0xff]
    %v6844 = vld [vmem:[%s6838 + $0x28] sm:$0xff]
    %v6845 = vld [vmem:[%s6838 + $0x30] sm:$0xff]
    %v6846 = vld [vmem:[%s6838 + $0x38] sm:$0xff]
    %v6847 = vld [vmem:[%s6838 + $0x40] sm:$0xff]
    %v6848 = vld [vmem:[%s6838 + $0x48] sm:$0xff]
    %v6849 = vld [vmem:[%s6838 + $0x50] sm:$0xff]
    %v6850 = vld [vmem:[%s6838 + $0x58] sm:$0xff]
    %v6851 = vld [vmem:[%s6838 + $0x60] sm:$0xff]
    %v6852 = vld [vmem:[%s6838 + $0x68] sm:$0xff]
    %v6853 = vld [vmem:[%s6838 + $0x70] sm:$0xff]
    %v6854 = vld [vmem:[%s6838 + $0x78] sm:$0xff]
    %s6855 = scalar_lea.vmem [#allocation2], 1920
    %v6856 = vld [vmem:[%s6855] sm:$0xff]
    %v6857 = vld [vmem:[%s6855 + $0x8] sm:$0xff]
    %v6858 = vld [vmem:[%s6855 + $0x10] sm:$0xff]
    %v6859 = vld [vmem:[%s6855 + $0x18] sm:$0xff]
    %v6860 = vld [vmem:[%s6855 + $0x20] sm:$0xff]
    %v6861 = vld [vmem:[%s6855 + $0x28] sm:$0xff]
    %v6862 = vld [vmem:[%s6855 + $0x30] sm:$0xff]
    %v6863 = vld [vmem:[%s6855 + $0x38] sm:$0xff]
    %v6864 = vld [vmem:[%s6855 + $0x40] sm:$0xff]
    %v6865 = vld [vmem:[%s6855 + $0x48] sm:$0xff]
    %v6866 = vld [vmem:[%s6855 + $0x50] sm:$0xff]
    %v6867 = vld [vmem:[%s6855 + $0x58] sm:$0xff]
    %v6868 = vld [vmem:[%s6855 + $0x60] sm:$0xff]
    %v6869 = vld [vmem:[%s6855 + $0x68] sm:$0xff]
    %v6870 = vld [vmem:[%s6855 + $0x70] sm:$0xff]
    %v6871 = vld [vmem:[%s6855 + $0x78] sm:$0xff]
    %v6873 = vunpack.c.l.b16 %v6837
    %v6874 = vpack.c.b16 %v6873, %v6873
    %v6876 = vshrl.u32 %v6874, 16
    %v6878 = vrot.slane %v6876, 3
    %v6895 = vunpack.c.l.b16 %v6856
    %v6896 = vunpack.c.h.b16 %v6856
    %v6897 = vunpack.c.l.b16 %v6857
    %v6898 = vunpack.c.h.b16 %v6857
    %v6899 = vunpack.c.l.b16 %v6858
    %v6900 = vunpack.c.h.b16 %v6858
    %v6901 = vunpack.c.l.b16 %v6859
    %v6902 = vunpack.c.h.b16 %v6859
    %v6903 = vunpack.c.l.b16 %v6860
    %v6904 = vunpack.c.h.b16 %v6860
    %v6905 = vunpack.c.l.b16 %v6861
    %v6906 = vunpack.c.h.b16 %v6861
    %v6907 = vunpack.c.l.b16 %v6862
    %v6908 = vunpack.c.h.b16 %v6862
    %v6909 = vunpack.c.l.b16 %v6863
    %v6910 = vunpack.c.h.b16 %v6863
    %v6911 = vunpack.c.l.b16 %v6864
    %v6912 = vunpack.c.h.b16 %v6864
    %v6913 = vunpack.c.l.b16 %v6865
    %v6914 = vunpack.c.h.b16 %v6865
    %v6915 = vunpack.c.l.b16 %v6866
    %v6916 = vunpack.c.h.b16 %v6866
    %v6917 = vunpack.c.l.b16 %v6867
    %v6918 = vunpack.c.h.b16 %v6867
    %v6919 = vunpack.c.l.b16 %v6868
    %v6920 = vunpack.c.h.b16 %v6868
    %v6921 = vunpack.c.l.b16 %v6869
    %v6922 = vunpack.c.h.b16 %v6869
    %v6923 = vunpack.c.l.b16 %v6870
    %v6924 = vunpack.c.h.b16 %v6870
    %v6925 = vunpack.c.l.b16 %v6871
    %v6926 = vunpack.c.h.b16 %v6871
    %v6927 = vpack.c.b16 %v6899, %v6895
    %v6928 = vpack.c.b16 %v6900, %v6896
    %v6929 = vpack.c.b16 %v6901, %v6897
    %v6930 = vpack.c.b16 %v6902, %v6898
    %v6931 = vpack.c.b16 %v6907, %v6903
    %v6932 = vpack.c.b16 %v6908, %v6904
    %v6933 = vpack.c.b16 %v6909, %v6905
    %v6934 = vpack.c.b16 %v6910, %v6906
    %v6935 = vpack.c.b16 %v6915, %v6911
    %v6936 = vpack.c.b16 %v6916, %v6912
    %v6937 = vpack.c.b16 %v6917, %v6913
    %v6938 = vpack.c.b16 %v6918, %v6914
    %v6939 = vpack.c.b16 %v6923, %v6919
    %v6940 = vpack.c.b16 %v6924, %v6920
    %v6941 = vpack.c.b16 %v6925, %v6921
    %v6942 = vpack.c.b16 %v6926, %v6922
    %v6960 = vsel %vm697, %v6878, 0
    %6962 = vmatpush.bf16.msra.mxu0 0
    %6963 = vmatpush.bf16.msra.mxu0 0
    %6964 = vmatpush.bf16.msra.mxu0 0
    %6965 = vmatpush.bf16.msra.mxu0 0
    %6966 = vmatpush.bf16.msra.mxu0 %v6939
    %6967 = vmatpush.bf16.msra.mxu0 %v6935
    %6968 = vmatpush.bf16.msra.mxu0 %v6931
    %6969 = vmatpush.bf16.msra.mxu0 %v6927
    %6970 = vmatmul.bf16.gmra.mxu0 %v6960
    %v6971 = vpop.f32.mrf.mxu0
    %v6972 = vadd.f32 0.0, %v6971
    %v6973 = vpop.f32.mrf.mxu0
    %6974 = vdwg.mxu0
    %6975 = vmatpush.bf16.msra.mxu0 0
    %6976 = vmatpush.bf16.msra.mxu0 0
    %6977 = vmatpush.bf16.msra.mxu0 0
    %6978 = vmatpush.bf16.msra.mxu0 0
    %6979 = vmatpush.bf16.msra.mxu0 %v6940
    %6980 = vmatpush.bf16.msra.mxu0 %v6936
    %6981 = vmatpush.bf16.msra.mxu0 %v6932
    %6982 = vmatpush.bf16.msra.mxu0 %v6928
    %6983 = vmatmul.bf16.gmra.mxu0 %v6960
    %v6984 = vpop.f32.mrf.mxu0
    %v6985 = vadd.f32 0.0, %v6984
    %v6986 = vpop.f32.mrf.mxu0
    %6987 = vdwg.mxu0
    %6988 = vmatpush.bf16.msra.mxu0 0
    %6989 = vmatpush.bf16.msra.mxu0 0
    %6990 = vmatpush.bf16.msra.mxu0 0
    %6991 = vmatpush.bf16.msra.mxu0 0
    %6992 = vmatpush.bf16.msra.mxu0 %v6941
    %6993 = vmatpush.bf16.msra.mxu0 %v6937
    %6994 = vmatpush.bf16.msra.mxu0 %v6933
    %6995 = vmatpush.bf16.msra.mxu0 %v6929
    %6996 = vmatmul.bf16.gmra.mxu0 %v6960
    %v6997 = vpop.f32.mrf.mxu0
    %v6998 = vadd.f32 0.0, %v6997
    %v6999 = vpop.f32.mrf.mxu0
    %7000 = vdwg.mxu0
    %7001 = vmatpush.bf16.msra.mxu0 0
    %7002 = vmatpush.bf16.msra.mxu0 0
    %7003 = vmatpush.bf16.msra.mxu0 0
    %7004 = vmatpush.bf16.msra.mxu0 0
    %7005 = vmatpush.bf16.msra.mxu0 %v6942
    %7006 = vmatpush.bf16.msra.mxu0 %v6938
    %7007 = vmatpush.bf16.msra.mxu0 %v6934
    %7008 = vmatpush.bf16.msra.mxu0 %v6930
    %7009 = vmatmul.bf16.gmra.mxu0 %v6960
    %v7010 = vpop.f32.mrf.mxu0
    %v7011 = vadd.f32 0.0, %v7010
    %v7012 = vpop.f32.mrf.mxu0
    %7013 = vdwg.mxu0
    %v7030 = vunpack.c.l.b16 %v5602
    %v7031 = vunpack.c.h.b16 %v5602
    %v7032 = vunpack.c.l.b16 %v5603
    %v7033 = vunpack.c.h.b16 %v5603
    %v7034 = vunpack.c.l.b16 %v5604
    %v7035 = vunpack.c.h.b16 %v5604
    %v7036 = vunpack.c.l.b16 %v5605
    %v7037 = vunpack.c.h.b16 %v5605
    %v7038 = vunpack.c.l.b16 %v5606
    %v7039 = vunpack.c.h.b16 %v5606
    %v7040 = vunpack.c.l.b16 %v5607
    %v7041 = vunpack.c.h.b16 %v5607
    %v7042 = vunpack.c.l.b16 %v5608
    %v7043 = vunpack.c.h.b16 %v5608
    %v7044 = vunpack.c.l.b16 %v5609
    %v7045 = vunpack.c.h.b16 %v5609
    %v7046 = vunpack.c.l.b16 %v5610
    %v7047 = vunpack.c.h.b16 %v5610
    %v7048 = vunpack.c.l.b16 %v5611
    %v7049 = vunpack.c.h.b16 %v5611
    %v7050 = vunpack.c.l.b16 %v5612
    %v7051 = vunpack.c.h.b16 %v5612
    %v7052 = vunpack.c.l.b16 %v5613
    %v7053 = vunpack.c.h.b16 %v5613
    %v7054 = vunpack.c.l.b16 %v5614
    %v7055 = vunpack.c.h.b16 %v5614
    %v7056 = vunpack.c.l.b16 %v5615
    %v7057 = vunpack.c.h.b16 %v5615
    %v7058 = vunpack.c.l.b16 %v5616
    %v7059 = vunpack.c.h.b16 %v5616
    %v7060 = vunpack.c.l.b16 %v5617
    %v7061 = vunpack.c.h.b16 %v5617
    %v7062 = vpack.c.b16 %v7034, %v7030
    %v7063 = vpack.c.b16 %v7035, %v7031
    %v7064 = vpack.c.b16 %v7036, %v7032
    %v7065 = vpack.c.b16 %v7037, %v7033
    %v7066 = vpack.c.b16 %v7042, %v7038
    %v7067 = vpack.c.b16 %v7043, %v7039
    %v7068 = vpack.c.b16 %v7044, %v7040
    %v7069 = vpack.c.b16 %v7045, %v7041
    %v7070 = vpack.c.b16 %v7050, %v7046
    %v7071 = vpack.c.b16 %v7051, %v7047
    %v7072 = vpack.c.b16 %v7052, %v7048
    %v7073 = vpack.c.b16 %v7053, %v7049
    %v7074 = vpack.c.b16 %v7058, %v7054
    %v7075 = vpack.c.b16 %v7059, %v7055
    %v7076 = vpack.c.b16 %v7060, %v7056
    %v7077 = vpack.c.b16 %v7061, %v7057
    %v7095 = vsel %vm697, %v5601, 0
    %7097 = vmatpush.bf16.msra.mxu0 0
    %7098 = vmatpush.bf16.msra.mxu0 0
    %7099 = vmatpush.bf16.msra.mxu0 0
    %7100 = vmatpush.bf16.msra.mxu0 0
    %7101 = vmatpush.bf16.msra.mxu0 %v7074
    %7102 = vmatpush.bf16.msra.mxu0 %v7070
    %7103 = vmatpush.bf16.msra.mxu0 %v7066
    %7104 = vmatpush.bf16.msra.mxu0 %v7062
    %7105 = vmatmul.bf16.gmra.mxu0 %v7095
    %v7106 = vpop.f32.mrf.mxu0
    %v7107 = vadd.f32 %v5734, %v7106
    %v7108 = vpop.f32.mrf.mxu0
    %7109 = vdwg.mxu0
    %7110 = vmatpush.bf16.msra.mxu0 0
    %7111 = vmatpush.bf16.msra.mxu0 0
    %7112 = vmatpush.bf16.msra.mxu0 0
    %7113 = vmatpush.bf16.msra.mxu0 0
    %7114 = vmatpush.bf16.msra.mxu0 %v7075
    %7115 = vmatpush.bf16.msra.mxu0 %v7071
    %7116 = vmatpush.bf16.msra.mxu0 %v7067
    %7117 = vmatpush.bf16.msra.mxu0 %v7063
    %7118 = vmatmul.bf16.gmra.mxu0 %v7095
    %v7119 = vpop.f32.mrf.mxu0
    %v7120 = vadd.f32 %v5747, %v7119
    %v7121 = vpop.f32.mrf.mxu0
    %7122 = vdwg.mxu0
    %7123 = vmatpush.bf16.msra.mxu0 0
    %7124 = vmatpush.bf16.msra.mxu0 0
    %7125 = vmatpush.bf16.msra.mxu0 0
    %7126 = vmatpush.bf16.msra.mxu0 0
    %7127 = vmatpush.bf16.msra.mxu0 %v7076
    %7128 = vmatpush.bf16.msra.mxu0 %v7072
    %7129 = vmatpush.bf16.msra.mxu0 %v7068
    %7130 = vmatpush.bf16.msra.mxu0 %v7064
    %7131 = vmatmul.bf16.gmra.mxu0 %v7095
    %v7132 = vpop.f32.mrf.mxu0
    %v7133 = vadd.f32 %v5760, %v7132
    %v7134 = vpop.f32.mrf.mxu0
    %7135 = vdwg.mxu0
    %7136 = vmatpush.bf16.msra.mxu0 0
    %7137 = vmatpush.bf16.msra.mxu0 0
    %7138 = vmatpush.bf16.msra.mxu0 0
    %7139 = vmatpush.bf16.msra.mxu0 0
    %7140 = vmatpush.bf16.msra.mxu0 %v7077
    %7141 = vmatpush.bf16.msra.mxu0 %v7073
    %7142 = vmatpush.bf16.msra.mxu0 %v7069
    %7143 = vmatpush.bf16.msra.mxu0 %v7065
    %7144 = vmatmul.bf16.gmra.mxu0 %v7095
    %v7145 = vpop.f32.mrf.mxu0
    %v7146 = vadd.f32 %v5773, %v7145
    %v7147 = vpop.f32.mrf.mxu0
    %7148 = vdwg.mxu0
    %v7149 = vrot.slane %v5813, 1
    %v7166 = vunpack.c.l.b16 %v5778
    %v7167 = vunpack.c.h.b16 %v5778
    %v7168 = vunpack.c.l.b16 %v5779
    %v7169 = vunpack.c.h.b16 %v5779
    %v7170 = vunpack.c.l.b16 %v5780
    %v7171 = vunpack.c.h.b16 %v5780
    %v7172 = vunpack.c.l.b16 %v5781
    %v7173 = vunpack.c.h.b16 %v5781
    %v7174 = vunpack.c.l.b16 %v5782
    %v7175 = vunpack.c.h.b16 %v5782
    %v7176 = vunpack.c.l.b16 %v5783
    %v7177 = vunpack.c.h.b16 %v5783
    %v7178 = vunpack.c.l.b16 %v5784
    %v7179 = vunpack.c.h.b16 %v5784
    %v7180 = vunpack.c.l.b16 %v5785
    %v7181 = vunpack.c.h.b16 %v5785
    %v7182 = vunpack.c.l.b16 %v5786
    %v7183 = vunpack.c.h.b16 %v5786
    %v7184 = vunpack.c.l.b16 %v5787
    %v7185 = vunpack.c.h.b16 %v5787
    %v7186 = vunpack.c.l.b16 %v5788
    %v7187 = vunpack.c.h.b16 %v5788
    %v7188 = vunpack.c.l.b16 %v5789
    %v7189 = vunpack.c.h.b16 %v5789
    %v7190 = vunpack.c.l.b16 %v5790
    %v7191 = vunpack.c.h.b16 %v5790
    %v7192 = vunpack.c.l.b16 %v5791
    %v7193 = vunpack.c.h.b16 %v5791
    %v7194 = vunpack.c.l.b16 %v5792
    %v7195 = vunpack.c.h.b16 %v5792
    %v7196 = vunpack.c.l.b16 %v5793
    %v7197 = vunpack.c.h.b16 %v5793
    %v7198 = vpack.c.b16 %v7170, %v7166
    %v7199 = vpack.c.b16 %v7171, %v7167
    %v7200 = vpack.c.b16 %v7172, %v7168
    %v7201 = vpack.c.b16 %v7173, %v7169
    %v7202 = vpack.c.b16 %v7178, %v7174
    %v7203 = vpack.c.b16 %v7179, %v7175
    %v7204 = vpack.c.b16 %v7180, %v7176
    %v7205 = vpack.c.b16 %v7181, %v7177
    %v7206 = vpack.c.b16 %v7186, %v7182
    %v7207 = vpack.c.b16 %v7187, %v7183
    %v7208 = vpack.c.b16 %v7188, %v7184
    %v7209 = vpack.c.b16 %v7189, %v7185
    %v7210 = vpack.c.b16 %v7194, %v7190
    %v7211 = vpack.c.b16 %v7195, %v7191
    %v7212 = vpack.c.b16 %v7196, %v7192
    %v7213 = vpack.c.b16 %v7197, %v7193
    %v7231 = vsel %vm697, %v7149, 0
    %7233 = vmatpush.bf16.msra.mxu0 0
    %7234 = vmatpush.bf16.msra.mxu0 0
    %7235 = vmatpush.bf16.msra.mxu0 0
    %7236 = vmatpush.bf16.msra.mxu0 0
    %7237 = vmatpush.bf16.msra.mxu0 %v7210
    %7238 = vmatpush.bf16.msra.mxu0 %v7206
    %7239 = vmatpush.bf16.msra.mxu0 %v7202
    %7240 = vmatpush.bf16.msra.mxu0 %v7198
    %7241 = vmatmul.bf16.gmra.mxu0 %v7231
    %v7242 = vpop.f32.mrf.mxu0
    %v7243 = vadd.f32 %v5911, %v7242
    %v7244 = vpop.f32.mrf.mxu0
    %7245 = vdwg.mxu0
    %7246 = vmatpush.bf16.msra.mxu0 0
    %7247 = vmatpush.bf16.msra.mxu0 0
    %7248 = vmatpush.bf16.msra.mxu0 0
    %7249 = vmatpush.bf16.msra.mxu0 0
    %7250 = vmatpush.bf16.msra.mxu0 %v7211
    %7251 = vmatpush.bf16.msra.mxu0 %v7207
    %7252 = vmatpush.bf16.msra.mxu0 %v7203
    %7253 = vmatpush.bf16.msra.mxu0 %v7199
    %7254 = vmatmul.bf16.gmra.mxu0 %v7231
    %v7255 = vpop.f32.mrf.mxu0
    %v7256 = vadd.f32 %v5924, %v7255
    %v7257 = vpop.f32.mrf.mxu0
    %7258 = vdwg.mxu0
    %7259 = vmatpush.bf16.msra.mxu0 0
    %7260 = vmatpush.bf16.msra.mxu0 0
    %7261 = vmatpush.bf16.msra.mxu0 0
    %7262 = vmatpush.bf16.msra.mxu0 0
    %7263 = vmatpush.bf16.msra.mxu0 %v7212
    %7264 = vmatpush.bf16.msra.mxu0 %v7208
    %7265 = vmatpush.bf16.msra.mxu0 %v7204
    %7266 = vmatpush.bf16.msra.mxu0 %v7200
    %7267 = vmatmul.bf16.gmra.mxu0 %v7231
    %v7268 = vpop.f32.mrf.mxu0
    %v7269 = vadd.f32 %v5937, %v7268
    %v7270 = vpop.f32.mrf.mxu0
    %7271 = vdwg.mxu0
    %7272 = vmatpush.bf16.msra.mxu0 0
    %7273 = vmatpush.bf16.msra.mxu0 0
    %7274 = vmatpush.bf16.msra.mxu0 0
    %7275 = vmatpush.bf16.msra.mxu0 0
    %7276 = vmatpush.bf16.msra.mxu0 %v7213
    %7277 = vmatpush.bf16.msra.mxu0 %v7209
    %7278 = vmatpush.bf16.msra.mxu0 %v7205
    %7279 = vmatpush.bf16.msra.mxu0 %v7201
    %7280 = vmatmul.bf16.gmra.mxu0 %v7231
    %v7281 = vpop.f32.mrf.mxu0
    %v7282 = vadd.f32 %v5950, %v7281
    %v7283 = vpop.f32.mrf.mxu0
    %7284 = vdwg.mxu0
    %v7285 = vrot.slane %v5990, 2
    %v7302 = vunpack.c.l.b16 %v5955
    %v7303 = vunpack.c.h.b16 %v5955
    %v7304 = vunpack.c.l.b16 %v5956
    %v7305 = vunpack.c.h.b16 %v5956
    %v7306 = vunpack.c.l.b16 %v5957
    %v7307 = vunpack.c.h.b16 %v5957
    %v7308 = vunpack.c.l.b16 %v5958
    %v7309 = vunpack.c.h.b16 %v5958
    %v7310 = vunpack.c.l.b16 %v5959
    %v7311 = vunpack.c.h.b16 %v5959
    %v7312 = vunpack.c.l.b16 %v5960
    %v7313 = vunpack.c.h.b16 %v5960
    %v7314 = vunpack.c.l.b16 %v5961
    %v7315 = vunpack.c.h.b16 %v5961
    %v7316 = vunpack.c.l.b16 %v5962
    %v7317 = vunpack.c.h.b16 %v5962
    %v7318 = vunpack.c.l.b16 %v5963
    %v7319 = vunpack.c.h.b16 %v5963
    %v7320 = vunpack.c.l.b16 %v5964
    %v7321 = vunpack.c.h.b16 %v5964
    %v7322 = vunpack.c.l.b16 %v5965
    %v7323 = vunpack.c.h.b16 %v5965
    %v7324 = vunpack.c.l.b16 %v5966
    %v7325 = vunpack.c.h.b16 %v5966
    %v7326 = vunpack.c.l.b16 %v5967
    %v7327 = vunpack.c.h.b16 %v5967
    %v7328 = vunpack.c.l.b16 %v5968
    %v7329 = vunpack.c.h.b16 %v5968
    %v7330 = vunpack.c.l.b16 %v5969
    %v7331 = vunpack.c.h.b16 %v5969
    %v7332 = vunpack.c.l.b16 %v5970
    %v7333 = vunpack.c.h.b16 %v5970
    %v7334 = vpack.c.b16 %v7306, %v7302
    %v7335 = vpack.c.b16 %v7307, %v7303
    %v7336 = vpack.c.b16 %v7308, %v7304
    %v7337 = vpack.c.b16 %v7309, %v7305
    %v7338 = vpack.c.b16 %v7314, %v7310
    %v7339 = vpack.c.b16 %v7315, %v7311
    %v7340 = vpack.c.b16 %v7316, %v7312
    %v7341 = vpack.c.b16 %v7317, %v7313
    %v7342 = vpack.c.b16 %v7322, %v7318
    %v7343 = vpack.c.b16 %v7323, %v7319
    %v7344 = vpack.c.b16 %v7324, %v7320
    %v7345 = vpack.c.b16 %v7325, %v7321
    %v7346 = vpack.c.b16 %v7330, %v7326
    %v7347 = vpack.c.b16 %v7331, %v7327
    %v7348 = vpack.c.b16 %v7332, %v7328
    %v7349 = vpack.c.b16 %v7333, %v7329
    %v7367 = vsel %vm697, %v7285, 0
    %7369 = vmatpush.bf16.msra.mxu0 0
    %7370 = vmatpush.bf16.msra.mxu0 0
    %7371 = vmatpush.bf16.msra.mxu0 0
    %7372 = vmatpush.bf16.msra.mxu0 0
    %7373 = vmatpush.bf16.msra.mxu0 %v7346
    %7374 = vmatpush.bf16.msra.mxu0 %v7342
    %7375 = vmatpush.bf16.msra.mxu0 %v7338
    %7376 = vmatpush.bf16.msra.mxu0 %v7334
    %7377 = vmatmul.bf16.gmra.mxu0 %v7367
    %v7378 = vpop.f32.mrf.mxu0
    %v7379 = vadd.f32 %v6088, %v7378
    %v7380 = vpop.f32.mrf.mxu0
    %7381 = vdwg.mxu0
    %7382 = vmatpush.bf16.msra.mxu0 0
    %7383 = vmatpush.bf16.msra.mxu0 0
    %7384 = vmatpush.bf16.msra.mxu0 0
    %7385 = vmatpush.bf16.msra.mxu0 0
    %7386 = vmatpush.bf16.msra.mxu0 %v7347
    %7387 = vmatpush.bf16.msra.mxu0 %v7343
    %7388 = vmatpush.bf16.msra.mxu0 %v7339
    %7389 = vmatpush.bf16.msra.mxu0 %v7335
    %7390 = vmatmul.bf16.gmra.mxu0 %v7367
    %v7391 = vpop.f32.mrf.mxu0
    %v7392 = vadd.f32 %v6101, %v7391
    %v7393 = vpop.f32.mrf.mxu0
    %7394 = vdwg.mxu0
    %7395 = vmatpush.bf16.msra.mxu0 0
    %7396 = vmatpush.bf16.msra.mxu0 0
    %7397 = vmatpush.bf16.msra.mxu0 0
    %7398 = vmatpush.bf16.msra.mxu0 0
    %7399 = vmatpush.bf16.msra.mxu0 %v7348
    %7400 = vmatpush.bf16.msra.mxu0 %v7344
    %7401 = vmatpush.bf16.msra.mxu0 %v7340
    %7402 = vmatpush.bf16.msra.mxu0 %v7336
    %7403 = vmatmul.bf16.gmra.mxu0 %v7367
    %v7404 = vpop.f32.mrf.mxu0
    %v7405 = vadd.f32 %v6114, %v7404
    %v7406 = vpop.f32.mrf.mxu0
    %7407 = vdwg.mxu0
    %7408 = vmatpush.bf16.msra.mxu0 0
    %7409 = vmatpush.bf16.msra.mxu0 0
    %7410 = vmatpush.bf16.msra.mxu0 0
    %7411 = vmatpush.bf16.msra.mxu0 0
    %7412 = vmatpush.bf16.msra.mxu0 %v7349
    %7413 = vmatpush.bf16.msra.mxu0 %v7345
    %7414 = vmatpush.bf16.msra.mxu0 %v7341
    %7415 = vmatpush.bf16.msra.mxu0 %v7337
    %7416 = vmatmul.bf16.gmra.mxu0 %v7367
    %v7417 = vpop.f32.mrf.mxu0
    %v7418 = vadd.f32 %v6127, %v7417
    %v7419 = vpop.f32.mrf.mxu0
    %7420 = vdwg.mxu0
    %v7421 = vrot.slane %v6167, 3
    %v7438 = vunpack.c.l.b16 %v6132
    %v7439 = vunpack.c.h.b16 %v6132
    %v7440 = vunpack.c.l.b16 %v6133
    %v7441 = vunpack.c.h.b16 %v6133
    %v7442 = vunpack.c.l.b16 %v6134
    %v7443 = vunpack.c.h.b16 %v6134
    %v7444 = vunpack.c.l.b16 %v6135
    %v7445 = vunpack.c.h.b16 %v6135
    %v7446 = vunpack.c.l.b16 %v6136
    %v7447 = vunpack.c.h.b16 %v6136
    %v7448 = vunpack.c.l.b16 %v6137
    %v7449 = vunpack.c.h.b16 %v6137
    %v7450 = vunpack.c.l.b16 %v6138
    %v7451 = vunpack.c.h.b16 %v6138
    %v7452 = vunpack.c.l.b16 %v6139
    %v7453 = vunpack.c.h.b16 %v6139
    %v7454 = vunpack.c.l.b16 %v6140
    %v7455 = vunpack.c.h.b16 %v6140
    %v7456 = vunpack.c.l.b16 %v6141
    %v7457 = vunpack.c.h.b16 %v6141
    %v7458 = vunpack.c.l.b16 %v6142
    %v7459 = vunpack.c.h.b16 %v6142
    %v7460 = vunpack.c.l.b16 %v6143
    %v7461 = vunpack.c.h.b16 %v6143
    %v7462 = vunpack.c.l.b16 %v6144
    %v7463 = vunpack.c.h.b16 %v6144
    %v7464 = vunpack.c.l.b16 %v6145
    %v7465 = vunpack.c.h.b16 %v6145
    %v7466 = vunpack.c.l.b16 %v6146
    %v7467 = vunpack.c.h.b16 %v6146
    %v7468 = vunpack.c.l.b16 %v6147
    %v7469 = vunpack.c.h.b16 %v6147
    %v7470 = vpack.c.b16 %v7442, %v7438
    %v7471 = vpack.c.b16 %v7443, %v7439
    %v7472 = vpack.c.b16 %v7444, %v7440
    %v7473 = vpack.c.b16 %v7445, %v7441
    %v7474 = vpack.c.b16 %v7450, %v7446
    %v7475 = vpack.c.b16 %v7451, %v7447
    %v7476 = vpack.c.b16 %v7452, %v7448
    %v7477 = vpack.c.b16 %v7453, %v7449
    %v7478 = vpack.c.b16 %v7458, %v7454
    %v7479 = vpack.c.b16 %v7459, %v7455
    %v7480 = vpack.c.b16 %v7460, %v7456
    %v7481 = vpack.c.b16 %v7461, %v7457
    %v7482 = vpack.c.b16 %v7466, %v7462
    %v7483 = vpack.c.b16 %v7467, %v7463
    %v7484 = vpack.c.b16 %v7468, %v7464
    %v7485 = vpack.c.b16 %v7469, %v7465
    %v7503 = vsel %vm697, %v7421, 0
    %7505 = vmatpush.bf16.msra.mxu0 0
    %7506 = vmatpush.bf16.msra.mxu0 0
    %7507 = vmatpush.bf16.msra.mxu0 0
    %7508 = vmatpush.bf16.msra.mxu0 0
    %7509 = vmatpush.bf16.msra.mxu0 %v7482
    %7510 = vmatpush.bf16.msra.mxu0 %v7478
    %7511 = vmatpush.bf16.msra.mxu0 %v7474
    %7512 = vmatpush.bf16.msra.mxu0 %v7470
    %7513 = vmatmul.bf16.gmra.mxu0 %v7503
    %v7514 = vpop.f32.mrf.mxu0
    %v7515 = vadd.f32 %v6265, %v7514
    %v7516 = vpop.f32.mrf.mxu0
    %7517 = vdwg.mxu0
    %7518 = vmatpush.bf16.msra.mxu0 0
    %7519 = vmatpush.bf16.msra.mxu0 0
    %7520 = vmatpush.bf16.msra.mxu0 0
    %7521 = vmatpush.bf16.msra.mxu0 0
    %7522 = vmatpush.bf16.msra.mxu0 %v7483
    %7523 = vmatpush.bf16.msra.mxu0 %v7479
    %7524 = vmatpush.bf16.msra.mxu0 %v7475
    %7525 = vmatpush.bf16.msra.mxu0 %v7471
    %7526 = vmatmul.bf16.gmra.mxu0 %v7503
    %v7527 = vpop.f32.mrf.mxu0
    %v7528 = vadd.f32 %v6278, %v7527
    %v7529 = vpop.f32.mrf.mxu0
    %7530 = vdwg.mxu0
    %7531 = vmatpush.bf16.msra.mxu0 0
    %7532 = vmatpush.bf16.msra.mxu0 0
    %7533 = vmatpush.bf16.msra.mxu0 0
    %7534 = vmatpush.bf16.msra.mxu0 0
    %7535 = vmatpush.bf16.msra.mxu0 %v7484
    %7536 = vmatpush.bf16.msra.mxu0 %v7480
    %7537 = vmatpush.bf16.msra.mxu0 %v7476
    %7538 = vmatpush.bf16.msra.mxu0 %v7472
    %7539 = vmatmul.bf16.gmra.mxu0 %v7503
    %v7540 = vpop.f32.mrf.mxu0
    %v7541 = vadd.f32 %v6291, %v7540
    %v7542 = vpop.f32.mrf.mxu0
    %7543 = vdwg.mxu0
    %7544 = vmatpush.bf16.msra.mxu0 0
    %7545 = vmatpush.bf16.msra.mxu0 0
    %7546 = vmatpush.bf16.msra.mxu0 0
    %7547 = vmatpush.bf16.msra.mxu0 0
    %7548 = vmatpush.bf16.msra.mxu0 %v7485
    %7549 = vmatpush.bf16.msra.mxu0 %v7481
    %7550 = vmatpush.bf16.msra.mxu0 %v7477
    %7551 = vmatpush.bf16.msra.mxu0 %v7473
    %7552 = vmatmul.bf16.gmra.mxu0 %v7503
    %v7553 = vpop.f32.mrf.mxu0
    %v7554 = vadd.f32 %v6304, %v7553
    %v7555 = vpop.f32.mrf.mxu0
    %7556 = vdwg.mxu0
    %v7573 = vunpack.c.l.b16 %v6309
    %v7574 = vunpack.c.h.b16 %v6309
    %v7575 = vunpack.c.l.b16 %v6310
    %v7576 = vunpack.c.h.b16 %v6310
    %v7577 = vunpack.c.l.b16 %v6311
    %v7578 = vunpack.c.h.b16 %v6311
    %v7579 = vunpack.c.l.b16 %v6312
    %v7580 = vunpack.c.h.b16 %v6312
    %v7581 = vunpack.c.l.b16 %v6313
    %v7582 = vunpack.c.h.b16 %v6313
    %v7583 = vunpack.c.l.b16 %v6314
    %v7584 = vunpack.c.h.b16 %v6314
    %v7585 = vunpack.c.l.b16 %v6315
    %v7586 = vunpack.c.h.b16 %v6315
    %v7587 = vunpack.c.l.b16 %v6316
    %v7588 = vunpack.c.h.b16 %v6316
    %v7589 = vunpack.c.l.b16 %v6317
    %v7590 = vunpack.c.h.b16 %v6317
    %v7591 = vunpack.c.l.b16 %v6318
    %v7592 = vunpack.c.h.b16 %v6318
    %v7593 = vunpack.c.l.b16 %v6319
    %v7594 = vunpack.c.h.b16 %v6319
    %v7595 = vunpack.c.l.b16 %v6320
    %v7596 = vunpack.c.h.b16 %v6320
    %v7597 = vunpack.c.l.b16 %v6321
    %v7598 = vunpack.c.h.b16 %v6321
    %v7599 = vunpack.c.l.b16 %v6322
    %v7600 = vunpack.c.h.b16 %v6322
    %v7601 = vunpack.c.l.b16 %v6323
    %v7602 = vunpack.c.h.b16 %v6323
    %v7603 = vunpack.c.l.b16 %v6324
    %v7604 = vunpack.c.h.b16 %v6324
    %v7605 = vpack.c.b16 %v7577, %v7573
    %v7606 = vpack.c.b16 %v7578, %v7574
    %v7607 = vpack.c.b16 %v7579, %v7575
    %v7608 = vpack.c.b16 %v7580, %v7576
    %v7609 = vpack.c.b16 %v7585, %v7581
    %v7610 = vpack.c.b16 %v7586, %v7582
    %v7611 = vpack.c.b16 %v7587, %v7583
    %v7612 = vpack.c.b16 %v7588, %v7584
    %v7613 = vpack.c.b16 %v7593, %v7589
    %v7614 = vpack.c.b16 %v7594, %v7590
    %v7615 = vpack.c.b16 %v7595, %v7591
    %v7616 = vpack.c.b16 %v7596, %v7592
    %v7617 = vpack.c.b16 %v7601, %v7597
    %v7618 = vpack.c.b16 %v7602, %v7598
    %v7619 = vpack.c.b16 %v7603, %v7599
    %v7620 = vpack.c.b16 %v7604, %v7600
    %v7638 = vsel %vm697, %v6307, 0
    %7640 = vmatpush.bf16.msra.mxu0 0
    %7641 = vmatpush.bf16.msra.mxu0 0
    %7642 = vmatpush.bf16.msra.mxu0 0
    %7643 = vmatpush.bf16.msra.mxu0 0
    %7644 = vmatpush.bf16.msra.mxu0 %v7617
    %7645 = vmatpush.bf16.msra.mxu0 %v7613
    %7646 = vmatpush.bf16.msra.mxu0 %v7609
    %7647 = vmatpush.bf16.msra.mxu0 %v7605
    %7648 = vmatmul.bf16.gmra.mxu0 %v7638
    %v7649 = vpop.f32.mrf.mxu0
    %v7650 = vadd.f32 %v6441, %v7649
    %v7651 = vpop.f32.mrf.mxu0
    %7652 = vdwg.mxu0
    %7653 = vmatpush.bf16.msra.mxu0 0
    %7654 = vmatpush.bf16.msra.mxu0 0
    %7655 = vmatpush.bf16.msra.mxu0 0
    %7656 = vmatpush.bf16.msra.mxu0 0
    %7657 = vmatpush.bf16.msra.mxu0 %v7618
    %7658 = vmatpush.bf16.msra.mxu0 %v7614
    %7659 = vmatpush.bf16.msra.mxu0 %v7610
    %7660 = vmatpush.bf16.msra.mxu0 %v7606
    %7661 = vmatmul.bf16.gmra.mxu0 %v7638
    %v7662 = vpop.f32.mrf.mxu0
    %v7663 = vadd.f32 %v6454, %v7662
    %v7664 = vpop.f32.mrf.mxu0
    %7665 = vdwg.mxu0
    %7666 = vmatpush.bf16.msra.mxu0 0
    %7667 = vmatpush.bf16.msra.mxu0 0
    %7668 = vmatpush.bf16.msra.mxu0 0
    %7669 = vmatpush.bf16.msra.mxu0 0
    %7670 = vmatpush.bf16.msra.mxu0 %v7619
    %7671 = vmatpush.bf16.msra.mxu0 %v7615
    %7672 = vmatpush.bf16.msra.mxu0 %v7611
    %7673 = vmatpush.bf16.msra.mxu0 %v7607
    %7674 = vmatmul.bf16.gmra.mxu0 %v7638
    %v7675 = vpop.f32.mrf.mxu0
    %v7676 = vadd.f32 %v6467, %v7675
    %v7677 = vpop.f32.mrf.mxu0
    %7678 = vdwg.mxu0
    %7679 = vmatpush.bf16.msra.mxu0 0
    %7680 = vmatpush.bf16.msra.mxu0 0
    %7681 = vmatpush.bf16.msra.mxu0 0
    %7682 = vmatpush.bf16.msra.mxu0 0
    %7683 = vmatpush.bf16.msra.mxu0 %v7620
    %7684 = vmatpush.bf16.msra.mxu0 %v7616
    %7685 = vmatpush.bf16.msra.mxu0 %v7612
    %7686 = vmatpush.bf16.msra.mxu0 %v7608
    %7687 = vmatmul.bf16.gmra.mxu0 %v7638
    %v7688 = vpop.f32.mrf.mxu0
    %v7689 = vadd.f32 %v6480, %v7688
    %v7690 = vpop.f32.mrf.mxu0
    %7691 = vdwg.mxu0
    %v7692 = vrot.slane %v6520, 1
    %v7709 = vunpack.c.l.b16 %v6485
    %v7710 = vunpack.c.h.b16 %v6485
    %v7711 = vunpack.c.l.b16 %v6486
    %v7712 = vunpack.c.h.b16 %v6486
    %v7713 = vunpack.c.l.b16 %v6487
    %v7714 = vunpack.c.h.b16 %v6487
    %v7715 = vunpack.c.l.b16 %v6488
    %v7716 = vunpack.c.h.b16 %v6488
    %v7717 = vunpack.c.l.b16 %v6489
    %v7718 = vunpack.c.h.b16 %v6489
    %v7719 = vunpack.c.l.b16 %v6490
    %v7720 = vunpack.c.h.b16 %v6490
    %v7721 = vunpack.c.l.b16 %v6491
    %v7722 = vunpack.c.h.b16 %v6491
    %v7723 = vunpack.c.l.b16 %v6492
    %v7724 = vunpack.c.h.b16 %v6492
    %v7725 = vunpack.c.l.b16 %v6493
    %v7726 = vunpack.c.h.b16 %v6493
    %v7727 = vunpack.c.l.b16 %v6494
    %v7728 = vunpack.c.h.b16 %v6494
    %v7729 = vunpack.c.l.b16 %v6495
    %v7730 = vunpack.c.h.b16 %v6495
    %v7731 = vunpack.c.l.b16 %v6496
    %v7732 = vunpack.c.h.b16 %v6496
    %v7733 = vunpack.c.l.b16 %v6497
    %v7734 = vunpack.c.h.b16 %v6497
    %v7735 = vunpack.c.l.b16 %v6498
    %v7736 = vunpack.c.h.b16 %v6498
    %v7737 = vunpack.c.l.b16 %v6499
    %v7738 = vunpack.c.h.b16 %v6499
    %v7739 = vunpack.c.l.b16 %v6500
    %v7740 = vunpack.c.h.b16 %v6500
    %v7741 = vpack.c.b16 %v7713, %v7709
    %v7742 = vpack.c.b16 %v7714, %v7710
    %v7743 = vpack.c.b16 %v7715, %v7711
    %v7744 = vpack.c.b16 %v7716, %v7712
    %v7745 = vpack.c.b16 %v7721, %v7717
    %v7746 = vpack.c.b16 %v7722, %v7718
    %v7747 = vpack.c.b16 %v7723, %v7719
    %v7748 = vpack.c.b16 %v7724, %v7720
    %v7749 = vpack.c.b16 %v7729, %v7725
    %v7750 = vpack.c.b16 %v7730, %v7726
    %v7751 = vpack.c.b16 %v7731, %v7727
    %v7752 = vpack.c.b16 %v7732, %v7728
    %v7753 = vpack.c.b16 %v7737, %v7733
    %v7754 = vpack.c.b16 %v7738, %v7734
    %v7755 = vpack.c.b16 %v7739, %v7735
    %v7756 = vpack.c.b16 %v7740, %v7736
    %v7774 = vsel %vm697, %v7692, 0
    %7776 = vmatpush.bf16.msra.mxu0 0
    %7777 = vmatpush.bf16.msra.mxu0 0
    %7778 = vmatpush.bf16.msra.mxu0 0
    %7779 = vmatpush.bf16.msra.mxu0 0
    %7780 = vmatpush.bf16.msra.mxu0 %v7753
    %7781 = vmatpush.bf16.msra.mxu0 %v7749
    %7782 = vmatpush.bf16.msra.mxu0 %v7745
    %7783 = vmatpush.bf16.msra.mxu0 %v7741
    %7784 = vmatmul.bf16.gmra.mxu0 %v7774
    %v7785 = vpop.f32.mrf.mxu0
    %v7786 = vadd.f32 %v6618, %v7785
    %v7787 = vpop.f32.mrf.mxu0
    %7788 = vdwg.mxu0
    %7789 = vmatpush.bf16.msra.mxu0 0
    %7790 = vmatpush.bf16.msra.mxu0 0
    %7791 = vmatpush.bf16.msra.mxu0 0
    %7792 = vmatpush.bf16.msra.mxu0 0
    %7793 = vmatpush.bf16.msra.mxu0 %v7754
    %7794 = vmatpush.bf16.msra.mxu0 %v7750
    %7795 = vmatpush.bf16.msra.mxu0 %v7746
    %7796 = vmatpush.bf16.msra.mxu0 %v7742
    %7797 = vmatmul.bf16.gmra.mxu0 %v7774
    %v7798 = vpop.f32.mrf.mxu0
    %v7799 = vadd.f32 %v6631, %v7798
    %v7800 = vpop.f32.mrf.mxu0
    %7801 = vdwg.mxu0
    %7802 = vmatpush.bf16.msra.mxu0 0
    %7803 = vmatpush.bf16.msra.mxu0 0
    %7804 = vmatpush.bf16.msra.mxu0 0
    %7805 = vmatpush.bf16.msra.mxu0 0
    %7806 = vmatpush.bf16.msra.mxu0 %v7755
    %7807 = vmatpush.bf16.msra.mxu0 %v7751
    %7808 = vmatpush.bf16.msra.mxu0 %v7747
    %7809 = vmatpush.bf16.msra.mxu0 %v7743
    %7810 = vmatmul.bf16.gmra.mxu0 %v7774
    %v7811 = vpop.f32.mrf.mxu0
    %v7812 = vadd.f32 %v6644, %v7811
    %v7813 = vpop.f32.mrf.mxu0
    %7814 = vdwg.mxu0
    %7815 = vmatpush.bf16.msra.mxu0 0
    %7816 = vmatpush.bf16.msra.mxu0 0
    %7817 = vmatpush.bf16.msra.mxu0 0
    %7818 = vmatpush.bf16.msra.mxu0 0
    %7819 = vmatpush.bf16.msra.mxu0 %v7756
    %7820 = vmatpush.bf16.msra.mxu0 %v7752
    %7821 = vmatpush.bf16.msra.mxu0 %v7748
    %7822 = vmatpush.bf16.msra.mxu0 %v7744
    %7823 = vmatmul.bf16.gmra.mxu0 %v7774
    %v7824 = vpop.f32.mrf.mxu0
    %v7825 = vadd.f32 %v6657, %v7824
    %v7826 = vpop.f32.mrf.mxu0
    %7827 = vdwg.mxu0
    %v7828 = vrot.slane %v6697, 2
    %v7845 = vunpack.c.l.b16 %v6662
    %v7846 = vunpack.c.h.b16 %v6662
    %v7847 = vunpack.c.l.b16 %v6663
    %v7848 = vunpack.c.h.b16 %v6663
    %v7849 = vunpack.c.l.b16 %v6664
    %v7850 = vunpack.c.h.b16 %v6664
    %v7851 = vunpack.c.l.b16 %v6665
    %v7852 = vunpack.c.h.b16 %v6665
    %v7853 = vunpack.c.l.b16 %v6666
    %v7854 = vunpack.c.h.b16 %v6666
    %v7855 = vunpack.c.l.b16 %v6667
    %v7856 = vunpack.c.h.b16 %v6667
    %v7857 = vunpack.c.l.b16 %v6668
    %v7858 = vunpack.c.h.b16 %v6668
    %v7859 = vunpack.c.l.b16 %v6669
    %v7860 = vunpack.c.h.b16 %v6669
    %v7861 = vunpack.c.l.b16 %v6670
    %v7862 = vunpack.c.h.b16 %v6670
    %v7863 = vunpack.c.l.b16 %v6671
    %v7864 = vunpack.c.h.b16 %v6671
    %v7865 = vunpack.c.l.b16 %v6672
    %v7866 = vunpack.c.h.b16 %v6672
    %v7867 = vunpack.c.l.b16 %v6673
    %v7868 = vunpack.c.h.b16 %v6673
    %v7869 = vunpack.c.l.b16 %v6674
    %v7870 = vunpack.c.h.b16 %v6674
    %v7871 = vunpack.c.l.b16 %v6675
    %v7872 = vunpack.c.h.b16 %v6675
    %v7873 = vunpack.c.l.b16 %v6676
    %v7874 = vunpack.c.h.b16 %v6676
    %v7875 = vunpack.c.l.b16 %v6677
    %v7876 = vunpack.c.h.b16 %v6677
    %v7877 = vpack.c.b16 %v7849, %v7845
    %v7878 = vpack.c.b16 %v7850, %v7846
    %v7879 = vpack.c.b16 %v7851, %v7847
    %v7880 = vpack.c.b16 %v7852, %v7848
    %v7881 = vpack.c.b16 %v7857, %v7853
    %v7882 = vpack.c.b16 %v7858, %v7854
    %v7883 = vpack.c.b16 %v7859, %v7855
    %v7884 = vpack.c.b16 %v7860, %v7856
    %v7885 = vpack.c.b16 %v7865, %v7861
    %v7886 = vpack.c.b16 %v7866, %v7862
    %v7887 = vpack.c.b16 %v7867, %v7863
    %v7888 = vpack.c.b16 %v7868, %v7864
    %v7889 = vpack.c.b16 %v7873, %v7869
    %v7890 = vpack.c.b16 %v7874, %v7870
    %v7891 = vpack.c.b16 %v7875, %v7871
    %v7892 = vpack.c.b16 %v7876, %v7872
    %v7910 = vsel %vm697, %v7828, 0
    %7912 = vmatpush.bf16.msra.mxu0 0
    %7913 = vmatpush.bf16.msra.mxu0 0
    %7914 = vmatpush.bf16.msra.mxu0 0
    %7915 = vmatpush.bf16.msra.mxu0 0
    %7916 = vmatpush.bf16.msra.mxu0 %v7889
    %7917 = vmatpush.bf16.msra.mxu0 %v7885
    %7918 = vmatpush.bf16.msra.mxu0 %v7881
    %7919 = vmatpush.bf16.msra.mxu0 %v7877
    %7920 = vmatmul.bf16.gmra.mxu0 %v7910
    %v7921 = vpop.f32.mrf.mxu0
    %v7922 = vadd.f32 %v6795, %v7921
    %v7923 = vpop.f32.mrf.mxu0
    %7924 = vdwg.mxu0
    %7925 = vmatpush.bf16.msra.mxu0 0
    %7926 = vmatpush.bf16.msra.mxu0 0
    %7927 = vmatpush.bf16.msra.mxu0 0
    %7928 = vmatpush.bf16.msra.mxu0 0
    %7929 = vmatpush.bf16.msra.mxu0 %v7890
    %7930 = vmatpush.bf16.msra.mxu0 %v7886
    %7931 = vmatpush.bf16.msra.mxu0 %v7882
    %7932 = vmatpush.bf16.msra.mxu0 %v7878
    %7933 = vmatmul.bf16.gmra.mxu0 %v7910
    %v7934 = vpop.f32.mrf.mxu0
    %v7935 = vadd.f32 %v6808, %v7934
    %v7936 = vpop.f32.mrf.mxu0
    %7937 = vdwg.mxu0
    %7938 = vmatpush.bf16.msra.mxu0 0
    %7939 = vmatpush.bf16.msra.mxu0 0
    %7940 = vmatpush.bf16.msra.mxu0 0
    %7941 = vmatpush.bf16.msra.mxu0 0
    %7942 = vmatpush.bf16.msra.mxu0 %v7891
    %7943 = vmatpush.bf16.msra.mxu0 %v7887
    %7944 = vmatpush.bf16.msra.mxu0 %v7883
    %7945 = vmatpush.bf16.msra.mxu0 %v7879
    %7946 = vmatmul.bf16.gmra.mxu0 %v7910
    %v7947 = vpop.f32.mrf.mxu0
    %v7948 = vadd.f32 %v6821, %v7947
    %v7949 = vpop.f32.mrf.mxu0
    %7950 = vdwg.mxu0
    %7951 = vmatpush.bf16.msra.mxu0 0
    %7952 = vmatpush.bf16.msra.mxu0 0
    %7953 = vmatpush.bf16.msra.mxu0 0
    %7954 = vmatpush.bf16.msra.mxu0 0
    %7955 = vmatpush.bf16.msra.mxu0 %v7892
    %7956 = vmatpush.bf16.msra.mxu0 %v7888
    %7957 = vmatpush.bf16.msra.mxu0 %v7884
    %7958 = vmatpush.bf16.msra.mxu0 %v7880
    %7959 = vmatmul.bf16.gmra.mxu0 %v7910
    %v7960 = vpop.f32.mrf.mxu0
    %v7961 = vadd.f32 %v6834, %v7960
    %v7962 = vpop.f32.mrf.mxu0
    %7963 = vdwg.mxu0
    %v7964 = vrot.slane %v6874, 3
    %v7981 = vunpack.c.l.b16 %v6839
    %v7982 = vunpack.c.h.b16 %v6839
    %v7983 = vunpack.c.l.b16 %v6840
    %v7984 = vunpack.c.h.b16 %v6840
    %v7985 = vunpack.c.l.b16 %v6841
    %v7986 = vunpack.c.h.b16 %v6841
    %v7987 = vunpack.c.l.b16 %v6842
    %v7988 = vunpack.c.h.b16 %v6842
    %v7989 = vunpack.c.l.b16 %v6843
    %v7990 = vunpack.c.h.b16 %v6843
    %v7991 = vunpack.c.l.b16 %v6844
    %v7992 = vunpack.c.h.b16 %v6844
    %v7993 = vunpack.c.l.b16 %v6845
    %v7994 = vunpack.c.h.b16 %v6845
    %v7995 = vunpack.c.l.b16 %v6846
    %v7996 = vunpack.c.h.b16 %v6846
    %v7997 = vunpack.c.l.b16 %v6847
    %v7998 = vunpack.c.h.b16 %v6847
    %v7999 = vunpack.c.l.b16 %v6848
    %v8000 = vunpack.c.h.b16 %v6848
    %v8001 = vunpack.c.l.b16 %v6849
    %v8002 = vunpack.c.h.b16 %v6849
    %v8003 = vunpack.c.l.b16 %v6850
    %v8004 = vunpack.c.h.b16 %v6850
    %v8005 = vunpack.c.l.b16 %v6851
    %v8006 = vunpack.c.h.b16 %v6851
    %v8007 = vunpack.c.l.b16 %v6852
    %v8008 = vunpack.c.h.b16 %v6852
    %v8009 = vunpack.c.l.b16 %v6853
    %v8010 = vunpack.c.h.b16 %v6853
    %v8011 = vunpack.c.l.b16 %v6854
    %v8012 = vunpack.c.h.b16 %v6854
    %v8013 = vpack.c.b16 %v7985, %v7981
    %v8014 = vpack.c.b16 %v7986, %v7982
    %v8015 = vpack.c.b16 %v7987, %v7983
    %v8016 = vpack.c.b16 %v7988, %v7984
    %v8017 = vpack.c.b16 %v7993, %v7989
    %v8018 = vpack.c.b16 %v7994, %v7990
    %v8019 = vpack.c.b16 %v7995, %v7991
    %v8020 = vpack.c.b16 %v7996, %v7992
    %v8021 = vpack.c.b16 %v8001, %v7997
    %v8022 = vpack.c.b16 %v8002, %v7998
    %v8023 = vpack.c.b16 %v8003, %v7999
    %v8024 = vpack.c.b16 %v8004, %v8000
    %v8025 = vpack.c.b16 %v8009, %v8005
    %v8026 = vpack.c.b16 %v8010, %v8006
    %v8027 = vpack.c.b16 %v8011, %v8007
    %v8028 = vpack.c.b16 %v8012, %v8008
    %v8046 = vsel %vm697, %v7964, 0
    %8048 = vmatpush.bf16.msra.mxu0 0
    %8049 = vmatpush.bf16.msra.mxu0 0
    %8050 = vmatpush.bf16.msra.mxu0 0
    %8051 = vmatpush.bf16.msra.mxu0 0
    %8052 = vmatpush.bf16.msra.mxu0 %v8025
    %8053 = vmatpush.bf16.msra.mxu0 %v8021
    %8054 = vmatpush.bf16.msra.mxu0 %v8017
    %8055 = vmatpush.bf16.msra.mxu0 %v8013
    %8056 = vmatmul.bf16.gmra.mxu0 %v8046
    %v8057 = vpop.f32.mrf.mxu0
    %v8058 = vadd.f32 %v6972, %v8057
    %v8059 = vpop.f32.mrf.mxu0
    %8060 = vdwg.mxu0
    %8061 = vmatpush.bf16.msra.mxu0 0
    %8062 = vmatpush.bf16.msra.mxu0 0
    %8063 = vmatpush.bf16.msra.mxu0 0
    %8064 = vmatpush.bf16.msra.mxu0 0
    %8065 = vmatpush.bf16.msra.mxu0 %v8026
    %8066 = vmatpush.bf16.msra.mxu0 %v8022
    %8067 = vmatpush.bf16.msra.mxu0 %v8018
    %8068 = vmatpush.bf16.msra.mxu0 %v8014
    %8069 = vmatmul.bf16.gmra.mxu0 %v8046
    %v8070 = vpop.f32.mrf.mxu0
    %v8071 = vadd.f32 %v6985, %v8070
    %v8072 = vpop.f32.mrf.mxu0
    %8073 = vdwg.mxu0
    %8074 = vmatpush.bf16.msra.mxu0 0
    %8075 = vmatpush.bf16.msra.mxu0 0
    %8076 = vmatpush.bf16.msra.mxu0 0
    %8077 = vmatpush.bf16.msra.mxu0 0
    %8078 = vmatpush.bf16.msra.mxu0 %v8027
    %8079 = vmatpush.bf16.msra.mxu0 %v8023
    %8080 = vmatpush.bf16.msra.mxu0 %v8019
    %8081 = vmatpush.bf16.msra.mxu0 %v8015
    %8082 = vmatmul.bf16.gmra.mxu0 %v8046
    %v8083 = vpop.f32.mrf.mxu0
    %v8084 = vadd.f32 %v6998, %v8083
    %v8085 = vpop.f32.mrf.mxu0
    %8086 = vdwg.mxu0
    %8087 = vmatpush.bf16.msra.mxu0 0
    %8088 = vmatpush.bf16.msra.mxu0 0
    %8089 = vmatpush.bf16.msra.mxu0 0
    %8090 = vmatpush.bf16.msra.mxu0 0
    %8091 = vmatpush.bf16.msra.mxu0 %v8028
    %8092 = vmatpush.bf16.msra.mxu0 %v8024
    %8093 = vmatpush.bf16.msra.mxu0 %v8020
    %8094 = vmatpush.bf16.msra.mxu0 %v8016
    %8095 = vmatmul.bf16.gmra.mxu0 %v8046
    %v8096 = vpop.f32.mrf.mxu0
    %v8097 = vadd.f32 %v7011, %v8096
    %v8098 = vpop.f32.mrf.mxu0
    %8099 = vdwg.mxu0
    %v8100 = vadd.f32 %v7107, %v7243
    %v8101 = vadd.f32 %v7120, %v7256
    %v8102 = vadd.f32 %v7133, %v7269
    %v8103 = vadd.f32 %v7146, %v7282
    %v8104 = vadd.f32 %v7379, %v7515
    %v8105 = vadd.f32 %v7392, %v7528
    %v8106 = vadd.f32 %v7405, %v7541
    %v8107 = vadd.f32 %v7418, %v7554
    %v8108 = vadd.f32 %v7650, %v7786
    %v8109 = vadd.f32 %v7663, %v7799
    %v8110 = vadd.f32 %v7676, %v7812
    %v8111 = vadd.f32 %v7689, %v7825
    %v8112 = vadd.f32 %v7922, %v8058
    %v8113 = vadd.f32 %v7935, %v8071
    %v8114 = vadd.f32 %v7948, %v8084
    %v8115 = vadd.f32 %v7961, %v8097
    %v8116 = vadd.f32 %v8100, %v8104
    %v8117 = vadd.f32 %v8101, %v8105
    %v8118 = vadd.f32 %v8102, %v8106
    %v8119 = vadd.f32 %v8103, %v8107
    %v8120 = vadd.f32 %v8108, %v8112
    %v8121 = vadd.f32 %v8109, %v8113
    %v8122 = vadd.f32 %v8110, %v8114
    %v8123 = vadd.f32 %v8111, %v8115
    %v8124 = vadd.f32 %v8116, %v8120
    %v8125 = vadd.f32 %v8117, %v8121
    %v8126 = vadd.f32 %v8118, %v8122
    %v8127 = vadd.f32 %v8119, %v8123
    %v8128 = vld [vmem:[%s7 + $0x3] sm:$0xf]
    %v8130 = vperm.slane %v8128, 0
    %v8131 = vperm.slane %v8128, 1
    %v8132 = vperm.slane %v8128, 2
    %v8133 = vperm.slane %v8128, 3
    %v8138 = vadd.f32 %v8124, %v8130
    %v8139 = vadd.f32 %v8125, %v8131
    %v8140 = vadd.f32 %v8126, %v8132
    %v8141 = vadd.f32 %v8127, %v8133
    %v8142 = vmax.f32 %v8138, 0.0
    %v8143 = vmax.f32 %v8139, 0.0
    %v8144 = vmax.f32 %v8140, 0.0
    %v8145 = vmax.f32 %v8141, 0.0
    %v8146 = vpack.c.bf16 %v8142, %v8142
    %v8147 = vpack.c.bf16 %v8143, %v8143
    %v8148 = vpack.c.bf16 %v8144, %v8144
    %v8149 = vpack.c.bf16 %v8145, %v8145
    %v8150 = vld [vmem:[%s8] sm:$0xf]
    %v8151 = vld [vmem:[%s8 + $0x4] sm:$0xf]
    %v8152 = vld [vmem:[%s8 + $0x8] sm:$0xf]
    %v8153 = vld [vmem:[%s8 + $0xc] sm:$0xf]
    %v8154 = vld [vmem:[%s8 + $0x10] sm:$0xf]
    %v8155 = vld [vmem:[%s8 + $0x14] sm:$0xf]
    %v8156 = vld [vmem:[%s8 + $0x18] sm:$0xf]
    %v8157 = vld [vmem:[%s8 + $0x1c] sm:$0xf]
    %v8158 = vld [vmem:[%s8 + $0x20] sm:$0xf]
    %v8159 = vld [vmem:[%s8 + $0x24] sm:$0xf]
    %v8160 = vld [vmem:[%s8 + $0x28] sm:$0xf]
    %v8161 = vld [vmem:[%s8 + $0x2c] sm:$0xf]
    %v8162 = vld [vmem:[%s8 + $0x30] sm:$0xf]
    %v8163 = vld [vmem:[%s8 + $0x34] sm:$0xf]
    %v8164 = vld [vmem:[%s8 + $0x38] sm:$0xf]
    %v8165 = vld [vmem:[%s8 + $0x3c] sm:$0xf]
    %v8166 = vld [vmem:[%s8 + $0x40] sm:$0xf]
    %v8167 = vld [vmem:[%s8 + $0x44] sm:$0xf]
    %v8168 = vld [vmem:[%s8 + $0x48] sm:$0xf]
    %v8169 = vld [vmem:[%s8 + $0x4c] sm:$0xf]
    %v8170 = vld [vmem:[%s8 + $0x50] sm:$0xf]
    %v8171 = vld [vmem:[%s8 + $0x54] sm:$0xf]
    %v8172 = vld [vmem:[%s8 + $0x58] sm:$0xf]
    %v8173 = vld [vmem:[%s8 + $0x5c] sm:$0xf]
    %v8174 = vld [vmem:[%s8 + $0x60] sm:$0xf]
    %v8175 = vld [vmem:[%s8 + $0x64] sm:$0xf]
    %v8176 = vld [vmem:[%s8 + $0x68] sm:$0xf]
    %v8177 = vld [vmem:[%s8 + $0x6c] sm:$0xf]
    %v8178 = vld [vmem:[%s8 + $0x70] sm:$0xf]
    %v8179 = vld [vmem:[%s8 + $0x74] sm:$0xf]
    %v8180 = vld [vmem:[%s8 + $0x78] sm:$0xf]
    %v8181 = vld [vmem:[%s8 + $0x7c] sm:$0xf]
    %v8182 = vld [vmem:[%s8 + $0x80] sm:$0xf]
    %v8183 = vld [vmem:[%s8 + $0x84] sm:$0xf]
    %v8184 = vld [vmem:[%s8 + $0x88] sm:$0xf]
    %v8185 = vld [vmem:[%s8 + $0x8c] sm:$0xf]
    %v8186 = vld [vmem:[%s8 + $0x90] sm:$0xf]
    %v8187 = vld [vmem:[%s8 + $0x94] sm:$0xf]
    %v8188 = vld [vmem:[%s8 + $0x98] sm:$0xf]
    %v8189 = vld [vmem:[%s8 + $0x9c] sm:$0xf]
    %v8190 = vld [vmem:[%s8 + $0xa0] sm:$0xf]
    %v8191 = vld [vmem:[%s8 + $0xa4] sm:$0xf]
    %v8192 = vld [vmem:[%s8 + $0xa8] sm:$0xf]
    %v8193 = vld [vmem:[%s8 + $0xac] sm:$0xf]
    %v8194 = vld [vmem:[%s8 + $0xb0] sm:$0xf]
    %v8195 = vld [vmem:[%s8 + $0xb4] sm:$0xf]
    %v8196 = vld [vmem:[%s8 + $0xb8] sm:$0xf]
    %v8197 = vld [vmem:[%s8 + $0xbc] sm:$0xf]
    %v8198 = vld [vmem:[%s8 + $0xc0] sm:$0xf]
    %v8199 = vld [vmem:[%s8 + $0xc4] sm:$0xf]
    %v8200 = vld [vmem:[%s8 + $0xc8] sm:$0xf]
    %v8201 = vld [vmem:[%s8 + $0xcc] sm:$0xf]
    %v8202 = vld [vmem:[%s8 + $0xd0] sm:$0xf]
    %v8203 = vld [vmem:[%s8 + $0xd4] sm:$0xf]
    %v8204 = vld [vmem:[%s8 + $0xd8] sm:$0xf]
    %v8205 = vld [vmem:[%s8 + $0xdc] sm:$0xf]
    %v8206 = vld [vmem:[%s8 + $0xe0] sm:$0xf]
    %v8207 = vld [vmem:[%s8 + $0xe4] sm:$0xf]
    %v8208 = vld [vmem:[%s8 + $0xe8] sm:$0xf]
    %v8209 = vld [vmem:[%s8 + $0xec] sm:$0xf]
    %v8210 = vld [vmem:[%s8 + $0xf0] sm:$0xf]
    %v8211 = vld [vmem:[%s8 + $0xf4] sm:$0xf]
    %v8212 = vld [vmem:[%s8 + $0xf8] sm:$0xf]
    %v8213 = vld [vmem:[%s8 + $0xfc] sm:$0xf]
    %v8214 = vld [vmem:[%s7 + $0x7] sm:$0x1]
    %v8279 = vunpack.c.l.b16 %v8150
    %v8280 = vunpack.c.l.b16 %v8151
    %v8281 = vunpack.c.l.b16 %v8152
    %v8282 = vunpack.c.l.b16 %v8153
    %v8283 = vunpack.c.l.b16 %v8154
    %v8284 = vunpack.c.l.b16 %v8155
    %v8285 = vunpack.c.l.b16 %v8156
    %v8286 = vunpack.c.l.b16 %v8157
    %v8287 = vunpack.c.l.b16 %v8158
    %v8288 = vunpack.c.l.b16 %v8159
    %v8289 = vunpack.c.l.b16 %v8160
    %v8290 = vunpack.c.l.b16 %v8161
    %v8291 = vunpack.c.l.b16 %v8162
    %v8292 = vunpack.c.l.b16 %v8163
    %v8293 = vunpack.c.l.b16 %v8164
    %v8294 = vunpack.c.l.b16 %v8165
    %v8295 = vunpack.c.l.b16 %v8166
    %v8296 = vunpack.c.l.b16 %v8167
    %v8297 = vunpack.c.l.b16 %v8168
    %v8298 = vunpack.c.l.b16 %v8169
    %v8299 = vunpack.c.l.b16 %v8170
    %v8300 = vunpack.c.l.b16 %v8171
    %v8301 = vunpack.c.l.b16 %v8172
    %v8302 = vunpack.c.l.b16 %v8173
    %v8303 = vunpack.c.l.b16 %v8174
    %v8304 = vunpack.c.l.b16 %v8175
    %v8305 = vunpack.c.l.b16 %v8176
    %v8306 = vunpack.c.l.b16 %v8177
    %v8307 = vunpack.c.l.b16 %v8178
    %v8308 = vunpack.c.l.b16 %v8179
    %v8309 = vunpack.c.l.b16 %v8180
    %v8310 = vunpack.c.l.b16 %v8181
    %v8311 = vunpack.c.l.b16 %v8182
    %v8312 = vunpack.c.l.b16 %v8183
    %v8313 = vunpack.c.l.b16 %v8184
    %v8314 = vunpack.c.l.b16 %v8185
    %v8315 = vunpack.c.l.b16 %v8186
    %v8316 = vunpack.c.l.b16 %v8187
    %v8317 = vunpack.c.l.b16 %v8188
    %v8318 = vunpack.c.l.b16 %v8189
    %v8319 = vunpack.c.l.b16 %v8190
    %v8320 = vunpack.c.l.b16 %v8191
    %v8321 = vunpack.c.l.b16 %v8192
    %v8322 = vunpack.c.l.b16 %v8193
    %v8323 = vunpack.c.l.b16 %v8194
    %v8324 = vunpack.c.l.b16 %v8195
    %v8325 = vunpack.c.l.b16 %v8196
    %v8326 = vunpack.c.l.b16 %v8197
    %v8327 = vunpack.c.l.b16 %v8198
    %v8328 = vunpack.c.l.b16 %v8199
    %v8329 = vunpack.c.l.b16 %v8200
    %v8330 = vunpack.c.l.b16 %v8201
    %v8331 = vunpack.c.l.b16 %v8202
    %v8332 = vunpack.c.l.b16 %v8203
    %v8333 = vunpack.c.l.b16 %v8204
    %v8334 = vunpack.c.l.b16 %v8205
    %v8335 = vunpack.c.l.b16 %v8206
    %v8336 = vunpack.c.l.b16 %v8207
    %v8337 = vunpack.c.l.b16 %v8208
    %v8338 = vunpack.c.l.b16 %v8209
    %v8339 = vunpack.c.l.b16 %v8210
    %v8340 = vunpack.c.l.b16 %v8211
    %v8341 = vunpack.c.l.b16 %v8212
    %v8342 = vunpack.c.l.b16 %v8213
    %v8343 = vpack.c.b16 %v8280, %v8279
    %v8344 = vpack.c.b16 %v8282, %v8281
    %v8345 = vpack.c.b16 %v8284, %v8283
    %v8346 = vpack.c.b16 %v8286, %v8285
    %v8347 = vpack.c.b16 %v8288, %v8287
    %v8348 = vpack.c.b16 %v8290, %v8289
    %v8349 = vpack.c.b16 %v8292, %v8291
    %v8350 = vpack.c.b16 %v8294, %v8293
    %v8351 = vpack.c.b16 %v8296, %v8295
    %v8352 = vpack.c.b16 %v8298, %v8297
    %v8353 = vpack.c.b16 %v8300, %v8299
    %v8354 = vpack.c.b16 %v8302, %v8301
    %v8355 = vpack.c.b16 %v8304, %v8303
    %v8356 = vpack.c.b16 %v8306, %v8305
    %v8357 = vpack.c.b16 %v8308, %v8307
    %v8358 = vpack.c.b16 %v8310, %v8309
    %v8359 = vpack.c.b16 %v8312, %v8311
    %v8360 = vpack.c.b16 %v8314, %v8313
    %v8361 = vpack.c.b16 %v8316, %v8315
    %v8362 = vpack.c.b16 %v8318, %v8317
    %v8363 = vpack.c.b16 %v8320, %v8319
    %v8364 = vpack.c.b16 %v8322, %v8321
    %v8365 = vpack.c.b16 %v8324, %v8323
    %v8366 = vpack.c.b16 %v8326, %v8325
    %v8367 = vpack.c.b16 %v8328, %v8327
    %v8368 = vpack.c.b16 %v8330, %v8329
    %v8369 = vpack.c.b16 %v8332, %v8331
    %v8370 = vpack.c.b16 %v8334, %v8333
    %v8371 = vpack.c.b16 %v8336, %v8335
    %v8372 = vpack.c.b16 %v8338, %v8337
    %v8373 = vpack.c.b16 %v8340, %v8339
    %v8374 = vpack.c.b16 %v8342, %v8341
    %8407 = vmatpush.bf16.msra.mxu0 %v8350
    %8408 = vmatpush.bf16.msra.mxu0 %v8349
    %8409 = vmatpush.bf16.msra.mxu0 %v8348
    %8410 = vmatpush.bf16.msra.mxu0 %v8347
    %8411 = vmatpush.bf16.msra.mxu0 %v8346
    %8412 = vmatpush.bf16.msra.mxu0 %v8345
    %8413 = vmatpush.bf16.msra.mxu0 %v8344
    %8414 = vmatpush.bf16.msra.mxu0 %v8343
    %8415 = vmatmul.bf16.gmra.mxu0 %v8146
    %v8416 = vpop.f32.mrf.mxu0
    %v8417 = vadd.f32 %v8214, %v8416
    %v8418 = vpop.f32.mrf.mxu0
    %8419 = vdwg.mxu0
    %8420 = vmatpush.bf16.msra.mxu0 %v8358
    %8421 = vmatpush.bf16.msra.mxu0 %v8357
    %8422 = vmatpush.bf16.msra.mxu0 %v8356
    %8423 = vmatpush.bf16.msra.mxu0 %v8355
    %8424 = vmatpush.bf16.msra.mxu0 %v8354
    %8425 = vmatpush.bf16.msra.mxu0 %v8353
    %8426 = vmatpush.bf16.msra.mxu0 %v8352
    %8427 = vmatpush.bf16.msra.mxu0 %v8351
    %8428 = vmatmul.bf16.gmra.mxu0 %v8147
    %v8429 = vpop.f32.mrf.mxu0
    %v8430 = vadd.f32 %v8417, %v8429
    %v8431 = vpop.f32.mrf.mxu0
    %8432 = vdwg.mxu0
    %8433 = vmatpush.bf16.msra.mxu0 %v8366
    %8434 = vmatpush.bf16.msra.mxu0 %v8365
    %8435 = vmatpush.bf16.msra.mxu0 %v8364
    %8436 = vmatpush.bf16.msra.mxu0 %v8363
    %8437 = vmatpush.bf16.msra.mxu0 %v8362
    %8438 = vmatpush.bf16.msra.mxu0 %v8361
    %8439 = vmatpush.bf16.msra.mxu0 %v8360
    %8440 = vmatpush.bf16.msra.mxu0 %v8359
    %8441 = vmatmul.bf16.gmra.mxu0 %v8148
    %v8442 = vpop.f32.mrf.mxu0
    %v8443 = vadd.f32 %v8430, %v8442
    %v8444 = vpop.f32.mrf.mxu0
    %8445 = vdwg.mxu0
    %8446 = vmatpush.bf16.msra.mxu0 %v8374
    %8447 = vmatpush.bf16.msra.mxu0 %v8373
    %8448 = vmatpush.bf16.msra.mxu0 %v8372
    %8449 = vmatpush.bf16.msra.mxu0 %v8371
    %8450 = vmatpush.bf16.msra.mxu0 %v8370
    %8451 = vmatpush.bf16.msra.mxu0 %v8369
    %8452 = vmatpush.bf16.msra.mxu0 %v8368
    %8453 = vmatpush.bf16.msra.mxu0 %v8367
    %8454 = vmatmul.bf16.gmra.mxu0 %v8149
    %v8455 = vpop.f32.mrf.mxu0
    %v8456 = vadd.f32 %v8443, %v8455
    %v8457 = vpop.f32.mrf.mxu0
    %8458 = vdwg.mxu0
    %vm8459 = vcmask 139264
    %8460 = vst.msk [vmem:[#allocation5] sm:$0x1] %vm8459, %v8456
    // Predicated region
    $region57: #{forward.1} parent=1 // pred_check
      _
    $region58: #{forward.1} parent=1 // pred_check_branch
      %8462 = sbr.rel (0) target = $region60
    $region59: #{forward.1} parent=1 // pred_region
      %8464 = vsyncadd [#allocation6], 0
      %s8466 = sshll.u32 [#allocation5], 4
      %s8467 = int_to_ptr.vmem [resolvable:$true] %s8466
      %s8468 = sshll.u32 %s10, 4
      %s8469 = int_to_ptr.hbm [resolvable:$true] %s8468
      %8471 = dma.vmem_to_hbm [thread:$0]  %s8467, 16, %s8469, [#allocation6]
    $region60: #{forward.1} parent=1 // pred_fallthru
      _
    // Predicated region
    $region61: #{forward.1} parent=1 // pred_check
      _
    $region62: #{forward.1} parent=1 // pred_check_branch
      %8473 = sbr.rel (0) target = $region64
    $region63: #{forward.1} parent=1 // pred_region
      %8475 = dma.done [#allocation6], 16
    $region64: #{forward.1} parent=1 // pred_fallthru
      _
    %8476 = vsyncpa [#allocation6], 1
  %8477 = vsyncmov [#allocation3]
  %s8478 = vpop.sfrf %8477
  %p8479 = scmp.eq.s32.totalorder %s8478, 0
  %p8480 = pneg %p8479
  %8482 = shalt.err (%p8480)

</llo_original>
